<compile_context>
chip_gen: v7x
topology: tpu7x:2x2x1
jax: 0.10.0
libtpu: 0.0.40
codegen_flags: <defaults>
</compile_context>

<pallas_src>
import math
import jax
import jax.numpy as jnp
from jax.experimental import pallas as pl
from jax.experimental.pallas import tpu as pltpu

# ---- model configuration (small, consistent with the module) ----
MAX_NODE_NUM = 8
MAX_SER_SET = 4
ATT_NUM = 4
EMB_DIM = 128
HEAD_NUM = 8
HEAD_DIM = EMB_DIM // HEAD_NUM
HIDDEN = 128
NODE_DIM = MAX_NODE_NUM + MAX_SER_SET * ATT_NUM          # 24
IN_DIM = NODE_DIM + ATT_NUM                               # 28
IN_DIM_PAD = 32                                           # pad ragged K=28 -> 32

B_TILE = 16                                               # batch elems per grid step
M_ROWS = B_TILE * MAX_NODE_NUM                            # 128 folded rows


def _silu(x):
    return x * jax.nn.sigmoid(x)          # EUP logistic, no f32 divide


def _relu(x):
    return jnp.maximum(x, 0.0)


def mha_decision_kernel(x_ref, mask_ref, amask_ref,
                        w1_ref, b1_ref, w2_ref, b2_ref,
                        wq_ref, bq_ref, wk_ref, bk_ref, wv_ref, bv_ref,
                        wo_ref, bo_ref,
                        w3_ref, b3_ref, w4_ref, b4_ref,
                        prob_ref,
                        e_scr, y_scr):
    # Fold the B_TILE batch elements into the row (sublane) dim so every linear
    # is one 2D MXU matmul; cast operands to bf16, accumulate in f32.
    x = x_ref[...].reshape(M_ROWS, IN_DIM_PAD).astype(jnp.bfloat16)

    # --- init_emb_layer: Linear -> SiLU -> Linear ---
    h = _silu(jnp.dot(x, w1_ref[...], preferred_element_type=jnp.float32) + b1_ref[...])
    e = jnp.dot(h.astype(jnp.bfloat16), w2_ref[...],
                preferred_element_type=jnp.float32) + b2_ref[...]        # (M, E) f32
    e_scr[...] = e                       # park for the residual add (bounds live range)
    e_bf = e.astype(jnp.bfloat16)

    # --- MultiHeadAttention (activation = relu after each linear) ---
    # 1/sqrt(head_dim) is already folded into wq/bq (relu is +-homogeneous).
    q = _relu(jnp.dot(e_bf, wq_ref[...], preferred_element_type=jnp.float32) + bq_ref[...])
    k = _relu(jnp.dot(e_bf, wk_ref[...], preferred_element_type=jnp.float32) + bk_ref[...])
    v = _relu(jnp.dot(e_bf, wv_ref[...], preferred_element_type=jnp.float32) + bv_ref[...])
    q_bf = q.astype(jnp.bfloat16)
    kT_bf = jnp.transpose(k).astype(jnp.bfloat16)   # one (128,128) transpose per step
    v_bf = v.astype(jnp.bfloat16)

    for hd in range(HEAD_NUM):                      # static unroll over 8 heads
        sl = slice(hd * HEAD_DIM, (hd + 1) * HEAD_DIM)
        # scores over the folded rows + precomputed additive block-diagonal mask
        s = jnp.dot(q_bf[:, sl], kT_bf[sl, :],
                    preferred_element_type=jnp.float32) + amask_ref[...]
        m = jnp.max(s, axis=-1, keepdims=True)      # = per-block max (exact)
        p = jnp.exp(s - m)                          # cross-batch entries underflow to 0
        denom = jnp.sum(p, axis=-1, keepdims=True)
        p = p * pl.reciprocal(denom, approx=True)   # EUP slot, ~free
        y_scr[:, sl] = jnp.dot(p.astype(jnp.bfloat16), v_bf[:, sl],
                               preferred_element_type=jnp.float32)

    y = _relu(jnp.dot(y_scr[...].astype(jnp.bfloat16), wo_ref[...],
                      preferred_element_type=jnp.float32) + bo_ref[...])

    # residual connection
    out = y + e_scr[...]

    # --- ser_prob_head: Linear -> SiLU -> Linear ---
    h2 = _silu(jnp.dot(out.astype(jnp.bfloat16), w3_ref[...],
                       preferred_element_type=jnp.float32) + b3_ref[...])
    logits = jnp.dot(h2.astype(jnp.bfloat16), w4_ref[...],
                     preferred_element_type=jnp.float32) + b4_ref[...]   # (M, S)

    # masked_fill(masks == 0, -1e9) then exact softmax for the output probs
    mask = mask_ref[...].reshape(M_ROWS, MAX_SER_SET)
    logits = jnp.where(mask == 0, -1.0e9, logits)
    lm = jnp.max(logits, axis=-1, keepdims=True)
    pe = jnp.exp(logits - lm)
    prob = pe / jnp.sum(pe, axis=-1, keepdims=True)
    prob_ref[...] = prob.reshape(B_TILE, MAX_NODE_NUM, MAX_SER_SET)


def _full_spec(shape):
    ndim = len(shape)
    return pl.BlockSpec(shape, lambda g, _n=ndim: (0,) * _n)


def mha_decision_forward(params, tasks, constraints, masks, key):
    B = tasks.shape[0]
    # constraints.unsqueeze(1).repeat([1, N, 1]) + concat  (glue, plain JAX)
    cons = jnp.broadcast_to(constraints[:, None, :], (B, MAX_NODE_NUM, ATT_NUM))
    x = jnp.concatenate([tasks, cons], axis=-1)                     # (B, N, 28)
    x = jnp.pad(x, ((0, 0), (0, 0), (0, IN_DIM_PAD - IN_DIM)))      # (B, N, 32)

    # Pad the batch to a multiple of B_TILE (padded rows are sliced off below).
    b_pad = int(pl.cdiv(B, B_TILE)) * B_TILE
    if b_pad != B:
        x = jnp.pad(x, ((0, b_pad - B), (0, 0), (0, 0)))
        masks_p = jnp.pad(masks, ((0, b_pad - B), (0, 0), (0, 0)))
    else:
        masks_p = masks

    # Additive block-diagonal attention mask (0 within a batch element, -1e9 across),
    # precomputed once and kept VMEM-resident (64 KiB).
    blk = jnp.arange(M_ROWS, dtype=jnp.int32) // MAX_NODE_NUM
    amask = jnp.where(blk[:, None] == blk[None, :], 0.0, -1.0e9).astype(jnp.float32)

    # Weight prep: fold input-dim padding into w1 (zero rows), fold the softmax
    # scale into wq/bq (exact since relu is positively homogeneous), cast matmul
    # weights to bf16 (biases stay f32; added after f32 accumulation).
    scale = 1.0 / math.sqrt(HEAD_DIM)
    w1 = jnp.pad(params["w1"], ((0, IN_DIM_PAD - IN_DIM), (0, 0)))

    def bf(w):
        return w.astype(jnp.bfloat16)

    weights = [
        bf(w1), params["b1"],
        bf(params["w2"]), params["b2"],
        bf(params["wq"] * scale), params["bq"] * scale,
        bf(params["wk"]), params["bk"],
        bf(params["wv"]), params["bv"],
        bf(params["wo"]), params["bo"],
        bf(params["w3"]), params["b3"],
        bf(params["w4"]), params["b4"],
    ]

    x_spec = pl.BlockSpec((B_TILE, MAX_NODE_NUM, IN_DIM_PAD), lambda g: (g, 0, 0))
    m_spec = pl.BlockSpec((B_TILE, MAX_NODE_NUM, MAX_SER_SET), lambda g: (g, 0, 0))
    o_spec = pl.BlockSpec((B_TILE, MAX_NODE_NUM, MAX_SER_SET), lambda g: (g, 0, 0))

    ser_prob = pl.pallas_call(
        mha_decision_kernel,
        out_shape=jax.ShapeDtypeStruct((b_pad, MAX_NODE_NUM, MAX_SER_SET), jnp.float32),
        grid=(b_pad // B_TILE,),
        in_specs=[x_spec, m_spec, _full_spec(amask.shape)]
                 + [_full_spec(w.shape) for w in weights],
        out_specs=o_spec,
        scratch_shapes=[pltpu.VMEM((M_ROWS, EMB_DIM), jnp.float32),   # e (residual)
                        pltpu.VMEM((M_ROWS, EMB_DIM), jnp.float32)],  # per-head outputs
        compiler_params=pltpu.CompilerParams(dimension_semantics=("parallel",)),
    )(x, masks_p, amask, *weights)
    ser_prob = ser_prob[:B]

    # Categorical sampling + gather of selected probability (glue, plain JAX).
    # TODO(synk): sampling uses jax.random.categorical instead of in-kernel PRNG.
    ser_idx = jax.random.categorical(key, jnp.log(ser_prob + 1e-30), axis=-1)  # (B, N)
    select_prob = jnp.take_along_axis(ser_prob, ser_idx[..., None], axis=-1)[..., 0]
    return ser_idx, select_prob


def init_params(key):
    def linear(k, fan_in, fan_out):
        kw, kb = jax.random.split(k)
        lim = 1.0 / math.sqrt(fan_in)
        w = jax.random.uniform(kw, (fan_in, fan_out), jnp.float32, -lim, lim)
        b = jax.random.uniform(kb, (1, fan_out), jnp.float32, -lim, lim)
        return w, b

    ks = jax.random.split(key, 8)
    p = {}
    p["w1"], p["b1"] = linear(ks[0], IN_DIM, HIDDEN)
    p["w2"], p["b2"] = linear(ks[1], HIDDEN, EMB_DIM)
    p["wq"], p["bq"] = linear(ks[2], EMB_DIM, EMB_DIM)
    p["wk"], p["bk"] = linear(ks[3], EMB_DIM, EMB_DIM)
    p["wv"], p["bv"] = linear(ks[4], EMB_DIM, EMB_DIM)
    p["wo"], p["bo"] = linear(ks[5], EMB_DIM, EMB_DIM)
    p["w3"], p["b3"] = linear(ks[6], EMB_DIM, HIDDEN)
    p["w4"], p["b4"] = linear(ks[7], HIDDEN, MAX_SER_SET)
    return p


if __name__ == "__main__":
    key = jax.random.PRNGKey(0)
    k_tasks, k_cons, k_mask, k_sample, k_params = jax.random.split(key, 5)

    B = 2
    tasks = jax.random.normal(k_tasks, (B, MAX_NODE_NUM, NODE_DIM), jnp.float32)
    constraints = jax.random.normal(k_cons, (B, ATT_NUM), jnp.float32)
    masks = (jax.random.uniform(k_mask, (B, MAX_NODE_NUM, MAX_SER_SET)) < 0.7).astype(jnp.float32)
    masks = masks.at[..., 0].set(1.0)   # ensure at least one valid service per node

    params = init_params(k_params)

    ser_idx, select_prob = mha_decision_forward(params, tasks, constraints, masks, k_sample)
    jax.block_until_ready((ser_idx, select_prob))

    assert ser_idx.shape == (B, MAX_NODE_NUM)
    assert select_prob.shape == (B, MAX_NODE_NUM)
    print("KERNEL_OK")
</pallas_src>

<mosaic_0001>
module attributes {stable_mosaic.version = 11 : i64} {
  func.func @mha_decision_kernel(%arg0: i32, %arg1: memref<16x8x32xf32, #tpu.memory_space<vmem>>, %arg2: memref<16x8x4xf32, #tpu.memory_space<vmem>>, %arg3: memref<128x128xf32, #tpu.memory_space<vmem>>, %arg4: memref<32x128xbf16, #tpu.memory_space<vmem>>, %arg5: memref<1x128xf32, #tpu.memory_space<vmem>>, %arg6: memref<128x128xbf16, #tpu.memory_space<vmem>>, %arg7: memref<1x128xf32, #tpu.memory_space<vmem>>, %arg8: memref<128x128xbf16, #tpu.memory_space<vmem>>, %arg9: memref<1x128xf32, #tpu.memory_space<vmem>>, %arg10: memref<128x128xbf16, #tpu.memory_space<vmem>>, %arg11: memref<1x128xf32, #tpu.memory_space<vmem>>, %arg12: memref<128x128xbf16, #tpu.memory_space<vmem>>, %arg13: memref<1x128xf32, #tpu.memory_space<vmem>>, %arg14: memref<128x128xbf16, #tpu.memory_space<vmem>>, %arg15: memref<1x128xf32, #tpu.memory_space<vmem>>, %arg16: memref<128x128xbf16, #tpu.memory_space<vmem>>, %arg17: memref<1x128xf32, #tpu.memory_space<vmem>>, %arg18: memref<128x4xbf16, #tpu.memory_space<vmem>>, %arg19: memref<1x4xf32, #tpu.memory_space<vmem>>, %arg20: memref<16x8x4xf32, #tpu.memory_space<vmem>>, %arg21: memref<128x128xf32, #tpu.memory_space<vmem>>, %arg22: memref<128x128xf32, #tpu.memory_space<vmem>>) attributes {dimension_semantics = [#tpu.dimension_semantics<parallel>], iteration_bounds = array<i64: 1>, scalar_prefetch = 0 : i64, scratch_operands = 2 : i64, tpu.core_type = #tpu.core_type<tc>, window_params = [{transform_indices = @transform_0, window_bounds = array<i64: 16, 8, 32>}, {transform_indices = @transform_1, window_bounds = array<i64: 16, 8, 4>}, {pipeline_mode = #tpu.pipeline_mode<synchronous>, transform_indices = @transform_2, window_bounds = array<i64: 128, 128>}, {pipeline_mode = #tpu.pipeline_mode<synchronous>, transform_indices = @transform_3, window_bounds = array<i64: 32, 128>}, {pipeline_mode = #tpu.pipeline_mode<synchronous>, transform_indices = @transform_4, window_bounds = array<i64: 1, 128>}, {pipeline_mode = #tpu.pipeline_mode<synchronous>, transform_indices = @transform_5, window_bounds = array<i64: 128, 128>}, {pipeline_mode = #tpu.pipeline_mode<synchronous>, transform_indices = @transform_6, window_bounds = array<i64: 1, 128>}, {pipeline_mode = #tpu.pipeline_mode<synchronous>, transform_indices = @transform_7, window_bounds = array<i64: 128, 128>}, {pipeline_mode = #tpu.pipeline_mode<synchronous>, transform_indices = @transform_8, window_bounds = array<i64: 1, 128>}, {pipeline_mode = #tpu.pipeline_mode<synchronous>, transform_indices = @transform_9, window_bounds = array<i64: 128, 128>}, {pipeline_mode = #tpu.pipeline_mode<synchronous>, transform_indices = @transform_10, window_bounds = array<i64: 1, 128>}, {pipeline_mode = #tpu.pipeline_mode<synchronous>, transform_indices = @transform_11, window_bounds = array<i64: 128, 128>}, {pipeline_mode = #tpu.pipeline_mode<synchronous>, transform_indices = @transform_12, window_bounds = array<i64: 1, 128>}, {pipeline_mode = #tpu.pipeline_mode<synchronous>, transform_indices = @transform_13, window_bounds = array<i64: 128, 128>}, {pipeline_mode = #tpu.pipeline_mode<synchronous>, transform_indices = @transform_14, window_bounds = array<i64: 1, 128>}, {pipeline_mode = #tpu.pipeline_mode<synchronous>, transform_indices = @transform_15, window_bounds = array<i64: 128, 128>}, {pipeline_mode = #tpu.pipeline_mode<synchronous>, transform_indices = @transform_16, window_bounds = array<i64: 1, 128>}, {pipeline_mode = #tpu.pipeline_mode<synchronous>, transform_indices = @transform_17, window_bounds = array<i64: 128, 4>}, {pipeline_mode = #tpu.pipeline_mode<synchronous>, transform_indices = @transform_18, window_bounds = array<i64: 1, 4>}, {transform_indices = @transform_19, window_bounds = array<i64: 16, 8, 4>}]} {
    %c0 = arith.constant 0 : index
    %c0_0 = arith.constant 0 : index
    %c0_1 = arith.constant 0 : index
    %0 = vector.load %arg1[%c0, %c0_0, %c0_1] : memref<16x8x32xf32, #tpu.memory_space<vmem>>, vector<16x8x32xf32>
    %1 = vector.shape_cast %0 : vector<16x8x32xf32> to vector<128x32xf32>
    %2 = arith.truncf %1 : vector<128x32xf32> to vector<128x32xbf16>
    %c0_2 = arith.constant 0 : index
    %c0_3 = arith.constant 0 : index
    %3 = vector.load %arg4[%c0_2, %c0_3] : memref<32x128xbf16, #tpu.memory_space<vmem>>, vector<32x128xbf16>
    %cst = arith.constant dense<0.000000e+00> : vector<128x128xf32>
    %4 = tpu.matmul %2, %3, %cst {dimension_numbers = #tpu.dot_dimension_numbers<[1], [0], [0], [1], [0, 0, 1, 1], [], []>} : vector<128x32xbf16>, vector<32x128xbf16>, vector<128x128xf32> -> vector<128x128xf32>
    %c0_4 = arith.constant 0 : index
    %c0_5 = arith.constant 0 : index
    %5 = vector.load %arg5[%c0_4, %c0_5] : memref<1x128xf32, #tpu.memory_space<vmem>>, vector<1x128xf32>
    %6 = vector.broadcast %5 : vector<1x128xf32> to vector<128x128xf32>
    %7 = arith.addf %4, %6 : vector<128x128xf32>
    %8 = arith.negf %7 : vector<128x128xf32>
    %9 = math.exp %8 : vector<128x128xf32>
    %cst_6 = arith.constant 1.000000e+00 : f32
    %10 = vector.broadcast %cst_6 : f32 to vector<128x128xf32>
    %11 = arith.addf %10, %9 : vector<128x128xf32>
    %12 = arith.divf %10, %11 : vector<128x128xf32>
    %13 = arith.mulf %7, %12 : vector<128x128xf32>
    %14 = arith.truncf %13 : vector<128x128xf32> to vector<128x128xbf16>
    %c0_7 = arith.constant 0 : index
    %c0_8 = arith.constant 0 : index
    %15 = vector.load %arg6[%c0_7, %c0_8] : memref<128x128xbf16, #tpu.memory_space<vmem>>, vector<128x128xbf16>
    %cst_9 = arith.constant dense<0.000000e+00> : vector<128x128xf32>
    %16 = tpu.matmul %14, %15, %cst_9 {dimension_numbers = #tpu.dot_dimension_numbers<[1], [0], [0], [1], [0, 0, 1, 1], [], []>} : vector<128x128xbf16>, vector<128x128xbf16>, vector<128x128xf32> -> vector<128x128xf32>
    %c0_10 = arith.constant 0 : index
    %c0_11 = arith.constant 0 : index
    %17 = vector.load %arg7[%c0_10, %c0_11] : memref<1x128xf32, #tpu.memory_space<vmem>>, vector<1x128xf32>
    %18 = vector.broadcast %17 : vector<1x128xf32> to vector<128x128xf32>
    %19 = arith.addf %16, %18 : vector<128x128xf32>
    %c0_12 = arith.constant 0 : index
    %c0_13 = arith.constant 0 : index
    %20 = vector.load %arg21[%c0_12, %c0_13] : memref<128x128xf32, #tpu.memory_space<vmem>>, vector<128x128xf32>
    tpu.vector_store %arg21[%c0_12, %c0_13], %19 {strides = array<i32>} : memref<128x128xf32, #tpu.memory_space<vmem>>, vector<128x128xf32>,
    %21 = arith.truncf %19 : vector<128x128xf32> to vector<128x128xbf16>
    %c0_14 = arith.constant 0 : index
    %c0_15 = arith.constant 0 : index
    %22 = vector.load %arg8[%c0_14, %c0_15] : memref<128x128xbf16, #tpu.memory_space<vmem>>, vector<128x128xbf16>
    %cst_16 = arith.constant dense<0.000000e+00> : vector<128x128xf32>
    %23 = tpu.matmul %21, %22, %cst_16 {dimension_numbers = #tpu.dot_dimension_numbers<[1], [0], [0], [1], [0, 0, 1, 1], [], []>} : vector<128x128xbf16>, vector<128x128xbf16>, vector<128x128xf32> -> vector<128x128xf32>
    %c0_17 = arith.constant 0 : index
    %c0_18 = arith.constant 0 : index
    %24 = vector.load %arg9[%c0_17, %c0_18] : memref<1x128xf32, #tpu.memory_space<vmem>>, vector<1x128xf32>
    %25 = vector.broadcast %24 : vector<1x128xf32> to vector<128x128xf32>
    %26 = arith.addf %23, %25 : vector<128x128xf32>
    %cst_19 = arith.constant 0.000000e+00 : f32
    %27 = vector.broadcast %cst_19 : f32 to vector<128x128xf32>
    %28 = arith.maximumf %26, %27 : vector<128x128xf32>
    %c0_20 = arith.constant 0 : index
    %c0_21 = arith.constant 0 : index
    %29 = vector.load %arg10[%c0_20, %c0_21] : memref<128x128xbf16, #tpu.memory_space<vmem>>, vector<128x128xbf16>
    %cst_22 = arith.constant dense<0.000000e+00> : vector<128x128xf32>
    %30 = tpu.matmul %21, %29, %cst_22 {dimension_numbers = #tpu.dot_dimension_numbers<[1], [0], [0], [1], [0, 0, 1, 1], [], []>} : vector<128x128xbf16>, vector<128x128xbf16>, vector<128x128xf32> -> vector<128x128xf32>
    %c0_23 = arith.constant 0 : index
    %c0_24 = arith.constant 0 : index
    %31 = vector.load %arg11[%c0_23, %c0_24] : memref<1x128xf32, #tpu.memory_space<vmem>>, vector<1x128xf32>
    %32 = vector.broadcast %31 : vector<1x128xf32> to vector<128x128xf32>
    %33 = arith.addf %30, %32 : vector<128x128xf32>
    %cst_25 = arith.constant 0.000000e+00 : f32
    %34 = vector.broadcast %cst_25 : f32 to vector<128x128xf32>
    %35 = arith.maximumf %33, %34 : vector<128x128xf32>
    %c0_26 = arith.constant 0 : index
    %c0_27 = arith.constant 0 : index
    %36 = vector.load %arg12[%c0_26, %c0_27] : memref<128x128xbf16, #tpu.memory_space<vmem>>, vector<128x128xbf16>
    %cst_28 = arith.constant dense<0.000000e+00> : vector<128x128xf32>
    %37 = tpu.matmul %21, %36, %cst_28 {dimension_numbers = #tpu.dot_dimension_numbers<[1], [0], [0], [1], [0, 0, 1, 1], [], []>} : vector<128x128xbf16>, vector<128x128xbf16>, vector<128x128xf32> -> vector<128x128xf32>
    %c0_29 = arith.constant 0 : index
    %c0_30 = arith.constant 0 : index
    %38 = vector.load %arg13[%c0_29, %c0_30] : memref<1x128xf32, #tpu.memory_space<vmem>>, vector<1x128xf32>
    %39 = vector.broadcast %38 : vector<1x128xf32> to vector<128x128xf32>
    %40 = arith.addf %37, %39 : vector<128x128xf32>
    %cst_31 = arith.constant 0.000000e+00 : f32
    %41 = vector.broadcast %cst_31 : f32 to vector<128x128xf32>
    %42 = arith.maximumf %40, %41 : vector<128x128xf32>
    %43 = arith.truncf %28 : vector<128x128xf32> to vector<128x128xbf16>
    %44 = tpu.transpose %35, [1, 0] : vector<128x128xf32> -> vector<128x128xf32>
    %45 = arith.truncf %44 : vector<128x128xf32> to vector<128x128xbf16>
    %46 = arith.truncf %42 : vector<128x128xf32> to vector<128x128xbf16>
    %47 = vector.extract_strided_slice %43 {offsets = [0, 0], sizes = [128, 16], strides = [1, 1]} : vector<128x128xbf16> to vector<128x16xbf16>
    %48 = vector.extract_strided_slice %45 {offsets = [0, 0], sizes = [16, 128], strides = [1, 1]} : vector<128x128xbf16> to vector<16x128xbf16>
    %cst_32 = arith.constant dense<0.000000e+00> : vector<128x128xf32>
    %49 = tpu.matmul %47, %48, %cst_32 {dimension_numbers = #tpu.dot_dimension_numbers<[1], [0], [0], [1], [0, 0, 1, 1], [], []>} : vector<128x16xbf16>, vector<16x128xbf16>, vector<128x128xf32> -> vector<128x128xf32>
    %c0_33 = arith.constant 0 : index
    %c0_34 = arith.constant 0 : index
    %50 = vector.load %arg3[%c0_33, %c0_34] : memref<128x128xf32, #tpu.memory_space<vmem>>, vector<128x128xf32>
    %51 = arith.addf %49, %50 : vector<128x128xf32>
    %cst_35 = arith.constant dense<0xFF800000> : vector<128xf32>
    %52 = vector.multi_reduction <maximumf>, %51, %cst_35 [1] : vector<128x128xf32> to vector<128xf32>
    %53 = vector.shape_cast %52 : vector<128xf32> to vector<128x1xf32>
    %54 = vector.broadcast %53 : vector<128x1xf32> to vector<128x128xf32>
    %55 = arith.subf %51, %54 : vector<128x128xf32>
    %56 = math.exp %55 : vector<128x128xf32>
    %cst_36 = arith.constant dense<0.000000e+00> : vector<128xf32>
    %57 = vector.multi_reduction <add>, %56, %cst_36 [1] : vector<128x128xf32> to vector<128xf32>
    %58 = vector.shape_cast %57 : vector<128xf32> to vector<128x1xf32>
    %59 = tpu.reciprocal %58 {approx = true} : vector<128x1xf32> -> vector<128x1xf32>
    %60 = vector.broadcast %59 : vector<128x1xf32> to vector<128x128xf32>
    %61 = arith.mulf %56, %60 : vector<128x128xf32>
    %62 = arith.truncf %61 : vector<128x128xf32> to vector<128x128xbf16>
    %63 = vector.extract_strided_slice %46 {offsets = [0, 0], sizes = [128, 16], strides = [1, 1]} : vector<128x128xbf16> to vector<128x16xbf16>
    %cst_37 = arith.constant dense<0.000000e+00> : vector<128x16xf32>
    %64 = tpu.matmul %62, %63, %cst_37 {dimension_numbers = #tpu.dot_dimension_numbers<[1], [0], [0], [1], [0, 0, 1, 1], [], []>} : vector<128x128xbf16>, vector<128x16xbf16>, vector<128x16xf32> -> vector<128x16xf32>
    %c0_38 = arith.constant 0 : index
    %c0_39 = arith.constant 0 : index
    %65 = vector.load %arg22[%c0_38, %c0_39] : memref<128x128xf32, #tpu.memory_space<vmem>>, vector<128x16xf32>
    tpu.vector_store %arg22[%c0_38, %c0_39], %64 {strides = array<i32>} : memref<128x128xf32, #tpu.memory_space<vmem>>, vector<128x16xf32>,
    %66 = vector.extract_strided_slice %43 {offsets = [0, 16], sizes = [128, 16], strides = [1, 1]} : vector<128x128xbf16> to vector<128x16xbf16>
    %67 = vector.extract_strided_slice %45 {offsets = [16, 0], sizes = [16, 128], strides = [1, 1]} : vector<128x128xbf16> to vector<16x128xbf16>
    %cst_40 = arith.constant dense<0.000000e+00> : vector<128x128xf32>
    %68 = tpu.matmul %66, %67, %cst_40 {dimension_numbers = #tpu.dot_dimension_numbers<[1], [0], [0], [1], [0, 0, 1, 1], [], []>} : vector<128x16xbf16>, vector<16x128xbf16>, vector<128x128xf32> -> vector<128x128xf32>
    %c0_41 = arith.constant 0 : index
    %c0_42 = arith.constant 0 : index
    %69 = vector.load %arg3[%c0_41, %c0_42] : memref<128x128xf32, #tpu.memory_space<vmem>>, vector<128x128xf32>
    %70 = arith.addf %68, %69 : vector<128x128xf32>
    %cst_43 = arith.constant dense<0xFF800000> : vector<128xf32>
    %71 = vector.multi_reduction <maximumf>, %70, %cst_43 [1] : vector<128x128xf32> to vector<128xf32>
    %72 = vector.shape_cast %71 : vector<128xf32> to vector<128x1xf32>
    %73 = vector.broadcast %72 : vector<128x1xf32> to vector<128x128xf32>
    %74 = arith.subf %70, %73 : vector<128x128xf32>
    %75 = math.exp %74 : vector<128x128xf32>
    %cst_44 = arith.constant dense<0.000000e+00> : vector<128xf32>
    %76 = vector.multi_reduction <add>, %75, %cst_44 [1] : vector<128x128xf32> to vector<128xf32>
    %77 = vector.shape_cast %76 : vector<128xf32> to vector<128x1xf32>
    %78 = tpu.reciprocal %77 {approx = true} : vector<128x1xf32> -> vector<128x1xf32>
    %79 = vector.broadcast %78 : vector<128x1xf32> to vector<128x128xf32>
    %80 = arith.mulf %75, %79 : vector<128x128xf32>
    %81 = arith.truncf %80 : vector<128x128xf32> to vector<128x128xbf16>
    %82 = vector.extract_strided_slice %46 {offsets = [0, 16], sizes = [128, 16], strides = [1, 1]} : vector<128x128xbf16> to vector<128x16xbf16>
    %cst_45 = arith.constant dense<0.000000e+00> : vector<128x16xf32>
    %83 = tpu.matmul %81, %82, %cst_45 {dimension_numbers = #tpu.dot_dimension_numbers<[1], [0], [0], [1], [0, 0, 1, 1], [], []>} : vector<128x128xbf16>, vector<128x16xbf16>, vector<128x16xf32> -> vector<128x16xf32>
    %c0_46 = arith.constant 0 : index
    %c16 = arith.constant 16 : index
    %84 = vector.load %arg22[%c0_46, %c16] : memref<128x128xf32, #tpu.memory_space<vmem>>, vector<128x16xf32>
    tpu.vector_store %arg22[%c0_46, %c16], %83 {strides = array<i32>} : memref<128x128xf32, #tpu.memory_space<vmem>>, vector<128x16xf32>,
    %85 = vector.extract_strided_slice %43 {offsets = [0, 32], sizes = [128, 16], strides = [1, 1]} : vector<128x128xbf16> to vector<128x16xbf16>
    %86 = vector.extract_strided_slice %45 {offsets = [32, 0], sizes = [16, 128], strides = [1, 1]} : vector<128x128xbf16> to vector<16x128xbf16>
    %cst_47 = arith.constant dense<0.000000e+00> : vector<128x128xf32>
    %87 = tpu.matmul %85, %86, %cst_47 {dimension_numbers = #tpu.dot_dimension_numbers<[1], [0], [0], [1], [0, 0, 1, 1], [], []>} : vector<128x16xbf16>, vector<16x128xbf16>, vector<128x128xf32> -> vector<128x128xf32>
    %c0_48 = arith.constant 0 : index
    %c0_49 = arith.constant 0 : index
    %88 = vector.load %arg3[%c0_48, %c0_49] : memref<128x128xf32, #tpu.memory_space<vmem>>, vector<128x128xf32>
    %89 = arith.addf %87, %88 : vector<128x128xf32>
    %cst_50 = arith.constant dense<0xFF800000> : vector<128xf32>
    %90 = vector.multi_reduction <maximumf>, %89, %cst_50 [1] : vector<128x128xf32> to vector<128xf32>
    %91 = vector.shape_cast %90 : vector<128xf32> to vector<128x1xf32>
    %92 = vector.broadcast %91 : vector<128x1xf32> to vector<128x128xf32>
    %93 = arith.subf %89, %92 : vector<128x128xf32>
    %94 = math.exp %93 : vector<128x128xf32>
    %cst_51 = arith.constant dense<0.000000e+00> : vector<128xf32>
    %95 = vector.multi_reduction <add>, %94, %cst_51 [1] : vector<128x128xf32> to vector<128xf32>
    %96 = vector.shape_cast %95 : vector<128xf32> to vector<128x1xf32>
    %97 = tpu.reciprocal %96 {approx = true} : vector<128x1xf32> -> vector<128x1xf32>
    %98 = vector.broadcast %97 : vector<128x1xf32> to vector<128x128xf32>
    %99 = arith.mulf %94, %98 : vector<128x128xf32>
    %100 = arith.truncf %99 : vector<128x128xf32> to vector<128x128xbf16>
    %101 = vector.extract_strided_slice %46 {offsets = [0, 32], sizes = [128, 16], strides = [1, 1]} : vector<128x128xbf16> to vector<128x16xbf16>
    %cst_52 = arith.constant dense<0.000000e+00> : vector<128x16xf32>
    %102 = tpu.matmul %100, %101, %cst_52 {dimension_numbers = #tpu.dot_dimension_numbers<[1], [0], [0], [1], [0, 0, 1, 1], [], []>} : vector<128x128xbf16>, vector<128x16xbf16>, vector<128x16xf32> -> vector<128x16xf32>
    %c0_53 = arith.constant 0 : index
    %c32 = arith.constant 32 : index
    %103 = vector.load %arg22[%c0_53, %c32] : memref<128x128xf32, #tpu.memory_space<vmem>>, vector<128x16xf32>
    tpu.vector_store %arg22[%c0_53, %c32], %102 {strides = array<i32>} : memref<128x128xf32, #tpu.memory_space<vmem>>, vector<128x16xf32>,
    %104 = vector.extract_strided_slice %43 {offsets = [0, 48], sizes = [128, 16], strides = [1, 1]} : vector<128x128xbf16> to vector<128x16xbf16>
    %105 = vector.extract_strided_slice %45 {offsets = [48, 0], sizes = [16, 128], strides = [1, 1]} : vector<128x128xbf16> to vector<16x128xbf16>
    %cst_54 = arith.constant dense<0.000000e+00> : vector<128x128xf32>
    %106 = tpu.matmul %104, %105, %cst_54 {dimension_numbers = #tpu.dot_dimension_numbers<[1], [0], [0], [1], [0, 0, 1, 1], [], []>} : vector<128x16xbf16>, vector<16x128xbf16>, vector<128x128xf32> -> vector<128x128xf32>
    %c0_55 = arith.constant 0 : index
    %c0_56 = arith.constant 0 : index
    %107 = vector.load %arg3[%c0_55, %c0_56] : memref<128x128xf32, #tpu.memory_space<vmem>>, vector<128x128xf32>
    %108 = arith.addf %106, %107 : vector<128x128xf32>
    %cst_57 = arith.constant dense<0xFF800000> : vector<128xf32>
    %109 = vector.multi_reduction <maximumf>, %108, %cst_57 [1] : vector<128x128xf32> to vector<128xf32>
    %110 = vector.shape_cast %109 : vector<128xf32> to vector<128x1xf32>
    %111 = vector.broadcast %110 : vector<128x1xf32> to vector<128x128xf32>
    %112 = arith.subf %108, %111 : vector<128x128xf32>
    %113 = math.exp %112 : vector<128x128xf32>
    %cst_58 = arith.constant dense<0.000000e+00> : vector<128xf32>
    %114 = vector.multi_reduction <add>, %113, %cst_58 [1] : vector<128x128xf32> to vector<128xf32>
    %115 = vector.shape_cast %114 : vector<128xf32> to vector<128x1xf32>
    %116 = tpu.reciprocal %115 {approx = true} : vector<128x1xf32> -> vector<128x1xf32>
    %117 = vector.broadcast %116 : vector<128x1xf32> to vector<128x128xf32>
    %118 = arith.mulf %113, %117 : vector<128x128xf32>
    %119 = arith.truncf %118 : vector<128x128xf32> to vector<128x128xbf16>
    %120 = vector.extract_strided_slice %46 {offsets = [0, 48], sizes = [128, 16], strides = [1, 1]} : vector<128x128xbf16> to vector<128x16xbf16>
    %cst_59 = arith.constant dense<0.000000e+00> : vector<128x16xf32>
    %121 = tpu.matmul %119, %120, %cst_59 {dimension_numbers = #tpu.dot_dimension_numbers<[1], [0], [0], [1], [0, 0, 1, 1], [], []>} : vector<128x128xbf16>, vector<128x16xbf16>, vector<128x16xf32> -> vector<128x16xf32>
    %c0_60 = arith.constant 0 : index
    %c48 = arith.constant 48 : index
    %122 = vector.load %arg22[%c0_60, %c48] : memref<128x128xf32, #tpu.memory_space<vmem>>, vector<128x16xf32>
    tpu.vector_store %arg22[%c0_60, %c48], %121 {strides = array<i32>} : memref<128x128xf32, #tpu.memory_space<vmem>>, vector<128x16xf32>,
    %123 = vector.extract_strided_slice %43 {offsets = [0, 64], sizes = [128, 16], strides = [1, 1]} : vector<128x128xbf16> to vector<128x16xbf16>
    %124 = vector.extract_strided_slice %45 {offsets = [64, 0], sizes = [16, 128], strides = [1, 1]} : vector<128x128xbf16> to vector<16x128xbf16>
    %cst_61 = arith.constant dense<0.000000e+00> : vector<128x128xf32>
    %125 = tpu.matmul %123, %124, %cst_61 {dimension_numbers = #tpu.dot_dimension_numbers<[1], [0], [0], [1], [0, 0, 1, 1], [], []>} : vector<128x16xbf16>, vector<16x128xbf16>, vector<128x128xf32> -> vector<128x128xf32>
    %c0_62 = arith.constant 0 : index
    %c0_63 = arith.constant 0 : index
    %126 = vector.load %arg3[%c0_62, %c0_63] : memref<128x128xf32, #tpu.memory_space<vmem>>, vector<128x128xf32>
    %127 = arith.addf %125, %126 : vector<128x128xf32>
    %cst_64 = arith.constant dense<0xFF800000> : vector<128xf32>
    %128 = vector.multi_reduction <maximumf>, %127, %cst_64 [1] : vector<128x128xf32> to vector<128xf32>
    %129 = vector.shape_cast %128 : vector<128xf32> to vector<128x1xf32>
    %130 = vector.broadcast %129 : vector<128x1xf32> to vector<128x128xf32>
    %131 = arith.subf %127, %130 : vector<128x128xf32>
    %132 = math.exp %131 : vector<128x128xf32>
    %cst_65 = arith.constant dense<0.000000e+00> : vector<128xf32>
    %133 = vector.multi_reduction <add>, %132, %cst_65 [1] : vector<128x128xf32> to vector<128xf32>
    %134 = vector.shape_cast %133 : vector<128xf32> to vector<128x1xf32>
    %135 = tpu.reciprocal %134 {approx = true} : vector<128x1xf32> -> vector<128x1xf32>
    %136 = vector.broadcast %135 : vector<128x1xf32> to vector<128x128xf32>
    %137 = arith.mulf %132, %136 : vector<128x128xf32>
    %138 = arith.truncf %137 : vector<128x128xf32> to vector<128x128xbf16>
    %139 = vector.extract_strided_slice %46 {offsets = [0, 64], sizes = [128, 16], strides = [1, 1]} : vector<128x128xbf16> to vector<128x16xbf16>
    %cst_66 = arith.constant dense<0.000000e+00> : vector<128x16xf32>
    %140 = tpu.matmul %138, %139, %cst_66 {dimension_numbers = #tpu.dot_dimension_numbers<[1], [0], [0], [1], [0, 0, 1, 1], [], []>} : vector<128x128xbf16>, vector<128x16xbf16>, vector<128x16xf32> -> vector<128x16xf32>
    %c0_67 = arith.constant 0 : index
    %c64 = arith.constant 64 : index
    %141 = vector.load %arg22[%c0_67, %c64] : memref<128x128xf32, #tpu.memory_space<vmem>>, vector<128x16xf32>
    tpu.vector_store %arg22[%c0_67, %c64], %140 {strides = array<i32>} : memref<128x128xf32, #tpu.memory_space<vmem>>, vector<128x16xf32>,
    %142 = vector.extract_strided_slice %43 {offsets = [0, 80], sizes = [128, 16], strides = [1, 1]} : vector<128x128xbf16> to vector<128x16xbf16>
    %143 = vector.extract_strided_slice %45 {offsets = [80, 0], sizes = [16, 128], strides = [1, 1]} : vector<128x128xbf16> to vector<16x128xbf16>
    %cst_68 = arith.constant dense<0.000000e+00> : vector<128x128xf32>
    %144 = tpu.matmul %142, %143, %cst_68 {dimension_numbers = #tpu.dot_dimension_numbers<[1], [0], [0], [1], [0, 0, 1, 1], [], []>} : vector<128x16xbf16>, vector<16x128xbf16>, vector<128x128xf32> -> vector<128x128xf32>
    %c0_69 = arith.constant 0 : index
    %c0_70 = arith.constant 0 : index
    %145 = vector.load %arg3[%c0_69, %c0_70] : memref<128x128xf32, #tpu.memory_space<vmem>>, vector<128x128xf32>
    %146 = arith.addf %144, %145 : vector<128x128xf32>
    %cst_71 = arith.constant dense<0xFF800000> : vector<128xf32>
    %147 = vector.multi_reduction <maximumf>, %146, %cst_71 [1] : vector<128x128xf32> to vector<128xf32>
    %148 = vector.shape_cast %147 : vector<128xf32> to vector<128x1xf32>
    %149 = vector.broadcast %148 : vector<128x1xf32> to vector<128x128xf32>
    %150 = arith.subf %146, %149 : vector<128x128xf32>
    %151 = math.exp %150 : vector<128x128xf32>
    %cst_72 = arith.constant dense<0.000000e+00> : vector<128xf32>
    %152 = vector.multi_reduction <add>, %151, %cst_72 [1] : vector<128x128xf32> to vector<128xf32>
    %153 = vector.shape_cast %152 : vector<128xf32> to vector<128x1xf32>
    %154 = tpu.reciprocal %153 {approx = true} : vector<128x1xf32> -> vector<128x1xf32>
    %155 = vector.broadcast %154 : vector<128x1xf32> to vector<128x128xf32>
    %156 = arith.mulf %151, %155 : vector<128x128xf32>
    %157 = arith.truncf %156 : vector<128x128xf32> to vector<128x128xbf16>
    %158 = vector.extract_strided_slice %46 {offsets = [0, 80], sizes = [128, 16], strides = [1, 1]} : vector<128x128xbf16> to vector<128x16xbf16>
    %cst_73 = arith.constant dense<0.000000e+00> : vector<128x16xf32>
    %159 = tpu.matmul %157, %158, %cst_73 {dimension_numbers = #tpu.dot_dimension_numbers<[1], [0], [0], [1], [0, 0, 1, 1], [], []>} : vector<128x128xbf16>, vector<128x16xbf16>, vector<128x16xf32> -> vector<128x16xf32>
    %c0_74 = arith.constant 0 : index
    %c80 = arith.constant 80 : index
    %160 = vector.load %arg22[%c0_74, %c80] : memref<128x128xf32, #tpu.memory_space<vmem>>, vector<128x16xf32>
    tpu.vector_store %arg22[%c0_74, %c80], %159 {strides = array<i32>} : memref<128x128xf32, #tpu.memory_space<vmem>>, vector<128x16xf32>,
    %161 = vector.extract_strided_slice %43 {offsets = [0, 96], sizes = [128, 16], strides = [1, 1]} : vector<128x128xbf16> to vector<128x16xbf16>
    %162 = vector.extract_strided_slice %45 {offsets = [96, 0], sizes = [16, 128], strides = [1, 1]} : vector<128x128xbf16> to vector<16x128xbf16>
    %cst_75 = arith.constant dense<0.000000e+00> : vector<128x128xf32>
    %163 = tpu.matmul %161, %162, %cst_75 {dimension_numbers = #tpu.dot_dimension_numbers<[1], [0], [0], [1], [0, 0, 1, 1], [], []>} : vector<128x16xbf16>, vector<16x128xbf16>, vector<128x128xf32> -> vector<128x128xf32>
    %c0_76 = arith.constant 0 : index
    %c0_77 = arith.constant 0 : index
    %164 = vector.load %arg3[%c0_76, %c0_77] : memref<128x128xf32, #tpu.memory_space<vmem>>, vector<128x128xf32>
    %165 = arith.addf %163, %164 : vector<128x128xf32>
    %cst_78 = arith.constant dense<0xFF800000> : vector<128xf32>
    %166 = vector.multi_reduction <maximumf>, %165, %cst_78 [1] : vector<128x128xf32> to vector<128xf32>
    %167 = vector.shape_cast %166 : vector<128xf32> to vector<128x1xf32>
    %168 = vector.broadcast %167 : vector<128x1xf32> to vector<128x128xf32>
    %169 = arith.subf %165, %168 : vector<128x128xf32>
    %170 = math.exp %169 : vector<128x128xf32>
    %cst_79 = arith.constant dense<0.000000e+00> : vector<128xf32>
    %171 = vector.multi_reduction <add>, %170, %cst_79 [1] : vector<128x128xf32> to vector<128xf32>
    %172 = vector.shape_cast %171 : vector<128xf32> to vector<128x1xf32>
    %173 = tpu.reciprocal %172 {approx = true} : vector<128x1xf32> -> vector<128x1xf32>
    %174 = vector.broadcast %173 : vector<128x1xf32> to vector<128x128xf32>
    %175 = arith.mulf %170, %174 : vector<128x128xf32>
    %176 = arith.truncf %175 : vector<128x128xf32> to vector<128x128xbf16>
    %177 = vector.extract_strided_slice %46 {offsets = [0, 96], sizes = [128, 16], strides = [1, 1]} : vector<128x128xbf16> to vector<128x16xbf16>
    %cst_80 = arith.constant dense<0.000000e+00> : vector<128x16xf32>
    %178 = tpu.matmul %176, %177, %cst_80 {dimension_numbers = #tpu.dot_dimension_numbers<[1], [0], [0], [1], [0, 0, 1, 1], [], []>} : vector<128x128xbf16>, vector<128x16xbf16>, vector<128x16xf32> -> vector<128x16xf32>
    %c0_81 = arith.constant 0 : index
    %c96 = arith.constant 96 : index
    %179 = vector.load %arg22[%c0_81, %c96] : memref<128x128xf32, #tpu.memory_space<vmem>>, vector<128x16xf32>
    tpu.vector_store %arg22[%c0_81, %c96], %178 {strides = array<i32>} : memref<128x128xf32, #tpu.memory_space<vmem>>, vector<128x16xf32>,
    %180 = vector.extract_strided_slice %43 {offsets = [0, 112], sizes = [128, 16], strides = [1, 1]} : vector<128x128xbf16> to vector<128x16xbf16>
    %181 = vector.extract_strided_slice %45 {offsets = [112, 0], sizes = [16, 128], strides = [1, 1]} : vector<128x128xbf16> to vector<16x128xbf16>
    %cst_82 = arith.constant dense<0.000000e+00> : vector<128x128xf32>
    %182 = tpu.matmul %180, %181, %cst_82 {dimension_numbers = #tpu.dot_dimension_numbers<[1], [0], [0], [1], [0, 0, 1, 1], [], []>} : vector<128x16xbf16>, vector<16x128xbf16>, vector<128x128xf32> -> vector<128x128xf32>
    %c0_83 = arith.constant 0 : index
    %c0_84 = arith.constant 0 : index
    %183 = vector.load %arg3[%c0_83, %c0_84] : memref<128x128xf32, #tpu.memory_space<vmem>>, vector<128x128xf32>
    %184 = arith.addf %182, %183 : vector<128x128xf32>
    %cst_85 = arith.constant dense<0xFF800000> : vector<128xf32>
    %185 = vector.multi_reduction <maximumf>, %184, %cst_85 [1] : vector<128x128xf32> to vector<128xf32>
    %186 = vector.shape_cast %185 : vector<128xf32> to vector<128x1xf32>
    %187 = vector.broadcast %186 : vector<128x1xf32> to vector<128x128xf32>
    %188 = arith.subf %184, %187 : vector<128x128xf32>
    %189 = math.exp %188 : vector<128x128xf32>
    %cst_86 = arith.constant dense<0.000000e+00> : vector<128xf32>
    %190 = vector.multi_reduction <add>, %189, %cst_86 [1] : vector<128x128xf32> to vector<128xf32>
    %191 = vector.shape_cast %190 : vector<128xf32> to vector<128x1xf32>
    %192 = tpu.reciprocal %191 {approx = true} : vector<128x1xf32> -> vector<128x1xf32>
    %193 = vector.broadcast %192 : vector<128x1xf32> to vector<128x128xf32>
    %194 = arith.mulf %189, %193 : vector<128x128xf32>
    %195 = arith.truncf %194 : vector<128x128xf32> to vector<128x128xbf16>
    %196 = vector.extract_strided_slice %46 {offsets = [0, 112], sizes = [128, 16], strides = [1, 1]} : vector<128x128xbf16> to vector<128x16xbf16>
    %cst_87 = arith.constant dense<0.000000e+00> : vector<128x16xf32>
    %197 = tpu.matmul %195, %196, %cst_87 {dimension_numbers = #tpu.dot_dimension_numbers<[1], [0], [0], [1], [0, 0, 1, 1], [], []>} : vector<128x128xbf16>, vector<128x16xbf16>, vector<128x16xf32> -> vector<128x16xf32>
    %c0_88 = arith.constant 0 : index
    %c112 = arith.constant 112 : index
    %198 = vector.load %arg22[%c0_88, %c112] : memref<128x128xf32, #tpu.memory_space<vmem>>, vector<128x16xf32>
    tpu.vector_store %arg22[%c0_88, %c112], %197 {strides = array<i32>} : memref<128x128xf32, #tpu.memory_space<vmem>>, vector<128x16xf32>,
    %c0_89 = arith.constant 0 : index
    %c0_90 = arith.constant 0 : index
    %199 = vector.load %arg22[%c0_89, %c0_90] : memref<128x128xf32, #tpu.memory_space<vmem>>, vector<128x128xf32>
    %200 = arith.truncf %199 : vector<128x128xf32> to vector<128x128xbf16>
    %c0_91 = arith.constant 0 : index
    %c0_92 = arith.constant 0 : index
    %201 = vector.load %arg14[%c0_91, %c0_92] : memref<128x128xbf16, #tpu.memory_space<vmem>>, vector<128x128xbf16>
    %cst_93 = arith.constant dense<0.000000e+00> : vector<128x128xf32>
    %202 = tpu.matmul %200, %201, %cst_93 {dimension_numbers = #tpu.dot_dimension_numbers<[1], [0], [0], [1], [0, 0, 1, 1], [], []>} : vector<128x128xbf16>, vector<128x128xbf16>, vector<128x128xf32> -> vector<128x128xf32>
    %c0_94 = arith.constant 0 : index
    %c0_95 = arith.constant 0 : index
    %203 = vector.load %arg15[%c0_94, %c0_95] : memref<1x128xf32, #tpu.memory_space<vmem>>, vector<1x128xf32>
    %204 = vector.broadcast %203 : vector<1x128xf32> to vector<128x128xf32>
    %205 = arith.addf %202, %204 : vector<128x128xf32>
    %cst_96 = arith.constant 0.000000e+00 : f32
    %206 = vector.broadcast %cst_96 : f32 to vector<128x128xf32>
    %207 = arith.maximumf %205, %206 : vector<128x128xf32>
    %c0_97 = arith.constant 0 : index
    %c0_98 = arith.constant 0 : index
    %208 = vector.load %arg21[%c0_97, %c0_98] : memref<128x128xf32, #tpu.memory_space<vmem>>, vector<128x128xf32>
    %209 = arith.addf %207, %208 : vector<128x128xf32>
    %210 = arith.truncf %209 : vector<128x128xf32> to vector<128x128xbf16>
    %c0_99 = arith.constant 0 : index
    %c0_100 = arith.constant 0 : index
    %211 = vector.load %arg16[%c0_99, %c0_100] : memref<128x128xbf16, #tpu.memory_space<vmem>>, vector<128x128xbf16>
    %cst_101 = arith.constant dense<0.000000e+00> : vector<128x128xf32>
    %212 = tpu.matmul %210, %211, %cst_101 {dimension_numbers = #tpu.dot_dimension_numbers<[1], [0], [0], [1], [0, 0, 1, 1], [], []>} : vector<128x128xbf16>, vector<128x128xbf16>, vector<128x128xf32> -> vector<128x128xf32>
    %c0_102 = arith.constant 0 : index
    %c0_103 = arith.constant 0 : index
    %213 = vector.load %arg17[%c0_102, %c0_103] : memref<1x128xf32, #tpu.memory_space<vmem>>, vector<1x128xf32>
    %214 = vector.broadcast %213 : vector<1x128xf32> to vector<128x128xf32>
    %215 = arith.addf %212, %214 : vector<128x128xf32>
    %216 = arith.negf %215 : vector<128x128xf32>
    %217 = math.exp %216 : vector<128x128xf32>
    %cst_104 = arith.constant 1.000000e+00 : f32
    %218 = vector.broadcast %cst_104 : f32 to vector<128x128xf32>
    %219 = arith.addf %218, %217 : vector<128x128xf32>
    %220 = arith.divf %218, %219 : vector<128x128xf32>
    %221 = arith.mulf %215, %220 : vector<128x128xf32>
    %222 = arith.truncf %221 : vector<128x128xf32> to vector<128x128xbf16>
    %c0_105 = arith.constant 0 : index
    %c0_106 = arith.constant 0 : index
    %223 = vector.load %arg18[%c0_105, %c0_106] : memref<128x4xbf16, #tpu.memory_space<vmem>>, vector<128x4xbf16>
    %cst_107 = arith.constant dense<0.000000e+00> : vector<128x4xf32>
    %224 = tpu.matmul %222, %223, %cst_107 {dimension_numbers = #tpu.dot_dimension_numbers<[1], [0], [0], [1], [0, 0, 1, 1], [], []>} : vector<128x128xbf16>, vector<128x4xbf16>, vector<128x4xf32> -> vector<128x4xf32>
    %c0_108 = arith.constant 0 : index
    %c0_109 = arith.constant 0 : index
    %225 = vector.load %arg19[%c0_108, %c0_109] : memref<1x4xf32, #tpu.memory_space<vmem>>, vector<1x4xf32>
    %226 = vector.broadcast %225 : vector<1x4xf32> to vector<128x4xf32>
    %227 = arith.addf %224, %226 : vector<128x4xf32>
    %c0_110 = arith.constant 0 : index
    %c0_111 = arith.constant 0 : index
    %c0_112 = arith.constant 0 : index
    %228 = vector.load %arg2[%c0_110, %c0_111, %c0_112] : memref<16x8x4xf32, #tpu.memory_space<vmem>>, vector<16x8x4xf32>
    %229 = vector.shape_cast %228 : vector<16x8x4xf32> to vector<128x4xf32>
    %cst_113 = arith.constant 0.000000e+00 : f32
    %230 = vector.broadcast %cst_113 : f32 to vector<128x4xf32>
    %231 = arith.cmpf oeq, %229, %230 : vector<128x4xf32>
    %cst_114 = arith.constant -1.000000e+09 : f32
    %232 = vector.broadcast %cst_114 : f32 to vector<128x4xf32>
    %233 = arith.select %231, %232, %227 : vector<128x4xi1>, vector<128x4xf32>
    %cst_115 = arith.constant dense<0xFF800000> : vector<128xf32>
    %234 = vector.multi_reduction <maximumf>, %233, %cst_115 [1] : vector<128x4xf32> to vector<128xf32>
    %235 = vector.shape_cast %234 : vector<128xf32> to vector<128x1xf32>
    %236 = vector.broadcast %235 : vector<128x1xf32> to vector<128x4xf32>
    %237 = arith.subf %233, %236 : vector<128x4xf32>
    %238 = math.exp %237 : vector<128x4xf32>
    %cst_116 = arith.constant dense<0.000000e+00> : vector<128xf32>
    %239 = vector.multi_reduction <add>, %238, %cst_116 [1] : vector<128x4xf32> to vector<128xf32>
    %240 = vector.shape_cast %239 : vector<128xf32> to vector<128x1xf32>
    %241 = vector.broadcast %240 : vector<128x1xf32> to vector<128x4xf32>
    %242 = arith.divf %238, %241 : vector<128x4xf32>
    %243 = vector.shape_cast %242 : vector<128x4xf32> to vector<16x8x4xf32>
    %c0_117 = arith.constant 0 : index
    %c0_118 = arith.constant 0 : index
    %c0_119 = arith.constant 0 : index
    %244 = vector.load %arg20[%c0_117, %c0_118, %c0_119] : memref<16x8x4xf32, #tpu.memory_space<vmem>>, vector<16x8x4xf32>
    tpu.vector_store %arg20[%c0_117, %c0_118, %c0_119], %243 {strides = array<i32>} : memref<16x8x4xf32, #tpu.memory_space<vmem>>, vector<16x8x4xf32>,
    return
  }
  func.func @transform_0(%arg0: i32) -> (i32, i32, i32) {
    %c0_i32 = arith.constant 0 : i32
    %c0_i32_0 = arith.constant 0 : i32
    %c0_i32_1 = arith.constant 0 : i32
    return %arg0, %c0_i32, %c0_i32_0 : i32, i32, i32
  }
  func.func @transform_1(%arg0: i32) -> (i32, i32, i32) {
    %c0_i32 = arith.constant 0 : i32
    %c0_i32_0 = arith.constant 0 : i32
    %c0_i32_1 = arith.constant 0 : i32
    return %arg0, %c0_i32, %c0_i32_0 : i32, i32, i32
  }
  func.func @transform_2(%arg0: i32) -> (i32, i32) {
    %c0_i32 = arith.constant 0 : i32
    %c0_i32_0 = arith.constant 0 : i32
    %c0_i32_1 = arith.constant 0 : i32
    return %c0_i32, %c0_i32_0 : i32, i32
  }
  func.func @transform_3(%arg0: i32) -> (i32, i32) {
    %c0_i32 = arith.constant 0 : i32
    %c0_i32_0 = arith.constant 0 : i32
    %c0_i32_1 = arith.constant 0 : i32
    return %c0_i32, %c0_i32_0 : i32, i32
  }
  func.func @transform_4(%arg0: i32) -> (i32, i32) {
    %c0_i32 = arith.constant 0 : i32
    %c0_i32_0 = arith.constant 0 : i32
    %c0_i32_1 = arith.constant 0 : i32
    return %c0_i32, %c0_i32_0 : i32, i32
  }
  func.func @transform_5(%arg0: i32) -> (i32, i32) {
    %c0_i32 = arith.constant 0 : i32
    %c0_i32_0 = arith.constant 0 : i32
    %c0_i32_1 = arith.constant 0 : i32
    return %c0_i32, %c0_i32_0 : i32, i32
  }
  func.func @transform_6(%arg0: i32) -> (i32, i32) {
    %c0_i32 = arith.constant 0 : i32
    %c0_i32_0 = arith.constant 0 : i32
    %c0_i32_1 = arith.constant 0 : i32
    return %c0_i32, %c0_i32_0 : i32, i32
  }
  func.func @transform_7(%arg0: i32) -> (i32, i32) {
    %c0_i32 = arith.constant 0 : i32
    %c0_i32_0 = arith.constant 0 : i32
    %c0_i32_1 = arith.constant 0 : i32
    return %c0_i32, %c0_i32_0 : i32, i32
  }
  func.func @transform_8(%arg0: i32) -> (i32, i32) {
    %c0_i32 = arith.constant 0 : i32
    %c0_i32_0 = arith.constant 0 : i32
    %c0_i32_1 = arith.constant 0 : i32
    return %c0_i32, %c0_i32_0 : i32, i32
  }
  func.func @transform_9(%arg0: i32) -> (i32, i32) {
    %c0_i32 = arith.constant 0 : i32
    %c0_i32_0 = arith.constant 0 : i32
    %c0_i32_1 = arith.constant 0 : i32
    return %c0_i32, %c0_i32_0 : i32, i32
  }
  func.func @transform_10(%arg0: i32) -> (i32, i32) {
    %c0_i32 = arith.constant 0 : i32
    %c0_i32_0 = arith.constant 0 : i32
    %c0_i32_1 = arith.constant 0 : i32
    return %c0_i32, %c0_i32_0 : i32, i32
  }
  func.func @transform_11(%arg0: i32) -> (i32, i32) {
    %c0_i32 = arith.constant 0 : i32
    %c0_i32_0 = arith.constant 0 : i32
    %c0_i32_1 = arith.constant 0 : i32
    return %c0_i32, %c0_i32_0 : i32, i32
  }
  func.func @transform_12(%arg0: i32) -> (i32, i32) {
    %c0_i32 = arith.constant 0 : i32
    %c0_i32_0 = arith.constant 0 : i32
    %c0_i32_1 = arith.constant 0 : i32
    return %c0_i32, %c0_i32_0 : i32, i32
  }
  func.func @transform_13(%arg0: i32) -> (i32, i32) {
    %c0_i32 = arith.constant 0 : i32
    %c0_i32_0 = arith.constant 0 : i32
    %c0_i32_1 = arith.constant 0 : i32
    return %c0_i32, %c0_i32_0 : i32, i32
  }
  func.func @transform_14(%arg0: i32) -> (i32, i32) {
    %c0_i32 = arith.constant 0 : i32
    %c0_i32_0 = arith.constant 0 : i32
    %c0_i32_1 = arith.constant 0 : i32
    return %c0_i32, %c0_i32_0 : i32, i32
  }
  func.func @transform_15(%arg0: i32) -> (i32, i32) {
    %c0_i32 = arith.constant 0 : i32
    %c0_i32_0 = arith.constant 0 : i32
    %c0_i32_1 = arith.constant 0 : i32
    return %c0_i32, %c0_i32_0 : i32, i32
  }
  func.func @transform_16(%arg0: i32) -> (i32, i32) {
    %c0_i32 = arith.constant 0 : i32
    %c0_i32_0 = arith.constant 0 : i32
    %c0_i32_1 = arith.constant 0 : i32
    return %c0_i32, %c0_i32_0 : i32, i32
  }
  func.func @transform_17(%arg0: i32) -> (i32, i32) {
    %c0_i32 = arith.constant 0 : i32
    %c0_i32_0 = arith.constant 0 : i32
    %c0_i32_1 = arith.constant 0 : i32
    return %c0_i32, %c0_i32_0 : i32, i32
  }
  func.func @transform_18(%arg0: i32) -> (i32, i32) {
    %c0_i32 = arith.constant 0 : i32
    %c0_i32_0 = arith.constant 0 : i32
    %c0_i32_1 = arith.constant 0 : i32
    return %c0_i32, %c0_i32_0 : i32, i32
  }
  func.func @transform_19(%arg0: i32) -> (i32, i32, i32) {
    %c0_i32 = arith.constant 0 : i32
    %c0_i32_0 = arith.constant 0 : i32
    %c0_i32_1 = arith.constant 0 : i32
    return %arg0, %c0_i32, %c0_i32_0 : i32, i32, i32
  }
}

</mosaic_0001>

<llo_original>
// kernel: tpu_custom_call.1
$region0: #{tpu_custom_call.1}
  #allocation0 [shape = 'u32[]', space=smem, size = 0x4, offset = 0x4, fixed_abs, tag = 'smem constant byte address 0x4 - core index']
  #allocation1 [shape = 'u32[144,128]{1,0:T(1,128)}', space=vmem, size = 0x12000, scoped, tag = 'internal scratch']
  #allocation2 [shape = 'f32[128,128]{1,0:T(8,128)}', space=vmem, size = 0x10000, scoped, tag = 'scratch operand']
  #allocation3 [shape = 'f32[128,128]{1,0:T(8,128)}', space=vmem, size = 0x10000, scoped, tag = 'scratch operand']
  %s0 = inlined_call_operand.vmem [shape: f32[16,8,32], index: 0, kind: input, shape index: {}]
  %s1 = inlined_call_operand.vmem [shape: f32[16,8,4], index: 1, kind: input, shape index: {}]
  %s2 = inlined_call_operand.hbm [shape: f32[128,128], index: 2, kind: input, shape index: {}]
  %s3 = inlined_call_operand.hbm [shape: bf16[32,128], index: 3, kind: input, shape index: {}]
  %s4 = inlined_call_operand.hbm [shape: f32[1,128], index: 4, kind: input, shape index: {}]
  %s5 = inlined_call_operand.vmem [shape: bf16[128,128], index: 5, kind: input, shape index: {}]
  %s6 = inlined_call_operand.hbm [shape: f32[1,128], index: 6, kind: input, shape index: {}]
  %s7 = inlined_call_operand.hbm [shape: bf16[128,128], index: 7, kind: input, shape index: {}]
  %s8 = inlined_call_operand.hbm [shape: f32[1,128], index: 8, kind: input, shape index: {}]
  %s9 = inlined_call_operand.vmem [shape: bf16[128,128], index: 9, kind: input, shape index: {}]
  %s10 = inlined_call_operand.vmem [shape: f32[1,128], index: 10, kind: input, shape index: {}]
  %s11 = inlined_call_operand.hbm [shape: bf16[128,128], index: 11, kind: input, shape index: {}]
  %s12 = inlined_call_operand.vmem [shape: f32[1,128], index: 12, kind: input, shape index: {}]
  %s13 = inlined_call_operand.hbm [shape: bf16[128,128], index: 13, kind: input, shape index: {}]
  %s14 = inlined_call_operand.vmem [shape: f32[1,128], index: 14, kind: input, shape index: {}]
  %s15 = inlined_call_operand.hbm [shape: bf16[128,128], index: 15, kind: input, shape index: {}]
  %s16 = inlined_call_operand.vmem [shape: f32[1,128], index: 16, kind: input, shape index: {}]
  %s17 = inlined_call_operand.vmem [shape: bf16[128,4], index: 17, kind: input, shape index: {}]
  %s18 = inlined_call_operand.vmem [shape: f32[1,4], index: 18, kind: input, shape index: {}]
  %s19 = inlined_call_operand.vmem [shape: f32[16,8,4], index: 19, kind: output, shape index: {}]
  %s20 = sld [smem:[#allocation0]]
  $region122: #{tpu_custom_call.1} parent=0
    _
  %s22 = ssub.s32 1, %s20
  %s23 = scalar_select 0, %s22, %s20
  $region1: #{tpu_custom_call.1} parent=0
    #allocation4 [shape = 'u8[65536]{0}', space=vmem, size = 0x10000, scoped, tag = 'input window, operand 2, single buffered']
    #allocation5 [shape = 's32[1]{0}', space=sflag, size = 0x4, scoped, tag = 'scoped memory for tpu_custom_call.1']
    #allocation6 [shape = 'u8[8192]{0}', space=vmem, size = 0x2000, scoped, tag = 'input window, operand 3, single buffered']
    #allocation7 [shape = 's32[1]{0}', space=sflag, size = 0x4, scoped, tag = 'scoped memory for tpu_custom_call.1']
    #allocation8 [shape = 'u8[512]{0}', space=vmem, size = 0x400, scoped, tag = 'input window, operand 4, single buffered']
    #allocation9 [shape = 'u8[512]{0}', space=vmem, size = 0x400, scoped, tag = 'input window, operand 6, single buffered']
    #allocation10 [shape = 's32[1]{0}', space=sflag, size = 0x4, scoped, tag = 'scoped memory for tpu_custom_call.1']
    #allocation11 [shape = 'u8[32768]{0}', space=vmem, size = 0x8000, scoped, tag = 'input window, operand 7, single buffered']
    #allocation12 [shape = 'u8[512]{0}', space=vmem, size = 0x400, scoped, tag = 'input window, operand 8, single buffered']
    #allocation13 [shape = 's32[1]{0}', space=sflag, size = 0x4, scoped, tag = 'scoped memory for tpu_custom_call.1']
    #allocation14 [shape = 'u8[32768]{0}', space=vmem, size = 0x8000, scoped, tag = 'input window, operand 11, single buffered']
    #allocation15 [shape = 'u8[32768]{0}', space=vmem, size = 0x8000, scoped, tag = 'input window, operand 13, single buffered']
    #allocation16 [shape = 's32[1]{0}', space=sflag, size = 0x4, scoped, tag = 'scoped memory for tpu_custom_call.1']
    #allocation17 [shape = 'u8[32768]{0}', space=vmem, size = 0x8000, scoped, tag = 'input window, operand 15, single buffered']
    %24 = vsyncpa [#allocation5], 0
    %25 = vsyncpa [#allocation7], 0
    %26 = vsyncpa [#allocation10], 0
    %27 = vsyncpa [#allocation13], 0
    %28 = vsyncpa [#allocation16], 0
    // Predicated region
    $region2: #{tpu_custom_call.1} parent=1 // pred_check
      _
    $region3: #{tpu_custom_call.1} parent=1 // pred_check_branch
      %30 = sbr.rel (0) target = $region5
    $region4: #{tpu_custom_call.1} parent=1 // pred_region
      _
    $region5: #{tpu_custom_call.1} parent=1 // pred_fallthru
      _
    // Predicated region
    $region6: #{tpu_custom_call.1} parent=1 // pred_check
      _
    $region7: #{tpu_custom_call.1} parent=1 // pred_check_branch
      %32 = sbr.rel (0) target = $region9
    $region8: #{tpu_custom_call.1} parent=1 // pred_region
      _
    $region9: #{tpu_custom_call.1} parent=1 // pred_fallthru
      _
    // Predicated region
    $region10: #{tpu_custom_call.1} parent=1 // pred_check
      _
    $region11: #{tpu_custom_call.1} parent=1 // pred_check_branch
      %34 = sbr.rel (0) target = $region13
    $region12: #{tpu_custom_call.1} parent=1 // pred_region
      %s36 = ssub.s32 2048, 2048
      %37 = vsyncadd [#allocation5], %s36
      %s38 = sshll.u32 [#allocation4], 4
      %s39 = int_to_ptr.vmem [resolvable:$true] %s38
      %44 = dma.hbm_to_vmem [thread:$0]  %s2, 2048, %s39, [#allocation5], 128, 128, 8
    $region13: #{tpu_custom_call.1} parent=1 // pred_fallthru
      _
    // Predicated region
    $region14: #{tpu_custom_call.1} parent=1 // pred_check
      _
    $region15: #{tpu_custom_call.1} parent=1 // pred_check_branch
      %46 = sbr.rel (0) target = $region17
    $region16: #{tpu_custom_call.1} parent=1 // pred_region
      %s48 = ssub.s32 256, 256
      %49 = vsyncadd [#allocation7], %s48
      %s50 = sshll.u32 [#allocation6], 4
      %s51 = int_to_ptr.vmem [resolvable:$true] %s50
      %56 = dma.hbm_to_vmem [thread:$0]  %s3, 256, %s51, [#allocation7], 64, 64, 4
    $region17: #{tpu_custom_call.1} parent=1 // pred_fallthru
      _
    // Predicated region
    $region18: #{tpu_custom_call.1} parent=1 // pred_check
      _
    $region19: #{tpu_custom_call.1} parent=1 // pred_check_branch
      %58 = sbr.rel (0) target = $region21
    $region20: #{tpu_custom_call.1} parent=1 // pred_region
      %s60 = ssub.s32 16, 16
      %61 = vsyncadd [#allocation7], %s60
      %s63 = sshll.u32 [#allocation8], 4
      %s64 = int_to_ptr.vmem [resolvable:$true] %s63
      %66 = dma.hbm_to_vmem [thread:$0]  %s4, 16, %s64, [#allocation7]
    $region21: #{tpu_custom_call.1} parent=1 // pred_fallthru
      _
    // Predicated region
    $region22: #{tpu_custom_call.1} parent=1 // pred_check
      _
    $region23: #{tpu_custom_call.1} parent=1 // pred_check_branch
      %68 = sbr.rel (0) target = $region25
    $region24: #{tpu_custom_call.1} parent=1 // pred_region
      _
    $region25: #{tpu_custom_call.1} parent=1 // pred_fallthru
      _
    // Predicated region
    $region26: #{tpu_custom_call.1} parent=1 // pred_check
      _
    $region27: #{tpu_custom_call.1} parent=1 // pred_check_branch
      %70 = sbr.rel (0) target = $region29
    $region28: #{tpu_custom_call.1} parent=1 // pred_region
      %s72 = ssub.s32 16, 16
      %73 = vsyncadd [#allocation10], %s72
      %s75 = sshll.u32 [#allocation9], 4
      %s76 = int_to_ptr.vmem [resolvable:$true] %s75
      %78 = dma.hbm_to_vmem [thread:$0]  %s6, 16, %s76, [#allocation10]
    $region29: #{tpu_custom_call.1} parent=1 // pred_fallthru
      _
    // Predicated region
    $region30: #{tpu_custom_call.1} parent=1 // pred_check
      _
    $region31: #{tpu_custom_call.1} parent=1 // pred_check_branch
      %80 = sbr.rel (0) target = $region33
    $region32: #{tpu_custom_call.1} parent=1 // pred_region
      %s82 = ssub.s32 1024, 1024
      %83 = vsyncadd [#allocation10], %s82
      %s84 = sshll.u32 [#allocation11], 4
      %s85 = int_to_ptr.vmem [resolvable:$true] %s84
      %90 = dma.hbm_to_vmem [thread:$0]  %s7, 1024, %s85, [#allocation10], 64, 64, 4
    $region33: #{tpu_custom_call.1} parent=1 // pred_fallthru
      _
    // Predicated region
    $region34: #{tpu_custom_call.1} parent=1 // pred_check
      _
    $region35: #{tpu_custom_call.1} parent=1 // pred_check_branch
      %92 = sbr.rel (0) target = $region37
    $region36: #{tpu_custom_call.1} parent=1 // pred_region
      %s94 = ssub.s32 16, 16
      %95 = vsyncadd [#allocation13], %s94
      %s97 = sshll.u32 [#allocation12], 4
      %s98 = int_to_ptr.vmem [resolvable:$true] %s97
      %100 = dma.hbm_to_vmem [thread:$0]  %s8, 16, %s98, [#allocation13]
    $region37: #{tpu_custom_call.1} parent=1 // pred_fallthru
      _
    // Predicated region
    $region38: #{tpu_custom_call.1} parent=1 // pred_check
      _
    $region39: #{tpu_custom_call.1} parent=1 // pred_check_branch
      %102 = sbr.rel (0) target = $region41
    $region40: #{tpu_custom_call.1} parent=1 // pred_region
      _
    $region41: #{tpu_custom_call.1} parent=1 // pred_fallthru
      _
    // Predicated region
    $region42: #{tpu_custom_call.1} parent=1 // pred_check
      _
    $region43: #{tpu_custom_call.1} parent=1 // pred_check_branch
      %104 = sbr.rel (0) target = $region45
    $region44: #{tpu_custom_call.1} parent=1 // pred_region
      _
    $region45: #{tpu_custom_call.1} parent=1 // pred_fallthru
      _
    // Predicated region
    $region46: #{tpu_custom_call.1} parent=1 // pred_check
      _
    $region47: #{tpu_custom_call.1} parent=1 // pred_check_branch
      %106 = sbr.rel (0) target = $region49
    $region48: #{tpu_custom_call.1} parent=1 // pred_region
      %s108 = ssub.s32 1024, 1024
      %109 = vsyncadd [#allocation13], %s108
      %s110 = sshll.u32 [#allocation14], 4
      %s111 = int_to_ptr.vmem [resolvable:$true] %s110
      %116 = dma.hbm_to_vmem [thread:$0]  %s11, 1024, %s111, [#allocation13], 64, 64, 4
    $region49: #{tpu_custom_call.1} parent=1 // pred_fallthru
      _
    // Predicated region
    $region50: #{tpu_custom_call.1} parent=1 // pred_check
      _
    $region51: #{tpu_custom_call.1} parent=1 // pred_check_branch
      %118 = sbr.rel (0) target = $region53
    $region52: #{tpu_custom_call.1} parent=1 // pred_region
      _
    $region53: #{tpu_custom_call.1} parent=1 // pred_fallthru
      _
    // Predicated region
    $region54: #{tpu_custom_call.1} parent=1 // pred_check
      _
    $region55: #{tpu_custom_call.1} parent=1 // pred_check_branch
      %120 = sbr.rel (0) target = $region57
    $region56: #{tpu_custom_call.1} parent=1 // pred_region
      %s122 = ssub.s32 1024, 1024
      %123 = vsyncadd [#allocation16], %s122
      %s124 = sshll.u32 [#allocation15], 4
      %s125 = int_to_ptr.vmem [resolvable:$true] %s124
      %130 = dma.hbm_to_vmem [thread:$0]  %s13, 1024, %s125, [#allocation16], 64, 64, 4
    $region57: #{tpu_custom_call.1} parent=1 // pred_fallthru
      _
    // Predicated region
    $region58: #{tpu_custom_call.1} parent=1 // pred_check
      _
    $region59: #{tpu_custom_call.1} parent=1 // pred_check_branch
      %132 = sbr.rel (0) target = $region61
    $region60: #{tpu_custom_call.1} parent=1 // pred_region
      _
    $region61: #{tpu_custom_call.1} parent=1 // pred_fallthru
      _
    // Predicated region
    $region62: #{tpu_custom_call.1} parent=1 // pred_check
      _
    $region63: #{tpu_custom_call.1} parent=1 // pred_check_branch
      %134 = sbr.rel (0) target = $region65
    $region64: #{tpu_custom_call.1} parent=1 // pred_region
      %s136 = ssub.s32 1024, 1024
      %137 = vsyncadd [#allocation16], %s136
      %s138 = sshll.u32 [#allocation17], 4
      %s139 = int_to_ptr.vmem [resolvable:$true] %s138
      %144 = dma.hbm_to_vmem [thread:$0]  %s15, 1024, %s139, [#allocation16], 64, 64, 4
    $region65: #{tpu_custom_call.1} parent=1 // pred_fallthru
      _
    // Predicated region
    $region66: #{tpu_custom_call.1} parent=1 // pred_check
      _
    $region67: #{tpu_custom_call.1} parent=1 // pred_check_branch
      %146 = sbr.rel (0) target = $region69
    $region68: #{tpu_custom_call.1} parent=1 // pred_region
      _
    $region69: #{tpu_custom_call.1} parent=1 // pred_fallthru
      _
    // Predicated region
    $region70: #{tpu_custom_call.1} parent=1 // pred_check
      _
    $region71: #{tpu_custom_call.1} parent=1 // pred_check_branch
      %148 = sbr.rel (0) target = $region73
    $region72: #{tpu_custom_call.1} parent=1 // pred_region
      _
    $region73: #{tpu_custom_call.1} parent=1 // pred_fallthru
      _
    // Predicated region
    $region74: #{tpu_custom_call.1} parent=1 // pred_check
      _
    $region75: #{tpu_custom_call.1} parent=1 // pred_check_branch
      %150 = sbr.rel (0) target = $region77
    $region76: #{tpu_custom_call.1} parent=1 // pred_region
      _
    $region77: #{tpu_custom_call.1} parent=1 // pred_fallthru
      _
    // Predicated region
    $region78: #{tpu_custom_call.1} parent=1 // pred_check
      _
    $region79: #{tpu_custom_call.1} parent=1 // pred_check_branch
      %152 = sbr.rel (0) target = $region81
    $region80: #{tpu_custom_call.1} parent=1 // pred_region
      %153 = dma.done [#allocation5], 2048
    $region81: #{tpu_custom_call.1} parent=1 // pred_fallthru
      _
    // Predicated region
    $region82: #{tpu_custom_call.1} parent=1 // pred_check
      _
    $region83: #{tpu_custom_call.1} parent=1 // pred_check_branch
      %155 = sbr.rel (0) target = $region85
    $region84: #{tpu_custom_call.1} parent=1 // pred_region
      %156 = dma.done [#allocation7], 256
    $region85: #{tpu_custom_call.1} parent=1 // pred_fallthru
      _
    // Predicated region
    $region86: #{tpu_custom_call.1} parent=1 // pred_check
      _
    $region87: #{tpu_custom_call.1} parent=1 // pred_check_branch
      %158 = sbr.rel (0) target = $region89
    $region88: #{tpu_custom_call.1} parent=1 // pred_region
      %159 = dma.done [#allocation7], 16
    $region89: #{tpu_custom_call.1} parent=1 // pred_fallthru
      _
    // Predicated region
    $region90: #{tpu_custom_call.1} parent=1 // pred_check
      _
    $region91: #{tpu_custom_call.1} parent=1 // pred_check_branch
      %161 = sbr.rel (0) target = $region93
    $region92: #{tpu_custom_call.1} parent=1 // pred_region
      %162 = dma.done [#allocation10], 16
    $region93: #{tpu_custom_call.1} parent=1 // pred_fallthru
      _
    // Predicated region
    $region94: #{tpu_custom_call.1} parent=1 // pred_check
      _
    $region95: #{tpu_custom_call.1} parent=1 // pred_check_branch
      %164 = sbr.rel (0) target = $region97
    $region96: #{tpu_custom_call.1} parent=1 // pred_region
      %165 = dma.done [#allocation10], 1024
    $region97: #{tpu_custom_call.1} parent=1 // pred_fallthru
      _
    // Predicated region
    $region98: #{tpu_custom_call.1} parent=1 // pred_check
      _
    $region99: #{tpu_custom_call.1} parent=1 // pred_check_branch
      %167 = sbr.rel (0) target = $region101
    $region100: #{tpu_custom_call.1} parent=1 // pred_region
      %168 = dma.done [#allocation13], 16
    $region101: #{tpu_custom_call.1} parent=1 // pred_fallthru
      _
    // Predicated region
    $region102: #{tpu_custom_call.1} parent=1 // pred_check
      _
    $region103: #{tpu_custom_call.1} parent=1 // pred_check_branch
      %170 = sbr.rel (0) target = $region105
    $region104: #{tpu_custom_call.1} parent=1 // pred_region
      %171 = dma.done [#allocation13], 1024
    $region105: #{tpu_custom_call.1} parent=1 // pred_fallthru
      _
    // Predicated region
    $region106: #{tpu_custom_call.1} parent=1 // pred_check
      _
    $region107: #{tpu_custom_call.1} parent=1 // pred_check_branch
      %173 = sbr.rel (0) target = $region109
    $region108: #{tpu_custom_call.1} parent=1 // pred_region
      %174 = dma.done [#allocation16], 1024
    $region109: #{tpu_custom_call.1} parent=1 // pred_fallthru
      _
    // Predicated region
    $region110: #{tpu_custom_call.1} parent=1 // pred_check
      _
    $region111: #{tpu_custom_call.1} parent=1 // pred_check_branch
      %176 = sbr.rel (0) target = $region113
    $region112: #{tpu_custom_call.1} parent=1 // pred_region
      %177 = dma.done [#allocation16], 1024
    $region113: #{tpu_custom_call.1} parent=1 // pred_fallthru
      _
    %v179 = vld [vmem:[%s0] sm:$0xff]
    %v180 = vld [vmem:[%s0 + $0x8] sm:$0xff]
    %v181 = vld [vmem:[%s0 + $0x10] sm:$0xff]
    %v182 = vld [vmem:[%s0 + $0x18] sm:$0xff]
    %v183 = vld [vmem:[%s0 + $0x20] sm:$0xff]
    %v184 = vld [vmem:[%s0 + $0x28] sm:$0xff]
    %v185 = vld [vmem:[%s0 + $0x30] sm:$0xff]
    %v186 = vld [vmem:[%s0 + $0x38] sm:$0xff]
    %v187 = vld [vmem:[%s0 + $0x40] sm:$0xff]
    %v188 = vld [vmem:[%s0 + $0x48] sm:$0xff]
    %v189 = vld [vmem:[%s0 + $0x50] sm:$0xff]
    %v190 = vld [vmem:[%s0 + $0x58] sm:$0xff]
    %v191 = vld [vmem:[%s0 + $0x60] sm:$0xff]
    %v192 = vld [vmem:[%s0 + $0x68] sm:$0xff]
    %v193 = vld [vmem:[%s0 + $0x70] sm:$0xff]
    %v194 = vld [vmem:[%s0 + $0x78] sm:$0xff]
    %v195 = vpack.c.bf16 %v180, %v179
    %v196 = vpack.c.bf16 %v182, %v181
    %v197 = vpack.c.bf16 %v184, %v183
    %v198 = vpack.c.bf16 %v186, %v185
    %v199 = vpack.c.bf16 %v188, %v187
    %v200 = vpack.c.bf16 %v190, %v189
    %v201 = vpack.c.bf16 %v192, %v191
    %v202 = vpack.c.bf16 %v194, %v193
    %v203 = vld [vmem:[#allocation6] sm:$0xf]
    %v204 = vld [vmem:[#allocation6 + $0x4] sm:$0xf]
    %v205 = vld [vmem:[#allocation6 + $0x8] sm:$0xf]
    %v206 = vld [vmem:[#allocation6 + $0xc] sm:$0xf]
    %v207 = vld [vmem:[#allocation8] sm:$0x1]
    %v209 = vlaneseq
    %v210 = vshrl.u32 %v209, 7
    %v211 = vsub.s32 0, %v210
    %v212 = vrot.slane %v207, %v211
    %v218 = vunpack.c.l.b16 %v203
    %v219 = vunpack.c.l.b16 %v204
    %v220 = vunpack.c.l.b16 %v205
    %v221 = vunpack.c.l.b16 %v206
    %v222 = vpack.c.b16 %v219, %v218
    %v223 = vpack.c.b16 %v221, %v220
    %vm226 = vcmask 261120
    %v228 = vsel %vm226, %v195, 0
    %v231 = vsel %vm226, %v196, 0
    %v234 = vsel %vm226, %v197, 0
    %v237 = vsel %vm226, %v198, 0
    %v240 = vsel %vm226, %v199, 0
    %v243 = vsel %vm226, %v200, 0
    %v246 = vsel %vm226, %v201, 0
    %v249 = vsel %vm226, %v202, 0
    %251 = vmatprep.subr.bf16.mxu0 0
    %252 = vmatpush1.bf16.msra.mxu0 %v222
    %253 = vmatprep.subr.bf16.mxu0 0
    %254 = vmatpush1.bf16.msra.mxu0 %v223
    %255 = vmatprep.subr.bf16.mxu0 0
    %256 = vmatpush1.bf16.msra.mxu0 0
    %257 = vmatprep.subr.bf16.mxu0 0
    %258 = vmatpush1.bf16.msra.mxu0 0
    %259 = vmatprep.subr.bf16.mxu0 0
    %260 = vmatpush1.bf16.msra.mxu0 0
    %261 = vmatprep.subr.bf16.mxu0 0
    %262 = vmatpush1.bf16.msra.mxu0 0
    %263 = vmatprep.subr.bf16.mxu0 0
    %264 = vmatpush1.bf16.msra.mxu0 0
    %265 = vmatprep.subr.bf16.mxu0 0
    %266 = vmatpush1.bf16.msra.mxu0 0
    %267 = vmatprep.subr.bf16.mxu0 0
    %268 = vmatpush1.bf16.msra.mxu0 0
    %269 = vmatprep.subr.bf16.mxu0 0
    %270 = vmatpush1.bf16.msra.mxu0 0
    %271 = vmatprep.subr.bf16.mxu0 0
    %272 = vmatpush1.bf16.msra.mxu0 0
    %273 = vmatprep.subr.bf16.mxu0 0
    %274 = vmatpush1.bf16.msra.mxu0 0
    %275 = vmatprep.subr.bf16.mxu0 0
    %276 = vmatpush1.bf16.msra.mxu0 0
    %277 = vmatprep.subr.bf16.mxu0 0
    %278 = vmatpush1.bf16.msra.mxu0 0
    %279 = vmatprep.subr.bf16.mxu0 0
    %280 = vmatpush1.bf16.msra.mxu0 0
    %281 = vmatprep.subr.bf16.mxu0 0
    %282 = vmatpush1.bf16.msra.mxu0 0
    %283 = vmatprep.mubr.bf16.mxu0 0
    %284 = vmatmul.mubr.bf16.gmra.mrb[0].mxu0 %v228
    %v285 = vpop.f32.mrb[0].mxu0
    %v286 = vadd.f32 %v212, %v285
    %v287 = vpop.f32.mrb[0].mxu0
    %v288 = vpop.f32.mrb[0].mxu0
    %v289 = vadd.f32 %v212, %v288
    %v290 = vpop.f32.mrb[0].mxu0
    %291 = vmatprep.mubr.bf16.mxu0 0
    %292 = vmatmul.mubr.bf16.gmra.mrb[0].mxu0 %v231
    %v293 = vpop.f32.mrb[0].mxu0
    %v294 = vadd.f32 %v212, %v293
    %v295 = vpop.f32.mrb[0].mxu0
    %v296 = vpop.f32.mrb[0].mxu0
    %v297 = vadd.f32 %v212, %v296
    %v298 = vpop.f32.mrb[0].mxu0
    %299 = vmatprep.mubr.bf16.mxu0 0
    %300 = vmatmul.mubr.bf16.gmra.mrb[0].mxu0 %v234
    %v301 = vpop.f32.mrb[0].mxu0
    %v302 = vadd.f32 %v212, %v301
    %v303 = vpop.f32.mrb[0].mxu0
    %v304 = vpop.f32.mrb[0].mxu0
    %v305 = vadd.f32 %v212, %v304
    %v306 = vpop.f32.mrb[0].mxu0
    %307 = vmatprep.mubr.bf16.mxu0 0
    %308 = vmatmul.mubr.bf16.gmra.mrb[0].mxu0 %v237
    %v309 = vpop.f32.mrb[0].mxu0
    %v310 = vadd.f32 %v212, %v309
    %v311 = vpop.f32.mrb[0].mxu0
    %v312 = vpop.f32.mrb[0].mxu0
    %v313 = vadd.f32 %v212, %v312
    %v314 = vpop.f32.mrb[0].mxu0
    %315 = vmatprep.mubr.bf16.mxu0 0
    %316 = vmatmul.mubr.bf16.gmra.mrb[0].mxu0 %v240
    %v317 = vpop.f32.mrb[0].mxu0
    %v318 = vadd.f32 %v212, %v317
    %v319 = vpop.f32.mrb[0].mxu0
    %v320 = vpop.f32.mrb[0].mxu0
    %v321 = vadd.f32 %v212, %v320
    %v322 = vpop.f32.mrb[0].mxu0
    %323 = vmatprep.mubr.bf16.mxu0 0
    %324 = vmatmul.mubr.bf16.gmra.mrb[0].mxu0 %v243
    %v325 = vpop.f32.mrb[0].mxu0
    %v326 = vadd.f32 %v212, %v325
    %v327 = vpop.f32.mrb[0].mxu0
    %v328 = vpop.f32.mrb[0].mxu0
    %v329 = vadd.f32 %v212, %v328
    %v330 = vpop.f32.mrb[0].mxu0
    %331 = vmatprep.mubr.bf16.mxu0 0
    %332 = vmatmul.mubr.bf16.gmra.mrb[0].mxu0 %v246
    %v333 = vpop.f32.mrb[0].mxu0
    %v334 = vadd.f32 %v212, %v333
    %v335 = vpop.f32.mrb[0].mxu0
    %v336 = vpop.f32.mrb[0].mxu0
    %v337 = vadd.f32 %v212, %v336
    %v338 = vpop.f32.mrb[0].mxu0
    %339 = vmatprep.mubr.bf16.mxu0 0
    %340 = vmatmul.mubr.bf16.gmra.mrb[0].mxu0 %v249
    %v341 = vpop.f32.mrb[0].mxu0
    %v342 = vadd.f32 %v212, %v341
    %v343 = vpop.f32.mrb[0].mxu0
    %v344 = vpop.f32.mrb[0].mxu0
    %v345 = vadd.f32 %v212, %v344
    %v346 = vpop.f32.mrb[0].mxu0
    %347 = vdwg.mxu0
    %v348 = vxor.u32 %v286, 2147483648
    %v349 = vxor.u32 %v289, 2147483648
    %v350 = vxor.u32 %v294, 2147483648
    %v351 = vxor.u32 %v297, 2147483648
    %v352 = vxor.u32 %v302, 2147483648
    %v353 = vxor.u32 %v305, 2147483648
    %v354 = vxor.u32 %v310, 2147483648
    %v355 = vxor.u32 %v313, 2147483648
    %v356 = vxor.u32 %v318, 2147483648
    %v357 = vxor.u32 %v321, 2147483648
    %v358 = vxor.u32 %v326, 2147483648
    %v359 = vxor.u32 %v329, 2147483648
    %v360 = vxor.u32 %v334, 2147483648
    %v361 = vxor.u32 %v337, 2147483648
    %v362 = vxor.u32 %v342, 2147483648
    %v363 = vxor.u32 %v345, 2147483648
    %v364 = vmul.f32 %v348, 1.442695
    %v365 = vpow.pop %v364
    %v366 = vmul.f32 %v349, 1.442695
    %v367 = vpow.pop %v366
    %v368 = vmul.f32 %v350, 1.442695
    %v369 = vpow.pop %v368
    %v370 = vmul.f32 %v351, 1.442695
    %v371 = vpow.pop %v370
    %v372 = vmul.f32 %v352, 1.442695
    %v373 = vpow.pop %v372
    %v374 = vmul.f32 %v353, 1.442695
    %v375 = vpow.pop %v374
    %v376 = vmul.f32 %v354, 1.442695
    %v377 = vpow.pop %v376
    %v378 = vmul.f32 %v355, 1.442695
    %v379 = vpow.pop %v378
    %v380 = vmul.f32 %v356, 1.442695
    %v381 = vpow.pop %v380
    %v382 = vmul.f32 %v357, 1.442695
    %v383 = vpow.pop %v382
    %v384 = vmul.f32 %v358, 1.442695
    %v385 = vpow.pop %v384
    %v386 = vmul.f32 %v359, 1.442695
    %v387 = vpow.pop %v386
    %v388 = vmul.f32 %v360, 1.442695
    %v389 = vpow.pop %v388
    %v390 = vmul.f32 %v361, 1.442695
    %v391 = vpow.pop %v390
    %v392 = vmul.f32 %v362, 1.442695
    %v393 = vpow.pop %v392
    %v394 = vmul.f32 %v363, 1.442695
    %v395 = vpow.pop %v394
    %v396 = vadd.f32 %v365, 1.0
    %v397 = vadd.f32 %v367, 1.0
    %v398 = vadd.f32 %v369, 1.0
    %v399 = vadd.f32 %v371, 1.0
    %v400 = vadd.f32 %v373, 1.0
    %v401 = vadd.f32 %v375, 1.0
    %v402 = vadd.f32 %v377, 1.0
    %v403 = vadd.f32 %v379, 1.0
    %v404 = vadd.f32 %v381, 1.0
    %v405 = vadd.f32 %v383, 1.0
    %v406 = vadd.f32 %v385, 1.0
    %v407 = vadd.f32 %v387, 1.0
    %v408 = vadd.f32 %v389, 1.0
    %v409 = vadd.f32 %v391, 1.0
    %v410 = vadd.f32 %v393, 1.0
    %v411 = vadd.f32 %v395, 1.0
    %v412 = vrcp.pop %v396
    %v413 = vmul.f32 1.0, %v412
    %v414 = vrcp.pop %v397
    %v415 = vmul.f32 1.0, %v414
    %v416 = vrcp.pop %v398
    %v417 = vmul.f32 1.0, %v416
    %v418 = vrcp.pop %v399
    %v419 = vmul.f32 1.0, %v418
    %v420 = vrcp.pop %v400
    %v421 = vmul.f32 1.0, %v420
    %v422 = vrcp.pop %v401
    %v423 = vmul.f32 1.0, %v422
    %v424 = vrcp.pop %v402
    %v425 = vmul.f32 1.0, %v424
    %v426 = vrcp.pop %v403
    %v427 = vmul.f32 1.0, %v426
    %v428 = vrcp.pop %v404
    %v429 = vmul.f32 1.0, %v428
    %v430 = vrcp.pop %v405
    %v431 = vmul.f32 1.0, %v430
    %v432 = vrcp.pop %v406
    %v433 = vmul.f32 1.0, %v432
    %v434 = vrcp.pop %v407
    %v435 = vmul.f32 1.0, %v434
    %v436 = vrcp.pop %v408
    %v437 = vmul.f32 1.0, %v436
    %v438 = vrcp.pop %v409
    %v439 = vmul.f32 1.0, %v438
    %v440 = vrcp.pop %v410
    %v441 = vmul.f32 1.0, %v440
    %v442 = vrcp.pop %v411
    %v443 = vmul.f32 1.0, %v442
    %v444 = vmul.f32 %v286, %v413
    %v445 = vmul.f32 %v289, %v415
    %v446 = vmul.f32 %v294, %v417
    %v447 = vmul.f32 %v297, %v419
    %v448 = vmul.f32 %v302, %v421
    %v449 = vmul.f32 %v305, %v423
    %v450 = vmul.f32 %v310, %v425
    %v451 = vmul.f32 %v313, %v427
    %v452 = vmul.f32 %v318, %v429
    %v453 = vmul.f32 %v321, %v431
    %v454 = vmul.f32 %v326, %v433
    %v455 = vmul.f32 %v329, %v435
    %v456 = vmul.f32 %v334, %v437
    %v457 = vmul.f32 %v337, %v439
    %v458 = vmul.f32 %v342, %v441
    %v459 = vmul.f32 %v345, %v443
    %v460 = vpack.c.bf16 %v445, %v444
    %v461 = vpack.c.bf16 %v447, %v446
    %v462 = vpack.c.bf16 %v449, %v448
    %v463 = vpack.c.bf16 %v451, %v450
    %v464 = vpack.c.bf16 %v453, %v452
    %v465 = vpack.c.bf16 %v455, %v454
    %v466 = vpack.c.bf16 %v457, %v456
    %v467 = vpack.c.bf16 %v459, %v458
    %v468 = vld [vmem:[%s5] sm:$0xf]
    %v469 = vld [vmem:[%s5 + $0x4] sm:$0xf]
    %v470 = vld [vmem:[%s5 + $0x8] sm:$0xf]
    %v471 = vld [vmem:[%s5 + $0xc] sm:$0xf]
    %v472 = vld [vmem:[%s5 + $0x10] sm:$0xf]
    %v473 = vld [vmem:[%s5 + $0x14] sm:$0xf]
    %v474 = vld [vmem:[%s5 + $0x18] sm:$0xf]
    %v475 = vld [vmem:[%s5 + $0x1c] sm:$0xf]
    %v476 = vld [vmem:[%s5 + $0x20] sm:$0xf]
    %v477 = vld [vmem:[%s5 + $0x24] sm:$0xf]
    %v478 = vld [vmem:[%s5 + $0x28] sm:$0xf]
    %v479 = vld [vmem:[%s5 + $0x2c] sm:$0xf]
    %v480 = vld [vmem:[%s5 + $0x30] sm:$0xf]
    %v481 = vld [vmem:[%s5 + $0x34] sm:$0xf]
    %v482 = vld [vmem:[%s5 + $0x38] sm:$0xf]
    %v483 = vld [vmem:[%s5 + $0x3c] sm:$0xf]
    %v484 = vld [vmem:[#allocation9] sm:$0x1]
    %v486 = vlaneseq
    %v487 = vshrl.u32 %v486, 7
    %v488 = vsub.s32 0, %v487
    %v489 = vrot.slane %v484, %v488
    %v507 = vunpack.c.l.b16 %v468
    %v508 = vunpack.c.l.b16 %v469
    %v509 = vunpack.c.l.b16 %v470
    %v510 = vunpack.c.l.b16 %v471
    %v511 = vunpack.c.l.b16 %v472
    %v512 = vunpack.c.l.b16 %v473
    %v513 = vunpack.c.l.b16 %v474
    %v514 = vunpack.c.l.b16 %v475
    %v515 = vunpack.c.l.b16 %v476
    %v516 = vunpack.c.l.b16 %v477
    %v517 = vunpack.c.l.b16 %v478
    %v518 = vunpack.c.l.b16 %v479
    %v519 = vunpack.c.l.b16 %v480
    %v520 = vunpack.c.l.b16 %v481
    %v521 = vunpack.c.l.b16 %v482
    %v522 = vunpack.c.l.b16 %v483
    %v523 = vpack.c.b16 %v508, %v507
    %v524 = vpack.c.b16 %v510, %v509
    %v525 = vpack.c.b16 %v512, %v511
    %v526 = vpack.c.b16 %v514, %v513
    %v527 = vpack.c.b16 %v516, %v515
    %v528 = vpack.c.b16 %v518, %v517
    %v529 = vpack.c.b16 %v520, %v519
    %v530 = vpack.c.b16 %v522, %v521
    %539 = vmatprep.subr.bf16.mxu0 0
    %540 = vmatpush1.bf16.msra.mxu0 %v523
    %541 = vmatprep.subr.bf16.mxu0 0
    %542 = vmatpush1.bf16.msra.mxu0 %v524
    %543 = vmatprep.subr.bf16.mxu0 0
    %544 = vmatpush1.bf16.msra.mxu0 %v525
    %545 = vmatprep.subr.bf16.mxu0 0
    %546 = vmatpush1.bf16.msra.mxu0 %v526
    %547 = vmatprep.subr.bf16.mxu0 0
    %548 = vmatpush1.bf16.msra.mxu0 %v527
    %549 = vmatprep.subr.bf16.mxu0 0
    %550 = vmatpush1.bf16.msra.mxu0 %v528
    %551 = vmatprep.subr.bf16.mxu0 0
    %552 = vmatpush1.bf16.msra.mxu0 %v529
    %553 = vmatprep.subr.bf16.mxu0 0
    %554 = vmatpush1.bf16.msra.mxu0 %v530
    %555 = vmatprep.subr.bf16.mxu0 0
    %556 = vmatpush1.bf16.msra.mxu0 0
    %557 = vmatprep.subr.bf16.mxu0 0
    %558 = vmatpush1.bf16.msra.mxu0 0
    %559 = vmatprep.subr.bf16.mxu0 0
    %560 = vmatpush1.bf16.msra.mxu0 0
    %561 = vmatprep.subr.bf16.mxu0 0
    %562 = vmatpush1.bf16.msra.mxu0 0
    %563 = vmatprep.subr.bf16.mxu0 0
    %564 = vmatpush1.bf16.msra.mxu0 0
    %565 = vmatprep.subr.bf16.mxu0 0
    %566 = vmatpush1.bf16.msra.mxu0 0
    %567 = vmatprep.subr.bf16.mxu0 0
    %568 = vmatpush1.bf16.msra.mxu0 0
    %569 = vmatprep.subr.bf16.mxu0 0
    %570 = vmatpush1.bf16.msra.mxu0 0
    %571 = vmatprep.mubr.bf16.mxu0 0
    %572 = vmatmul.mubr.bf16.gmra.mrb[0].mxu0 %v460
    %v573 = vpop.f32.mrb[0].mxu0
    %v574 = vadd.f32 %v489, %v573
    %v575 = vpop.f32.mrb[0].mxu0
    %v576 = vpop.f32.mrb[0].mxu0
    %v577 = vadd.f32 %v489, %v576
    %v578 = vpop.f32.mrb[0].mxu0
    %579 = vmatprep.mubr.bf16.mxu0 0
    %580 = vmatmul.mubr.bf16.gmra.mrb[0].mxu0 %v461
    %v581 = vpop.f32.mrb[0].mxu0
    %v582 = vadd.f32 %v489, %v581
    %v583 = vpop.f32.mrb[0].mxu0
    %v584 = vpop.f32.mrb[0].mxu0
    %v585 = vadd.f32 %v489, %v584
    %v586 = vpop.f32.mrb[0].mxu0
    %587 = vmatprep.mubr.bf16.mxu0 0
    %588 = vmatmul.mubr.bf16.gmra.mrb[0].mxu0 %v462
    %v589 = vpop.f32.mrb[0].mxu0
    %v590 = vadd.f32 %v489, %v589
    %v591 = vpop.f32.mrb[0].mxu0
    %v592 = vpop.f32.mrb[0].mxu0
    %v593 = vadd.f32 %v489, %v592
    %v594 = vpop.f32.mrb[0].mxu0
    %595 = vmatprep.mubr.bf16.mxu0 0
    %596 = vmatmul.mubr.bf16.gmra.mrb[0].mxu0 %v463
    %v597 = vpop.f32.mrb[0].mxu0
    %v598 = vadd.f32 %v489, %v597
    %v599 = vpop.f32.mrb[0].mxu0
    %v600 = vpop.f32.mrb[0].mxu0
    %v601 = vadd.f32 %v489, %v600
    %v602 = vpop.f32.mrb[0].mxu0
    %603 = vmatprep.mubr.bf16.mxu0 0
    %604 = vmatmul.mubr.bf16.gmra.mrb[0].mxu0 %v464
    %v605 = vpop.f32.mrb[0].mxu0
    %v606 = vadd.f32 %v489, %v605
    %v607 = vpop.f32.mrb[0].mxu0
    %v608 = vpop.f32.mrb[0].mxu0
    %v609 = vadd.f32 %v489, %v608
    %v610 = vpop.f32.mrb[0].mxu0
    %611 = vmatprep.mubr.bf16.mxu0 0
    %612 = vmatmul.mubr.bf16.gmra.mrb[0].mxu0 %v465
    %v613 = vpop.f32.mrb[0].mxu0
    %v614 = vadd.f32 %v489, %v613
    %v615 = vpop.f32.mrb[0].mxu0
    %v616 = vpop.f32.mrb[0].mxu0
    %v617 = vadd.f32 %v489, %v616
    %v618 = vpop.f32.mrb[0].mxu0
    %619 = vmatprep.mubr.bf16.mxu0 0
    %620 = vmatmul.mubr.bf16.gmra.mrb[0].mxu0 %v466
    %v621 = vpop.f32.mrb[0].mxu0
    %v622 = vadd.f32 %v489, %v621
    %v623 = vpop.f32.mrb[0].mxu0
    %v624 = vpop.f32.mrb[0].mxu0
    %v625 = vadd.f32 %v489, %v624
    %v626 = vpop.f32.mrb[0].mxu0
    %627 = vmatprep.mubr.bf16.mxu0 0
    %628 = vmatmul.mubr.bf16.gmra.mrb[0].mxu0 %v467
    %v629 = vpop.f32.mrb[0].mxu0
    %v630 = vadd.f32 %v489, %v629
    %v631 = vpop.f32.mrb[0].mxu0
    %v632 = vpop.f32.mrb[0].mxu0
    %v633 = vadd.f32 %v489, %v632
    %v634 = vpop.f32.mrb[0].mxu0
    %635 = vdwg.mxu0
    %636 = vst [vmem:[#allocation2] sm:$0xff] %v574
    %637 = vst [vmem:[#allocation2 + $0x8] sm:$0xff] %v577
    %638 = vst [vmem:[#allocation2 + $0x10] sm:$0xff] %v582
    %639 = vst [vmem:[#allocation2 + $0x18] sm:$0xff] %v585
    %640 = vst [vmem:[#allocation2 + $0x20] sm:$0xff] %v590
    %641 = vst [vmem:[#allocation2 + $0x28] sm:$0xff] %v593
    %642 = vst [vmem:[#allocation2 + $0x30] sm:$0xff] %v598
    %643 = vst [vmem:[#allocation2 + $0x38] sm:$0xff] %v601
    %644 = vst [vmem:[#allocation2 + $0x40] sm:$0xff] %v606
    %645 = vst [vmem:[#allocation2 + $0x48] sm:$0xff] %v609
    %646 = vst [vmem:[#allocation2 + $0x50] sm:$0xff] %v614
    %647 = vst [vmem:[#allocation2 + $0x58] sm:$0xff] %v617
    %648 = vst [vmem:[#allocation2 + $0x60] sm:$0xff] %v622
    %649 = vst [vmem:[#allocation2 + $0x68] sm:$0xff] %v625
    %650 = vst [vmem:[#allocation2 + $0x70] sm:$0xff] %v630
    %651 = vst [vmem:[#allocation2 + $0x78] sm:$0xff] %v633
    %v652 = vpack.c.bf16 %v577, %v574
    %v653 = vpack.c.bf16 %v585, %v582
    %v654 = vpack.c.bf16 %v593, %v590
    %v655 = vpack.c.bf16 %v601, %v598
    %v656 = vpack.c.bf16 %v609, %v606
    %v657 = vpack.c.bf16 %v617, %v614
    %v658 = vpack.c.bf16 %v625, %v622
    %v659 = vpack.c.bf16 %v633, %v630
    %v660 = vld [vmem:[#allocation11] sm:$0xf]
    %v661 = vld [vmem:[#allocation11 + $0x4] sm:$0xf]
    %v662 = vld [vmem:[#allocation11 + $0x8] sm:$0xf]
    %v663 = vld [vmem:[#allocation11 + $0xc] sm:$0xf]
    %v664 = vld [vmem:[#allocation11 + $0x10] sm:$0xf]
    %v665 = vld [vmem:[#allocation11 + $0x14] sm:$0xf]
    %v666 = vld [vmem:[#allocation11 + $0x18] sm:$0xf]
    %v667 = vld [vmem:[#allocation11 + $0x1c] sm:$0xf]
    %v668 = vld [vmem:[#allocation11 + $0x20] sm:$0xf]
    %v669 = vld [vmem:[#allocation11 + $0x24] sm:$0xf]
    %v670 = vld [vmem:[#allocation11 + $0x28] sm:$0xf]
    %v671 = vld [vmem:[#allocation11 + $0x2c] sm:$0xf]
    %v672 = vld [vmem:[#allocation11 + $0x30] sm:$0xf]
    %v673 = vld [vmem:[#allocation11 + $0x34] sm:$0xf]
    %v674 = vld [vmem:[#allocation11 + $0x38] sm:$0xf]
    %v675 = vld [vmem:[#allocation11 + $0x3c] sm:$0xf]
    %v676 = vld [vmem:[#allocation12] sm:$0x1]
    %v678 = vlaneseq
    %v679 = vshrl.u32 %v678, 7
    %v680 = vsub.s32 0, %v679
    %v681 = vrot.slane %v676, %v680
    %v699 = vunpack.c.l.b16 %v660
    %v700 = vunpack.c.l.b16 %v661
    %v701 = vunpack.c.l.b16 %v662
    %v702 = vunpack.c.l.b16 %v663
    %v703 = vunpack.c.l.b16 %v664
    %v704 = vunpack.c.l.b16 %v665
    %v705 = vunpack.c.l.b16 %v666
    %v706 = vunpack.c.l.b16 %v667
    %v707 = vunpack.c.l.b16 %v668
    %v708 = vunpack.c.l.b16 %v669
    %v709 = vunpack.c.l.b16 %v670
    %v710 = vunpack.c.l.b16 %v671
    %v711 = vunpack.c.l.b16 %v672
    %v712 = vunpack.c.l.b16 %v673
    %v713 = vunpack.c.l.b16 %v674
    %v714 = vunpack.c.l.b16 %v675
    %v715 = vpack.c.b16 %v700, %v699
    %v716 = vpack.c.b16 %v702, %v701
    %v717 = vpack.c.b16 %v704, %v703
    %v718 = vpack.c.b16 %v706, %v705
    %v719 = vpack.c.b16 %v708, %v707
    %v720 = vpack.c.b16 %v710, %v709
    %v721 = vpack.c.b16 %v712, %v711
    %v722 = vpack.c.b16 %v714, %v713
    %731 = vmatprep.subr.bf16.mxu0 0
    %732 = vmatpush1.bf16.msra.mxu0 %v715
    %733 = vmatprep.subr.bf16.mxu0 0
    %734 = vmatpush1.bf16.msra.mxu0 %v716
    %735 = vmatprep.subr.bf16.mxu0 0
    %736 = vmatpush1.bf16.msra.mxu0 %v717
    %737 = vmatprep.subr.bf16.mxu0 0
    %738 = vmatpush1.bf16.msra.mxu0 %v718
    %739 = vmatprep.subr.bf16.mxu0 0
    %740 = vmatpush1.bf16.msra.mxu0 %v719
    %741 = vmatprep.subr.bf16.mxu0 0
    %742 = vmatpush1.bf16.msra.mxu0 %v720
    %743 = vmatprep.subr.bf16.mxu0 0
    %744 = vmatpush1.bf16.msra.mxu0 %v721
    %745 = vmatprep.subr.bf16.mxu0 0
    %746 = vmatpush1.bf16.msra.mxu0 %v722
    %747 = vmatprep.subr.bf16.mxu0 0
    %748 = vmatpush1.bf16.msra.mxu0 0
    %749 = vmatprep.subr.bf16.mxu0 0
    %750 = vmatpush1.bf16.msra.mxu0 0
    %751 = vmatprep.subr.bf16.mxu0 0
    %752 = vmatpush1.bf16.msra.mxu0 0
    %753 = vmatprep.subr.bf16.mxu0 0
    %754 = vmatpush1.bf16.msra.mxu0 0
    %755 = vmatprep.subr.bf16.mxu0 0
    %756 = vmatpush1.bf16.msra.mxu0 0
    %757 = vmatprep.subr.bf16.mxu0 0
    %758 = vmatpush1.bf16.msra.mxu0 0
    %759 = vmatprep.subr.bf16.mxu0 0
    %760 = vmatpush1.bf16.msra.mxu0 0
    %761 = vmatprep.subr.bf16.mxu0 0
    %762 = vmatpush1.bf16.msra.mxu0 0
    %763 = vmatprep.mubr.bf16.mxu0 0
    %764 = vmatmul.mubr.bf16.gmra.mrb[0].mxu0 %v652
    %v765 = vpop.f32.mrb[0].mxu0
    %v766 = vadd.f32 %v681, %v765
    %v767 = vpop.f32.mrb[0].mxu0
    %v768 = vpop.f32.mrb[0].mxu0
    %v769 = vadd.f32 %v681, %v768
    %v770 = vpop.f32.mrb[0].mxu0
    %771 = vmatprep.mubr.bf16.mxu0 0
    %772 = vmatmul.mubr.bf16.gmra.mrb[0].mxu0 %v653
    %v773 = vpop.f32.mrb[0].mxu0
    %v774 = vadd.f32 %v681, %v773
    %v775 = vpop.f32.mrb[0].mxu0
    %v776 = vpop.f32.mrb[0].mxu0
    %v777 = vadd.f32 %v681, %v776
    %v778 = vpop.f32.mrb[0].mxu0
    %779 = vmatprep.mubr.bf16.mxu0 0
    %780 = vmatmul.mubr.bf16.gmra.mrb[0].mxu0 %v654
    %v781 = vpop.f32.mrb[0].mxu0
    %v782 = vadd.f32 %v681, %v781
    %v783 = vpop.f32.mrb[0].mxu0
    %v784 = vpop.f32.mrb[0].mxu0
    %v785 = vadd.f32 %v681, %v784
    %v786 = vpop.f32.mrb[0].mxu0
    %787 = vmatprep.mubr.bf16.mxu0 0
    %788 = vmatmul.mubr.bf16.gmra.mrb[0].mxu0 %v655
    %v789 = vpop.f32.mrb[0].mxu0
    %v790 = vadd.f32 %v681, %v789
    %v791 = vpop.f32.mrb[0].mxu0
    %v792 = vpop.f32.mrb[0].mxu0
    %v793 = vadd.f32 %v681, %v792
    %v794 = vpop.f32.mrb[0].mxu0
    %795 = vmatprep.mubr.bf16.mxu0 0
    %796 = vmatmul.mubr.bf16.gmra.mrb[0].mxu0 %v656
    %v797 = vpop.f32.mrb[0].mxu0
    %v798 = vadd.f32 %v681, %v797
    %v799 = vpop.f32.mrb[0].mxu0
    %v800 = vpop.f32.mrb[0].mxu0
    %v801 = vadd.f32 %v681, %v800
    %v802 = vpop.f32.mrb[0].mxu0
    %803 = vmatprep.mubr.bf16.mxu0 0
    %804 = vmatmul.mubr.bf16.gmra.mrb[0].mxu0 %v657
    %v805 = vpop.f32.mrb[0].mxu0
    %v806 = vadd.f32 %v681, %v805
    %v807 = vpop.f32.mrb[0].mxu0
    %v808 = vpop.f32.mrb[0].mxu0
    %v809 = vadd.f32 %v681, %v808
    %v810 = vpop.f32.mrb[0].mxu0
    %811 = vmatprep.mubr.bf16.mxu0 0
    %812 = vmatmul.mubr.bf16.gmra.mrb[0].mxu0 %v658
    %v813 = vpop.f32.mrb[0].mxu0
    %v814 = vadd.f32 %v681, %v813
    %v815 = vpop.f32.mrb[0].mxu0
    %v816 = vpop.f32.mrb[0].mxu0
    %v817 = vadd.f32 %v681, %v816
    %v818 = vpop.f32.mrb[0].mxu0
    %819 = vmatprep.mubr.bf16.mxu0 0
    %820 = vmatmul.mubr.bf16.gmra.mrb[0].mxu0 %v659
    %v821 = vpop.f32.mrb[0].mxu0
    %v822 = vadd.f32 %v681, %v821
    %v823 = vpop.f32.mrb[0].mxu0
    %v824 = vpop.f32.mrb[0].mxu0
    %v825 = vadd.f32 %v681, %v824
    %v826 = vpop.f32.mrb[0].mxu0
    %827 = vdwg.mxu0
    %v828 = vmax.f32 %v766, 0.0
    %v829 = vmax.f32 %v769, 0.0
    %v830 = vmax.f32 %v774, 0.0
    %v831 = vmax.f32 %v777, 0.0
    %v832 = vmax.f32 %v782, 0.0
    %v833 = vmax.f32 %v785, 0.0
    %v834 = vmax.f32 %v790, 0.0
    %v835 = vmax.f32 %v793, 0.0
    %v836 = vmax.f32 %v798, 0.0
    %v837 = vmax.f32 %v801, 0.0
    %v838 = vmax.f32 %v806, 0.0
    %v839 = vmax.f32 %v809, 0.0
    %v840 = vmax.f32 %v814, 0.0
    %v841 = vmax.f32 %v817, 0.0
    %v842 = vmax.f32 %v822, 0.0
    %v843 = vmax.f32 %v825, 0.0
    %v844 = vld [vmem:[%s9] sm:$0xf]
    %v845 = vld [vmem:[%s9 + $0x4] sm:$0xf]
    %v846 = vld [vmem:[%s9 + $0x8] sm:$0xf]
    %v847 = vld [vmem:[%s9 + $0xc] sm:$0xf]
    %v848 = vld [vmem:[%s9 + $0x10] sm:$0xf]
    %v849 = vld [vmem:[%s9 + $0x14] sm:$0xf]
    %v850 = vld [vmem:[%s9 + $0x18] sm:$0xf]
    %v851 = vld [vmem:[%s9 + $0x1c] sm:$0xf]
    %v852 = vld [vmem:[%s9 + $0x20] sm:$0xf]
    %v853 = vld [vmem:[%s9 + $0x24] sm:$0xf]
    %v854 = vld [vmem:[%s9 + $0x28] sm:$0xf]
    %v855 = vld [vmem:[%s9 + $0x2c] sm:$0xf]
    %v856 = vld [vmem:[%s9 + $0x30] sm:$0xf]
    %v857 = vld [vmem:[%s9 + $0x34] sm:$0xf]
    %v858 = vld [vmem:[%s9 + $0x38] sm:$0xf]
    %v859 = vld [vmem:[%s9 + $0x3c] sm:$0xf]
    %v860 = vld [vmem:[%s10] sm:$0x1]
    %v862 = vlaneseq
    %v863 = vshrl.u32 %v862, 7
    %v864 = vsub.s32 0, %v863
    %v865 = vrot.slane %v860, %v864
    %v883 = vunpack.c.l.b16 %v844
    %v884 = vunpack.c.l.b16 %v845
    %v885 = vunpack.c.l.b16 %v846
    %v886 = vunpack.c.l.b16 %v847
    %v887 = vunpack.c.l.b16 %v848
    %v888 = vunpack.c.l.b16 %v849
    %v889 = vunpack.c.l.b16 %v850
    %v890 = vunpack.c.l.b16 %v851
    %v891 = vunpack.c.l.b16 %v852
    %v892 = vunpack.c.l.b16 %v853
    %v893 = vunpack.c.l.b16 %v854
    %v894 = vunpack.c.l.b16 %v855
    %v895 = vunpack.c.l.b16 %v856
    %v896 = vunpack.c.l.b16 %v857
    %v897 = vunpack.c.l.b16 %v858
    %v898 = vunpack.c.l.b16 %v859
    %v899 = vpack.c.b16 %v884, %v883
    %v900 = vpack.c.b16 %v886, %v885
    %v901 = vpack.c.b16 %v888, %v887
    %v902 = vpack.c.b16 %v890, %v889
    %v903 = vpack.c.b16 %v892, %v891
    %v904 = vpack.c.b16 %v894, %v893
    %v905 = vpack.c.b16 %v896, %v895
    %v906 = vpack.c.b16 %v898, %v897
    %915 = vmatprep.subr.bf16.mxu0 0
    %916 = vmatpush1.bf16.msra.mxu0 %v899
    %917 = vmatprep.subr.bf16.mxu0 0
    %918 = vmatpush1.bf16.msra.mxu0 %v900
    %919 = vmatprep.subr.bf16.mxu0 0
    %920 = vmatpush1.bf16.msra.mxu0 %v901
    %921 = vmatprep.subr.bf16.mxu0 0
    %922 = vmatpush1.bf16.msra.mxu0 %v902
    %923 = vmatprep.subr.bf16.mxu0 0
    %924 = vmatpush1.bf16.msra.mxu0 %v903
    %925 = vmatprep.subr.bf16.mxu0 0
    %926 = vmatpush1.bf16.msra.mxu0 %v904
    %927 = vmatprep.subr.bf16.mxu0 0
    %928 = vmatpush1.bf16.msra.mxu0 %v905
    %929 = vmatprep.subr.bf16.mxu0 0
    %930 = vmatpush1.bf16.msra.mxu0 %v906
    %931 = vmatprep.subr.bf16.mxu0 0
    %932 = vmatpush1.bf16.msra.mxu0 0
    %933 = vmatprep.subr.bf16.mxu0 0
    %934 = vmatpush1.bf16.msra.mxu0 0
    %935 = vmatprep.subr.bf16.mxu0 0
    %936 = vmatpush1.bf16.msra.mxu0 0
    %937 = vmatprep.subr.bf16.mxu0 0
    %938 = vmatpush1.bf16.msra.mxu0 0
    %939 = vmatprep.subr.bf16.mxu0 0
    %940 = vmatpush1.bf16.msra.mxu0 0
    %941 = vmatprep.subr.bf16.mxu0 0
    %942 = vmatpush1.bf16.msra.mxu0 0
    %943 = vmatprep.subr.bf16.mxu0 0
    %944 = vmatpush1.bf16.msra.mxu0 0
    %945 = vmatprep.subr.bf16.mxu0 0
    %946 = vmatpush1.bf16.msra.mxu0 0
    %947 = vmatprep.mubr.bf16.mxu0 0
    %948 = vmatmul.mubr.bf16.gmra.mrb[0].mxu0 %v652
    %v949 = vpop.f32.mrb[0].mxu0
    %v950 = vadd.f32 %v865, %v949
    %v951 = vpop.f32.mrb[0].mxu0
    %v952 = vpop.f32.mrb[0].mxu0
    %v953 = vadd.f32 %v865, %v952
    %v954 = vpop.f32.mrb[0].mxu0
    %955 = vmatprep.mubr.bf16.mxu0 0
    %956 = vmatmul.mubr.bf16.gmra.mrb[0].mxu0 %v653
    %v957 = vpop.f32.mrb[0].mxu0
    %v958 = vadd.f32 %v865, %v957
    %v959 = vpop.f32.mrb[0].mxu0
    %v960 = vpop.f32.mrb[0].mxu0
    %v961 = vadd.f32 %v865, %v960
    %v962 = vpop.f32.mrb[0].mxu0
    %963 = vmatprep.mubr.bf16.mxu0 0
    %964 = vmatmul.mubr.bf16.gmra.mrb[0].mxu0 %v654
    %v965 = vpop.f32.mrb[0].mxu0
    %v966 = vadd.f32 %v865, %v965
    %v967 = vpop.f32.mrb[0].mxu0
    %v968 = vpop.f32.mrb[0].mxu0
    %v969 = vadd.f32 %v865, %v968
    %v970 = vpop.f32.mrb[0].mxu0
    %971 = vmatprep.mubr.bf16.mxu0 0
    %972 = vmatmul.mubr.bf16.gmra.mrb[0].mxu0 %v655
    %v973 = vpop.f32.mrb[0].mxu0
    %v974 = vadd.f32 %v865, %v973
    %v975 = vpop.f32.mrb[0].mxu0
    %v976 = vpop.f32.mrb[0].mxu0
    %v977 = vadd.f32 %v865, %v976
    %v978 = vpop.f32.mrb[0].mxu0
    %979 = vmatprep.mubr.bf16.mxu0 0
    %980 = vmatmul.mubr.bf16.gmra.mrb[0].mxu0 %v656
    %v981 = vpop.f32.mrb[0].mxu0
    %v982 = vadd.f32 %v865, %v981
    %v983 = vpop.f32.mrb[0].mxu0
    %v984 = vpop.f32.mrb[0].mxu0
    %v985 = vadd.f32 %v865, %v984
    %v986 = vpop.f32.mrb[0].mxu0
    %987 = vmatprep.mubr.bf16.mxu0 0
    %988 = vmatmul.mubr.bf16.gmra.mrb[0].mxu0 %v657
    %v989 = vpop.f32.mrb[0].mxu0
    %v990 = vadd.f32 %v865, %v989
    %v991 = vpop.f32.mrb[0].mxu0
    %v992 = vpop.f32.mrb[0].mxu0
    %v993 = vadd.f32 %v865, %v992
    %v994 = vpop.f32.mrb[0].mxu0
    %995 = vmatprep.mubr.bf16.mxu0 0
    %996 = vmatmul.mubr.bf16.gmra.mrb[0].mxu0 %v658
    %v997 = vpop.f32.mrb[0].mxu0
    %v998 = vadd.f32 %v865, %v997
    %v999 = vpop.f32.mrb[0].mxu0
    %v1000 = vpop.f32.mrb[0].mxu0
    %v1001 = vadd.f32 %v865, %v1000
    %v1002 = vpop.f32.mrb[0].mxu0
    %1003 = vmatprep.mubr.bf16.mxu0 0
    %1004 = vmatmul.mubr.bf16.gmra.mrb[0].mxu0 %v659
    %v1005 = vpop.f32.mrb[0].mxu0
    %v1006 = vadd.f32 %v865, %v1005
    %v1007 = vpop.f32.mrb[0].mxu0
    %v1008 = vpop.f32.mrb[0].mxu0
    %v1009 = vadd.f32 %v865, %v1008
    %v1010 = vpop.f32.mrb[0].mxu0
    %1011 = vdwg.mxu0
    %v1012 = vmax.f32 %v950, 0.0
    %v1013 = vmax.f32 %v953, 0.0
    %v1014 = vmax.f32 %v958, 0.0
    %v1015 = vmax.f32 %v961, 0.0
    %v1016 = vmax.f32 %v966, 0.0
    %v1017 = vmax.f32 %v969, 0.0
    %v1018 = vmax.f32 %v974, 0.0
    %v1019 = vmax.f32 %v977, 0.0
    %v1020 = vmax.f32 %v982, 0.0
    %v1021 = vmax.f32 %v985, 0.0
    %v1022 = vmax.f32 %v990, 0.0
    %v1023 = vmax.f32 %v993, 0.0
    %v1024 = vmax.f32 %v998, 0.0
    %v1025 = vmax.f32 %v1001, 0.0
    %v1026 = vmax.f32 %v1006, 0.0
    %v1027 = vmax.f32 %v1009, 0.0
    %v1028 = vld [vmem:[#allocation14] sm:$0xf]
    %v1029 = vld [vmem:[#allocation14 + $0x4] sm:$0xf]
    %v1030 = vld [vmem:[#allocation14 + $0x8] sm:$0xf]
    %v1031 = vld [vmem:[#allocation14 + $0xc] sm:$0xf]
    %v1032 = vld [vmem:[#allocation14 + $0x10] sm:$0xf]
    %v1033 = vld [vmem:[#allocation14 + $0x14] sm:$0xf]
    %v1034 = vld [vmem:[#allocation14 + $0x18] sm:$0xf]
    %v1035 = vld [vmem:[#allocation14 + $0x1c] sm:$0xf]
    %v1036 = vld [vmem:[#allocation14 + $0x20] sm:$0xf]
    %v1037 = vld [vmem:[#allocation14 + $0x24] sm:$0xf]
    %v1038 = vld [vmem:[#allocation14 + $0x28] sm:$0xf]
    %v1039 = vld [vmem:[#allocation14 + $0x2c] sm:$0xf]
    %v1040 = vld [vmem:[#allocation14 + $0x30] sm:$0xf]
    %v1041 = vld [vmem:[#allocation14 + $0x34] sm:$0xf]
    %v1042 = vld [vmem:[#allocation14 + $0x38] sm:$0xf]
    %v1043 = vld [vmem:[#allocation14 + $0x3c] sm:$0xf]
    %v1044 = vld [vmem:[%s12] sm:$0x1]
    %v1046 = vlaneseq
    %v1047 = vshrl.u32 %v1046, 7
    %v1048 = vsub.s32 0, %v1047
    %v1049 = vrot.slane %v1044, %v1048
    %v1067 = vunpack.c.l.b16 %v1028
    %v1068 = vunpack.c.l.b16 %v1029
    %v1069 = vunpack.c.l.b16 %v1030
    %v1070 = vunpack.c.l.b16 %v1031
    %v1071 = vunpack.c.l.b16 %v1032
    %v1072 = vunpack.c.l.b16 %v1033
    %v1073 = vunpack.c.l.b16 %v1034
    %v1074 = vunpack.c.l.b16 %v1035
    %v1075 = vunpack.c.l.b16 %v1036
    %v1076 = vunpack.c.l.b16 %v1037
    %v1077 = vunpack.c.l.b16 %v1038
    %v1078 = vunpack.c.l.b16 %v1039
    %v1079 = vunpack.c.l.b16 %v1040
    %v1080 = vunpack.c.l.b16 %v1041
    %v1081 = vunpack.c.l.b16 %v1042
    %v1082 = vunpack.c.l.b16 %v1043
    %v1083 = vpack.c.b16 %v1068, %v1067
    %v1084 = vpack.c.b16 %v1070, %v1069
    %v1085 = vpack.c.b16 %v1072, %v1071
    %v1086 = vpack.c.b16 %v1074, %v1073
    %v1087 = vpack.c.b16 %v1076, %v1075
    %v1088 = vpack.c.b16 %v1078, %v1077
    %v1089 = vpack.c.b16 %v1080, %v1079
    %v1090 = vpack.c.b16 %v1082, %v1081
    %1099 = vmatprep.subr.bf16.mxu0 0
    %1100 = vmatpush1.bf16.msra.mxu0 %v1083
    %1101 = vmatprep.subr.bf16.mxu0 0
    %1102 = vmatpush1.bf16.msra.mxu0 %v1084
    %1103 = vmatprep.subr.bf16.mxu0 0
    %1104 = vmatpush1.bf16.msra.mxu0 %v1085
    %1105 = vmatprep.subr.bf16.mxu0 0
    %1106 = vmatpush1.bf16.msra.mxu0 %v1086
    %1107 = vmatprep.subr.bf16.mxu0 0
    %1108 = vmatpush1.bf16.msra.mxu0 %v1087
    %1109 = vmatprep.subr.bf16.mxu0 0
    %1110 = vmatpush1.bf16.msra.mxu0 %v1088
    %1111 = vmatprep.subr.bf16.mxu0 0
    %1112 = vmatpush1.bf16.msra.mxu0 %v1089
    %1113 = vmatprep.subr.bf16.mxu0 0
    %1114 = vmatpush1.bf16.msra.mxu0 %v1090
    %1115 = vmatprep.subr.bf16.mxu0 0
    %1116 = vmatpush1.bf16.msra.mxu0 0
    %1117 = vmatprep.subr.bf16.mxu0 0
    %1118 = vmatpush1.bf16.msra.mxu0 0
    %1119 = vmatprep.subr.bf16.mxu0 0
    %1120 = vmatpush1.bf16.msra.mxu0 0
    %1121 = vmatprep.subr.bf16.mxu0 0
    %1122 = vmatpush1.bf16.msra.mxu0 0
    %1123 = vmatprep.subr.bf16.mxu0 0
    %1124 = vmatpush1.bf16.msra.mxu0 0
    %1125 = vmatprep.subr.bf16.mxu0 0
    %1126 = vmatpush1.bf16.msra.mxu0 0
    %1127 = vmatprep.subr.bf16.mxu0 0
    %1128 = vmatpush1.bf16.msra.mxu0 0
    %1129 = vmatprep.subr.bf16.mxu0 0
    %1130 = vmatpush1.bf16.msra.mxu0 0
    %1131 = vmatprep.mubr.bf16.mxu0 0
    %1132 = vmatmul.mubr.bf16.gmra.mrb[0].mxu0 %v652
    %v1133 = vpop.f32.mrb[0].mxu0
    %v1134 = vadd.f32 %v1049, %v1133
    %v1135 = vpop.f32.mrb[0].mxu0
    %v1136 = vpop.f32.mrb[0].mxu0
    %v1137 = vadd.f32 %v1049, %v1136
    %v1138 = vpop.f32.mrb[0].mxu0
    %1139 = vmatprep.mubr.bf16.mxu0 0
    %1140 = vmatmul.mubr.bf16.gmra.mrb[0].mxu0 %v653
    %v1141 = vpop.f32.mrb[0].mxu0
    %v1142 = vadd.f32 %v1049, %v1141
    %v1143 = vpop.f32.mrb[0].mxu0
    %v1144 = vpop.f32.mrb[0].mxu0
    %v1145 = vadd.f32 %v1049, %v1144
    %v1146 = vpop.f32.mrb[0].mxu0
    %1147 = vmatprep.mubr.bf16.mxu0 0
    %1148 = vmatmul.mubr.bf16.gmra.mrb[0].mxu0 %v654
    %v1149 = vpop.f32.mrb[0].mxu0
    %v1150 = vadd.f32 %v1049, %v1149
    %v1151 = vpop.f32.mrb[0].mxu0
    %v1152 = vpop.f32.mrb[0].mxu0
    %v1153 = vadd.f32 %v1049, %v1152
    %v1154 = vpop.f32.mrb[0].mxu0
    %1155 = vmatprep.mubr.bf16.mxu0 0
    %1156 = vmatmul.mubr.bf16.gmra.mrb[0].mxu0 %v655
    %v1157 = vpop.f32.mrb[0].mxu0
    %v1158 = vadd.f32 %v1049, %v1157
    %v1159 = vpop.f32.mrb[0].mxu0
    %v1160 = vpop.f32.mrb[0].mxu0
    %v1161 = vadd.f32 %v1049, %v1160
    %v1162 = vpop.f32.mrb[0].mxu0
    %1163 = vmatprep.mubr.bf16.mxu0 0
    %1164 = vmatmul.mubr.bf16.gmra.mrb[0].mxu0 %v656
    %v1165 = vpop.f32.mrb[0].mxu0
    %v1166 = vadd.f32 %v1049, %v1165
    %v1167 = vpop.f32.mrb[0].mxu0
    %v1168 = vpop.f32.mrb[0].mxu0
    %v1169 = vadd.f32 %v1049, %v1168
    %v1170 = vpop.f32.mrb[0].mxu0
    %1171 = vmatprep.mubr.bf16.mxu0 0
    %1172 = vmatmul.mubr.bf16.gmra.mrb[0].mxu0 %v657
    %v1173 = vpop.f32.mrb[0].mxu0
    %v1174 = vadd.f32 %v1049, %v1173
    %v1175 = vpop.f32.mrb[0].mxu0
    %v1176 = vpop.f32.mrb[0].mxu0
    %v1177 = vadd.f32 %v1049, %v1176
    %v1178 = vpop.f32.mrb[0].mxu0
    %1179 = vmatprep.mubr.bf16.mxu0 0
    %1180 = vmatmul.mubr.bf16.gmra.mrb[0].mxu0 %v658
    %v1181 = vpop.f32.mrb[0].mxu0
    %v1182 = vadd.f32 %v1049, %v1181
    %v1183 = vpop.f32.mrb[0].mxu0
    %v1184 = vpop.f32.mrb[0].mxu0
    %v1185 = vadd.f32 %v1049, %v1184
    %v1186 = vpop.f32.mrb[0].mxu0
    %1187 = vmatprep.mubr.bf16.mxu0 0
    %1188 = vmatmul.mubr.bf16.gmra.mrb[0].mxu0 %v659
    %v1189 = vpop.f32.mrb[0].mxu0
    %v1190 = vadd.f32 %v1049, %v1189
    %v1191 = vpop.f32.mrb[0].mxu0
    %v1192 = vpop.f32.mrb[0].mxu0
    %v1193 = vadd.f32 %v1049, %v1192
    %v1194 = vpop.f32.mrb[0].mxu0
    %1195 = vdwg.mxu0
    %v1196 = vmax.f32 %v1134, 0.0
    %v1197 = vmax.f32 %v1137, 0.0
    %v1198 = vmax.f32 %v1142, 0.0
    %v1199 = vmax.f32 %v1145, 0.0
    %v1200 = vmax.f32 %v1150, 0.0
    %v1201 = vmax.f32 %v1153, 0.0
    %v1202 = vmax.f32 %v1158, 0.0
    %v1203 = vmax.f32 %v1161, 0.0
    %v1204 = vmax.f32 %v1166, 0.0
    %v1205 = vmax.f32 %v1169, 0.0
    %v1206 = vmax.f32 %v1174, 0.0
    %v1207 = vmax.f32 %v1177, 0.0
    %v1208 = vmax.f32 %v1182, 0.0
    %v1209 = vmax.f32 %v1185, 0.0
    %v1210 = vmax.f32 %v1190, 0.0
    %v1211 = vmax.f32 %v1193, 0.0
    %v1212 = vpack.c.bf16 %v829, %v828
    %v1213 = vpack.c.bf16 %v831, %v830
    %v1214 = vpack.c.bf16 %v833, %v832
    %v1215 = vpack.c.bf16 %v835, %v834
    %v1216 = vpack.c.bf16 %v837, %v836
    %v1217 = vpack.c.bf16 %v839, %v838
    %v1218 = vpack.c.bf16 %v841, %v840
    %v1219 = vpack.c.bf16 %v843, %v842
    %1220 = vxpose.xlu0.b32.start [1/16] %v1012, 128
    %1221 = vxpose.xlu0.b32.cont [2/16] %v1013, 128
    %1222 = vxpose.xlu0.b32.cont [3/16] %v1014, 128
    %1223 = vxpose.xlu0.b32.cont [4/16] %v1015, 128
    %1224 = vxpose.xlu0.b32.cont [5/16] %v1016, 128
    %1225 = vxpose.xlu0.b32.cont [6/16] %v1017, 128
    %1226 = vxpose.xlu0.b32.cont [7/16] %v1018, 128
    %1227 = vxpose.xlu0.b32.cont [8/16] %v1019, 128
    %1228 = vxpose.xlu0.b32.cont [9/16] %v1020, 128
    %1229 = vxpose.xlu0.b32.cont [10/16] %v1021, 128
    %1230 = vxpose.xlu0.b32.cont [11/16] %v1022, 128
    %1231 = vxpose.xlu0.b32.cont [12/16] %v1023, 128
    %1232 = vxpose.xlu0.b32.cont [13/16] %v1024, 128
    %1233 = vxpose.xlu0.b32.cont [14/16] %v1025, 128
    %1234 = vxpose.xlu0.b32.cont [15/16] %v1026, 128
    %1235 = vxpose.xlu0.b32.end [16/16] %v1027, 128
    %v1236 = vpop.trf.xlu0
    %v1237 = vpop.trf.xlu0
    %v1238 = vpop.trf.xlu0
    %v1239 = vpop.trf.xlu0
    %v1240 = vpop.trf.xlu0
    %v1241 = vpop.trf.xlu0
    %v1242 = vpop.trf.xlu0
    %v1243 = vpop.trf.xlu0
    %v1244 = vpop.trf.xlu0
    %v1245 = vpop.trf.xlu0
    %v1246 = vpop.trf.xlu0
    %v1247 = vpop.trf.xlu0
    %v1248 = vpop.trf.xlu0
    %v1249 = vpop.trf.xlu0
    %v1250 = vpop.trf.xlu0
    %v1251 = vpop.trf.xlu0
    %v1252 = vpack.c.bf16 %v1237, %v1236
    %v1253 = vpack.c.bf16 %v1239, %v1238
    %v1254 = vpack.c.bf16 %v1241, %v1240
    %v1255 = vpack.c.bf16 %v1243, %v1242
    %v1256 = vpack.c.bf16 %v1245, %v1244
    %v1257 = vpack.c.bf16 %v1247, %v1246
    %v1258 = vpack.c.bf16 %v1249, %v1248
    %v1259 = vpack.c.bf16 %v1251, %v1250
    %v1260 = vpack.c.bf16 %v1197, %v1196
    %v1261 = vpack.c.bf16 %v1199, %v1198
    %v1262 = vpack.c.bf16 %v1201, %v1200
    %v1263 = vpack.c.bf16 %v1203, %v1202
    %v1264 = vpack.c.bf16 %v1205, %v1204
    %v1265 = vpack.c.bf16 %v1207, %v1206
    %v1266 = vpack.c.bf16 %v1209, %v1208
    %v1267 = vpack.c.bf16 %v1211, %v1210
    %v1268 = vld [vmem:[#allocation4] sm:$0xff]
    %v1269 = vld [vmem:[#allocation4 + $0x8] sm:$0xff]
    %v1270 = vld [vmem:[#allocation4 + $0x10] sm:$0xff]
    %v1271 = vld [vmem:[#allocation4 + $0x18] sm:$0xff]
    %v1272 = vld [vmem:[#allocation4 + $0x20] sm:$0xff]
    %v1273 = vld [vmem:[#allocation4 + $0x28] sm:$0xff]
    %v1274 = vld [vmem:[#allocation4 + $0x30] sm:$0xff]
    %v1275 = vld [vmem:[#allocation4 + $0x38] sm:$0xff]
    %v1276 = vld [vmem:[#allocation4 + $0x40] sm:$0xff]
    %v1277 = vld [vmem:[#allocation4 + $0x48] sm:$0xff]
    %v1278 = vld [vmem:[#allocation4 + $0x50] sm:$0xff]
    %v1279 = vld [vmem:[#allocation4 + $0x58] sm:$0xff]
    %v1280 = vld [vmem:[#allocation4 + $0x60] sm:$0xff]
    %v1281 = vld [vmem:[#allocation4 + $0x68] sm:$0xff]
    %v1282 = vld [vmem:[#allocation4 + $0x70] sm:$0xff]
    %v1283 = vld [vmem:[#allocation4 + $0x78] sm:$0xff]
    %vm1284 = vcmask 130048
    %v1286 = vsel %vm1284, %v1212, 0
    %v1289 = vsel %vm1284, %v1213, 0
    %v1292 = vsel %vm1284, %v1214, 0
    %v1295 = vsel %vm1284, %v1215, 0
    %v1298 = vsel %vm1284, %v1216, 0
    %v1301 = vsel %vm1284, %v1217, 0
    %v1304 = vsel %vm1284, %v1218, 0
    %v1307 = vsel %vm1284, %v1219, 0
    %1309 = vmatprep.subr.bf16.mxu0 0
    %1310 = vmatpush1.bf16.msra.mxu0 %v1252
    %1311 = vmatprep.subr.bf16.mxu0 0
    %1312 = vmatpush1.bf16.msra.mxu0 0
    %1313 = vmatprep.subr.bf16.mxu0 0
    %1314 = vmatpush1.bf16.msra.mxu0 0
    %1315 = vmatprep.subr.bf16.mxu0 0
    %1316 = vmatpush1.bf16.msra.mxu0 0
    %1317 = vmatprep.subr.bf16.mxu0 0
    %1318 = vmatpush1.bf16.msra.mxu0 0
    %1319 = vmatprep.subr.bf16.mxu0 0
    %1320 = vmatpush1.bf16.msra.mxu0 0
    %1321 = vmatprep.subr.bf16.mxu0 0
    %1322 = vmatpush1.bf16.msra.mxu0 0
    %1323 = vmatprep.subr.bf16.mxu0 0
    %1324 = vmatpush1.bf16.msra.mxu0 0
    %1325 = vmatprep.subr.bf16.mxu0 0
    %1326 = vmatpush1.bf16.msra.mxu0 0
    %1327 = vmatprep.subr.bf16.mxu0 0
    %1328 = vmatpush1.bf16.msra.mxu0 0
    %1329 = vmatprep.subr.bf16.mxu0 0
    %1330 = vmatpush1.bf16.msra.mxu0 0
    %1331 = vmatprep.subr.bf16.mxu0 0
    %1332 = vmatpush1.bf16.msra.mxu0 0
    %1333 = vmatprep.subr.bf16.mxu0 0
    %1334 = vmatpush1.bf16.msra.mxu0 0
    %1335 = vmatprep.subr.bf16.mxu0 0
    %1336 = vmatpush1.bf16.msra.mxu0 0
    %1337 = vmatprep.subr.bf16.mxu0 0
    %1338 = vmatpush1.bf16.msra.mxu0 0
    %1339 = vmatprep.subr.bf16.mxu0 0
    %1340 = vmatpush1.bf16.msra.mxu0 0
    %1341 = vmatprep.mubr.bf16.mxu0 0
    %1342 = vmatmul.mubr.bf16.gmra.mrb[0].mxu0 %v1286
    %v1343 = vpop.f32.mrb[0].mxu0
    %v1344 = vadd.f32 %v1268, %v1343
    %v1345 = vpop.f32.mrb[0].mxu0
    %v1346 = vpop.f32.mrb[0].mxu0
    %v1347 = vadd.f32 %v1269, %v1346
    %v1348 = vpop.f32.mrb[0].mxu0
    %1349 = vmatprep.mubr.bf16.mxu0 0
    %1350 = vmatmul.mubr.bf16.gmra.mrb[0].mxu0 %v1289
    %v1351 = vpop.f32.mrb[0].mxu0
    %v1352 = vadd.f32 %v1270, %v1351
    %v1353 = vpop.f32.mrb[0].mxu0
    %v1354 = vpop.f32.mrb[0].mxu0
    %v1355 = vadd.f32 %v1271, %v1354
    %v1356 = vpop.f32.mrb[0].mxu0
    %1357 = vmatprep.mubr.bf16.mxu0 0
    %1358 = vmatmul.mubr.bf16.gmra.mrb[0].mxu0 %v1292
    %v1359 = vpop.f32.mrb[0].mxu0
    %v1360 = vadd.f32 %v1272, %v1359
    %v1361 = vpop.f32.mrb[0].mxu0
    %v1362 = vpop.f32.mrb[0].mxu0
    %v1363 = vadd.f32 %v1273, %v1362
    %v1364 = vpop.f32.mrb[0].mxu0
    %1365 = vmatprep.mubr.bf16.mxu0 0
    %1366 = vmatmul.mubr.bf16.gmra.mrb[0].mxu0 %v1295
    %v1367 = vpop.f32.mrb[0].mxu0
    %v1368 = vadd.f32 %v1274, %v1367
    %v1369 = vpop.f32.mrb[0].mxu0
    %v1370 = vpop.f32.mrb[0].mxu0
    %v1371 = vadd.f32 %v1275, %v1370
    %v1372 = vpop.f32.mrb[0].mxu0
    %1373 = vmatprep.mubr.bf16.mxu0 0
    %1374 = vmatmul.mubr.bf16.gmra.mrb[0].mxu0 %v1298
    %v1375 = vpop.f32.mrb[0].mxu0
    %v1376 = vadd.f32 %v1276, %v1375
    %v1377 = vpop.f32.mrb[0].mxu0
    %v1378 = vpop.f32.mrb[0].mxu0
    %v1379 = vadd.f32 %v1277, %v1378
    %v1380 = vpop.f32.mrb[0].mxu0
    %1381 = vmatprep.mubr.bf16.mxu0 0
    %1382 = vmatmul.mubr.bf16.gmra.mrb[0].mxu0 %v1301
    %v1383 = vpop.f32.mrb[0].mxu0
    %v1384 = vadd.f32 %v1278, %v1383
    %v1385 = vpop.f32.mrb[0].mxu0
    %v1386 = vpop.f32.mrb[0].mxu0
    %v1387 = vadd.f32 %v1279, %v1386
    %v1388 = vpop.f32.mrb[0].mxu0
    %1389 = vmatprep.mubr.bf16.mxu0 0
    %1390 = vmatmul.mubr.bf16.gmra.mrb[0].mxu0 %v1304
    %v1391 = vpop.f32.mrb[0].mxu0
    %v1392 = vadd.f32 %v1280, %v1391
    %v1393 = vpop.f32.mrb[0].mxu0
    %v1394 = vpop.f32.mrb[0].mxu0
    %v1395 = vadd.f32 %v1281, %v1394
    %v1396 = vpop.f32.mrb[0].mxu0
    %1397 = vmatprep.mubr.bf16.mxu0 0
    %1398 = vmatmul.mubr.bf16.gmra.mrb[0].mxu0 %v1307
    %v1399 = vpop.f32.mrb[0].mxu0
    %v1400 = vadd.f32 %v1282, %v1399
    %v1401 = vpop.f32.mrb[0].mxu0
    %v1402 = vpop.f32.mrb[0].mxu0
    %v1403 = vadd.f32 %v1283, %v1402
    %v1404 = vpop.f32.mrb[0].mxu0
    %1405 = vdwg.mxu0
    %1406 = vmax.xlane.f32.xlu0 %v1344
    %v1407 = vpop.xlane.xlu0 %1406
    %1408 = vmax.xlane.f32.xlu0 %v1347
    %v1409 = vpop.xlane.xlu0 %1408
    %1410 = vmax.xlane.f32.xlu0 %v1352
    %v1411 = vpop.xlane.xlu0 %1410
    %1412 = vmax.xlane.f32.xlu0 %v1355
    %v1413 = vpop.xlane.xlu0 %1412
    %1414 = vmax.xlane.f32.xlu0 %v1360
    %v1415 = vpop.xlane.xlu0 %1414
    %1416 = vmax.xlane.f32.xlu0 %v1363
    %v1417 = vpop.xlane.xlu0 %1416
    %1418 = vmax.xlane.f32.xlu0 %v1368
    %v1419 = vpop.xlane.xlu0 %1418
    %1420 = vmax.xlane.f32.xlu0 %v1371
    %v1421 = vpop.xlane.xlu0 %1420
    %1422 = vmax.xlane.f32.xlu0 %v1376
    %v1423 = vpop.xlane.xlu0 %1422
    %1424 = vmax.xlane.f32.xlu0 %v1379
    %v1425 = vpop.xlane.xlu0 %1424
    %1426 = vmax.xlane.f32.xlu0 %v1384
    %v1427 = vpop.xlane.xlu0 %1426
    %1428 = vmax.xlane.f32.xlu0 %v1387
    %v1429 = vpop.xlane.xlu0 %1428
    %1430 = vmax.xlane.f32.xlu0 %v1392
    %v1431 = vpop.xlane.xlu0 %1430
    %1432 = vmax.xlane.f32.xlu0 %v1395
    %v1433 = vpop.xlane.xlu0 %1432
    %1434 = vmax.xlane.f32.xlu0 %v1400
    %v1435 = vpop.xlane.xlu0 %1434
    %1436 = vmax.xlane.f32.xlu0 %v1403
    %v1437 = vpop.xlane.xlu0 %1436
    %v1438 = vsub.f32 %v1344, %v1407
    %v1439 = vsub.f32 %v1347, %v1409
    %v1440 = vsub.f32 %v1352, %v1411
    %v1441 = vsub.f32 %v1355, %v1413
    %v1442 = vsub.f32 %v1360, %v1415
    %v1443 = vsub.f32 %v1363, %v1417
    %v1444 = vsub.f32 %v1368, %v1419
    %v1445 = vsub.f32 %v1371, %v1421
    %v1446 = vsub.f32 %v1376, %v1423
    %v1447 = vsub.f32 %v1379, %v1425
    %v1448 = vsub.f32 %v1384, %v1427
    %v1449 = vsub.f32 %v1387, %v1429
    %v1450 = vsub.f32 %v1392, %v1431
    %v1451 = vsub.f32 %v1395, %v1433
    %v1452 = vsub.f32 %v1400, %v1435
    %v1453 = vsub.f32 %v1403, %v1437
    %v1454 = vmul.f32 %v1438, 1.442695
    %v1455 = vpow.pop %v1454
    %v1456 = vmul.f32 %v1439, 1.442695
    %v1457 = vpow.pop %v1456
    %v1458 = vmul.f32 %v1440, 1.442695
    %v1459 = vpow.pop %v1458
    %v1460 = vmul.f32 %v1441, 1.442695
    %v1461 = vpow.pop %v1460
    %v1462 = vmul.f32 %v1442, 1.442695
    %v1463 = vpow.pop %v1462
    %v1464 = vmul.f32 %v1443, 1.442695
    %v1465 = vpow.pop %v1464
    %v1466 = vmul.f32 %v1444, 1.442695
    %v1467 = vpow.pop %v1466
    %v1468 = vmul.f32 %v1445, 1.442695
    %v1469 = vpow.pop %v1468
    %v1470 = vmul.f32 %v1446, 1.442695
    %v1471 = vpow.pop %v1470
    %v1472 = vmul.f32 %v1447, 1.442695
    %v1473 = vpow.pop %v1472
    %v1474 = vmul.f32 %v1448, 1.442695
    %v1475 = vpow.pop %v1474
    %v1476 = vmul.f32 %v1449, 1.442695
    %v1477 = vpow.pop %v1476
    %v1478 = vmul.f32 %v1450, 1.442695
    %v1479 = vpow.pop %v1478
    %v1480 = vmul.f32 %v1451, 1.442695
    %v1481 = vpow.pop %v1480
    %v1482 = vmul.f32 %v1452, 1.442695
    %v1483 = vpow.pop %v1482
    %v1484 = vmul.f32 %v1453, 1.442695
    %v1485 = vpow.pop %v1484
    %1486 = vadd.xlane.f32.xlu0 %v1455
    %v1487 = vpop.xlane.xlu0 %1486
    %1488 = vadd.xlane.f32.xlu0 %v1457
    %v1489 = vpop.xlane.xlu0 %1488
    %1490 = vadd.xlane.f32.xlu0 %v1459
    %v1491 = vpop.xlane.xlu0 %1490
    %1492 = vadd.xlane.f32.xlu0 %v1461
    %v1493 = vpop.xlane.xlu0 %1492
    %1494 = vadd.xlane.f32.xlu0 %v1463
    %v1495 = vpop.xlane.xlu0 %1494
    %1496 = vadd.xlane.f32.xlu0 %v1465
    %v1497 = vpop.xlane.xlu0 %1496
    %1498 = vadd.xlane.f32.xlu0 %v1467
    %v1499 = vpop.xlane.xlu0 %1498
    %1500 = vadd.xlane.f32.xlu0 %v1469
    %v1501 = vpop.xlane.xlu0 %1500
    %1502 = vadd.xlane.f32.xlu0 %v1471
    %v1503 = vpop.xlane.xlu0 %1502
    %1504 = vadd.xlane.f32.xlu0 %v1473
    %v1505 = vpop.xlane.xlu0 %1504
    %1506 = vadd.xlane.f32.xlu0 %v1475
    %v1507 = vpop.xlane.xlu0 %1506
    %1508 = vadd.xlane.f32.xlu0 %v1477
    %v1509 = vpop.xlane.xlu0 %1508
    %1510 = vadd.xlane.f32.xlu0 %v1479
    %v1511 = vpop.xlane.xlu0 %1510
    %1512 = vadd.xlane.f32.xlu0 %v1481
    %v1513 = vpop.xlane.xlu0 %1512
    %1514 = vadd.xlane.f32.xlu0 %v1483
    %v1515 = vpop.xlane.xlu0 %1514
    %1516 = vadd.xlane.f32.xlu0 %v1485
    %v1517 = vpop.xlane.xlu0 %1516
    %v1518 = vrcp.pop %v1487
    %v1519 = vrcp.pop %v1489
    %v1520 = vrcp.pop %v1491
    %v1521 = vrcp.pop %v1493
    %v1522 = vrcp.pop %v1495
    %v1523 = vrcp.pop %v1497
    %v1524 = vrcp.pop %v1499
    %v1525 = vrcp.pop %v1501
    %v1526 = vrcp.pop %v1503
    %v1527 = vrcp.pop %v1505
    %v1528 = vrcp.pop %v1507
    %v1529 = vrcp.pop %v1509
    %v1530 = vrcp.pop %v1511
    %v1531 = vrcp.pop %v1513
    %v1532 = vrcp.pop %v1515
    %v1533 = vrcp.pop %v1517
    %v1534 = vmul.f32 %v1455, %v1518
    %v1535 = vmul.f32 %v1457, %v1519
    %v1536 = vmul.f32 %v1459, %v1520
    %v1537 = vmul.f32 %v1461, %v1521
    %v1538 = vmul.f32 %v1463, %v1522
    %v1539 = vmul.f32 %v1465, %v1523
    %v1540 = vmul.f32 %v1467, %v1524
    %v1541 = vmul.f32 %v1469, %v1525
    %v1542 = vmul.f32 %v1471, %v1526
    %v1543 = vmul.f32 %v1473, %v1527
    %v1544 = vmul.f32 %v1475, %v1528
    %v1545 = vmul.f32 %v1477, %v1529
    %v1546 = vmul.f32 %v1479, %v1530
    %v1547 = vmul.f32 %v1481, %v1531
    %v1548 = vmul.f32 %v1483, %v1532
    %v1549 = vmul.f32 %v1485, %v1533
    %v1550 = vpack.c.bf16 %v1535, %v1534
    %v1551 = vpack.c.bf16 %v1537, %v1536
    %v1552 = vpack.c.bf16 %v1539, %v1538
    %v1553 = vpack.c.bf16 %v1541, %v1540
    %v1554 = vpack.c.bf16 %v1543, %v1542
    %v1555 = vpack.c.bf16 %v1545, %v1544
    %v1556 = vpack.c.bf16 %v1547, %v1546
    %v1557 = vpack.c.bf16 %v1549, %v1548
    %1558 = vmatprep.subr.bf16.mxu0 0
    %1559 = vmatpush1.bf16.msra.mxu0 %v1260
    %1560 = vmatprep.subr.bf16.mxu0 0
    %1561 = vmatpush1.bf16.msra.mxu0 %v1261
    %1562 = vmatprep.subr.bf16.mxu0 0
    %1563 = vmatpush1.bf16.msra.mxu0 %v1262
    %1564 = vmatprep.subr.bf16.mxu0 0
    %1565 = vmatpush1.bf16.msra.mxu0 %v1263
    %1566 = vmatprep.subr.bf16.mxu0 0
    %1567 = vmatpush1.bf16.msra.mxu0 %v1264
    %1568 = vmatprep.subr.bf16.mxu0 0
    %1569 = vmatpush1.bf16.msra.mxu0 %v1265
    %1570 = vmatprep.subr.bf16.mxu0 0
    %1571 = vmatpush1.bf16.msra.mxu0 %v1266
    %1572 = vmatprep.subr.bf16.mxu0 0
    %1573 = vmatpush1.bf16.msra.mxu0 %v1267
    %1574 = vmatprep.subr.bf16.mxu0 0
    %1575 = vmatpush1.bf16.msra.mxu0 0
    %1576 = vmatprep.subr.bf16.mxu0 0
    %1577 = vmatpush1.bf16.msra.mxu0 0
    %1578 = vmatprep.subr.bf16.mxu0 0
    %1579 = vmatpush1.bf16.msra.mxu0 0
    %1580 = vmatprep.subr.bf16.mxu0 0
    %1581 = vmatpush1.bf16.msra.mxu0 0
    %1582 = vmatprep.subr.bf16.mxu0 0
    %1583 = vmatpush1.bf16.msra.mxu0 0
    %1584 = vmatprep.subr.bf16.mxu0 0
    %1585 = vmatpush1.bf16.msra.mxu0 0
    %1586 = vmatprep.subr.bf16.mxu0 0
    %1587 = vmatpush1.bf16.msra.mxu0 0
    %1588 = vmatprep.subr.bf16.mxu0 0
    %1589 = vmatpush1.bf16.msra.mxu0 0
    %1590 = vmatprep.mubr.bf16.mxu0 0
    %1591 = vmatmul.mubr.bf16.gmra.mrb[0].mxu0 %v1550
    %v1592 = vpop.f32.mrb[0].mxu0
    %v1593 = vadd.f32 0.0, %v1592
    %v1594 = vpop.f32.mrb[0].mxu0
    %v1595 = vpop.f32.mrb[0].mxu0
    %v1596 = vadd.f32 0.0, %v1595
    %v1597 = vpop.f32.mrb[0].mxu0
    %1598 = vmatprep.mubr.bf16.mxu0 0
    %1599 = vmatmul.mubr.bf16.gmra.mrb[0].mxu0 %v1551
    %v1600 = vpop.f32.mrb[0].mxu0
    %v1601 = vadd.f32 0.0, %v1600
    %v1602 = vpop.f32.mrb[0].mxu0
    %v1603 = vpop.f32.mrb[0].mxu0
    %v1604 = vadd.f32 0.0, %v1603
    %v1605 = vpop.f32.mrb[0].mxu0
    %1606 = vmatprep.mubr.bf16.mxu0 0
    %1607 = vmatmul.mubr.bf16.gmra.mrb[0].mxu0 %v1552
    %v1608 = vpop.f32.mrb[0].mxu0
    %v1609 = vadd.f32 0.0, %v1608
    %v1610 = vpop.f32.mrb[0].mxu0
    %v1611 = vpop.f32.mrb[0].mxu0
    %v1612 = vadd.f32 0.0, %v1611
    %v1613 = vpop.f32.mrb[0].mxu0
    %1614 = vmatprep.mubr.bf16.mxu0 0
    %1615 = vmatmul.mubr.bf16.gmra.mrb[0].mxu0 %v1553
    %v1616 = vpop.f32.mrb[0].mxu0
    %v1617 = vadd.f32 0.0, %v1616
    %v1618 = vpop.f32.mrb[0].mxu0
    %v1619 = vpop.f32.mrb[0].mxu0
    %v1620 = vadd.f32 0.0, %v1619
    %v1621 = vpop.f32.mrb[0].mxu0
    %1622 = vmatprep.mubr.bf16.mxu0 0
    %1623 = vmatmul.mubr.bf16.gmra.mrb[0].mxu0 %v1554
    %v1624 = vpop.f32.mrb[0].mxu0
    %v1625 = vadd.f32 0.0, %v1624
    %v1626 = vpop.f32.mrb[0].mxu0
    %v1627 = vpop.f32.mrb[0].mxu0
    %v1628 = vadd.f32 0.0, %v1627
    %v1629 = vpop.f32.mrb[0].mxu0
    %1630 = vmatprep.mubr.bf16.mxu0 0
    %1631 = vmatmul.mubr.bf16.gmra.mrb[0].mxu0 %v1555
    %v1632 = vpop.f32.mrb[0].mxu0
    %v1633 = vadd.f32 0.0, %v1632
    %v1634 = vpop.f32.mrb[0].mxu0
    %v1635 = vpop.f32.mrb[0].mxu0
    %v1636 = vadd.f32 0.0, %v1635
    %v1637 = vpop.f32.mrb[0].mxu0
    %1638 = vmatprep.mubr.bf16.mxu0 0
    %1639 = vmatmul.mubr.bf16.gmra.mrb[0].mxu0 %v1556
    %v1640 = vpop.f32.mrb[0].mxu0
    %v1641 = vadd.f32 0.0, %v1640
    %v1642 = vpop.f32.mrb[0].mxu0
    %v1643 = vpop.f32.mrb[0].mxu0
    %v1644 = vadd.f32 0.0, %v1643
    %v1645 = vpop.f32.mrb[0].mxu0
    %1646 = vmatprep.mubr.bf16.mxu0 0
    %1647 = vmatmul.mubr.bf16.gmra.mrb[0].mxu0 %v1557
    %v1648 = vpop.f32.mrb[0].mxu0
    %v1649 = vadd.f32 0.0, %v1648
    %v1650 = vpop.f32.mrb[0].mxu0
    %v1651 = vpop.f32.mrb[0].mxu0
    %v1652 = vadd.f32 0.0, %v1651
    %v1653 = vpop.f32.mrb[0].mxu0
    %1654 = vdwg.mxu0
    %1655 = vst.msk [vmem:[#allocation3] sm:$0xff] %vm1284, %v1593
    %1656 = vst.msk [vmem:[#allocation3 + $0x8] sm:$0xff] %vm1284, %v1596
    %1657 = vst.msk [vmem:[#allocation3 + $0x10] sm:$0xff] %vm1284, %v1601
    %1658 = vst.msk [vmem:[#allocation3 + $0x18] sm:$0xff] %vm1284, %v1604
    %1659 = vst.msk [vmem:[#allocation3 + $0x20] sm:$0xff] %vm1284, %v1609
    %1660 = vst.msk [vmem:[#allocation3 + $0x28] sm:$0xff] %vm1284, %v1612
    %1661 = vst.msk [vmem:[#allocation3 + $0x30] sm:$0xff] %vm1284, %v1617
    %1662 = vst.msk [vmem:[#allocation3 + $0x38] sm:$0xff] %vm1284, %v1620
    %1663 = vst.msk [vmem:[#allocation3 + $0x40] sm:$0xff] %vm1284, %v1625
    %1664 = vst.msk [vmem:[#allocation3 + $0x48] sm:$0xff] %vm1284, %v1628
    %1665 = vst.msk [vmem:[#allocation3 + $0x50] sm:$0xff] %vm1284, %v1633
    %1666 = vst.msk [vmem:[#allocation3 + $0x58] sm:$0xff] %vm1284, %v1636
    %1667 = vst.msk [vmem:[#allocation3 + $0x60] sm:$0xff] %vm1284, %v1641
    %1668 = vst.msk [vmem:[#allocation3 + $0x68] sm:$0xff] %vm1284, %v1644
    %1669 = vst.msk [vmem:[#allocation3 + $0x70] sm:$0xff] %vm1284, %v1649
    %1670 = vst.msk [vmem:[#allocation3 + $0x78] sm:$0xff] %vm1284, %v1652
    %v1671 = vld [vmem:[#allocation4] sm:$0xff]
    %v1672 = vld [vmem:[#allocation4 + $0x8] sm:$0xff]
    %v1673 = vld [vmem:[#allocation4 + $0x10] sm:$0xff]
    %v1674 = vld [vmem:[#allocation4 + $0x18] sm:$0xff]
    %v1675 = vld [vmem:[#allocation4 + $0x20] sm:$0xff]
    %v1676 = vld [vmem:[#allocation4 + $0x28] sm:$0xff]
    %v1677 = vld [vmem:[#allocation4 + $0x30] sm:$0xff]
    %v1678 = vld [vmem:[#allocation4 + $0x38] sm:$0xff]
    %v1679 = vld [vmem:[#allocation4 + $0x40] sm:$0xff]
    %v1680 = vld [vmem:[#allocation4 + $0x48] sm:$0xff]
    %v1681 = vld [vmem:[#allocation4 + $0x50] sm:$0xff]
    %v1682 = vld [vmem:[#allocation4 + $0x58] sm:$0xff]
    %v1683 = vld [vmem:[#allocation4 + $0x60] sm:$0xff]
    %v1684 = vld [vmem:[#allocation4 + $0x68] sm:$0xff]
    %v1685 = vld [vmem:[#allocation4 + $0x70] sm:$0xff]
    %v1686 = vld [vmem:[#allocation4 + $0x78] sm:$0xff]
    %1695 = vrot.lane.b32.xlu0 %v1212, 112
    %v1696 = vpop.permute.xlu0 %1695
    %1697 = vrot.lane.b32.xlu0 %v1213, 112
    %v1698 = vpop.permute.xlu0 %1697
    %1699 = vrot.lane.b32.xlu0 %v1214, 112
    %v1700 = vpop.permute.xlu0 %1699
    %1701 = vrot.lane.b32.xlu0 %v1215, 112
    %v1702 = vpop.permute.xlu0 %1701
    %1703 = vrot.lane.b32.xlu0 %v1216, 112
    %v1704 = vpop.permute.xlu0 %1703
    %1705 = vrot.lane.b32.xlu0 %v1217, 112
    %v1706 = vpop.permute.xlu0 %1705
    %1707 = vrot.lane.b32.xlu0 %v1218, 112
    %v1708 = vpop.permute.xlu0 %1707
    %1709 = vrot.lane.b32.xlu0 %v1219, 112
    %v1710 = vpop.permute.xlu0 %1709
    %v1712 = vsel %vm1284, %v1696, 0
    %v1715 = vsel %vm1284, %v1698, 0
    %v1718 = vsel %vm1284, %v1700, 0
    %v1721 = vsel %vm1284, %v1702, 0
    %v1724 = vsel %vm1284, %v1704, 0
    %v1727 = vsel %vm1284, %v1706, 0
    %v1730 = vsel %vm1284, %v1708, 0
    %v1733 = vsel %vm1284, %v1710, 0
    %1735 = vmatprep.subr.bf16.mxu0 0
    %1736 = vmatpush1.bf16.msra.mxu0 %v1253
    %1737 = vmatprep.subr.bf16.mxu0 0
    %1738 = vmatpush1.bf16.msra.mxu0 0
    %1739 = vmatprep.subr.bf16.mxu0 0
    %1740 = vmatpush1.bf16.msra.mxu0 0
    %1741 = vmatprep.subr.bf16.mxu0 0
    %1742 = vmatpush1.bf16.msra.mxu0 0
    %1743 = vmatprep.subr.bf16.mxu0 0
    %1744 = vmatpush1.bf16.msra.mxu0 0
    %1745 = vmatprep.subr.bf16.mxu0 0
    %1746 = vmatpush1.bf16.msra.mxu0 0
    %1747 = vmatprep.subr.bf16.mxu0 0
    %1748 = vmatpush1.bf16.msra.mxu0 0
    %1749 = vmatprep.subr.bf16.mxu0 0
    %1750 = vmatpush1.bf16.msra.mxu0 0
    %1751 = vmatprep.subr.bf16.mxu0 0
    %1752 = vmatpush1.bf16.msra.mxu0 0
    %1753 = vmatprep.subr.bf16.mxu0 0
    %1754 = vmatpush1.bf16.msra.mxu0 0
    %1755 = vmatprep.subr.bf16.mxu0 0
    %1756 = vmatpush1.bf16.msra.mxu0 0
    %1757 = vmatprep.subr.bf16.mxu0 0
    %1758 = vmatpush1.bf16.msra.mxu0 0
    %1759 = vmatprep.subr.bf16.mxu0 0
    %1760 = vmatpush1.bf16.msra.mxu0 0
    %1761 = vmatprep.subr.bf16.mxu0 0
    %1762 = vmatpush1.bf16.msra.mxu0 0
    %1763 = vmatprep.subr.bf16.mxu0 0
    %1764 = vmatpush1.bf16.msra.mxu0 0
    %1765 = vmatprep.subr.bf16.mxu0 0
    %1766 = vmatpush1.bf16.msra.mxu0 0
    %1767 = vmatprep.mubr.bf16.mxu0 0
    %1768 = vmatmul.mubr.bf16.gmra.mrb[0].mxu0 %v1712
    %v1769 = vpop.f32.mrb[0].mxu0
    %v1770 = vadd.f32 %v1671, %v1769
    %v1771 = vpop.f32.mrb[0].mxu0
    %v1772 = vpop.f32.mrb[0].mxu0
    %v1773 = vadd.f32 %v1672, %v1772
    %v1774 = vpop.f32.mrb[0].mxu0
    %1775 = vmatprep.mubr.bf16.mxu0 0
    %1776 = vmatmul.mubr.bf16.gmra.mrb[0].mxu0 %v1715
    %v1777 = vpop.f32.mrb[0].mxu0
    %v1778 = vadd.f32 %v1673, %v1777
    %v1779 = vpop.f32.mrb[0].mxu0
    %v1780 = vpop.f32.mrb[0].mxu0
    %v1781 = vadd.f32 %v1674, %v1780
    %v1782 = vpop.f32.mrb[0].mxu0
    %1783 = vmatprep.mubr.bf16.mxu0 0
    %1784 = vmatmul.mubr.bf16.gmra.mrb[0].mxu0 %v1718
    %v1785 = vpop.f32.mrb[0].mxu0
    %v1786 = vadd.f32 %v1675, %v1785
    %v1787 = vpop.f32.mrb[0].mxu0
    %v1788 = vpop.f32.mrb[0].mxu0
    %v1789 = vadd.f32 %v1676, %v1788
    %v1790 = vpop.f32.mrb[0].mxu0
    %1791 = vmatprep.mubr.bf16.mxu0 0
    %1792 = vmatmul.mubr.bf16.gmra.mrb[0].mxu0 %v1721
    %v1793 = vpop.f32.mrb[0].mxu0
    %v1794 = vadd.f32 %v1677, %v1793
    %v1795 = vpop.f32.mrb[0].mxu0
    %v1796 = vpop.f32.mrb[0].mxu0
    %v1797 = vadd.f32 %v1678, %v1796
    %v1798 = vpop.f32.mrb[0].mxu0
    %1799 = vmatprep.mubr.bf16.mxu0 0
    %1800 = vmatmul.mubr.bf16.gmra.mrb[0].mxu0 %v1724
    %v1801 = vpop.f32.mrb[0].mxu0
    %v1802 = vadd.f32 %v1679, %v1801
    %v1803 = vpop.f32.mrb[0].mxu0
    %v1804 = vpop.f32.mrb[0].mxu0
    %v1805 = vadd.f32 %v1680, %v1804
    %v1806 = vpop.f32.mrb[0].mxu0
    %1807 = vmatprep.mubr.bf16.mxu0 0
    %1808 = vmatmul.mubr.bf16.gmra.mrb[0].mxu0 %v1727
    %v1809 = vpop.f32.mrb[0].mxu0
    %v1810 = vadd.f32 %v1681, %v1809
    %v1811 = vpop.f32.mrb[0].mxu0
    %v1812 = vpop.f32.mrb[0].mxu0
    %v1813 = vadd.f32 %v1682, %v1812
    %v1814 = vpop.f32.mrb[0].mxu0
    %1815 = vmatprep.mubr.bf16.mxu0 0
    %1816 = vmatmul.mubr.bf16.gmra.mrb[0].mxu0 %v1730
    %v1817 = vpop.f32.mrb[0].mxu0
    %v1818 = vadd.f32 %v1683, %v1817
    %v1819 = vpop.f32.mrb[0].mxu0
    %v1820 = vpop.f32.mrb[0].mxu0
    %v1821 = vadd.f32 %v1684, %v1820
    %v1822 = vpop.f32.mrb[0].mxu0
    %1823 = vmatprep.mubr.bf16.mxu0 0
    %1824 = vmatmul.mubr.bf16.gmra.mrb[0].mxu0 %v1733
    %v1825 = vpop.f32.mrb[0].mxu0
    %v1826 = vadd.f32 %v1685, %v1825
    %v1827 = vpop.f32.mrb[0].mxu0
    %v1828 = vpop.f32.mrb[0].mxu0
    %v1829 = vadd.f32 %v1686, %v1828
    %v1830 = vpop.f32.mrb[0].mxu0
    %1831 = vdwg.mxu0
    %1832 = vmax.xlane.f32.xlu0 %v1770
    %v1833 = vpop.xlane.xlu0 %1832
    %1834 = vmax.xlane.f32.xlu0 %v1773
    %v1835 = vpop.xlane.xlu0 %1834
    %1836 = vmax.xlane.f32.xlu0 %v1778
    %v1837 = vpop.xlane.xlu0 %1836
    %1838 = vmax.xlane.f32.xlu0 %v1781
    %v1839 = vpop.xlane.xlu0 %1838
    %1840 = vmax.xlane.f32.xlu0 %v1786
    %v1841 = vpop.xlane.xlu0 %1840
    %1842 = vmax.xlane.f32.xlu0 %v1789
    %v1843 = vpop.xlane.xlu0 %1842
    %1844 = vmax.xlane.f32.xlu0 %v1794
    %v1845 = vpop.xlane.xlu0 %1844
    %1846 = vmax.xlane.f32.xlu0 %v1797
    %v1847 = vpop.xlane.xlu0 %1846
    %1848 = vmax.xlane.f32.xlu0 %v1802
    %v1849 = vpop.xlane.xlu0 %1848
    %1850 = vmax.xlane.f32.xlu0 %v1805
    %v1851 = vpop.xlane.xlu0 %1850
    %1852 = vmax.xlane.f32.xlu0 %v1810
    %v1853 = vpop.xlane.xlu0 %1852
    %1854 = vmax.xlane.f32.xlu0 %v1813
    %v1855 = vpop.xlane.xlu0 %1854
    %1856 = vmax.xlane.f32.xlu0 %v1818
    %v1857 = vpop.xlane.xlu0 %1856
    %1858 = vmax.xlane.f32.xlu0 %v1821
    %v1859 = vpop.xlane.xlu0 %1858
    %1860 = vmax.xlane.f32.xlu0 %v1826
    %v1861 = vpop.xlane.xlu0 %1860
    %1862 = vmax.xlane.f32.xlu0 %v1829
    %v1863 = vpop.xlane.xlu0 %1862
    %v1864 = vsub.f32 %v1770, %v1833
    %v1865 = vsub.f32 %v1773, %v1835
    %v1866 = vsub.f32 %v1778, %v1837
    %v1867 = vsub.f32 %v1781, %v1839
    %v1868 = vsub.f32 %v1786, %v1841
    %v1869 = vsub.f32 %v1789, %v1843
    %v1870 = vsub.f32 %v1794, %v1845
    %v1871 = vsub.f32 %v1797, %v1847
    %v1872 = vsub.f32 %v1802, %v1849
    %v1873 = vsub.f32 %v1805, %v1851
    %v1874 = vsub.f32 %v1810, %v1853
    %v1875 = vsub.f32 %v1813, %v1855
    %v1876 = vsub.f32 %v1818, %v1857
    %v1877 = vsub.f32 %v1821, %v1859
    %v1878 = vsub.f32 %v1826, %v1861
    %v1879 = vsub.f32 %v1829, %v1863
    %v1880 = vmul.f32 %v1864, 1.442695
    %v1881 = vpow.pop %v1880
    %v1882 = vmul.f32 %v1865, 1.442695
    %v1883 = vpow.pop %v1882
    %v1884 = vmul.f32 %v1866, 1.442695
    %v1885 = vpow.pop %v1884
    %v1886 = vmul.f32 %v1867, 1.442695
    %v1887 = vpow.pop %v1886
    %v1888 = vmul.f32 %v1868, 1.442695
    %v1889 = vpow.pop %v1888
    %v1890 = vmul.f32 %v1869, 1.442695
    %v1891 = vpow.pop %v1890
    %v1892 = vmul.f32 %v1870, 1.442695
    %v1893 = vpow.pop %v1892
    %v1894 = vmul.f32 %v1871, 1.442695
    %v1895 = vpow.pop %v1894
    %v1896 = vmul.f32 %v1872, 1.442695
    %v1897 = vpow.pop %v1896
    %v1898 = vmul.f32 %v1873, 1.442695
    %v1899 = vpow.pop %v1898
    %v1900 = vmul.f32 %v1874, 1.442695
    %v1901 = vpow.pop %v1900
    %v1902 = vmul.f32 %v1875, 1.442695
    %v1903 = vpow.pop %v1902
    %v1904 = vmul.f32 %v1876, 1.442695
    %v1905 = vpow.pop %v1904
    %v1906 = vmul.f32 %v1877, 1.442695
    %v1907 = vpow.pop %v1906
    %v1908 = vmul.f32 %v1878, 1.442695
    %v1909 = vpow.pop %v1908
    %v1910 = vmul.f32 %v1879, 1.442695
    %v1911 = vpow.pop %v1910
    %1912 = vadd.xlane.f32.xlu0 %v1881
    %v1913 = vpop.xlane.xlu0 %1912
    %1914 = vadd.xlane.f32.xlu0 %v1883
    %v1915 = vpop.xlane.xlu0 %1914
    %1916 = vadd.xlane.f32.xlu0 %v1885
    %v1917 = vpop.xlane.xlu0 %1916
    %1918 = vadd.xlane.f32.xlu0 %v1887
    %v1919 = vpop.xlane.xlu0 %1918
    %1920 = vadd.xlane.f32.xlu0 %v1889
    %v1921 = vpop.xlane.xlu0 %1920
    %1922 = vadd.xlane.f32.xlu0 %v1891
    %v1923 = vpop.xlane.xlu0 %1922
    %1924 = vadd.xlane.f32.xlu0 %v1893
    %v1925 = vpop.xlane.xlu0 %1924
    %1926 = vadd.xlane.f32.xlu0 %v1895
    %v1927 = vpop.xlane.xlu0 %1926
    %1928 = vadd.xlane.f32.xlu0 %v1897
    %v1929 = vpop.xlane.xlu0 %1928
    %1930 = vadd.xlane.f32.xlu0 %v1899
    %v1931 = vpop.xlane.xlu0 %1930
    %1932 = vadd.xlane.f32.xlu0 %v1901
    %v1933 = vpop.xlane.xlu0 %1932
    %1934 = vadd.xlane.f32.xlu0 %v1903
    %v1935 = vpop.xlane.xlu0 %1934
    %1936 = vadd.xlane.f32.xlu0 %v1905
    %v1937 = vpop.xlane.xlu0 %1936
    %1938 = vadd.xlane.f32.xlu0 %v1907
    %v1939 = vpop.xlane.xlu0 %1938
    %1940 = vadd.xlane.f32.xlu0 %v1909
    %v1941 = vpop.xlane.xlu0 %1940
    %1942 = vadd.xlane.f32.xlu0 %v1911
    %v1943 = vpop.xlane.xlu0 %1942
    %v1944 = vrcp.pop %v1913
    %v1945 = vrcp.pop %v1915
    %v1946 = vrcp.pop %v1917
    %v1947 = vrcp.pop %v1919
    %v1948 = vrcp.pop %v1921
    %v1949 = vrcp.pop %v1923
    %v1950 = vrcp.pop %v1925
    %v1951 = vrcp.pop %v1927
    %v1952 = vrcp.pop %v1929
    %v1953 = vrcp.pop %v1931
    %v1954 = vrcp.pop %v1933
    %v1955 = vrcp.pop %v1935
    %v1956 = vrcp.pop %v1937
    %v1957 = vrcp.pop %v1939
    %v1958 = vrcp.pop %v1941
    %v1959 = vrcp.pop %v1943
    %v1960 = vmul.f32 %v1881, %v1944
    %v1961 = vmul.f32 %v1883, %v1945
    %v1962 = vmul.f32 %v1885, %v1946
    %v1963 = vmul.f32 %v1887, %v1947
    %v1964 = vmul.f32 %v1889, %v1948
    %v1965 = vmul.f32 %v1891, %v1949
    %v1966 = vmul.f32 %v1893, %v1950
    %v1967 = vmul.f32 %v1895, %v1951
    %v1968 = vmul.f32 %v1897, %v1952
    %v1969 = vmul.f32 %v1899, %v1953
    %v1970 = vmul.f32 %v1901, %v1954
    %v1971 = vmul.f32 %v1903, %v1955
    %v1972 = vmul.f32 %v1905, %v1956
    %v1973 = vmul.f32 %v1907, %v1957
    %v1974 = vmul.f32 %v1909, %v1958
    %v1975 = vmul.f32 %v1911, %v1959
    %v1976 = vpack.c.bf16 %v1961, %v1960
    %v1977 = vpack.c.bf16 %v1963, %v1962
    %v1978 = vpack.c.bf16 %v1965, %v1964
    %v1979 = vpack.c.bf16 %v1967, %v1966
    %v1980 = vpack.c.bf16 %v1969, %v1968
    %v1981 = vpack.c.bf16 %v1971, %v1970
    %v1982 = vpack.c.bf16 %v1973, %v1972
    %v1983 = vpack.c.bf16 %v1975, %v1974
    %1992 = vrot.lane.b32.xlu0 %v1260, 112
    %v1993 = vpop.permute.xlu0 %1992
    %1994 = vrot.lane.b32.xlu0 %v1261, 112
    %v1995 = vpop.permute.xlu0 %1994
    %1996 = vrot.lane.b32.xlu0 %v1262, 112
    %v1997 = vpop.permute.xlu0 %1996
    %1998 = vrot.lane.b32.xlu0 %v1263, 112
    %v1999 = vpop.permute.xlu0 %1998
    %2000 = vrot.lane.b32.xlu0 %v1264, 112
    %v2001 = vpop.permute.xlu0 %2000
    %2002 = vrot.lane.b32.xlu0 %v1265, 112
    %v2003 = vpop.permute.xlu0 %2002
    %2004 = vrot.lane.b32.xlu0 %v1266, 112
    %v2005 = vpop.permute.xlu0 %2004
    %2006 = vrot.lane.b32.xlu0 %v1267, 112
    %v2007 = vpop.permute.xlu0 %2006
    %2016 = vmatprep.subr.bf16.mxu0 0
    %2017 = vmatpush1.bf16.msra.mxu0 %v1993
    %2018 = vmatprep.subr.bf16.mxu0 0
    %2019 = vmatpush1.bf16.msra.mxu0 %v1995
    %2020 = vmatprep.subr.bf16.mxu0 0
    %2021 = vmatpush1.bf16.msra.mxu0 %v1997
    %2022 = vmatprep.subr.bf16.mxu0 0
    %2023 = vmatpush1.bf16.msra.mxu0 %v1999
    %2024 = vmatprep.subr.bf16.mxu0 0
    %2025 = vmatpush1.bf16.msra.mxu0 %v2001
    %2026 = vmatprep.subr.bf16.mxu0 0
    %2027 = vmatpush1.bf16.msra.mxu0 %v2003
    %2028 = vmatprep.subr.bf16.mxu0 0
    %2029 = vmatpush1.bf16.msra.mxu0 %v2005
    %2030 = vmatprep.subr.bf16.mxu0 0
    %2031 = vmatpush1.bf16.msra.mxu0 %v2007
    %2032 = vmatprep.subr.bf16.mxu0 0
    %2033 = vmatpush1.bf16.msra.mxu0 0
    %2034 = vmatprep.subr.bf16.mxu0 0
    %2035 = vmatpush1.bf16.msra.mxu0 0
    %2036 = vmatprep.subr.bf16.mxu0 0
    %2037 = vmatpush1.bf16.msra.mxu0 0
    %2038 = vmatprep.subr.bf16.mxu0 0
    %2039 = vmatpush1.bf16.msra.mxu0 0
    %2040 = vmatprep.subr.bf16.mxu0 0
    %2041 = vmatpush1.bf16.msra.mxu0 0
    %2042 = vmatprep.subr.bf16.mxu0 0
    %2043 = vmatpush1.bf16.msra.mxu0 0
    %2044 = vmatprep.subr.bf16.mxu0 0
    %2045 = vmatpush1.bf16.msra.mxu0 0
    %2046 = vmatprep.subr.bf16.mxu0 0
    %2047 = vmatpush1.bf16.msra.mxu0 0
    %2048 = vmatprep.mubr.bf16.mxu0 0
    %2049 = vmatmul.mubr.bf16.gmra.mrb[0].mxu0 %v1976
    %v2050 = vpop.f32.mrb[0].mxu0
    %v2051 = vadd.f32 0.0, %v2050
    %v2052 = vpop.f32.mrb[0].mxu0
    %v2053 = vpop.f32.mrb[0].mxu0
    %v2054 = vadd.f32 0.0, %v2053
    %v2055 = vpop.f32.mrb[0].mxu0
    %2056 = vmatprep.mubr.bf16.mxu0 0
    %2057 = vmatmul.mubr.bf16.gmra.mrb[0].mxu0 %v1977
    %v2058 = vpop.f32.mrb[0].mxu0
    %v2059 = vadd.f32 0.0, %v2058
    %v2060 = vpop.f32.mrb[0].mxu0
    %v2061 = vpop.f32.mrb[0].mxu0
    %v2062 = vadd.f32 0.0, %v2061
    %v2063 = vpop.f32.mrb[0].mxu0
    %2064 = vmatprep.mubr.bf16.mxu0 0
    %2065 = vmatmul.mubr.bf16.gmra.mrb[0].mxu0 %v1978
    %v2066 = vpop.f32.mrb[0].mxu0
    %v2067 = vadd.f32 0.0, %v2066
    %v2068 = vpop.f32.mrb[0].mxu0
    %v2069 = vpop.f32.mrb[0].mxu0
    %v2070 = vadd.f32 0.0, %v2069
    %v2071 = vpop.f32.mrb[0].mxu0
    %2072 = vmatprep.mubr.bf16.mxu0 0
    %2073 = vmatmul.mubr.bf16.gmra.mrb[0].mxu0 %v1979
    %v2074 = vpop.f32.mrb[0].mxu0
    %v2075 = vadd.f32 0.0, %v2074
    %v2076 = vpop.f32.mrb[0].mxu0
    %v2077 = vpop.f32.mrb[0].mxu0
    %v2078 = vadd.f32 0.0, %v2077
    %v2079 = vpop.f32.mrb[0].mxu0
    %2080 = vmatprep.mubr.bf16.mxu0 0
    %2081 = vmatmul.mubr.bf16.gmra.mrb[0].mxu0 %v1980
    %v2082 = vpop.f32.mrb[0].mxu0
    %v2083 = vadd.f32 0.0, %v2082
    %v2084 = vpop.f32.mrb[0].mxu0
    %v2085 = vpop.f32.mrb[0].mxu0
    %v2086 = vadd.f32 0.0, %v2085
    %v2087 = vpop.f32.mrb[0].mxu0
    %2088 = vmatprep.mubr.bf16.mxu0 0
    %2089 = vmatmul.mubr.bf16.gmra.mrb[0].mxu0 %v1981
    %v2090 = vpop.f32.mrb[0].mxu0
    %v2091 = vadd.f32 0.0, %v2090
    %v2092 = vpop.f32.mrb[0].mxu0
    %v2093 = vpop.f32.mrb[0].mxu0
    %v2094 = vadd.f32 0.0, %v2093
    %v2095 = vpop.f32.mrb[0].mxu0
    %2096 = vmatprep.mubr.bf16.mxu0 0
    %2097 = vmatmul.mubr.bf16.gmra.mrb[0].mxu0 %v1982
    %v2098 = vpop.f32.mrb[0].mxu0
    %v2099 = vadd.f32 0.0, %v2098
    %v2100 = vpop.f32.mrb[0].mxu0
    %v2101 = vpop.f32.mrb[0].mxu0
    %v2102 = vadd.f32 0.0, %v2101
    %v2103 = vpop.f32.mrb[0].mxu0
    %2104 = vmatprep.mubr.bf16.mxu0 0
    %2105 = vmatmul.mubr.bf16.gmra.mrb[0].mxu0 %v1983
    %v2106 = vpop.f32.mrb[0].mxu0
    %v2107 = vadd.f32 0.0, %v2106
    %v2108 = vpop.f32.mrb[0].mxu0
    %v2109 = vpop.f32.mrb[0].mxu0
    %v2110 = vadd.f32 0.0, %v2109
    %v2111 = vpop.f32.mrb[0].mxu0
    %2112 = vdwg.mxu0
    %2129 = vrot.lane.b32.xlu0 %v2051, 16
    %v2130 = vpop.permute.xlu0 %2129
    %2131 = vrot.lane.b32.xlu0 %v2054, 16
    %v2132 = vpop.permute.xlu0 %2131
    %2133 = vrot.lane.b32.xlu0 %v2059, 16
    %v2134 = vpop.permute.xlu0 %2133
    %2135 = vrot.lane.b32.xlu0 %v2062, 16
    %v2136 = vpop.permute.xlu0 %2135
    %2137 = vrot.lane.b32.xlu0 %v2067, 16
    %v2138 = vpop.permute.xlu0 %2137
    %2139 = vrot.lane.b32.xlu0 %v2070, 16
    %v2140 = vpop.permute.xlu0 %2139
    %2141 = vrot.lane.b32.xlu0 %v2075, 16
    %v2142 = vpop.permute.xlu0 %2141
    %2143 = vrot.lane.b32.xlu0 %v2078, 16
    %v2144 = vpop.permute.xlu0 %2143
    %2145 = vrot.lane.b32.xlu0 %v2083, 16
    %v2146 = vpop.permute.xlu0 %2145
    %2147 = vrot.lane.b32.xlu0 %v2086, 16
    %v2148 = vpop.permute.xlu0 %2147
    %2149 = vrot.lane.b32.xlu0 %v2091, 16
    %v2150 = vpop.permute.xlu0 %2149
    %2151 = vrot.lane.b32.xlu0 %v2094, 16
    %v2152 = vpop.permute.xlu0 %2151
    %2153 = vrot.lane.b32.xlu0 %v2099, 16
    %v2154 = vpop.permute.xlu0 %2153
    %2155 = vrot.lane.b32.xlu0 %v2102, 16
    %v2156 = vpop.permute.xlu0 %2155
    %2157 = vrot.lane.b32.xlu0 %v2107, 16
    %v2158 = vpop.permute.xlu0 %2157
    %2159 = vrot.lane.b32.xlu0 %v2110, 16
    %v2160 = vpop.permute.xlu0 %2159
    %vm2177 = vcmask 261248
    %2178 = vst.msk [vmem:[#allocation3] sm:$0xff] %vm2177, %v2130
    %2179 = vst.msk [vmem:[#allocation3 + $0x8] sm:$0xff] %vm2177, %v2132
    %2180 = vst.msk [vmem:[#allocation3 + $0x10] sm:$0xff] %vm2177, %v2134
    %2181 = vst.msk [vmem:[#allocation3 + $0x18] sm:$0xff] %vm2177, %v2136
    %2182 = vst.msk [vmem:[#allocation3 + $0x20] sm:$0xff] %vm2177, %v2138
    %2183 = vst.msk [vmem:[#allocation3 + $0x28] sm:$0xff] %vm2177, %v2140
    %2184 = vst.msk [vmem:[#allocation3 + $0x30] sm:$0xff] %vm2177, %v2142
    %2185 = vst.msk [vmem:[#allocation3 + $0x38] sm:$0xff] %vm2177, %v2144
    %2186 = vst.msk [vmem:[#allocation3 + $0x40] sm:$0xff] %vm2177, %v2146
    %2187 = vst.msk [vmem:[#allocation3 + $0x48] sm:$0xff] %vm2177, %v2148
    %2188 = vst.msk [vmem:[#allocation3 + $0x50] sm:$0xff] %vm2177, %v2150
    %2189 = vst.msk [vmem:[#allocation3 + $0x58] sm:$0xff] %vm2177, %v2152
    %2190 = vst.msk [vmem:[#allocation3 + $0x60] sm:$0xff] %vm2177, %v2154
    %2191 = vst.msk [vmem:[#allocation3 + $0x68] sm:$0xff] %vm2177, %v2156
    %2192 = vst.msk [vmem:[#allocation3 + $0x70] sm:$0xff] %vm2177, %v2158
    %2193 = vst.msk [vmem:[#allocation3 + $0x78] sm:$0xff] %vm2177, %v2160
    %v2194 = vld [vmem:[#allocation4] sm:$0xff]
    %v2195 = vld [vmem:[#allocation4 + $0x8] sm:$0xff]
    %v2196 = vld [vmem:[#allocation4 + $0x10] sm:$0xff]
    %v2197 = vld [vmem:[#allocation4 + $0x18] sm:$0xff]
    %v2198 = vld [vmem:[#allocation4 + $0x20] sm:$0xff]
    %v2199 = vld [vmem:[#allocation4 + $0x28] sm:$0xff]
    %v2200 = vld [vmem:[#allocation4 + $0x30] sm:$0xff]
    %v2201 = vld [vmem:[#allocation4 + $0x38] sm:$0xff]
    %v2202 = vld [vmem:[#allocation4 + $0x40] sm:$0xff]
    %v2203 = vld [vmem:[#allocation4 + $0x48] sm:$0xff]
    %v2204 = vld [vmem:[#allocation4 + $0x50] sm:$0xff]
    %v2205 = vld [vmem:[#allocation4 + $0x58] sm:$0xff]
    %v2206 = vld [vmem:[#allocation4 + $0x60] sm:$0xff]
    %v2207 = vld [vmem:[#allocation4 + $0x68] sm:$0xff]
    %v2208 = vld [vmem:[#allocation4 + $0x70] sm:$0xff]
    %v2209 = vld [vmem:[#allocation4 + $0x78] sm:$0xff]
    %2210 = vrot.lane.b32.xlu0 %v1212, 96
    %v2211 = vpop.permute.xlu0 %2210
    %2212 = vrot.lane.b32.xlu0 %v1213, 96
    %v2213 = vpop.permute.xlu0 %2212
    %2214 = vrot.lane.b32.xlu0 %v1214, 96
    %v2215 = vpop.permute.xlu0 %2214
    %2216 = vrot.lane.b32.xlu0 %v1215, 96
    %v2217 = vpop.permute.xlu0 %2216
    %2218 = vrot.lane.b32.xlu0 %v1216, 96
    %v2219 = vpop.permute.xlu0 %2218
    %2220 = vrot.lane.b32.xlu0 %v1217, 96
    %v2221 = vpop.permute.xlu0 %2220
    %2222 = vrot.lane.b32.xlu0 %v1218, 96
    %v2223 = vpop.permute.xlu0 %2222
    %2224 = vrot.lane.b32.xlu0 %v1219, 96
    %v2225 = vpop.permute.xlu0 %2224
    %v2227 = vsel %vm1284, %v2211, 0
    %v2230 = vsel %vm1284, %v2213, 0
    %v2233 = vsel %vm1284, %v2215, 0
    %v2236 = vsel %vm1284, %v2217, 0
    %v2239 = vsel %vm1284, %v2219, 0
    %v2242 = vsel %vm1284, %v2221, 0
    %v2245 = vsel %vm1284, %v2223, 0
    %v2248 = vsel %vm1284, %v2225, 0
    %2250 = vmatprep.subr.bf16.mxu0 0
    %2251 = vmatpush1.bf16.msra.mxu0 %v1254
    %2252 = vmatprep.subr.bf16.mxu0 0
    %2253 = vmatpush1.bf16.msra.mxu0 0
    %2254 = vmatprep.subr.bf16.mxu0 0
    %2255 = vmatpush1.bf16.msra.mxu0 0
    %2256 = vmatprep.subr.bf16.mxu0 0
    %2257 = vmatpush1.bf16.msra.mxu0 0
    %2258 = vmatprep.subr.bf16.mxu0 0
    %2259 = vmatpush1.bf16.msra.mxu0 0
    %2260 = vmatprep.subr.bf16.mxu0 0
    %2261 = vmatpush1.bf16.msra.mxu0 0
    %2262 = vmatprep.subr.bf16.mxu0 0
    %2263 = vmatpush1.bf16.msra.mxu0 0
    %2264 = vmatprep.subr.bf16.mxu0 0
    %2265 = vmatpush1.bf16.msra.mxu0 0
    %2266 = vmatprep.subr.bf16.mxu0 0
    %2267 = vmatpush1.bf16.msra.mxu0 0
    %2268 = vmatprep.subr.bf16.mxu0 0
    %2269 = vmatpush1.bf16.msra.mxu0 0
    %2270 = vmatprep.subr.bf16.mxu0 0
    %2271 = vmatpush1.bf16.msra.mxu0 0
    %2272 = vmatprep.subr.bf16.mxu0 0
    %2273 = vmatpush1.bf16.msra.mxu0 0
    %2274 = vmatprep.subr.bf16.mxu0 0
    %2275 = vmatpush1.bf16.msra.mxu0 0
    %2276 = vmatprep.subr.bf16.mxu0 0
    %2277 = vmatpush1.bf16.msra.mxu0 0
    %2278 = vmatprep.subr.bf16.mxu0 0
    %2279 = vmatpush1.bf16.msra.mxu0 0
    %2280 = vmatprep.subr.bf16.mxu0 0
    %2281 = vmatpush1.bf16.msra.mxu0 0
    %2282 = vmatprep.mubr.bf16.mxu0 0
    %2283 = vmatmul.mubr.bf16.gmra.mrb[0].mxu0 %v2227
    %v2284 = vpop.f32.mrb[0].mxu0
    %v2285 = vadd.f32 %v2194, %v2284
    %v2286 = vpop.f32.mrb[0].mxu0
    %v2287 = vpop.f32.mrb[0].mxu0
    %v2288 = vadd.f32 %v2195, %v2287
    %v2289 = vpop.f32.mrb[0].mxu0
    %2290 = vmatprep.mubr.bf16.mxu0 0
    %2291 = vmatmul.mubr.bf16.gmra.mrb[0].mxu0 %v2230
    %v2292 = vpop.f32.mrb[0].mxu0
    %v2293 = vadd.f32 %v2196, %v2292
    %v2294 = vpop.f32.mrb[0].mxu0
    %v2295 = vpop.f32.mrb[0].mxu0
    %v2296 = vadd.f32 %v2197, %v2295
    %v2297 = vpop.f32.mrb[0].mxu0
    %2298 = vmatprep.mubr.bf16.mxu0 0
    %2299 = vmatmul.mubr.bf16.gmra.mrb[0].mxu0 %v2233
    %v2300 = vpop.f32.mrb[0].mxu0
    %v2301 = vadd.f32 %v2198, %v2300
    %v2302 = vpop.f32.mrb[0].mxu0
    %v2303 = vpop.f32.mrb[0].mxu0
    %v2304 = vadd.f32 %v2199, %v2303
    %v2305 = vpop.f32.mrb[0].mxu0
    %2306 = vmatprep.mubr.bf16.mxu0 0
    %2307 = vmatmul.mubr.bf16.gmra.mrb[0].mxu0 %v2236
    %v2308 = vpop.f32.mrb[0].mxu0
    %v2309 = vadd.f32 %v2200, %v2308
    %v2310 = vpop.f32.mrb[0].mxu0
    %v2311 = vpop.f32.mrb[0].mxu0
    %v2312 = vadd.f32 %v2201, %v2311
    %v2313 = vpop.f32.mrb[0].mxu0
    %2314 = vmatprep.mubr.bf16.mxu0 0
    %2315 = vmatmul.mubr.bf16.gmra.mrb[0].mxu0 %v2239
    %v2316 = vpop.f32.mrb[0].mxu0
    %v2317 = vadd.f32 %v2202, %v2316
    %v2318 = vpop.f32.mrb[0].mxu0
    %v2319 = vpop.f32.mrb[0].mxu0
    %v2320 = vadd.f32 %v2203, %v2319
    %v2321 = vpop.f32.mrb[0].mxu0
    %2322 = vmatprep.mubr.bf16.mxu0 0
    %2323 = vmatmul.mubr.bf16.gmra.mrb[0].mxu0 %v2242
    %v2324 = vpop.f32.mrb[0].mxu0
    %v2325 = vadd.f32 %v2204, %v2324
    %v2326 = vpop.f32.mrb[0].mxu0
    %v2327 = vpop.f32.mrb[0].mxu0
    %v2328 = vadd.f32 %v2205, %v2327
    %v2329 = vpop.f32.mrb[0].mxu0
    %2330 = vmatprep.mubr.bf16.mxu0 0
    %2331 = vmatmul.mubr.bf16.gmra.mrb[0].mxu0 %v2245
    %v2332 = vpop.f32.mrb[0].mxu0
    %v2333 = vadd.f32 %v2206, %v2332
    %v2334 = vpop.f32.mrb[0].mxu0
    %v2335 = vpop.f32.mrb[0].mxu0
    %v2336 = vadd.f32 %v2207, %v2335
    %v2337 = vpop.f32.mrb[0].mxu0
    %2338 = vmatprep.mubr.bf16.mxu0 0
    %2339 = vmatmul.mubr.bf16.gmra.mrb[0].mxu0 %v2248
    %v2340 = vpop.f32.mrb[0].mxu0
    %v2341 = vadd.f32 %v2208, %v2340
    %v2342 = vpop.f32.mrb[0].mxu0
    %v2343 = vpop.f32.mrb[0].mxu0
    %v2344 = vadd.f32 %v2209, %v2343
    %v2345 = vpop.f32.mrb[0].mxu0
    %2346 = vdwg.mxu0
    %2347 = vmax.xlane.f32.xlu0 %v2285
    %v2348 = vpop.xlane.xlu0 %2347
    %2349 = vmax.xlane.f32.xlu0 %v2288
    %v2350 = vpop.xlane.xlu0 %2349
    %2351 = vmax.xlane.f32.xlu0 %v2293
    %v2352 = vpop.xlane.xlu0 %2351
    %2353 = vmax.xlane.f32.xlu0 %v2296
    %v2354 = vpop.xlane.xlu0 %2353
    %2355 = vmax.xlane.f32.xlu0 %v2301
    %v2356 = vpop.xlane.xlu0 %2355
    %2357 = vmax.xlane.f32.xlu0 %v2304
    %v2358 = vpop.xlane.xlu0 %2357
    %2359 = vmax.xlane.f32.xlu0 %v2309
    %v2360 = vpop.xlane.xlu0 %2359
    %2361 = vmax.xlane.f32.xlu0 %v2312
    %v2362 = vpop.xlane.xlu0 %2361
    %2363 = vmax.xlane.f32.xlu0 %v2317
    %v2364 = vpop.xlane.xlu0 %2363
    %2365 = vmax.xlane.f32.xlu0 %v2320
    %v2366 = vpop.xlane.xlu0 %2365
    %2367 = vmax.xlane.f32.xlu0 %v2325
    %v2368 = vpop.xlane.xlu0 %2367
    %2369 = vmax.xlane.f32.xlu0 %v2328
    %v2370 = vpop.xlane.xlu0 %2369
    %2371 = vmax.xlane.f32.xlu0 %v2333
    %v2372 = vpop.xlane.xlu0 %2371
    %2373 = vmax.xlane.f32.xlu0 %v2336
    %v2374 = vpop.xlane.xlu0 %2373
    %2375 = vmax.xlane.f32.xlu0 %v2341
    %v2376 = vpop.xlane.xlu0 %2375
    %2377 = vmax.xlane.f32.xlu0 %v2344
    %v2378 = vpop.xlane.xlu0 %2377
    %v2379 = vsub.f32 %v2285, %v2348
    %v2380 = vsub.f32 %v2288, %v2350
    %v2381 = vsub.f32 %v2293, %v2352
    %v2382 = vsub.f32 %v2296, %v2354
    %v2383 = vsub.f32 %v2301, %v2356
    %v2384 = vsub.f32 %v2304, %v2358
    %v2385 = vsub.f32 %v2309, %v2360
    %v2386 = vsub.f32 %v2312, %v2362
    %v2387 = vsub.f32 %v2317, %v2364
    %v2388 = vsub.f32 %v2320, %v2366
    %v2389 = vsub.f32 %v2325, %v2368
    %v2390 = vsub.f32 %v2328, %v2370
    %v2391 = vsub.f32 %v2333, %v2372
    %v2392 = vsub.f32 %v2336, %v2374
    %v2393 = vsub.f32 %v2341, %v2376
    %v2394 = vsub.f32 %v2344, %v2378
    %v2395 = vmul.f32 %v2379, 1.442695
    %v2396 = vpow.pop %v2395
    %v2397 = vmul.f32 %v2380, 1.442695
    %v2398 = vpow.pop %v2397
    %v2399 = vmul.f32 %v2381, 1.442695
    %v2400 = vpow.pop %v2399
    %v2401 = vmul.f32 %v2382, 1.442695
    %v2402 = vpow.pop %v2401
    %v2403 = vmul.f32 %v2383, 1.442695
    %v2404 = vpow.pop %v2403
    %v2405 = vmul.f32 %v2384, 1.442695
    %v2406 = vpow.pop %v2405
    %v2407 = vmul.f32 %v2385, 1.442695
    %v2408 = vpow.pop %v2407
    %v2409 = vmul.f32 %v2386, 1.442695
    %v2410 = vpow.pop %v2409
    %v2411 = vmul.f32 %v2387, 1.442695
    %v2412 = vpow.pop %v2411
    %v2413 = vmul.f32 %v2388, 1.442695
    %v2414 = vpow.pop %v2413
    %v2415 = vmul.f32 %v2389, 1.442695
    %v2416 = vpow.pop %v2415
    %v2417 = vmul.f32 %v2390, 1.442695
    %v2418 = vpow.pop %v2417
    %v2419 = vmul.f32 %v2391, 1.442695
    %v2420 = vpow.pop %v2419
    %v2421 = vmul.f32 %v2392, 1.442695
    %v2422 = vpow.pop %v2421
    %v2423 = vmul.f32 %v2393, 1.442695
    %v2424 = vpow.pop %v2423
    %v2425 = vmul.f32 %v2394, 1.442695
    %v2426 = vpow.pop %v2425
    %2427 = vadd.xlane.f32.xlu0 %v2396
    %v2428 = vpop.xlane.xlu0 %2427
    %2429 = vadd.xlane.f32.xlu0 %v2398
    %v2430 = vpop.xlane.xlu0 %2429
    %2431 = vadd.xlane.f32.xlu0 %v2400
    %v2432 = vpop.xlane.xlu0 %2431
    %2433 = vadd.xlane.f32.xlu0 %v2402
    %v2434 = vpop.xlane.xlu0 %2433
    %2435 = vadd.xlane.f32.xlu0 %v2404
    %v2436 = vpop.xlane.xlu0 %2435
    %2437 = vadd.xlane.f32.xlu0 %v2406
    %v2438 = vpop.xlane.xlu0 %2437
    %2439 = vadd.xlane.f32.xlu0 %v2408
    %v2440 = vpop.xlane.xlu0 %2439
    %2441 = vadd.xlane.f32.xlu0 %v2410
    %v2442 = vpop.xlane.xlu0 %2441
    %2443 = vadd.xlane.f32.xlu0 %v2412
    %v2444 = vpop.xlane.xlu0 %2443
    %2445 = vadd.xlane.f32.xlu0 %v2414
    %v2446 = vpop.xlane.xlu0 %2445
    %2447 = vadd.xlane.f32.xlu0 %v2416
    %v2448 = vpop.xlane.xlu0 %2447
    %2449 = vadd.xlane.f32.xlu0 %v2418
    %v2450 = vpop.xlane.xlu0 %2449
    %2451 = vadd.xlane.f32.xlu0 %v2420
    %v2452 = vpop.xlane.xlu0 %2451
    %2453 = vadd.xlane.f32.xlu0 %v2422
    %v2454 = vpop.xlane.xlu0 %2453
    %2455 = vadd.xlane.f32.xlu0 %v2424
    %v2456 = vpop.xlane.xlu0 %2455
    %2457 = vadd.xlane.f32.xlu0 %v2426
    %v2458 = vpop.xlane.xlu0 %2457
    %v2459 = vrcp.pop %v2428
    %v2460 = vrcp.pop %v2430
    %v2461 = vrcp.pop %v2432
    %v2462 = vrcp.pop %v2434
    %v2463 = vrcp.pop %v2436
    %v2464 = vrcp.pop %v2438
    %v2465 = vrcp.pop %v2440
    %v2466 = vrcp.pop %v2442
    %v2467 = vrcp.pop %v2444
    %v2468 = vrcp.pop %v2446
    %v2469 = vrcp.pop %v2448
    %v2470 = vrcp.pop %v2450
    %v2471 = vrcp.pop %v2452
    %v2472 = vrcp.pop %v2454
    %v2473 = vrcp.pop %v2456
    %v2474 = vrcp.pop %v2458
    %v2475 = vmul.f32 %v2396, %v2459
    %v2476 = vmul.f32 %v2398, %v2460
    %v2477 = vmul.f32 %v2400, %v2461
    %v2478 = vmul.f32 %v2402, %v2462
    %v2479 = vmul.f32 %v2404, %v2463
    %v2480 = vmul.f32 %v2406, %v2464
    %v2481 = vmul.f32 %v2408, %v2465
    %v2482 = vmul.f32 %v2410, %v2466
    %v2483 = vmul.f32 %v2412, %v2467
    %v2484 = vmul.f32 %v2414, %v2468
    %v2485 = vmul.f32 %v2416, %v2469
    %v2486 = vmul.f32 %v2418, %v2470
    %v2487 = vmul.f32 %v2420, %v2471
    %v2488 = vmul.f32 %v2422, %v2472
    %v2489 = vmul.f32 %v2424, %v2473
    %v2490 = vmul.f32 %v2426, %v2474
    %v2491 = vpack.c.bf16 %v2476, %v2475
    %v2492 = vpack.c.bf16 %v2478, %v2477
    %v2493 = vpack.c.bf16 %v2480, %v2479
    %v2494 = vpack.c.bf16 %v2482, %v2481
    %v2495 = vpack.c.bf16 %v2484, %v2483
    %v2496 = vpack.c.bf16 %v2486, %v2485
    %v2497 = vpack.c.bf16 %v2488, %v2487
    %v2498 = vpack.c.bf16 %v2490, %v2489
    %2499 = vrot.lane.b32.xlu0 %v1260, 96
    %v2500 = vpop.permute.xlu0 %2499
    %2501 = vrot.lane.b32.xlu0 %v1261, 96
    %v2502 = vpop.permute.xlu0 %2501
    %2503 = vrot.lane.b32.xlu0 %v1262, 96
    %v2504 = vpop.permute.xlu0 %2503
    %2505 = vrot.lane.b32.xlu0 %v1263, 96
    %v2506 = vpop.permute.xlu0 %2505
    %2507 = vrot.lane.b32.xlu0 %v1264, 96
    %v2508 = vpop.permute.xlu0 %2507
    %2509 = vrot.lane.b32.xlu0 %v1265, 96
    %v2510 = vpop.permute.xlu0 %2509
    %2511 = vrot.lane.b32.xlu0 %v1266, 96
    %v2512 = vpop.permute.xlu0 %2511
    %2513 = vrot.lane.b32.xlu0 %v1267, 96
    %v2514 = vpop.permute.xlu0 %2513
    %2523 = vmatprep.subr.bf16.mxu0 0
    %2524 = vmatpush1.bf16.msra.mxu0 %v2500
    %2525 = vmatprep.subr.bf16.mxu0 0
    %2526 = vmatpush1.bf16.msra.mxu0 %v2502
    %2527 = vmatprep.subr.bf16.mxu0 0
    %2528 = vmatpush1.bf16.msra.mxu0 %v2504
    %2529 = vmatprep.subr.bf16.mxu0 0
    %2530 = vmatpush1.bf16.msra.mxu0 %v2506
    %2531 = vmatprep.subr.bf16.mxu0 0
    %2532 = vmatpush1.bf16.msra.mxu0 %v2508
    %2533 = vmatprep.subr.bf16.mxu0 0
    %2534 = vmatpush1.bf16.msra.mxu0 %v2510
    %2535 = vmatprep.subr.bf16.mxu0 0
    %2536 = vmatpush1.bf16.msra.mxu0 %v2512
    %2537 = vmatprep.subr.bf16.mxu0 0
    %2538 = vmatpush1.bf16.msra.mxu0 %v2514
    %2539 = vmatprep.subr.bf16.mxu0 0
    %2540 = vmatpush1.bf16.msra.mxu0 0
    %2541 = vmatprep.subr.bf16.mxu0 0
    %2542 = vmatpush1.bf16.msra.mxu0 0
    %2543 = vmatprep.subr.bf16.mxu0 0
    %2544 = vmatpush1.bf16.msra.mxu0 0
    %2545 = vmatprep.subr.bf16.mxu0 0
    %2546 = vmatpush1.bf16.msra.mxu0 0
    %2547 = vmatprep.subr.bf16.mxu0 0
    %2548 = vmatpush1.bf16.msra.mxu0 0
    %2549 = vmatprep.subr.bf16.mxu0 0
    %2550 = vmatpush1.bf16.msra.mxu0 0
    %2551 = vmatprep.subr.bf16.mxu0 0
    %2552 = vmatpush1.bf16.msra.mxu0 0
    %2553 = vmatprep.subr.bf16.mxu0 0
    %2554 = vmatpush1.bf16.msra.mxu0 0
    %2555 = vmatprep.mubr.bf16.mxu0 0
    %2556 = vmatmul.mubr.bf16.gmra.mrb[0].mxu0 %v2491
    %v2557 = vpop.f32.mrb[0].mxu0
    %v2558 = vadd.f32 0.0, %v2557
    %v2559 = vpop.f32.mrb[0].mxu0
    %v2560 = vpop.f32.mrb[0].mxu0
    %v2561 = vadd.f32 0.0, %v2560
    %v2562 = vpop.f32.mrb[0].mxu0
    %2563 = vmatprep.mubr.bf16.mxu0 0
    %2564 = vmatmul.mubr.bf16.gmra.mrb[0].mxu0 %v2492
    %v2565 = vpop.f32.mrb[0].mxu0
    %v2566 = vadd.f32 0.0, %v2565
    %v2567 = vpop.f32.mrb[0].mxu0
    %v2568 = vpop.f32.mrb[0].mxu0
    %v2569 = vadd.f32 0.0, %v2568
    %v2570 = vpop.f32.mrb[0].mxu0
    %2571 = vmatprep.mubr.bf16.mxu0 0
    %2572 = vmatmul.mubr.bf16.gmra.mrb[0].mxu0 %v2493
    %v2573 = vpop.f32.mrb[0].mxu0
    %v2574 = vadd.f32 0.0, %v2573
    %v2575 = vpop.f32.mrb[0].mxu0
    %v2576 = vpop.f32.mrb[0].mxu0
    %v2577 = vadd.f32 0.0, %v2576
    %v2578 = vpop.f32.mrb[0].mxu0
    %2579 = vmatprep.mubr.bf16.mxu0 0
    %2580 = vmatmul.mubr.bf16.gmra.mrb[0].mxu0 %v2494
    %v2581 = vpop.f32.mrb[0].mxu0
    %v2582 = vadd.f32 0.0, %v2581
    %v2583 = vpop.f32.mrb[0].mxu0
    %v2584 = vpop.f32.mrb[0].mxu0
    %v2585 = vadd.f32 0.0, %v2584
    %v2586 = vpop.f32.mrb[0].mxu0
    %2587 = vmatprep.mubr.bf16.mxu0 0
    %2588 = vmatmul.mubr.bf16.gmra.mrb[0].mxu0 %v2495
    %v2589 = vpop.f32.mrb[0].mxu0
    %v2590 = vadd.f32 0.0, %v2589
    %v2591 = vpop.f32.mrb[0].mxu0
    %v2592 = vpop.f32.mrb[0].mxu0
    %v2593 = vadd.f32 0.0, %v2592
    %v2594 = vpop.f32.mrb[0].mxu0
    %2595 = vmatprep.mubr.bf16.mxu0 0
    %2596 = vmatmul.mubr.bf16.gmra.mrb[0].mxu0 %v2496
    %v2597 = vpop.f32.mrb[0].mxu0
    %v2598 = vadd.f32 0.0, %v2597
    %v2599 = vpop.f32.mrb[0].mxu0
    %v2600 = vpop.f32.mrb[0].mxu0
    %v2601 = vadd.f32 0.0, %v2600
    %v2602 = vpop.f32.mrb[0].mxu0
    %2603 = vmatprep.mubr.bf16.mxu0 0
    %2604 = vmatmul.mubr.bf16.gmra.mrb[0].mxu0 %v2497
    %v2605 = vpop.f32.mrb[0].mxu0
    %v2606 = vadd.f32 0.0, %v2605
    %v2607 = vpop.f32.mrb[0].mxu0
    %v2608 = vpop.f32.mrb[0].mxu0
    %v2609 = vadd.f32 0.0, %v2608
    %v2610 = vpop.f32.mrb[0].mxu0
    %2611 = vmatprep.mubr.bf16.mxu0 0
    %2612 = vmatmul.mubr.bf16.gmra.mrb[0].mxu0 %v2498
    %v2613 = vpop.f32.mrb[0].mxu0
    %v2614 = vadd.f32 0.0, %v2613
    %v2615 = vpop.f32.mrb[0].mxu0
    %v2616 = vpop.f32.mrb[0].mxu0
    %v2617 = vadd.f32 0.0, %v2616
    %v2618 = vpop.f32.mrb[0].mxu0
    %2619 = vdwg.mxu0
    %2636 = vrot.lane.b32.xlu0 %v2558, 32
    %v2637 = vpop.permute.xlu0 %2636
    %2638 = vrot.lane.b32.xlu0 %v2561, 32
    %v2639 = vpop.permute.xlu0 %2638
    %2640 = vrot.lane.b32.xlu0 %v2566, 32
    %v2641 = vpop.permute.xlu0 %2640
    %2642 = vrot.lane.b32.xlu0 %v2569, 32
    %v2643 = vpop.permute.xlu0 %2642
    %2644 = vrot.lane.b32.xlu0 %v2574, 32
    %v2645 = vpop.permute.xlu0 %2644
    %2646 = vrot.lane.b32.xlu0 %v2577, 32
    %v2647 = vpop.permute.xlu0 %2646
    %2648 = vrot.lane.b32.xlu0 %v2582, 32
    %v2649 = vpop.permute.xlu0 %2648
    %2650 = vrot.lane.b32.xlu0 %v2585, 32
    %v2651 = vpop.permute.xlu0 %2650
    %2652 = vrot.lane.b32.xlu0 %v2590, 32
    %v2653 = vpop.permute.xlu0 %2652
    %2654 = vrot.lane.b32.xlu0 %v2593, 32
    %v2655 = vpop.permute.xlu0 %2654
    %2656 = vrot.lane.b32.xlu0 %v2598, 32
    %v2657 = vpop.permute.xlu0 %2656
    %2658 = vrot.lane.b32.xlu0 %v2601, 32
    %v2659 = vpop.permute.xlu0 %2658
    %2660 = vrot.lane.b32.xlu0 %v2606, 32
    %v2661 = vpop.permute.xlu0 %2660
    %2662 = vrot.lane.b32.xlu0 %v2609, 32
    %v2663 = vpop.permute.xlu0 %2662
    %2664 = vrot.lane.b32.xlu0 %v2614, 32
    %v2665 = vpop.permute.xlu0 %2664
    %2666 = vrot.lane.b32.xlu0 %v2617, 32
    %v2667 = vpop.permute.xlu0 %2666
    %vm2684 = vcmask 392448
    %2685 = vst.msk [vmem:[#allocation3] sm:$0xff] %vm2684, %v2637
    %2686 = vst.msk [vmem:[#allocation3 + $0x8] sm:$0xff] %vm2684, %v2639
    %2687 = vst.msk [vmem:[#allocation3 + $0x10] sm:$0xff] %vm2684, %v2641
    %2688 = vst.msk [vmem:[#allocation3 + $0x18] sm:$0xff] %vm2684, %v2643
    %2689 = vst.msk [vmem:[#allocation3 + $0x20] sm:$0xff] %vm2684, %v2645
    %2690 = vst.msk [vmem:[#allocation3 + $0x28] sm:$0xff] %vm2684, %v2647
    %2691 = vst.msk [vmem:[#allocation3 + $0x30] sm:$0xff] %vm2684, %v2649
    %2692 = vst.msk [vmem:[#allocation3 + $0x38] sm:$0xff] %vm2684, %v2651
    %2693 = vst.msk [vmem:[#allocation3 + $0x40] sm:$0xff] %vm2684, %v2653
    %2694 = vst.msk [vmem:[#allocation3 + $0x48] sm:$0xff] %vm2684, %v2655
    %2695 = vst.msk [vmem:[#allocation3 + $0x50] sm:$0xff] %vm2684, %v2657
    %2696 = vst.msk [vmem:[#allocation3 + $0x58] sm:$0xff] %vm2684, %v2659
    %2697 = vst.msk [vmem:[#allocation3 + $0x60] sm:$0xff] %vm2684, %v2661
    %2698 = vst.msk [vmem:[#allocation3 + $0x68] sm:$0xff] %vm2684, %v2663
    %2699 = vst.msk [vmem:[#allocation3 + $0x70] sm:$0xff] %vm2684, %v2665
    %2700 = vst.msk [vmem:[#allocation3 + $0x78] sm:$0xff] %vm2684, %v2667
    %v2701 = vld [vmem:[#allocation4] sm:$0xff]
    %v2702 = vld [vmem:[#allocation4 + $0x8] sm:$0xff]
    %v2703 = vld [vmem:[#allocation4 + $0x10] sm:$0xff]
    %v2704 = vld [vmem:[#allocation4 + $0x18] sm:$0xff]
    %v2705 = vld [vmem:[#allocation4 + $0x20] sm:$0xff]
    %v2706 = vld [vmem:[#allocation4 + $0x28] sm:$0xff]
    %v2707 = vld [vmem:[#allocation4 + $0x30] sm:$0xff]
    %v2708 = vld [vmem:[#allocation4 + $0x38] sm:$0xff]
    %v2709 = vld [vmem:[#allocation4 + $0x40] sm:$0xff]
    %v2710 = vld [vmem:[#allocation4 + $0x48] sm:$0xff]
    %v2711 = vld [vmem:[#allocation4 + $0x50] sm:$0xff]
    %v2712 = vld [vmem:[#allocation4 + $0x58] sm:$0xff]
    %v2713 = vld [vmem:[#allocation4 + $0x60] sm:$0xff]
    %v2714 = vld [vmem:[#allocation4 + $0x68] sm:$0xff]
    %v2715 = vld [vmem:[#allocation4 + $0x70] sm:$0xff]
    %v2716 = vld [vmem:[#allocation4 + $0x78] sm:$0xff]
    %2717 = vrot.lane.b32.xlu0 %v1212, 80
    %v2718 = vpop.permute.xlu0 %2717
    %2719 = vrot.lane.b32.xlu0 %v1213, 80
    %v2720 = vpop.permute.xlu0 %2719
    %2721 = vrot.lane.b32.xlu0 %v1214, 80
    %v2722 = vpop.permute.xlu0 %2721
    %2723 = vrot.lane.b32.xlu0 %v1215, 80
    %v2724 = vpop.permute.xlu0 %2723
    %2725 = vrot.lane.b32.xlu0 %v1216, 80
    %v2726 = vpop.permute.xlu0 %2725
    %2727 = vrot.lane.b32.xlu0 %v1217, 80
    %v2728 = vpop.permute.xlu0 %2727
    %2729 = vrot.lane.b32.xlu0 %v1218, 80
    %v2730 = vpop.permute.xlu0 %2729
    %2731 = vrot.lane.b32.xlu0 %v1219, 80
    %v2732 = vpop.permute.xlu0 %2731
    %v2734 = vsel %vm1284, %v2718, 0
    %v2737 = vsel %vm1284, %v2720, 0
    %v2740 = vsel %vm1284, %v2722, 0
    %v2743 = vsel %vm1284, %v2724, 0
    %v2746 = vsel %vm1284, %v2726, 0
    %v2749 = vsel %vm1284, %v2728, 0
    %v2752 = vsel %vm1284, %v2730, 0
    %v2755 = vsel %vm1284, %v2732, 0
    %2757 = vmatprep.subr.bf16.mxu0 0
    %2758 = vmatpush1.bf16.msra.mxu0 %v1255
    %2759 = vmatprep.subr.bf16.mxu0 0
    %2760 = vmatpush1.bf16.msra.mxu0 0
    %2761 = vmatprep.subr.bf16.mxu0 0
    %2762 = vmatpush1.bf16.msra.mxu0 0
    %2763 = vmatprep.subr.bf16.mxu0 0
    %2764 = vmatpush1.bf16.msra.mxu0 0
    %2765 = vmatprep.subr.bf16.mxu0 0
    %2766 = vmatpush1.bf16.msra.mxu0 0
    %2767 = vmatprep.subr.bf16.mxu0 0
    %2768 = vmatpush1.bf16.msra.mxu0 0
    %2769 = vmatprep.subr.bf16.mxu0 0
    %2770 = vmatpush1.bf16.msra.mxu0 0
    %2771 = vmatprep.subr.bf16.mxu0 0
    %2772 = vmatpush1.bf16.msra.mxu0 0
    %2773 = vmatprep.subr.bf16.mxu0 0
    %2774 = vmatpush1.bf16.msra.mxu0 0
    %2775 = vmatprep.subr.bf16.mxu0 0
    %2776 = vmatpush1.bf16.msra.mxu0 0
    %2777 = vmatprep.subr.bf16.mxu0 0
    %2778 = vmatpush1.bf16.msra.mxu0 0
    %2779 = vmatprep.subr.bf16.mxu0 0
    %2780 = vmatpush1.bf16.msra.mxu0 0
    %2781 = vmatprep.subr.bf16.mxu0 0
    %2782 = vmatpush1.bf16.msra.mxu0 0
    %2783 = vmatprep.subr.bf16.mxu0 0
    %2784 = vmatpush1.bf16.msra.mxu0 0
    %2785 = vmatprep.subr.bf16.mxu0 0
    %2786 = vmatpush1.bf16.msra.mxu0 0
    %2787 = vmatprep.subr.bf16.mxu0 0
    %2788 = vmatpush1.bf16.msra.mxu0 0
    %2789 = vmatprep.mubr.bf16.mxu0 0
    %2790 = vmatmul.mubr.bf16.gmra.mrb[0].mxu0 %v2734
    %v2791 = vpop.f32.mrb[0].mxu0
    %v2792 = vadd.f32 %v2701, %v2791
    %v2793 = vpop.f32.mrb[0].mxu0
    %v2794 = vpop.f32.mrb[0].mxu0
    %v2795 = vadd.f32 %v2702, %v2794
    %v2796 = vpop.f32.mrb[0].mxu0
    %2797 = vmatprep.mubr.bf16.mxu0 0
    %2798 = vmatmul.mubr.bf16.gmra.mrb[0].mxu0 %v2737
    %v2799 = vpop.f32.mrb[0].mxu0
    %v2800 = vadd.f32 %v2703, %v2799
    %v2801 = vpop.f32.mrb[0].mxu0
    %v2802 = vpop.f32.mrb[0].mxu0
    %v2803 = vadd.f32 %v2704, %v2802
    %v2804 = vpop.f32.mrb[0].mxu0
    %2805 = vmatprep.mubr.bf16.mxu0 0
    %2806 = vmatmul.mubr.bf16.gmra.mrb[0].mxu0 %v2740
    %v2807 = vpop.f32.mrb[0].mxu0
    %v2808 = vadd.f32 %v2705, %v2807
    %v2809 = vpop.f32.mrb[0].mxu0
    %v2810 = vpop.f32.mrb[0].mxu0
    %v2811 = vadd.f32 %v2706, %v2810
    %v2812 = vpop.f32.mrb[0].mxu0
    %2813 = vmatprep.mubr.bf16.mxu0 0
    %2814 = vmatmul.mubr.bf16.gmra.mrb[0].mxu0 %v2743
    %v2815 = vpop.f32.mrb[0].mxu0
    %v2816 = vadd.f32 %v2707, %v2815
    %v2817 = vpop.f32.mrb[0].mxu0
    %v2818 = vpop.f32.mrb[0].mxu0
    %v2819 = vadd.f32 %v2708, %v2818
    %v2820 = vpop.f32.mrb[0].mxu0
    %2821 = vmatprep.mubr.bf16.mxu0 0
    %2822 = vmatmul.mubr.bf16.gmra.mrb[0].mxu0 %v2746
    %v2823 = vpop.f32.mrb[0].mxu0
    %v2824 = vadd.f32 %v2709, %v2823
    %v2825 = vpop.f32.mrb[0].mxu0
    %v2826 = vpop.f32.mrb[0].mxu0
    %v2827 = vadd.f32 %v2710, %v2826
    %v2828 = vpop.f32.mrb[0].mxu0
    %2829 = vmatprep.mubr.bf16.mxu0 0
    %2830 = vmatmul.mubr.bf16.gmra.mrb[0].mxu0 %v2749
    %v2831 = vpop.f32.mrb[0].mxu0
    %v2832 = vadd.f32 %v2711, %v2831
    %v2833 = vpop.f32.mrb[0].mxu0
    %v2834 = vpop.f32.mrb[0].mxu0
    %v2835 = vadd.f32 %v2712, %v2834
    %v2836 = vpop.f32.mrb[0].mxu0
    %2837 = vmatprep.mubr.bf16.mxu0 0
    %2838 = vmatmul.mubr.bf16.gmra.mrb[0].mxu0 %v2752
    %v2839 = vpop.f32.mrb[0].mxu0
    %v2840 = vadd.f32 %v2713, %v2839
    %v2841 = vpop.f32.mrb[0].mxu0
    %v2842 = vpop.f32.mrb[0].mxu0
    %v2843 = vadd.f32 %v2714, %v2842
    %v2844 = vpop.f32.mrb[0].mxu0
    %2845 = vmatprep.mubr.bf16.mxu0 0
    %2846 = vmatmul.mubr.bf16.gmra.mrb[0].mxu0 %v2755
    %v2847 = vpop.f32.mrb[0].mxu0
    %v2848 = vadd.f32 %v2715, %v2847
    %v2849 = vpop.f32.mrb[0].mxu0
    %v2850 = vpop.f32.mrb[0].mxu0
    %v2851 = vadd.f32 %v2716, %v2850
    %v2852 = vpop.f32.mrb[0].mxu0
    %2853 = vdwg.mxu0
    %2854 = vmax.xlane.f32.xlu0 %v2792
    %v2855 = vpop.xlane.xlu0 %2854
    %2856 = vmax.xlane.f32.xlu0 %v2795
    %v2857 = vpop.xlane.xlu0 %2856
    %2858 = vmax.xlane.f32.xlu0 %v2800
    %v2859 = vpop.xlane.xlu0 %2858
    %2860 = vmax.xlane.f32.xlu0 %v2803
    %v2861 = vpop.xlane.xlu0 %2860
    %2862 = vmax.xlane.f32.xlu0 %v2808
    %v2863 = vpop.xlane.xlu0 %2862
    %2864 = vmax.xlane.f32.xlu0 %v2811
    %v2865 = vpop.xlane.xlu0 %2864
    %2866 = vmax.xlane.f32.xlu0 %v2816
    %v2867 = vpop.xlane.xlu0 %2866
    %2868 = vmax.xlane.f32.xlu0 %v2819
    %v2869 = vpop.xlane.xlu0 %2868
    %2870 = vmax.xlane.f32.xlu0 %v2824
    %v2871 = vpop.xlane.xlu0 %2870
    %2872 = vmax.xlane.f32.xlu0 %v2827
    %v2873 = vpop.xlane.xlu0 %2872
    %2874 = vmax.xlane.f32.xlu0 %v2832
    %v2875 = vpop.xlane.xlu0 %2874
    %2876 = vmax.xlane.f32.xlu0 %v2835
    %v2877 = vpop.xlane.xlu0 %2876
    %2878 = vmax.xlane.f32.xlu0 %v2840
    %v2879 = vpop.xlane.xlu0 %2878
    %2880 = vmax.xlane.f32.xlu0 %v2843
    %v2881 = vpop.xlane.xlu0 %2880
    %2882 = vmax.xlane.f32.xlu0 %v2848
    %v2883 = vpop.xlane.xlu0 %2882
    %2884 = vmax.xlane.f32.xlu0 %v2851
    %v2885 = vpop.xlane.xlu0 %2884
    %v2886 = vsub.f32 %v2792, %v2855
    %v2887 = vsub.f32 %v2795, %v2857
    %v2888 = vsub.f32 %v2800, %v2859
    %v2889 = vsub.f32 %v2803, %v2861
    %v2890 = vsub.f32 %v2808, %v2863
    %v2891 = vsub.f32 %v2811, %v2865
    %v2892 = vsub.f32 %v2816, %v2867
    %v2893 = vsub.f32 %v2819, %v2869
    %v2894 = vsub.f32 %v2824, %v2871
    %v2895 = vsub.f32 %v2827, %v2873
    %v2896 = vsub.f32 %v2832, %v2875
    %v2897 = vsub.f32 %v2835, %v2877
    %v2898 = vsub.f32 %v2840, %v2879
    %v2899 = vsub.f32 %v2843, %v2881
    %v2900 = vsub.f32 %v2848, %v2883
    %v2901 = vsub.f32 %v2851, %v2885
    %v2902 = vmul.f32 %v2886, 1.442695
    %v2903 = vpow.pop %v2902
    %v2904 = vmul.f32 %v2887, 1.442695
    %v2905 = vpow.pop %v2904
    %v2906 = vmul.f32 %v2888, 1.442695
    %v2907 = vpow.pop %v2906
    %v2908 = vmul.f32 %v2889, 1.442695
    %v2909 = vpow.pop %v2908
    %v2910 = vmul.f32 %v2890, 1.442695
    %v2911 = vpow.pop %v2910
    %v2912 = vmul.f32 %v2891, 1.442695
    %v2913 = vpow.pop %v2912
    %v2914 = vmul.f32 %v2892, 1.442695
    %v2915 = vpow.pop %v2914
    %v2916 = vmul.f32 %v2893, 1.442695
    %v2917 = vpow.pop %v2916
    %v2918 = vmul.f32 %v2894, 1.442695
    %v2919 = vpow.pop %v2918
    %v2920 = vmul.f32 %v2895, 1.442695
    %v2921 = vpow.pop %v2920
    %v2922 = vmul.f32 %v2896, 1.442695
    %v2923 = vpow.pop %v2922
    %v2924 = vmul.f32 %v2897, 1.442695
    %v2925 = vpow.pop %v2924
    %v2926 = vmul.f32 %v2898, 1.442695
    %v2927 = vpow.pop %v2926
    %v2928 = vmul.f32 %v2899, 1.442695
    %v2929 = vpow.pop %v2928
    %v2930 = vmul.f32 %v2900, 1.442695
    %v2931 = vpow.pop %v2930
    %v2932 = vmul.f32 %v2901, 1.442695
    %v2933 = vpow.pop %v2932
    %2934 = vadd.xlane.f32.xlu0 %v2903
    %v2935 = vpop.xlane.xlu0 %2934
    %2936 = vadd.xlane.f32.xlu0 %v2905
    %v2937 = vpop.xlane.xlu0 %2936
    %2938 = vadd.xlane.f32.xlu0 %v2907
    %v2939 = vpop.xlane.xlu0 %2938
    %2940 = vadd.xlane.f32.xlu0 %v2909
    %v2941 = vpop.xlane.xlu0 %2940
    %2942 = vadd.xlane.f32.xlu0 %v2911
    %v2943 = vpop.xlane.xlu0 %2942
    %2944 = vadd.xlane.f32.xlu0 %v2913
    %v2945 = vpop.xlane.xlu0 %2944
    %2946 = vadd.xlane.f32.xlu0 %v2915
    %v2947 = vpop.xlane.xlu0 %2946
    %2948 = vadd.xlane.f32.xlu0 %v2917
    %v2949 = vpop.xlane.xlu0 %2948
    %2950 = vadd.xlane.f32.xlu0 %v2919
    %v2951 = vpop.xlane.xlu0 %2950
    %2952 = vadd.xlane.f32.xlu0 %v2921
    %v2953 = vpop.xlane.xlu0 %2952
    %2954 = vadd.xlane.f32.xlu0 %v2923
    %v2955 = vpop.xlane.xlu0 %2954
    %2956 = vadd.xlane.f32.xlu0 %v2925
    %v2957 = vpop.xlane.xlu0 %2956
    %2958 = vadd.xlane.f32.xlu0 %v2927
    %v2959 = vpop.xlane.xlu0 %2958
    %2960 = vadd.xlane.f32.xlu0 %v2929
    %v2961 = vpop.xlane.xlu0 %2960
    %2962 = vadd.xlane.f32.xlu0 %v2931
    %v2963 = vpop.xlane.xlu0 %2962
    %2964 = vadd.xlane.f32.xlu0 %v2933
    %v2965 = vpop.xlane.xlu0 %2964
    %v2966 = vrcp.pop %v2935
    %v2967 = vrcp.pop %v2937
    %v2968 = vrcp.pop %v2939
    %v2969 = vrcp.pop %v2941
    %v2970 = vrcp.pop %v2943
    %v2971 = vrcp.pop %v2945
    %v2972 = vrcp.pop %v2947
    %v2973 = vrcp.pop %v2949
    %v2974 = vrcp.pop %v2951
    %v2975 = vrcp.pop %v2953
    %v2976 = vrcp.pop %v2955
    %v2977 = vrcp.pop %v2957
    %v2978 = vrcp.pop %v2959
    %v2979 = vrcp.pop %v2961
    %v2980 = vrcp.pop %v2963
    %v2981 = vrcp.pop %v2965
    %v2982 = vmul.f32 %v2903, %v2966
    %v2983 = vmul.f32 %v2905, %v2967
    %v2984 = vmul.f32 %v2907, %v2968
    %v2985 = vmul.f32 %v2909, %v2969
    %v2986 = vmul.f32 %v2911, %v2970
    %v2987 = vmul.f32 %v2913, %v2971
    %v2988 = vmul.f32 %v2915, %v2972
    %v2989 = vmul.f32 %v2917, %v2973
    %v2990 = vmul.f32 %v2919, %v2974
    %v2991 = vmul.f32 %v2921, %v2975
    %v2992 = vmul.f32 %v2923, %v2976
    %v2993 = vmul.f32 %v2925, %v2977
    %v2994 = vmul.f32 %v2927, %v2978
    %v2995 = vmul.f32 %v2929, %v2979
    %v2996 = vmul.f32 %v2931, %v2980
    %v2997 = vmul.f32 %v2933, %v2981
    %v2998 = vpack.c.bf16 %v2983, %v2982
    %v2999 = vpack.c.bf16 %v2985, %v2984
    %v3000 = vpack.c.bf16 %v2987, %v2986
    %v3001 = vpack.c.bf16 %v2989, %v2988
    %v3002 = vpack.c.bf16 %v2991, %v2990
    %v3003 = vpack.c.bf16 %v2993, %v2992
    %v3004 = vpack.c.bf16 %v2995, %v2994
    %v3005 = vpack.c.bf16 %v2997, %v2996
    %3006 = vrot.lane.b32.xlu0 %v1260, 80
    %v3007 = vpop.permute.xlu0 %3006
    %3008 = vrot.lane.b32.xlu0 %v1261, 80
    %v3009 = vpop.permute.xlu0 %3008
    %3010 = vrot.lane.b32.xlu0 %v1262, 80
    %v3011 = vpop.permute.xlu0 %3010
    %3012 = vrot.lane.b32.xlu0 %v1263, 80
    %v3013 = vpop.permute.xlu0 %3012
    %3014 = vrot.lane.b32.xlu0 %v1264, 80
    %v3015 = vpop.permute.xlu0 %3014
    %3016 = vrot.lane.b32.xlu0 %v1265, 80
    %v3017 = vpop.permute.xlu0 %3016
    %3018 = vrot.lane.b32.xlu0 %v1266, 80
    %v3019 = vpop.permute.xlu0 %3018
    %3020 = vrot.lane.b32.xlu0 %v1267, 80
    %v3021 = vpop.permute.xlu0 %3020
    %3030 = vmatprep.subr.bf16.mxu0 0
    %3031 = vmatpush1.bf16.msra.mxu0 %v3007
    %3032 = vmatprep.subr.bf16.mxu0 0
    %3033 = vmatpush1.bf16.msra.mxu0 %v3009
    %3034 = vmatprep.subr.bf16.mxu0 0
    %3035 = vmatpush1.bf16.msra.mxu0 %v3011
    %3036 = vmatprep.subr.bf16.mxu0 0
    %3037 = vmatpush1.bf16.msra.mxu0 %v3013
    %3038 = vmatprep.subr.bf16.mxu0 0
    %3039 = vmatpush1.bf16.msra.mxu0 %v3015
    %3040 = vmatprep.subr.bf16.mxu0 0
    %3041 = vmatpush1.bf16.msra.mxu0 %v3017
    %3042 = vmatprep.subr.bf16.mxu0 0
    %3043 = vmatpush1.bf16.msra.mxu0 %v3019
    %3044 = vmatprep.subr.bf16.mxu0 0
    %3045 = vmatpush1.bf16.msra.mxu0 %v3021
    %3046 = vmatprep.subr.bf16.mxu0 0
    %3047 = vmatpush1.bf16.msra.mxu0 0
    %3048 = vmatprep.subr.bf16.mxu0 0
    %3049 = vmatpush1.bf16.msra.mxu0 0
    %3050 = vmatprep.subr.bf16.mxu0 0
    %3051 = vmatpush1.bf16.msra.mxu0 0
    %3052 = vmatprep.subr.bf16.mxu0 0
    %3053 = vmatpush1.bf16.msra.mxu0 0
    %3054 = vmatprep.subr.bf16.mxu0 0
    %3055 = vmatpush1.bf16.msra.mxu0 0
    %3056 = vmatprep.subr.bf16.mxu0 0
    %3057 = vmatpush1.bf16.msra.mxu0 0
    %3058 = vmatprep.subr.bf16.mxu0 0
    %3059 = vmatpush1.bf16.msra.mxu0 0
    %3060 = vmatprep.subr.bf16.mxu0 0
    %3061 = vmatpush1.bf16.msra.mxu0 0
    %3062 = vmatprep.mubr.bf16.mxu0 0
    %3063 = vmatmul.mubr.bf16.gmra.mrb[0].mxu0 %v2998
    %v3064 = vpop.f32.mrb[0].mxu0
    %v3065 = vadd.f32 0.0, %v3064
    %v3066 = vpop.f32.mrb[0].mxu0
    %v3067 = vpop.f32.mrb[0].mxu0
    %v3068 = vadd.f32 0.0, %v3067
    %v3069 = vpop.f32.mrb[0].mxu0
    %3070 = vmatprep.mubr.bf16.mxu0 0
    %3071 = vmatmul.mubr.bf16.gmra.mrb[0].mxu0 %v2999
    %v3072 = vpop.f32.mrb[0].mxu0
    %v3073 = vadd.f32 0.0, %v3072
    %v3074 = vpop.f32.mrb[0].mxu0
    %v3075 = vpop.f32.mrb[0].mxu0
    %v3076 = vadd.f32 0.0, %v3075
    %v3077 = vpop.f32.mrb[0].mxu0
    %3078 = vmatprep.mubr.bf16.mxu0 0
    %3079 = vmatmul.mubr.bf16.gmra.mrb[0].mxu0 %v3000
    %v3080 = vpop.f32.mrb[0].mxu0
    %v3081 = vadd.f32 0.0, %v3080
    %v3082 = vpop.f32.mrb[0].mxu0
    %v3083 = vpop.f32.mrb[0].mxu0
    %v3084 = vadd.f32 0.0, %v3083
    %v3085 = vpop.f32.mrb[0].mxu0
    %3086 = vmatprep.mubr.bf16.mxu0 0
    %3087 = vmatmul.mubr.bf16.gmra.mrb[0].mxu0 %v3001
    %v3088 = vpop.f32.mrb[0].mxu0
    %v3089 = vadd.f32 0.0, %v3088
    %v3090 = vpop.f32.mrb[0].mxu0
    %v3091 = vpop.f32.mrb[0].mxu0
    %v3092 = vadd.f32 0.0, %v3091
    %v3093 = vpop.f32.mrb[0].mxu0
    %3094 = vmatprep.mubr.bf16.mxu0 0
    %3095 = vmatmul.mubr.bf16.gmra.mrb[0].mxu0 %v3002
    %v3096 = vpop.f32.mrb[0].mxu0
    %v3097 = vadd.f32 0.0, %v3096
    %v3098 = vpop.f32.mrb[0].mxu0
    %v3099 = vpop.f32.mrb[0].mxu0
    %v3100 = vadd.f32 0.0, %v3099
    %v3101 = vpop.f32.mrb[0].mxu0
    %3102 = vmatprep.mubr.bf16.mxu0 0
    %3103 = vmatmul.mubr.bf16.gmra.mrb[0].mxu0 %v3003
    %v3104 = vpop.f32.mrb[0].mxu0
    %v3105 = vadd.f32 0.0, %v3104
    %v3106 = vpop.f32.mrb[0].mxu0
    %v3107 = vpop.f32.mrb[0].mxu0
    %v3108 = vadd.f32 0.0, %v3107
    %v3109 = vpop.f32.mrb[0].mxu0
    %3110 = vmatprep.mubr.bf16.mxu0 0
    %3111 = vmatmul.mubr.bf16.gmra.mrb[0].mxu0 %v3004
    %v3112 = vpop.f32.mrb[0].mxu0
    %v3113 = vadd.f32 0.0, %v3112
    %v3114 = vpop.f32.mrb[0].mxu0
    %v3115 = vpop.f32.mrb[0].mxu0
    %v3116 = vadd.f32 0.0, %v3115
    %v3117 = vpop.f32.mrb[0].mxu0
    %3118 = vmatprep.mubr.bf16.mxu0 0
    %3119 = vmatmul.mubr.bf16.gmra.mrb[0].mxu0 %v3005
    %v3120 = vpop.f32.mrb[0].mxu0
    %v3121 = vadd.f32 0.0, %v3120
    %v3122 = vpop.f32.mrb[0].mxu0
    %v3123 = vpop.f32.mrb[0].mxu0
    %v3124 = vadd.f32 0.0, %v3123
    %v3125 = vpop.f32.mrb[0].mxu0
    %3126 = vdwg.mxu0
    %3143 = vrot.lane.b32.xlu0 %v3065, 48
    %v3144 = vpop.permute.xlu0 %3143
    %3145 = vrot.lane.b32.xlu0 %v3068, 48
    %v3146 = vpop.permute.xlu0 %3145
    %3147 = vrot.lane.b32.xlu0 %v3073, 48
    %v3148 = vpop.permute.xlu0 %3147
    %3149 = vrot.lane.b32.xlu0 %v3076, 48
    %v3150 = vpop.permute.xlu0 %3149
    %3151 = vrot.lane.b32.xlu0 %v3081, 48
    %v3152 = vpop.permute.xlu0 %3151
    %3153 = vrot.lane.b32.xlu0 %v3084, 48
    %v3154 = vpop.permute.xlu0 %3153
    %3155 = vrot.lane.b32.xlu0 %v3089, 48
    %v3156 = vpop.permute.xlu0 %3155
    %3157 = vrot.lane.b32.xlu0 %v3092, 48
    %v3158 = vpop.permute.xlu0 %3157
    %3159 = vrot.lane.b32.xlu0 %v3097, 48
    %v3160 = vpop.permute.xlu0 %3159
    %3161 = vrot.lane.b32.xlu0 %v3100, 48
    %v3162 = vpop.permute.xlu0 %3161
    %3163 = vrot.lane.b32.xlu0 %v3105, 48
    %v3164 = vpop.permute.xlu0 %3163
    %3165 = vrot.lane.b32.xlu0 %v3108, 48
    %v3166 = vpop.permute.xlu0 %3165
    %3167 = vrot.lane.b32.xlu0 %v3113, 48
    %v3168 = vpop.permute.xlu0 %3167
    %3169 = vrot.lane.b32.xlu0 %v3116, 48
    %v3170 = vpop.permute.xlu0 %3169
    %3171 = vrot.lane.b32.xlu0 %v3121, 48
    %v3172 = vpop.permute.xlu0 %3171
    %3173 = vrot.lane.b32.xlu0 %v3124, 48
    %v3174 = vpop.permute.xlu0 %3173
    %vm3191 = vcmask 523648
    %3192 = vst.msk [vmem:[#allocation3] sm:$0xff] %vm3191, %v3144
    %3193 = vst.msk [vmem:[#allocation3 + $0x8] sm:$0xff] %vm3191, %v3146
    %3194 = vst.msk [vmem:[#allocation3 + $0x10] sm:$0xff] %vm3191, %v3148
    %3195 = vst.msk [vmem:[#allocation3 + $0x18] sm:$0xff] %vm3191, %v3150
    %3196 = vst.msk [vmem:[#allocation3 + $0x20] sm:$0xff] %vm3191, %v3152
    %3197 = vst.msk [vmem:[#allocation3 + $0x28] sm:$0xff] %vm3191, %v3154
    %3198 = vst.msk [vmem:[#allocation3 + $0x30] sm:$0xff] %vm3191, %v3156
    %3199 = vst.msk [vmem:[#allocation3 + $0x38] sm:$0xff] %vm3191, %v3158
    %3200 = vst.msk [vmem:[#allocation3 + $0x40] sm:$0xff] %vm3191, %v3160
    %3201 = vst.msk [vmem:[#allocation3 + $0x48] sm:$0xff] %vm3191, %v3162
    %3202 = vst.msk [vmem:[#allocation3 + $0x50] sm:$0xff] %vm3191, %v3164
    %3203 = vst.msk [vmem:[#allocation3 + $0x58] sm:$0xff] %vm3191, %v3166
    %3204 = vst.msk [vmem:[#allocation3 + $0x60] sm:$0xff] %vm3191, %v3168
    %3205 = vst.msk [vmem:[#allocation3 + $0x68] sm:$0xff] %vm3191, %v3170
    %3206 = vst.msk [vmem:[#allocation3 + $0x70] sm:$0xff] %vm3191, %v3172
    %3207 = vst.msk [vmem:[#allocation3 + $0x78] sm:$0xff] %vm3191, %v3174
    %v3208 = vld [vmem:[#allocation4] sm:$0xff]
    %v3209 = vld [vmem:[#allocation4 + $0x8] sm:$0xff]
    %v3210 = vld [vmem:[#allocation4 + $0x10] sm:$0xff]
    %v3211 = vld [vmem:[#allocation4 + $0x18] sm:$0xff]
    %v3212 = vld [vmem:[#allocation4 + $0x20] sm:$0xff]
    %v3213 = vld [vmem:[#allocation4 + $0x28] sm:$0xff]
    %v3214 = vld [vmem:[#allocation4 + $0x30] sm:$0xff]
    %v3215 = vld [vmem:[#allocation4 + $0x38] sm:$0xff]
    %v3216 = vld [vmem:[#allocation4 + $0x40] sm:$0xff]
    %v3217 = vld [vmem:[#allocation4 + $0x48] sm:$0xff]
    %v3218 = vld [vmem:[#allocation4 + $0x50] sm:$0xff]
    %v3219 = vld [vmem:[#allocation4 + $0x58] sm:$0xff]
    %v3220 = vld [vmem:[#allocation4 + $0x60] sm:$0xff]
    %v3221 = vld [vmem:[#allocation4 + $0x68] sm:$0xff]
    %v3222 = vld [vmem:[#allocation4 + $0x70] sm:$0xff]
    %v3223 = vld [vmem:[#allocation4 + $0x78] sm:$0xff]
    %3224 = vrot.lane.b32.xlu0 %v1212, 64
    %v3225 = vpop.permute.xlu0 %3224
    %3226 = vrot.lane.b32.xlu0 %v1213, 64
    %v3227 = vpop.permute.xlu0 %3226
    %3228 = vrot.lane.b32.xlu0 %v1214, 64
    %v3229 = vpop.permute.xlu0 %3228
    %3230 = vrot.lane.b32.xlu0 %v1215, 64
    %v3231 = vpop.permute.xlu0 %3230
    %3232 = vrot.lane.b32.xlu0 %v1216, 64
    %v3233 = vpop.permute.xlu0 %3232
    %3234 = vrot.lane.b32.xlu0 %v1217, 64
    %v3235 = vpop.permute.xlu0 %3234
    %3236 = vrot.lane.b32.xlu0 %v1218, 64
    %v3237 = vpop.permute.xlu0 %3236
    %3238 = vrot.lane.b32.xlu0 %v1219, 64
    %v3239 = vpop.permute.xlu0 %3238
    %v3241 = vsel %vm1284, %v3225, 0
    %v3244 = vsel %vm1284, %v3227, 0
    %v3247 = vsel %vm1284, %v3229, 0
    %v3250 = vsel %vm1284, %v3231, 0
    %v3253 = vsel %vm1284, %v3233, 0
    %v3256 = vsel %vm1284, %v3235, 0
    %v3259 = vsel %vm1284, %v3237, 0
    %v3262 = vsel %vm1284, %v3239, 0
    %3264 = vmatprep.subr.bf16.mxu0 0
    %3265 = vmatpush1.bf16.msra.mxu0 %v1256
    %3266 = vmatprep.subr.bf16.mxu0 0
    %3267 = vmatpush1.bf16.msra.mxu0 0
    %3268 = vmatprep.subr.bf16.mxu0 0
    %3269 = vmatpush1.bf16.msra.mxu0 0
    %3270 = vmatprep.subr.bf16.mxu0 0
    %3271 = vmatpush1.bf16.msra.mxu0 0
    %3272 = vmatprep.subr.bf16.mxu0 0
    %3273 = vmatpush1.bf16.msra.mxu0 0
    %3274 = vmatprep.subr.bf16.mxu0 0
    %3275 = vmatpush1.bf16.msra.mxu0 0
    %3276 = vmatprep.subr.bf16.mxu0 0
    %3277 = vmatpush1.bf16.msra.mxu0 0
    %3278 = vmatprep.subr.bf16.mxu0 0
    %3279 = vmatpush1.bf16.msra.mxu0 0
    %3280 = vmatprep.subr.bf16.mxu0 0
    %3281 = vmatpush1.bf16.msra.mxu0 0
    %3282 = vmatprep.subr.bf16.mxu0 0
    %3283 = vmatpush1.bf16.msra.mxu0 0
    %3284 = vmatprep.subr.bf16.mxu0 0
    %3285 = vmatpush1.bf16.msra.mxu0 0
    %3286 = vmatprep.subr.bf16.mxu0 0
    %3287 = vmatpush1.bf16.msra.mxu0 0
    %3288 = vmatprep.subr.bf16.mxu0 0
    %3289 = vmatpush1.bf16.msra.mxu0 0
    %3290 = vmatprep.subr.bf16.mxu0 0
    %3291 = vmatpush1.bf16.msra.mxu0 0
    %3292 = vmatprep.subr.bf16.mxu0 0
    %3293 = vmatpush1.bf16.msra.mxu0 0
    %3294 = vmatprep.subr.bf16.mxu0 0
    %3295 = vmatpush1.bf16.msra.mxu0 0
    %3296 = vmatprep.mubr.bf16.mxu0 0
    %3297 = vmatmul.mubr.bf16.gmra.mrb[0].mxu0 %v3241
    %v3298 = vpop.f32.mrb[0].mxu0
    %v3299 = vadd.f32 %v3208, %v3298
    %v3300 = vpop.f32.mrb[0].mxu0
    %v3301 = vpop.f32.mrb[0].mxu0
    %v3302 = vadd.f32 %v3209, %v3301
    %v3303 = vpop.f32.mrb[0].mxu0
    %3304 = vmatprep.mubr.bf16.mxu0 0
    %3305 = vmatmul.mubr.bf16.gmra.mrb[0].mxu0 %v3244
    %v3306 = vpop.f32.mrb[0].mxu0
    %v3307 = vadd.f32 %v3210, %v3306
    %v3308 = vpop.f32.mrb[0].mxu0
    %v3309 = vpop.f32.mrb[0].mxu0
    %v3310 = vadd.f32 %v3211, %v3309
    %v3311 = vpop.f32.mrb[0].mxu0
    %3312 = vmatprep.mubr.bf16.mxu0 0
    %3313 = vmatmul.mubr.bf16.gmra.mrb[0].mxu0 %v3247
    %v3314 = vpop.f32.mrb[0].mxu0
    %v3315 = vadd.f32 %v3212, %v3314
    %v3316 = vpop.f32.mrb[0].mxu0
    %v3317 = vpop.f32.mrb[0].mxu0
    %v3318 = vadd.f32 %v3213, %v3317
    %v3319 = vpop.f32.mrb[0].mxu0
    %3320 = vmatprep.mubr.bf16.mxu0 0
    %3321 = vmatmul.mubr.bf16.gmra.mrb[0].mxu0 %v3250
    %v3322 = vpop.f32.mrb[0].mxu0
    %v3323 = vadd.f32 %v3214, %v3322
    %v3324 = vpop.f32.mrb[0].mxu0
    %v3325 = vpop.f32.mrb[0].mxu0
    %v3326 = vadd.f32 %v3215, %v3325
    %v3327 = vpop.f32.mrb[0].mxu0
    %3328 = vmatprep.mubr.bf16.mxu0 0
    %3329 = vmatmul.mubr.bf16.gmra.mrb[0].mxu0 %v3253
    %v3330 = vpop.f32.mrb[0].mxu0
    %v3331 = vadd.f32 %v3216, %v3330
    %v3332 = vpop.f32.mrb[0].mxu0
    %v3333 = vpop.f32.mrb[0].mxu0
    %v3334 = vadd.f32 %v3217, %v3333
    %v3335 = vpop.f32.mrb[0].mxu0
    %3336 = vmatprep.mubr.bf16.mxu0 0
    %3337 = vmatmul.mubr.bf16.gmra.mrb[0].mxu0 %v3256
    %v3338 = vpop.f32.mrb[0].mxu0
    %v3339 = vadd.f32 %v3218, %v3338
    %v3340 = vpop.f32.mrb[0].mxu0
    %v3341 = vpop.f32.mrb[0].mxu0
    %v3342 = vadd.f32 %v3219, %v3341
    %v3343 = vpop.f32.mrb[0].mxu0
    %3344 = vmatprep.mubr.bf16.mxu0 0
    %3345 = vmatmul.mubr.bf16.gmra.mrb[0].mxu0 %v3259
    %v3346 = vpop.f32.mrb[0].mxu0
    %v3347 = vadd.f32 %v3220, %v3346
    %v3348 = vpop.f32.mrb[0].mxu0
    %v3349 = vpop.f32.mrb[0].mxu0
    %v3350 = vadd.f32 %v3221, %v3349
    %v3351 = vpop.f32.mrb[0].mxu0
    %3352 = vmatprep.mubr.bf16.mxu0 0
    %3353 = vmatmul.mubr.bf16.gmra.mrb[0].mxu0 %v3262
    %v3354 = vpop.f32.mrb[0].mxu0
    %v3355 = vadd.f32 %v3222, %v3354
    %v3356 = vpop.f32.mrb[0].mxu0
    %v3357 = vpop.f32.mrb[0].mxu0
    %v3358 = vadd.f32 %v3223, %v3357
    %v3359 = vpop.f32.mrb[0].mxu0
    %3360 = vdwg.mxu0
    %3361 = vmax.xlane.f32.xlu0 %v3299
    %v3362 = vpop.xlane.xlu0 %3361
    %3363 = vmax.xlane.f32.xlu0 %v3302
    %v3364 = vpop.xlane.xlu0 %3363
    %3365 = vmax.xlane.f32.xlu0 %v3307
    %v3366 = vpop.xlane.xlu0 %3365
    %3367 = vmax.xlane.f32.xlu0 %v3310
    %v3368 = vpop.xlane.xlu0 %3367
    %3369 = vmax.xlane.f32.xlu0 %v3315
    %v3370 = vpop.xlane.xlu0 %3369
    %3371 = vmax.xlane.f32.xlu0 %v3318
    %v3372 = vpop.xlane.xlu0 %3371
    %3373 = vmax.xlane.f32.xlu0 %v3323
    %v3374 = vpop.xlane.xlu0 %3373
    %3375 = vmax.xlane.f32.xlu0 %v3326
    %v3376 = vpop.xlane.xlu0 %3375
    %3377 = vmax.xlane.f32.xlu0 %v3331
    %v3378 = vpop.xlane.xlu0 %3377
    %3379 = vmax.xlane.f32.xlu0 %v3334
    %v3380 = vpop.xlane.xlu0 %3379
    %3381 = vmax.xlane.f32.xlu0 %v3339
    %v3382 = vpop.xlane.xlu0 %3381
    %3383 = vmax.xlane.f32.xlu0 %v3342
    %v3384 = vpop.xlane.xlu0 %3383
    %3385 = vmax.xlane.f32.xlu0 %v3347
    %v3386 = vpop.xlane.xlu0 %3385
    %3387 = vmax.xlane.f32.xlu0 %v3350
    %v3388 = vpop.xlane.xlu0 %3387
    %3389 = vmax.xlane.f32.xlu0 %v3355
    %v3390 = vpop.xlane.xlu0 %3389
    %3391 = vmax.xlane.f32.xlu0 %v3358
    %v3392 = vpop.xlane.xlu0 %3391
    %v3393 = vsub.f32 %v3299, %v3362
    %v3394 = vsub.f32 %v3302, %v3364
    %v3395 = vsub.f32 %v3307, %v3366
    %v3396 = vsub.f32 %v3310, %v3368
    %v3397 = vsub.f32 %v3315, %v3370
    %v3398 = vsub.f32 %v3318, %v3372
    %v3399 = vsub.f32 %v3323, %v3374
    %v3400 = vsub.f32 %v3326, %v3376
    %v3401 = vsub.f32 %v3331, %v3378
    %v3402 = vsub.f32 %v3334, %v3380
    %v3403 = vsub.f32 %v3339, %v3382
    %v3404 = vsub.f32 %v3342, %v3384
    %v3405 = vsub.f32 %v3347, %v3386
    %v3406 = vsub.f32 %v3350, %v3388
    %v3407 = vsub.f32 %v3355, %v3390
    %v3408 = vsub.f32 %v3358, %v3392
    %v3409 = vmul.f32 %v3393, 1.442695
    %v3410 = vpow.pop %v3409
    %v3411 = vmul.f32 %v3394, 1.442695
    %v3412 = vpow.pop %v3411
    %v3413 = vmul.f32 %v3395, 1.442695
    %v3414 = vpow.pop %v3413
    %v3415 = vmul.f32 %v3396, 1.442695
    %v3416 = vpow.pop %v3415
    %v3417 = vmul.f32 %v3397, 1.442695
    %v3418 = vpow.pop %v3417
    %v3419 = vmul.f32 %v3398, 1.442695
    %v3420 = vpow.pop %v3419
    %v3421 = vmul.f32 %v3399, 1.442695
    %v3422 = vpow.pop %v3421
    %v3423 = vmul.f32 %v3400, 1.442695
    %v3424 = vpow.pop %v3423
    %v3425 = vmul.f32 %v3401, 1.442695
    %v3426 = vpow.pop %v3425
    %v3427 = vmul.f32 %v3402, 1.442695
    %v3428 = vpow.pop %v3427
    %v3429 = vmul.f32 %v3403, 1.442695
    %v3430 = vpow.pop %v3429
    %v3431 = vmul.f32 %v3404, 1.442695
    %v3432 = vpow.pop %v3431
    %v3433 = vmul.f32 %v3405, 1.442695
    %v3434 = vpow.pop %v3433
    %v3435 = vmul.f32 %v3406, 1.442695
    %v3436 = vpow.pop %v3435
    %v3437 = vmul.f32 %v3407, 1.442695
    %v3438 = vpow.pop %v3437
    %v3439 = vmul.f32 %v3408, 1.442695
    %v3440 = vpow.pop %v3439
    %3441 = vadd.xlane.f32.xlu0 %v3410
    %v3442 = vpop.xlane.xlu0 %3441
    %3443 = vadd.xlane.f32.xlu0 %v3412
    %v3444 = vpop.xlane.xlu0 %3443
    %3445 = vadd.xlane.f32.xlu0 %v3414
    %v3446 = vpop.xlane.xlu0 %3445
    %3447 = vadd.xlane.f32.xlu0 %v3416
    %v3448 = vpop.xlane.xlu0 %3447
    %3449 = vadd.xlane.f32.xlu0 %v3418
    %v3450 = vpop.xlane.xlu0 %3449
    %3451 = vadd.xlane.f32.xlu0 %v3420
    %v3452 = vpop.xlane.xlu0 %3451
    %3453 = vadd.xlane.f32.xlu0 %v3422
    %v3454 = vpop.xlane.xlu0 %3453
    %3455 = vadd.xlane.f32.xlu0 %v3424
    %v3456 = vpop.xlane.xlu0 %3455
    %3457 = vadd.xlane.f32.xlu0 %v3426
    %v3458 = vpop.xlane.xlu0 %3457
    %3459 = vadd.xlane.f32.xlu0 %v3428
    %v3460 = vpop.xlane.xlu0 %3459
    %3461 = vadd.xlane.f32.xlu0 %v3430
    %v3462 = vpop.xlane.xlu0 %3461
    %3463 = vadd.xlane.f32.xlu0 %v3432
    %v3464 = vpop.xlane.xlu0 %3463
    %3465 = vadd.xlane.f32.xlu0 %v3434
    %v3466 = vpop.xlane.xlu0 %3465
    %3467 = vadd.xlane.f32.xlu0 %v3436
    %v3468 = vpop.xlane.xlu0 %3467
    %3469 = vadd.xlane.f32.xlu0 %v3438
    %v3470 = vpop.xlane.xlu0 %3469
    %3471 = vadd.xlane.f32.xlu0 %v3440
    %v3472 = vpop.xlane.xlu0 %3471
    %v3473 = vrcp.pop %v3442
    %v3474 = vrcp.pop %v3444
    %v3475 = vrcp.pop %v3446
    %v3476 = vrcp.pop %v3448
    %v3477 = vrcp.pop %v3450
    %v3478 = vrcp.pop %v3452
    %v3479 = vrcp.pop %v3454
    %v3480 = vrcp.pop %v3456
    %v3481 = vrcp.pop %v3458
    %v3482 = vrcp.pop %v3460
    %v3483 = vrcp.pop %v3462
    %v3484 = vrcp.pop %v3464
    %v3485 = vrcp.pop %v3466
    %v3486 = vrcp.pop %v3468
    %v3487 = vrcp.pop %v3470
    %v3488 = vrcp.pop %v3472
    %v3489 = vmul.f32 %v3410, %v3473
    %v3490 = vmul.f32 %v3412, %v3474
    %v3491 = vmul.f32 %v3414, %v3475
    %v3492 = vmul.f32 %v3416, %v3476
    %v3493 = vmul.f32 %v3418, %v3477
    %v3494 = vmul.f32 %v3420, %v3478
    %v3495 = vmul.f32 %v3422, %v3479
    %v3496 = vmul.f32 %v3424, %v3480
    %v3497 = vmul.f32 %v3426, %v3481
    %v3498 = vmul.f32 %v3428, %v3482
    %v3499 = vmul.f32 %v3430, %v3483
    %v3500 = vmul.f32 %v3432, %v3484
    %v3501 = vmul.f32 %v3434, %v3485
    %v3502 = vmul.f32 %v3436, %v3486
    %v3503 = vmul.f32 %v3438, %v3487
    %v3504 = vmul.f32 %v3440, %v3488
    %v3505 = vpack.c.bf16 %v3490, %v3489
    %v3506 = vpack.c.bf16 %v3492, %v3491
    %v3507 = vpack.c.bf16 %v3494, %v3493
    %v3508 = vpack.c.bf16 %v3496, %v3495
    %v3509 = vpack.c.bf16 %v3498, %v3497
    %v3510 = vpack.c.bf16 %v3500, %v3499
    %v3511 = vpack.c.bf16 %v3502, %v3501
    %v3512 = vpack.c.bf16 %v3504, %v3503
    %3513 = vrot.lane.b32.xlu0 %v1260, 64
    %v3514 = vpop.permute.xlu0 %3513
    %3515 = vrot.lane.b32.xlu0 %v1261, 64
    %v3516 = vpop.permute.xlu0 %3515
    %3517 = vrot.lane.b32.xlu0 %v1262, 64
    %v3518 = vpop.permute.xlu0 %3517
    %3519 = vrot.lane.b32.xlu0 %v1263, 64
    %v3520 = vpop.permute.xlu0 %3519
    %3521 = vrot.lane.b32.xlu0 %v1264, 64
    %v3522 = vpop.permute.xlu0 %3521
    %3523 = vrot.lane.b32.xlu0 %v1265, 64
    %v3524 = vpop.permute.xlu0 %3523
    %3525 = vrot.lane.b32.xlu0 %v1266, 64
    %v3526 = vpop.permute.xlu0 %3525
    %3527 = vrot.lane.b32.xlu0 %v1267, 64
    %v3528 = vpop.permute.xlu0 %3527
    %3537 = vmatprep.subr.bf16.mxu0 0
    %3538 = vmatpush1.bf16.msra.mxu0 %v3514
    %3539 = vmatprep.subr.bf16.mxu0 0
    %3540 = vmatpush1.bf16.msra.mxu0 %v3516
    %3541 = vmatprep.subr.bf16.mxu0 0
    %3542 = vmatpush1.bf16.msra.mxu0 %v3518
    %3543 = vmatprep.subr.bf16.mxu0 0
    %3544 = vmatpush1.bf16.msra.mxu0 %v3520
    %3545 = vmatprep.subr.bf16.mxu0 0
    %3546 = vmatpush1.bf16.msra.mxu0 %v3522
    %3547 = vmatprep.subr.bf16.mxu0 0
    %3548 = vmatpush1.bf16.msra.mxu0 %v3524
    %3549 = vmatprep.subr.bf16.mxu0 0
    %3550 = vmatpush1.bf16.msra.mxu0 %v3526
    %3551 = vmatprep.subr.bf16.mxu0 0
    %3552 = vmatpush1.bf16.msra.mxu0 %v3528
    %3553 = vmatprep.subr.bf16.mxu0 0
    %3554 = vmatpush1.bf16.msra.mxu0 0
    %3555 = vmatprep.subr.bf16.mxu0 0
    %3556 = vmatpush1.bf16.msra.mxu0 0
    %3557 = vmatprep.subr.bf16.mxu0 0
    %3558 = vmatpush1.bf16.msra.mxu0 0
    %3559 = vmatprep.subr.bf16.mxu0 0
    %3560 = vmatpush1.bf16.msra.mxu0 0
    %3561 = vmatprep.subr.bf16.mxu0 0
    %3562 = vmatpush1.bf16.msra.mxu0 0
    %3563 = vmatprep.subr.bf16.mxu0 0
    %3564 = vmatpush1.bf16.msra.mxu0 0
    %3565 = vmatprep.subr.bf16.mxu0 0
    %3566 = vmatpush1.bf16.msra.mxu0 0
    %3567 = vmatprep.subr.bf16.mxu0 0
    %3568 = vmatpush1.bf16.msra.mxu0 0
    %3569 = vmatprep.mubr.bf16.mxu0 0
    %3570 = vmatmul.mubr.bf16.gmra.mrb[0].mxu0 %v3505
    %v3571 = vpop.f32.mrb[0].mxu0
    %v3572 = vadd.f32 0.0, %v3571
    %v3573 = vpop.f32.mrb[0].mxu0
    %v3574 = vpop.f32.mrb[0].mxu0
    %v3575 = vadd.f32 0.0, %v3574
    %v3576 = vpop.f32.mrb[0].mxu0
    %3577 = vmatprep.mubr.bf16.mxu0 0
    %3578 = vmatmul.mubr.bf16.gmra.mrb[0].mxu0 %v3506
    %v3579 = vpop.f32.mrb[0].mxu0
    %v3580 = vadd.f32 0.0, %v3579
    %v3581 = vpop.f32.mrb[0].mxu0
    %v3582 = vpop.f32.mrb[0].mxu0
    %v3583 = vadd.f32 0.0, %v3582
    %v3584 = vpop.f32.mrb[0].mxu0
    %3585 = vmatprep.mubr.bf16.mxu0 0
    %3586 = vmatmul.mubr.bf16.gmra.mrb[0].mxu0 %v3507
    %v3587 = vpop.f32.mrb[0].mxu0
    %v3588 = vadd.f32 0.0, %v3587
    %v3589 = vpop.f32.mrb[0].mxu0
    %v3590 = vpop.f32.mrb[0].mxu0
    %v3591 = vadd.f32 0.0, %v3590
    %v3592 = vpop.f32.mrb[0].mxu0
    %3593 = vmatprep.mubr.bf16.mxu0 0
    %3594 = vmatmul.mubr.bf16.gmra.mrb[0].mxu0 %v3508
    %v3595 = vpop.f32.mrb[0].mxu0
    %v3596 = vadd.f32 0.0, %v3595
    %v3597 = vpop.f32.mrb[0].mxu0
    %v3598 = vpop.f32.mrb[0].mxu0
    %v3599 = vadd.f32 0.0, %v3598
    %v3600 = vpop.f32.mrb[0].mxu0
    %3601 = vmatprep.mubr.bf16.mxu0 0
    %3602 = vmatmul.mubr.bf16.gmra.mrb[0].mxu0 %v3509
    %v3603 = vpop.f32.mrb[0].mxu0
    %v3604 = vadd.f32 0.0, %v3603
    %v3605 = vpop.f32.mrb[0].mxu0
    %v3606 = vpop.f32.mrb[0].mxu0
    %v3607 = vadd.f32 0.0, %v3606
    %v3608 = vpop.f32.mrb[0].mxu0
    %3609 = vmatprep.mubr.bf16.mxu0 0
    %3610 = vmatmul.mubr.bf16.gmra.mrb[0].mxu0 %v3510
    %v3611 = vpop.f32.mrb[0].mxu0
    %v3612 = vadd.f32 0.0, %v3611
    %v3613 = vpop.f32.mrb[0].mxu0
    %v3614 = vpop.f32.mrb[0].mxu0
    %v3615 = vadd.f32 0.0, %v3614
    %v3616 = vpop.f32.mrb[0].mxu0
    %3617 = vmatprep.mubr.bf16.mxu0 0
    %3618 = vmatmul.mubr.bf16.gmra.mrb[0].mxu0 %v3511
    %v3619 = vpop.f32.mrb[0].mxu0
    %v3620 = vadd.f32 0.0, %v3619
    %v3621 = vpop.f32.mrb[0].mxu0
    %v3622 = vpop.f32.mrb[0].mxu0
    %v3623 = vadd.f32 0.0, %v3622
    %v3624 = vpop.f32.mrb[0].mxu0
    %3625 = vmatprep.mubr.bf16.mxu0 0
    %3626 = vmatmul.mubr.bf16.gmra.mrb[0].mxu0 %v3512
    %v3627 = vpop.f32.mrb[0].mxu0
    %v3628 = vadd.f32 0.0, %v3627
    %v3629 = vpop.f32.mrb[0].mxu0
    %v3630 = vpop.f32.mrb[0].mxu0
    %v3631 = vadd.f32 0.0, %v3630
    %v3632 = vpop.f32.mrb[0].mxu0
    %3633 = vdwg.mxu0
    %3650 = vrot.lane.b32.xlu0 %v3572, 64
    %v3651 = vpop.permute.xlu0 %3650
    %3652 = vrot.lane.b32.xlu0 %v3575, 64
    %v3653 = vpop.permute.xlu0 %3652
    %3654 = vrot.lane.b32.xlu0 %v3580, 64
    %v3655 = vpop.permute.xlu0 %3654
    %3656 = vrot.lane.b32.xlu0 %v3583, 64
    %v3657 = vpop.permute.xlu0 %3656
    %3658 = vrot.lane.b32.xlu0 %v3588, 64
    %v3659 = vpop.permute.xlu0 %3658
    %3660 = vrot.lane.b32.xlu0 %v3591, 64
    %v3661 = vpop.permute.xlu0 %3660
    %3662 = vrot.lane.b32.xlu0 %v3596, 64
    %v3663 = vpop.permute.xlu0 %3662
    %3664 = vrot.lane.b32.xlu0 %v3599, 64
    %v3665 = vpop.permute.xlu0 %3664
    %3666 = vrot.lane.b32.xlu0 %v3604, 64
    %v3667 = vpop.permute.xlu0 %3666
    %3668 = vrot.lane.b32.xlu0 %v3607, 64
    %v3669 = vpop.permute.xlu0 %3668
    %3670 = vrot.lane.b32.xlu0 %v3612, 64
    %v3671 = vpop.permute.xlu0 %3670
    %3672 = vrot.lane.b32.xlu0 %v3615, 64
    %v3673 = vpop.permute.xlu0 %3672
    %3674 = vrot.lane.b32.xlu0 %v3620, 64
    %v3675 = vpop.permute.xlu0 %3674
    %3676 = vrot.lane.b32.xlu0 %v3623, 64
    %v3677 = vpop.permute.xlu0 %3676
    %3678 = vrot.lane.b32.xlu0 %v3628, 64
    %v3679 = vpop.permute.xlu0 %3678
    %3680 = vrot.lane.b32.xlu0 %v3631, 64
    %v3681 = vpop.permute.xlu0 %3680
    %vm3698 = vcmask 654848
    %3699 = vst.msk [vmem:[#allocation3] sm:$0xff] %vm3698, %v3651
    %3700 = vst.msk [vmem:[#allocation3 + $0x8] sm:$0xff] %vm3698, %v3653
    %3701 = vst.msk [vmem:[#allocation3 + $0x10] sm:$0xff] %vm3698, %v3655
    %3702 = vst.msk [vmem:[#allocation3 + $0x18] sm:$0xff] %vm3698, %v3657
    %3703 = vst.msk [vmem:[#allocation3 + $0x20] sm:$0xff] %vm3698, %v3659
    %3704 = vst.msk [vmem:[#allocation3 + $0x28] sm:$0xff] %vm3698, %v3661
    %3705 = vst.msk [vmem:[#allocation3 + $0x30] sm:$0xff] %vm3698, %v3663
    %3706 = vst.msk [vmem:[#allocation3 + $0x38] sm:$0xff] %vm3698, %v3665
    %3707 = vst.msk [vmem:[#allocation3 + $0x40] sm:$0xff] %vm3698, %v3667
    %3708 = vst.msk [vmem:[#allocation3 + $0x48] sm:$0xff] %vm3698, %v3669
    %3709 = vst.msk [vmem:[#allocation3 + $0x50] sm:$0xff] %vm3698, %v3671
    %3710 = vst.msk [vmem:[#allocation3 + $0x58] sm:$0xff] %vm3698, %v3673
    %3711 = vst.msk [vmem:[#allocation3 + $0x60] sm:$0xff] %vm3698, %v3675
    %3712 = vst.msk [vmem:[#allocation3 + $0x68] sm:$0xff] %vm3698, %v3677
    %3713 = vst.msk [vmem:[#allocation3 + $0x70] sm:$0xff] %vm3698, %v3679
    %3714 = vst.msk [vmem:[#allocation3 + $0x78] sm:$0xff] %vm3698, %v3681
    %v3715 = vld [vmem:[#allocation4] sm:$0xff]
    %v3716 = vld [vmem:[#allocation4 + $0x8] sm:$0xff]
    %v3717 = vld [vmem:[#allocation4 + $0x10] sm:$0xff]
    %v3718 = vld [vmem:[#allocation4 + $0x18] sm:$0xff]
    %v3719 = vld [vmem:[#allocation4 + $0x20] sm:$0xff]
    %v3720 = vld [vmem:[#allocation4 + $0x28] sm:$0xff]
    %v3721 = vld [vmem:[#allocation4 + $0x30] sm:$0xff]
    %v3722 = vld [vmem:[#allocation4 + $0x38] sm:$0xff]
    %v3723 = vld [vmem:[#allocation4 + $0x40] sm:$0xff]
    %v3724 = vld [vmem:[#allocation4 + $0x48] sm:$0xff]
    %v3725 = vld [vmem:[#allocation4 + $0x50] sm:$0xff]
    %v3726 = vld [vmem:[#allocation4 + $0x58] sm:$0xff]
    %v3727 = vld [vmem:[#allocation4 + $0x60] sm:$0xff]
    %v3728 = vld [vmem:[#allocation4 + $0x68] sm:$0xff]
    %v3729 = vld [vmem:[#allocation4 + $0x70] sm:$0xff]
    %v3730 = vld [vmem:[#allocation4 + $0x78] sm:$0xff]
    %3731 = vrot.lane.b32.xlu0 %v1212, 48
    %v3732 = vpop.permute.xlu0 %3731
    %3733 = vrot.lane.b32.xlu0 %v1213, 48
    %v3734 = vpop.permute.xlu0 %3733
    %3735 = vrot.lane.b32.xlu0 %v1214, 48
    %v3736 = vpop.permute.xlu0 %3735
    %3737 = vrot.lane.b32.xlu0 %v1215, 48
    %v3738 = vpop.permute.xlu0 %3737
    %3739 = vrot.lane.b32.xlu0 %v1216, 48
    %v3740 = vpop.permute.xlu0 %3739
    %3741 = vrot.lane.b32.xlu0 %v1217, 48
    %v3742 = vpop.permute.xlu0 %3741
    %3743 = vrot.lane.b32.xlu0 %v1218, 48
    %v3744 = vpop.permute.xlu0 %3743
    %3745 = vrot.lane.b32.xlu0 %v1219, 48
    %v3746 = vpop.permute.xlu0 %3745
    %v3748 = vsel %vm1284, %v3732, 0
    %v3751 = vsel %vm1284, %v3734, 0
    %v3754 = vsel %vm1284, %v3736, 0
    %v3757 = vsel %vm1284, %v3738, 0
    %v3760 = vsel %vm1284, %v3740, 0
    %v3763 = vsel %vm1284, %v3742, 0
    %v3766 = vsel %vm1284, %v3744, 0
    %v3769 = vsel %vm1284, %v3746, 0
    %3771 = vmatprep.subr.bf16.mxu0 0
    %3772 = vmatpush1.bf16.msra.mxu0 %v1257
    %3773 = vmatprep.subr.bf16.mxu0 0
    %3774 = vmatpush1.bf16.msra.mxu0 0
    %3775 = vmatprep.subr.bf16.mxu0 0
    %3776 = vmatpush1.bf16.msra.mxu0 0
    %3777 = vmatprep.subr.bf16.mxu0 0
    %3778 = vmatpush1.bf16.msra.mxu0 0
    %3779 = vmatprep.subr.bf16.mxu0 0
    %3780 = vmatpush1.bf16.msra.mxu0 0
    %3781 = vmatprep.subr.bf16.mxu0 0
    %3782 = vmatpush1.bf16.msra.mxu0 0
    %3783 = vmatprep.subr.bf16.mxu0 0
    %3784 = vmatpush1.bf16.msra.mxu0 0
    %3785 = vmatprep.subr.bf16.mxu0 0
    %3786 = vmatpush1.bf16.msra.mxu0 0
    %3787 = vmatprep.subr.bf16.mxu0 0
    %3788 = vmatpush1.bf16.msra.mxu0 0
    %3789 = vmatprep.subr.bf16.mxu0 0
    %3790 = vmatpush1.bf16.msra.mxu0 0
    %3791 = vmatprep.subr.bf16.mxu0 0
    %3792 = vmatpush1.bf16.msra.mxu0 0
    %3793 = vmatprep.subr.bf16.mxu0 0
    %3794 = vmatpush1.bf16.msra.mxu0 0
    %3795 = vmatprep.subr.bf16.mxu0 0
    %3796 = vmatpush1.bf16.msra.mxu0 0
    %3797 = vmatprep.subr.bf16.mxu0 0
    %3798 = vmatpush1.bf16.msra.mxu0 0
    %3799 = vmatprep.subr.bf16.mxu0 0
    %3800 = vmatpush1.bf16.msra.mxu0 0
    %3801 = vmatprep.subr.bf16.mxu0 0
    %3802 = vmatpush1.bf16.msra.mxu0 0
    %3803 = vmatprep.mubr.bf16.mxu0 0
    %3804 = vmatmul.mubr.bf16.gmra.mrb[0].mxu0 %v3748
    %v3805 = vpop.f32.mrb[0].mxu0
    %v3806 = vadd.f32 %v3715, %v3805
    %v3807 = vpop.f32.mrb[0].mxu0
    %v3808 = vpop.f32.mrb[0].mxu0
    %v3809 = vadd.f32 %v3716, %v3808
    %v3810 = vpop.f32.mrb[0].mxu0
    %3811 = vmatprep.mubr.bf16.mxu0 0
    %3812 = vmatmul.mubr.bf16.gmra.mrb[0].mxu0 %v3751
    %v3813 = vpop.f32.mrb[0].mxu0
    %v3814 = vadd.f32 %v3717, %v3813
    %v3815 = vpop.f32.mrb[0].mxu0
    %v3816 = vpop.f32.mrb[0].mxu0
    %v3817 = vadd.f32 %v3718, %v3816
    %v3818 = vpop.f32.mrb[0].mxu0
    %3819 = vmatprep.mubr.bf16.mxu0 0
    %3820 = vmatmul.mubr.bf16.gmra.mrb[0].mxu0 %v3754
    %v3821 = vpop.f32.mrb[0].mxu0
    %v3822 = vadd.f32 %v3719, %v3821
    %v3823 = vpop.f32.mrb[0].mxu0
    %v3824 = vpop.f32.mrb[0].mxu0
    %v3825 = vadd.f32 %v3720, %v3824
    %v3826 = vpop.f32.mrb[0].mxu0
    %3827 = vmatprep.mubr.bf16.mxu0 0
    %3828 = vmatmul.mubr.bf16.gmra.mrb[0].mxu0 %v3757
    %v3829 = vpop.f32.mrb[0].mxu0
    %v3830 = vadd.f32 %v3721, %v3829
    %v3831 = vpop.f32.mrb[0].mxu0
    %v3832 = vpop.f32.mrb[0].mxu0
    %v3833 = vadd.f32 %v3722, %v3832
    %v3834 = vpop.f32.mrb[0].mxu0
    %3835 = vmatprep.mubr.bf16.mxu0 0
    %3836 = vmatmul.mubr.bf16.gmra.mrb[0].mxu0 %v3760
    %v3837 = vpop.f32.mrb[0].mxu0
    %v3838 = vadd.f32 %v3723, %v3837
    %v3839 = vpop.f32.mrb[0].mxu0
    %v3840 = vpop.f32.mrb[0].mxu0
    %v3841 = vadd.f32 %v3724, %v3840
    %v3842 = vpop.f32.mrb[0].mxu0
    %3843 = vmatprep.mubr.bf16.mxu0 0
    %3844 = vmatmul.mubr.bf16.gmra.mrb[0].mxu0 %v3763
    %v3845 = vpop.f32.mrb[0].mxu0
    %v3846 = vadd.f32 %v3725, %v3845
    %v3847 = vpop.f32.mrb[0].mxu0
    %v3848 = vpop.f32.mrb[0].mxu0
    %v3849 = vadd.f32 %v3726, %v3848
    %v3850 = vpop.f32.mrb[0].mxu0
    %3851 = vmatprep.mubr.bf16.mxu0 0
    %3852 = vmatmul.mubr.bf16.gmra.mrb[0].mxu0 %v3766
    %v3853 = vpop.f32.mrb[0].mxu0
    %v3854 = vadd.f32 %v3727, %v3853
    %v3855 = vpop.f32.mrb[0].mxu0
    %v3856 = vpop.f32.mrb[0].mxu0
    %v3857 = vadd.f32 %v3728, %v3856
    %v3858 = vpop.f32.mrb[0].mxu0
    %3859 = vmatprep.mubr.bf16.mxu0 0
    %3860 = vmatmul.mubr.bf16.gmra.mrb[0].mxu0 %v3769
    %v3861 = vpop.f32.mrb[0].mxu0
    %v3862 = vadd.f32 %v3729, %v3861
    %v3863 = vpop.f32.mrb[0].mxu0
    %v3864 = vpop.f32.mrb[0].mxu0
    %v3865 = vadd.f32 %v3730, %v3864
    %v3866 = vpop.f32.mrb[0].mxu0
    %3867 = vdwg.mxu0
    %3868 = vmax.xlane.f32.xlu0 %v3806
    %v3869 = vpop.xlane.xlu0 %3868
    %3870 = vmax.xlane.f32.xlu0 %v3809
    %v3871 = vpop.xlane.xlu0 %3870
    %3872 = vmax.xlane.f32.xlu0 %v3814
    %v3873 = vpop.xlane.xlu0 %3872
    %3874 = vmax.xlane.f32.xlu0 %v3817
    %v3875 = vpop.xlane.xlu0 %3874
    %3876 = vmax.xlane.f32.xlu0 %v3822
    %v3877 = vpop.xlane.xlu0 %3876
    %3878 = vmax.xlane.f32.xlu0 %v3825
    %v3879 = vpop.xlane.xlu0 %3878
    %3880 = vmax.xlane.f32.xlu0 %v3830
    %v3881 = vpop.xlane.xlu0 %3880
    %3882 = vmax.xlane.f32.xlu0 %v3833
    %v3883 = vpop.xlane.xlu0 %3882
    %3884 = vmax.xlane.f32.xlu0 %v3838
    %v3885 = vpop.xlane.xlu0 %3884
    %3886 = vmax.xlane.f32.xlu0 %v3841
    %v3887 = vpop.xlane.xlu0 %3886
    %3888 = vmax.xlane.f32.xlu0 %v3846
    %v3889 = vpop.xlane.xlu0 %3888
    %3890 = vmax.xlane.f32.xlu0 %v3849
    %v3891 = vpop.xlane.xlu0 %3890
    %3892 = vmax.xlane.f32.xlu0 %v3854
    %v3893 = vpop.xlane.xlu0 %3892
    %3894 = vmax.xlane.f32.xlu0 %v3857
    %v3895 = vpop.xlane.xlu0 %3894
    %3896 = vmax.xlane.f32.xlu0 %v3862
    %v3897 = vpop.xlane.xlu0 %3896
    %3898 = vmax.xlane.f32.xlu0 %v3865
    %v3899 = vpop.xlane.xlu0 %3898
    %v3900 = vsub.f32 %v3806, %v3869
    %v3901 = vsub.f32 %v3809, %v3871
    %v3902 = vsub.f32 %v3814, %v3873
    %v3903 = vsub.f32 %v3817, %v3875
    %v3904 = vsub.f32 %v3822, %v3877
    %v3905 = vsub.f32 %v3825, %v3879
    %v3906 = vsub.f32 %v3830, %v3881
    %v3907 = vsub.f32 %v3833, %v3883
    %v3908 = vsub.f32 %v3838, %v3885
    %v3909 = vsub.f32 %v3841, %v3887
    %v3910 = vsub.f32 %v3846, %v3889
    %v3911 = vsub.f32 %v3849, %v3891
    %v3912 = vsub.f32 %v3854, %v3893
    %v3913 = vsub.f32 %v3857, %v3895
    %v3914 = vsub.f32 %v3862, %v3897
    %v3915 = vsub.f32 %v3865, %v3899
    %v3916 = vmul.f32 %v3900, 1.442695
    %v3917 = vpow.pop %v3916
    %v3918 = vmul.f32 %v3901, 1.442695
    %v3919 = vpow.pop %v3918
    %v3920 = vmul.f32 %v3902, 1.442695
    %v3921 = vpow.pop %v3920
    %v3922 = vmul.f32 %v3903, 1.442695
    %v3923 = vpow.pop %v3922
    %v3924 = vmul.f32 %v3904, 1.442695
    %v3925 = vpow.pop %v3924
    %v3926 = vmul.f32 %v3905, 1.442695
    %v3927 = vpow.pop %v3926
    %v3928 = vmul.f32 %v3906, 1.442695
    %v3929 = vpow.pop %v3928
    %v3930 = vmul.f32 %v3907, 1.442695
    %v3931 = vpow.pop %v3930
    %v3932 = vmul.f32 %v3908, 1.442695
    %v3933 = vpow.pop %v3932
    %v3934 = vmul.f32 %v3909, 1.442695
    %v3935 = vpow.pop %v3934
    %v3936 = vmul.f32 %v3910, 1.442695
    %v3937 = vpow.pop %v3936
    %v3938 = vmul.f32 %v3911, 1.442695
    %v3939 = vpow.pop %v3938
    %v3940 = vmul.f32 %v3912, 1.442695
    %v3941 = vpow.pop %v3940
    %v3942 = vmul.f32 %v3913, 1.442695
    %v3943 = vpow.pop %v3942
    %v3944 = vmul.f32 %v3914, 1.442695
    %v3945 = vpow.pop %v3944
    %v3946 = vmul.f32 %v3915, 1.442695
    %v3947 = vpow.pop %v3946
    %3948 = vadd.xlane.f32.xlu0 %v3917
    %v3949 = vpop.xlane.xlu0 %3948
    %3950 = vadd.xlane.f32.xlu0 %v3919
    %v3951 = vpop.xlane.xlu0 %3950
    %3952 = vadd.xlane.f32.xlu0 %v3921
    %v3953 = vpop.xlane.xlu0 %3952
    %3954 = vadd.xlane.f32.xlu0 %v3923
    %v3955 = vpop.xlane.xlu0 %3954
    %3956 = vadd.xlane.f32.xlu0 %v3925
    %v3957 = vpop.xlane.xlu0 %3956
    %3958 = vadd.xlane.f32.xlu0 %v3927
    %v3959 = vpop.xlane.xlu0 %3958
    %3960 = vadd.xlane.f32.xlu0 %v3929
    %v3961 = vpop.xlane.xlu0 %3960
    %3962 = vadd.xlane.f32.xlu0 %v3931
    %v3963 = vpop.xlane.xlu0 %3962
    %3964 = vadd.xlane.f32.xlu0 %v3933
    %v3965 = vpop.xlane.xlu0 %3964
    %3966 = vadd.xlane.f32.xlu0 %v3935
    %v3967 = vpop.xlane.xlu0 %3966
    %3968 = vadd.xlane.f32.xlu0 %v3937
    %v3969 = vpop.xlane.xlu0 %3968
    %3970 = vadd.xlane.f32.xlu0 %v3939
    %v3971 = vpop.xlane.xlu0 %3970
    %3972 = vadd.xlane.f32.xlu0 %v3941
    %v3973 = vpop.xlane.xlu0 %3972
    %3974 = vadd.xlane.f32.xlu0 %v3943
    %v3975 = vpop.xlane.xlu0 %3974
    %3976 = vadd.xlane.f32.xlu0 %v3945
    %v3977 = vpop.xlane.xlu0 %3976
    %3978 = vadd.xlane.f32.xlu0 %v3947
    %v3979 = vpop.xlane.xlu0 %3978
    %v3980 = vrcp.pop %v3949
    %v3981 = vrcp.pop %v3951
    %v3982 = vrcp.pop %v3953
    %v3983 = vrcp.pop %v3955
    %v3984 = vrcp.pop %v3957
    %v3985 = vrcp.pop %v3959
    %v3986 = vrcp.pop %v3961
    %v3987 = vrcp.pop %v3963
    %v3988 = vrcp.pop %v3965
    %v3989 = vrcp.pop %v3967
    %v3990 = vrcp.pop %v3969
    %v3991 = vrcp.pop %v3971
    %v3992 = vrcp.pop %v3973
    %v3993 = vrcp.pop %v3975
    %v3994 = vrcp.pop %v3977
    %v3995 = vrcp.pop %v3979
    %v3996 = vmul.f32 %v3917, %v3980
    %v3997 = vmul.f32 %v3919, %v3981
    %v3998 = vmul.f32 %v3921, %v3982
    %v3999 = vmul.f32 %v3923, %v3983
    %v4000 = vmul.f32 %v3925, %v3984
    %v4001 = vmul.f32 %v3927, %v3985
    %v4002 = vmul.f32 %v3929, %v3986
    %v4003 = vmul.f32 %v3931, %v3987
    %v4004 = vmul.f32 %v3933, %v3988
    %v4005 = vmul.f32 %v3935, %v3989
    %v4006 = vmul.f32 %v3937, %v3990
    %v4007 = vmul.f32 %v3939, %v3991
    %v4008 = vmul.f32 %v3941, %v3992
    %v4009 = vmul.f32 %v3943, %v3993
    %v4010 = vmul.f32 %v3945, %v3994
    %v4011 = vmul.f32 %v3947, %v3995
    %v4012 = vpack.c.bf16 %v3997, %v3996
    %v4013 = vpack.c.bf16 %v3999, %v3998
    %v4014 = vpack.c.bf16 %v4001, %v4000
    %v4015 = vpack.c.bf16 %v4003, %v4002
    %v4016 = vpack.c.bf16 %v4005, %v4004
    %v4017 = vpack.c.bf16 %v4007, %v4006
    %v4018 = vpack.c.bf16 %v4009, %v4008
    %v4019 = vpack.c.bf16 %v4011, %v4010
    %4020 = vrot.lane.b32.xlu0 %v1260, 48
    %v4021 = vpop.permute.xlu0 %4020
    %4022 = vrot.lane.b32.xlu0 %v1261, 48
    %v4023 = vpop.permute.xlu0 %4022
    %4024 = vrot.lane.b32.xlu0 %v1262, 48
    %v4025 = vpop.permute.xlu0 %4024
    %4026 = vrot.lane.b32.xlu0 %v1263, 48
    %v4027 = vpop.permute.xlu0 %4026
    %4028 = vrot.lane.b32.xlu0 %v1264, 48
    %v4029 = vpop.permute.xlu0 %4028
    %4030 = vrot.lane.b32.xlu0 %v1265, 48
    %v4031 = vpop.permute.xlu0 %4030
    %4032 = vrot.lane.b32.xlu0 %v1266, 48
    %v4033 = vpop.permute.xlu0 %4032
    %4034 = vrot.lane.b32.xlu0 %v1267, 48
    %v4035 = vpop.permute.xlu0 %4034
    %4044 = vmatprep.subr.bf16.mxu0 0
    %4045 = vmatpush1.bf16.msra.mxu0 %v4021
    %4046 = vmatprep.subr.bf16.mxu0 0
    %4047 = vmatpush1.bf16.msra.mxu0 %v4023
    %4048 = vmatprep.subr.bf16.mxu0 0
    %4049 = vmatpush1.bf16.msra.mxu0 %v4025
    %4050 = vmatprep.subr.bf16.mxu0 0
    %4051 = vmatpush1.bf16.msra.mxu0 %v4027
    %4052 = vmatprep.subr.bf16.mxu0 0
    %4053 = vmatpush1.bf16.msra.mxu0 %v4029
    %4054 = vmatprep.subr.bf16.mxu0 0
    %4055 = vmatpush1.bf16.msra.mxu0 %v4031
    %4056 = vmatprep.subr.bf16.mxu0 0
    %4057 = vmatpush1.bf16.msra.mxu0 %v4033
    %4058 = vmatprep.subr.bf16.mxu0 0
    %4059 = vmatpush1.bf16.msra.mxu0 %v4035
    %4060 = vmatprep.subr.bf16.mxu0 0
    %4061 = vmatpush1.bf16.msra.mxu0 0
    %4062 = vmatprep.subr.bf16.mxu0 0
    %4063 = vmatpush1.bf16.msra.mxu0 0
    %4064 = vmatprep.subr.bf16.mxu0 0
    %4065 = vmatpush1.bf16.msra.mxu0 0
    %4066 = vmatprep.subr.bf16.mxu0 0
    %4067 = vmatpush1.bf16.msra.mxu0 0
    %4068 = vmatprep.subr.bf16.mxu0 0
    %4069 = vmatpush1.bf16.msra.mxu0 0
    %4070 = vmatprep.subr.bf16.mxu0 0
    %4071 = vmatpush1.bf16.msra.mxu0 0
    %4072 = vmatprep.subr.bf16.mxu0 0
    %4073 = vmatpush1.bf16.msra.mxu0 0
    %4074 = vmatprep.subr.bf16.mxu0 0
    %4075 = vmatpush1.bf16.msra.mxu0 0
    %4076 = vmatprep.mubr.bf16.mxu0 0
    %4077 = vmatmul.mubr.bf16.gmra.mrb[0].mxu0 %v4012
    %v4078 = vpop.f32.mrb[0].mxu0
    %v4079 = vadd.f32 0.0, %v4078
    %v4080 = vpop.f32.mrb[0].mxu0
    %v4081 = vpop.f32.mrb[0].mxu0
    %v4082 = vadd.f32 0.0, %v4081
    %v4083 = vpop.f32.mrb[0].mxu0
    %4084 = vmatprep.mubr.bf16.mxu0 0
    %4085 = vmatmul.mubr.bf16.gmra.mrb[0].mxu0 %v4013
    %v4086 = vpop.f32.mrb[0].mxu0
    %v4087 = vadd.f32 0.0, %v4086
    %v4088 = vpop.f32.mrb[0].mxu0
    %v4089 = vpop.f32.mrb[0].mxu0
    %v4090 = vadd.f32 0.0, %v4089
    %v4091 = vpop.f32.mrb[0].mxu0
    %4092 = vmatprep.mubr.bf16.mxu0 0
    %4093 = vmatmul.mubr.bf16.gmra.mrb[0].mxu0 %v4014
    %v4094 = vpop.f32.mrb[0].mxu0
    %v4095 = vadd.f32 0.0, %v4094
    %v4096 = vpop.f32.mrb[0].mxu0
    %v4097 = vpop.f32.mrb[0].mxu0
    %v4098 = vadd.f32 0.0, %v4097
    %v4099 = vpop.f32.mrb[0].mxu0
    %4100 = vmatprep.mubr.bf16.mxu0 0
    %4101 = vmatmul.mubr.bf16.gmra.mrb[0].mxu0 %v4015
    %v4102 = vpop.f32.mrb[0].mxu0
    %v4103 = vadd.f32 0.0, %v4102
    %v4104 = vpop.f32.mrb[0].mxu0
    %v4105 = vpop.f32.mrb[0].mxu0
    %v4106 = vadd.f32 0.0, %v4105
    %v4107 = vpop.f32.mrb[0].mxu0
    %4108 = vmatprep.mubr.bf16.mxu0 0
    %4109 = vmatmul.mubr.bf16.gmra.mrb[0].mxu0 %v4016
    %v4110 = vpop.f32.mrb[0].mxu0
    %v4111 = vadd.f32 0.0, %v4110
    %v4112 = vpop.f32.mrb[0].mxu0
    %v4113 = vpop.f32.mrb[0].mxu0
    %v4114 = vadd.f32 0.0, %v4113
    %v4115 = vpop.f32.mrb[0].mxu0
    %4116 = vmatprep.mubr.bf16.mxu0 0
    %4117 = vmatmul.mubr.bf16.gmra.mrb[0].mxu0 %v4017
    %v4118 = vpop.f32.mrb[0].mxu0
    %v4119 = vadd.f32 0.0, %v4118
    %v4120 = vpop.f32.mrb[0].mxu0
    %v4121 = vpop.f32.mrb[0].mxu0
    %v4122 = vadd.f32 0.0, %v4121
    %v4123 = vpop.f32.mrb[0].mxu0
    %4124 = vmatprep.mubr.bf16.mxu0 0
    %4125 = vmatmul.mubr.bf16.gmra.mrb[0].mxu0 %v4018
    %v4126 = vpop.f32.mrb[0].mxu0
    %v4127 = vadd.f32 0.0, %v4126
    %v4128 = vpop.f32.mrb[0].mxu0
    %v4129 = vpop.f32.mrb[0].mxu0
    %v4130 = vadd.f32 0.0, %v4129
    %v4131 = vpop.f32.mrb[0].mxu0
    %4132 = vmatprep.mubr.bf16.mxu0 0
    %4133 = vmatmul.mubr.bf16.gmra.mrb[0].mxu0 %v4019
    %v4134 = vpop.f32.mrb[0].mxu0
    %v4135 = vadd.f32 0.0, %v4134
    %v4136 = vpop.f32.mrb[0].mxu0
    %v4137 = vpop.f32.mrb[0].mxu0
    %v4138 = vadd.f32 0.0, %v4137
    %v4139 = vpop.f32.mrb[0].mxu0
    %4140 = vdwg.mxu0
    %4157 = vrot.lane.b32.xlu0 %v4079, 80
    %v4158 = vpop.permute.xlu0 %4157
    %4159 = vrot.lane.b32.xlu0 %v4082, 80
    %v4160 = vpop.permute.xlu0 %4159
    %4161 = vrot.lane.b32.xlu0 %v4087, 80
    %v4162 = vpop.permute.xlu0 %4161
    %4163 = vrot.lane.b32.xlu0 %v4090, 80
    %v4164 = vpop.permute.xlu0 %4163
    %4165 = vrot.lane.b32.xlu0 %v4095, 80
    %v4166 = vpop.permute.xlu0 %4165
    %4167 = vrot.lane.b32.xlu0 %v4098, 80
    %v4168 = vpop.permute.xlu0 %4167
    %4169 = vrot.lane.b32.xlu0 %v4103, 80
    %v4170 = vpop.permute.xlu0 %4169
    %4171 = vrot.lane.b32.xlu0 %v4106, 80
    %v4172 = vpop.permute.xlu0 %4171
    %4173 = vrot.lane.b32.xlu0 %v4111, 80
    %v4174 = vpop.permute.xlu0 %4173
    %4175 = vrot.lane.b32.xlu0 %v4114, 80
    %v4176 = vpop.permute.xlu0 %4175
    %4177 = vrot.lane.b32.xlu0 %v4119, 80
    %v4178 = vpop.permute.xlu0 %4177
    %4179 = vrot.lane.b32.xlu0 %v4122, 80
    %v4180 = vpop.permute.xlu0 %4179
    %4181 = vrot.lane.b32.xlu0 %v4127, 80
    %v4182 = vpop.permute.xlu0 %4181
    %4183 = vrot.lane.b32.xlu0 %v4130, 80
    %v4184 = vpop.permute.xlu0 %4183
    %4185 = vrot.lane.b32.xlu0 %v4135, 80
    %v4186 = vpop.permute.xlu0 %4185
    %4187 = vrot.lane.b32.xlu0 %v4138, 80
    %v4188 = vpop.permute.xlu0 %4187
    %vm4205 = vcmask 786048
    %4206 = vst.msk [vmem:[#allocation3] sm:$0xff] %vm4205, %v4158
    %4207 = vst.msk [vmem:[#allocation3 + $0x8] sm:$0xff] %vm4205, %v4160
    %4208 = vst.msk [vmem:[#allocation3 + $0x10] sm:$0xff] %vm4205, %v4162
    %4209 = vst.msk [vmem:[#allocation3 + $0x18] sm:$0xff] %vm4205, %v4164
    %4210 = vst.msk [vmem:[#allocation3 + $0x20] sm:$0xff] %vm4205, %v4166
    %4211 = vst.msk [vmem:[#allocation3 + $0x28] sm:$0xff] %vm4205, %v4168
    %4212 = vst.msk [vmem:[#allocation3 + $0x30] sm:$0xff] %vm4205, %v4170
    %4213 = vst.msk [vmem:[#allocation3 + $0x38] sm:$0xff] %vm4205, %v4172
    %4214 = vst.msk [vmem:[#allocation3 + $0x40] sm:$0xff] %vm4205, %v4174
    %4215 = vst.msk [vmem:[#allocation3 + $0x48] sm:$0xff] %vm4205, %v4176
    %4216 = vst.msk [vmem:[#allocation3 + $0x50] sm:$0xff] %vm4205, %v4178
    %4217 = vst.msk [vmem:[#allocation3 + $0x58] sm:$0xff] %vm4205, %v4180
    %4218 = vst.msk [vmem:[#allocation3 + $0x60] sm:$0xff] %vm4205, %v4182
    %4219 = vst.msk [vmem:[#allocation3 + $0x68] sm:$0xff] %vm4205, %v4184
    %4220 = vst.msk [vmem:[#allocation3 + $0x70] sm:$0xff] %vm4205, %v4186
    %4221 = vst.msk [vmem:[#allocation3 + $0x78] sm:$0xff] %vm4205, %v4188
    %v4222 = vld [vmem:[#allocation4] sm:$0xff]
    %v4223 = vld [vmem:[#allocation4 + $0x8] sm:$0xff]
    %v4224 = vld [vmem:[#allocation4 + $0x10] sm:$0xff]
    %v4225 = vld [vmem:[#allocation4 + $0x18] sm:$0xff]
    %v4226 = vld [vmem:[#allocation4 + $0x20] sm:$0xff]
    %v4227 = vld [vmem:[#allocation4 + $0x28] sm:$0xff]
    %v4228 = vld [vmem:[#allocation4 + $0x30] sm:$0xff]
    %v4229 = vld [vmem:[#allocation4 + $0x38] sm:$0xff]
    %v4230 = vld [vmem:[#allocation4 + $0x40] sm:$0xff]
    %v4231 = vld [vmem:[#allocation4 + $0x48] sm:$0xff]
    %v4232 = vld [vmem:[#allocation4 + $0x50] sm:$0xff]
    %v4233 = vld [vmem:[#allocation4 + $0x58] sm:$0xff]
    %v4234 = vld [vmem:[#allocation4 + $0x60] sm:$0xff]
    %v4235 = vld [vmem:[#allocation4 + $0x68] sm:$0xff]
    %v4236 = vld [vmem:[#allocation4 + $0x70] sm:$0xff]
    %v4237 = vld [vmem:[#allocation4 + $0x78] sm:$0xff]
    %4238 = vrot.lane.b32.xlu0 %v1212, 32
    %v4239 = vpop.permute.xlu0 %4238
    %4240 = vrot.lane.b32.xlu0 %v1213, 32
    %v4241 = vpop.permute.xlu0 %4240
    %4242 = vrot.lane.b32.xlu0 %v1214, 32
    %v4243 = vpop.permute.xlu0 %4242
    %4244 = vrot.lane.b32.xlu0 %v1215, 32
    %v4245 = vpop.permute.xlu0 %4244
    %4246 = vrot.lane.b32.xlu0 %v1216, 32
    %v4247 = vpop.permute.xlu0 %4246
    %4248 = vrot.lane.b32.xlu0 %v1217, 32
    %v4249 = vpop.permute.xlu0 %4248
    %4250 = vrot.lane.b32.xlu0 %v1218, 32
    %v4251 = vpop.permute.xlu0 %4250
    %4252 = vrot.lane.b32.xlu0 %v1219, 32
    %v4253 = vpop.permute.xlu0 %4252
    %v4255 = vsel %vm1284, %v4239, 0
    %v4258 = vsel %vm1284, %v4241, 0
    %v4261 = vsel %vm1284, %v4243, 0
    %v4264 = vsel %vm1284, %v4245, 0
    %v4267 = vsel %vm1284, %v4247, 0
    %v4270 = vsel %vm1284, %v4249, 0
    %v4273 = vsel %vm1284, %v4251, 0
    %v4276 = vsel %vm1284, %v4253, 0
    %4278 = vmatprep.subr.bf16.mxu0 0
    %4279 = vmatpush1.bf16.msra.mxu0 %v1258
    %4280 = vmatprep.subr.bf16.mxu0 0
    %4281 = vmatpush1.bf16.msra.mxu0 0
    %4282 = vmatprep.subr.bf16.mxu0 0
    %4283 = vmatpush1.bf16.msra.mxu0 0
    %4284 = vmatprep.subr.bf16.mxu0 0
    %4285 = vmatpush1.bf16.msra.mxu0 0
    %4286 = vmatprep.subr.bf16.mxu0 0
    %4287 = vmatpush1.bf16.msra.mxu0 0
    %4288 = vmatprep.subr.bf16.mxu0 0
    %4289 = vmatpush1.bf16.msra.mxu0 0
    %4290 = vmatprep.subr.bf16.mxu0 0
    %4291 = vmatpush1.bf16.msra.mxu0 0
    %4292 = vmatprep.subr.bf16.mxu0 0
    %4293 = vmatpush1.bf16.msra.mxu0 0
    %4294 = vmatprep.subr.bf16.mxu0 0
    %4295 = vmatpush1.bf16.msra.mxu0 0
    %4296 = vmatprep.subr.bf16.mxu0 0
    %4297 = vmatpush1.bf16.msra.mxu0 0
    %4298 = vmatprep.subr.bf16.mxu0 0
    %4299 = vmatpush1.bf16.msra.mxu0 0
    %4300 = vmatprep.subr.bf16.mxu0 0
    %4301 = vmatpush1.bf16.msra.mxu0 0
    %4302 = vmatprep.subr.bf16.mxu0 0
    %4303 = vmatpush1.bf16.msra.mxu0 0
    %4304 = vmatprep.subr.bf16.mxu0 0
    %4305 = vmatpush1.bf16.msra.mxu0 0
    %4306 = vmatprep.subr.bf16.mxu0 0
    %4307 = vmatpush1.bf16.msra.mxu0 0
    %4308 = vmatprep.subr.bf16.mxu0 0
    %4309 = vmatpush1.bf16.msra.mxu0 0
    %4310 = vmatprep.mubr.bf16.mxu0 0
    %4311 = vmatmul.mubr.bf16.gmra.mrb[0].mxu0 %v4255
    %v4312 = vpop.f32.mrb[0].mxu0
    %v4313 = vadd.f32 %v4222, %v4312
    %v4314 = vpop.f32.mrb[0].mxu0
    %v4315 = vpop.f32.mrb[0].mxu0
    %v4316 = vadd.f32 %v4223, %v4315
    %v4317 = vpop.f32.mrb[0].mxu0
    %4318 = vmatprep.mubr.bf16.mxu0 0
    %4319 = vmatmul.mubr.bf16.gmra.mrb[0].mxu0 %v4258
    %v4320 = vpop.f32.mrb[0].mxu0
    %v4321 = vadd.f32 %v4224, %v4320
    %v4322 = vpop.f32.mrb[0].mxu0
    %v4323 = vpop.f32.mrb[0].mxu0
    %v4324 = vadd.f32 %v4225, %v4323
    %v4325 = vpop.f32.mrb[0].mxu0
    %4326 = vmatprep.mubr.bf16.mxu0 0
    %4327 = vmatmul.mubr.bf16.gmra.mrb[0].mxu0 %v4261
    %v4328 = vpop.f32.mrb[0].mxu0
    %v4329 = vadd.f32 %v4226, %v4328
    %v4330 = vpop.f32.mrb[0].mxu0
    %v4331 = vpop.f32.mrb[0].mxu0
    %v4332 = vadd.f32 %v4227, %v4331
    %v4333 = vpop.f32.mrb[0].mxu0
    %4334 = vmatprep.mubr.bf16.mxu0 0
    %4335 = vmatmul.mubr.bf16.gmra.mrb[0].mxu0 %v4264
    %v4336 = vpop.f32.mrb[0].mxu0
    %v4337 = vadd.f32 %v4228, %v4336
    %v4338 = vpop.f32.mrb[0].mxu0
    %v4339 = vpop.f32.mrb[0].mxu0
    %v4340 = vadd.f32 %v4229, %v4339
    %v4341 = vpop.f32.mrb[0].mxu0
    %4342 = vmatprep.mubr.bf16.mxu0 0
    %4343 = vmatmul.mubr.bf16.gmra.mrb[0].mxu0 %v4267
    %v4344 = vpop.f32.mrb[0].mxu0
    %v4345 = vadd.f32 %v4230, %v4344
    %v4346 = vpop.f32.mrb[0].mxu0
    %v4347 = vpop.f32.mrb[0].mxu0
    %v4348 = vadd.f32 %v4231, %v4347
    %v4349 = vpop.f32.mrb[0].mxu0
    %4350 = vmatprep.mubr.bf16.mxu0 0
    %4351 = vmatmul.mubr.bf16.gmra.mrb[0].mxu0 %v4270
    %v4352 = vpop.f32.mrb[0].mxu0
    %v4353 = vadd.f32 %v4232, %v4352
    %v4354 = vpop.f32.mrb[0].mxu0
    %v4355 = vpop.f32.mrb[0].mxu0
    %v4356 = vadd.f32 %v4233, %v4355
    %v4357 = vpop.f32.mrb[0].mxu0
    %4358 = vmatprep.mubr.bf16.mxu0 0
    %4359 = vmatmul.mubr.bf16.gmra.mrb[0].mxu0 %v4273
    %v4360 = vpop.f32.mrb[0].mxu0
    %v4361 = vadd.f32 %v4234, %v4360
    %v4362 = vpop.f32.mrb[0].mxu0
    %v4363 = vpop.f32.mrb[0].mxu0
    %v4364 = vadd.f32 %v4235, %v4363
    %v4365 = vpop.f32.mrb[0].mxu0
    %4366 = vmatprep.mubr.bf16.mxu0 0
    %4367 = vmatmul.mubr.bf16.gmra.mrb[0].mxu0 %v4276
    %v4368 = vpop.f32.mrb[0].mxu0
    %v4369 = vadd.f32 %v4236, %v4368
    %v4370 = vpop.f32.mrb[0].mxu0
    %v4371 = vpop.f32.mrb[0].mxu0
    %v4372 = vadd.f32 %v4237, %v4371
    %v4373 = vpop.f32.mrb[0].mxu0
    %4374 = vdwg.mxu0
    %4375 = vmax.xlane.f32.xlu0 %v4313
    %v4376 = vpop.xlane.xlu0 %4375
    %4377 = vmax.xlane.f32.xlu0 %v4316
    %v4378 = vpop.xlane.xlu0 %4377
    %4379 = vmax.xlane.f32.xlu0 %v4321
    %v4380 = vpop.xlane.xlu0 %4379
    %4381 = vmax.xlane.f32.xlu0 %v4324
    %v4382 = vpop.xlane.xlu0 %4381
    %4383 = vmax.xlane.f32.xlu0 %v4329
    %v4384 = vpop.xlane.xlu0 %4383
    %4385 = vmax.xlane.f32.xlu0 %v4332
    %v4386 = vpop.xlane.xlu0 %4385
    %4387 = vmax.xlane.f32.xlu0 %v4337
    %v4388 = vpop.xlane.xlu0 %4387
    %4389 = vmax.xlane.f32.xlu0 %v4340
    %v4390 = vpop.xlane.xlu0 %4389
    %4391 = vmax.xlane.f32.xlu0 %v4345
    %v4392 = vpop.xlane.xlu0 %4391
    %4393 = vmax.xlane.f32.xlu0 %v4348
    %v4394 = vpop.xlane.xlu0 %4393
    %4395 = vmax.xlane.f32.xlu0 %v4353
    %v4396 = vpop.xlane.xlu0 %4395
    %4397 = vmax.xlane.f32.xlu0 %v4356
    %v4398 = vpop.xlane.xlu0 %4397
    %4399 = vmax.xlane.f32.xlu0 %v4361
    %v4400 = vpop.xlane.xlu0 %4399
    %4401 = vmax.xlane.f32.xlu0 %v4364
    %v4402 = vpop.xlane.xlu0 %4401
    %4403 = vmax.xlane.f32.xlu0 %v4369
    %v4404 = vpop.xlane.xlu0 %4403
    %4405 = vmax.xlane.f32.xlu0 %v4372
    %v4406 = vpop.xlane.xlu0 %4405
    %v4407 = vsub.f32 %v4313, %v4376
    %v4408 = vsub.f32 %v4316, %v4378
    %v4409 = vsub.f32 %v4321, %v4380
    %v4410 = vsub.f32 %v4324, %v4382
    %v4411 = vsub.f32 %v4329, %v4384
    %v4412 = vsub.f32 %v4332, %v4386
    %v4413 = vsub.f32 %v4337, %v4388
    %v4414 = vsub.f32 %v4340, %v4390
    %v4415 = vsub.f32 %v4345, %v4392
    %v4416 = vsub.f32 %v4348, %v4394
    %v4417 = vsub.f32 %v4353, %v4396
    %v4418 = vsub.f32 %v4356, %v4398
    %v4419 = vsub.f32 %v4361, %v4400
    %v4420 = vsub.f32 %v4364, %v4402
    %v4421 = vsub.f32 %v4369, %v4404
    %v4422 = vsub.f32 %v4372, %v4406
    %v4423 = vmul.f32 %v4407, 1.442695
    %v4424 = vpow.pop %v4423
    %v4425 = vmul.f32 %v4408, 1.442695
    %v4426 = vpow.pop %v4425
    %v4427 = vmul.f32 %v4409, 1.442695
    %v4428 = vpow.pop %v4427
    %v4429 = vmul.f32 %v4410, 1.442695
    %v4430 = vpow.pop %v4429
    %v4431 = vmul.f32 %v4411, 1.442695
    %v4432 = vpow.pop %v4431
    %v4433 = vmul.f32 %v4412, 1.442695
    %v4434 = vpow.pop %v4433
    %v4435 = vmul.f32 %v4413, 1.442695
    %v4436 = vpow.pop %v4435
    %v4437 = vmul.f32 %v4414, 1.442695
    %v4438 = vpow.pop %v4437
    %v4439 = vmul.f32 %v4415, 1.442695
    %v4440 = vpow.pop %v4439
    %v4441 = vmul.f32 %v4416, 1.442695
    %v4442 = vpow.pop %v4441
    %v4443 = vmul.f32 %v4417, 1.442695
    %v4444 = vpow.pop %v4443
    %v4445 = vmul.f32 %v4418, 1.442695
    %v4446 = vpow.pop %v4445
    %v4447 = vmul.f32 %v4419, 1.442695
    %v4448 = vpow.pop %v4447
    %v4449 = vmul.f32 %v4420, 1.442695
    %v4450 = vpow.pop %v4449
    %v4451 = vmul.f32 %v4421, 1.442695
    %v4452 = vpow.pop %v4451
    %v4453 = vmul.f32 %v4422, 1.442695
    %v4454 = vpow.pop %v4453
    %4455 = vadd.xlane.f32.xlu0 %v4424
    %v4456 = vpop.xlane.xlu0 %4455
    %4457 = vadd.xlane.f32.xlu0 %v4426
    %v4458 = vpop.xlane.xlu0 %4457
    %4459 = vadd.xlane.f32.xlu0 %v4428
    %v4460 = vpop.xlane.xlu0 %4459
    %4461 = vadd.xlane.f32.xlu0 %v4430
    %v4462 = vpop.xlane.xlu0 %4461
    %4463 = vadd.xlane.f32.xlu0 %v4432
    %v4464 = vpop.xlane.xlu0 %4463
    %4465 = vadd.xlane.f32.xlu0 %v4434
    %v4466 = vpop.xlane.xlu0 %4465
    %4467 = vadd.xlane.f32.xlu0 %v4436
    %v4468 = vpop.xlane.xlu0 %4467
    %4469 = vadd.xlane.f32.xlu0 %v4438
    %v4470 = vpop.xlane.xlu0 %4469
    %4471 = vadd.xlane.f32.xlu0 %v4440
    %v4472 = vpop.xlane.xlu0 %4471
    %4473 = vadd.xlane.f32.xlu0 %v4442
    %v4474 = vpop.xlane.xlu0 %4473
    %4475 = vadd.xlane.f32.xlu0 %v4444
    %v4476 = vpop.xlane.xlu0 %4475
    %4477 = vadd.xlane.f32.xlu0 %v4446
    %v4478 = vpop.xlane.xlu0 %4477
    %4479 = vadd.xlane.f32.xlu0 %v4448
    %v4480 = vpop.xlane.xlu0 %4479
    %4481 = vadd.xlane.f32.xlu0 %v4450
    %v4482 = vpop.xlane.xlu0 %4481
    %4483 = vadd.xlane.f32.xlu0 %v4452
    %v4484 = vpop.xlane.xlu0 %4483
    %4485 = vadd.xlane.f32.xlu0 %v4454
    %v4486 = vpop.xlane.xlu0 %4485
    %v4487 = vrcp.pop %v4456
    %v4488 = vrcp.pop %v4458
    %v4489 = vrcp.pop %v4460
    %v4490 = vrcp.pop %v4462
    %v4491 = vrcp.pop %v4464
    %v4492 = vrcp.pop %v4466
    %v4493 = vrcp.pop %v4468
    %v4494 = vrcp.pop %v4470
    %v4495 = vrcp.pop %v4472
    %v4496 = vrcp.pop %v4474
    %v4497 = vrcp.pop %v4476
    %v4498 = vrcp.pop %v4478
    %v4499 = vrcp.pop %v4480
    %v4500 = vrcp.pop %v4482
    %v4501 = vrcp.pop %v4484
    %v4502 = vrcp.pop %v4486
    %v4503 = vmul.f32 %v4424, %v4487
    %v4504 = vmul.f32 %v4426, %v4488
    %v4505 = vmul.f32 %v4428, %v4489
    %v4506 = vmul.f32 %v4430, %v4490
    %v4507 = vmul.f32 %v4432, %v4491
    %v4508 = vmul.f32 %v4434, %v4492
    %v4509 = vmul.f32 %v4436, %v4493
    %v4510 = vmul.f32 %v4438, %v4494
    %v4511 = vmul.f32 %v4440, %v4495
    %v4512 = vmul.f32 %v4442, %v4496
    %v4513 = vmul.f32 %v4444, %v4497
    %v4514 = vmul.f32 %v4446, %v4498
    %v4515 = vmul.f32 %v4448, %v4499
    %v4516 = vmul.f32 %v4450, %v4500
    %v4517 = vmul.f32 %v4452, %v4501
    %v4518 = vmul.f32 %v4454, %v4502
    %v4519 = vpack.c.bf16 %v4504, %v4503
    %v4520 = vpack.c.bf16 %v4506, %v4505
    %v4521 = vpack.c.bf16 %v4508, %v4507
    %v4522 = vpack.c.bf16 %v4510, %v4509
    %v4523 = vpack.c.bf16 %v4512, %v4511
    %v4524 = vpack.c.bf16 %v4514, %v4513
    %v4525 = vpack.c.bf16 %v4516, %v4515
    %v4526 = vpack.c.bf16 %v4518, %v4517
    %4527 = vrot.lane.b32.xlu0 %v1260, 32
    %v4528 = vpop.permute.xlu0 %4527
    %4529 = vrot.lane.b32.xlu0 %v1261, 32
    %v4530 = vpop.permute.xlu0 %4529
    %4531 = vrot.lane.b32.xlu0 %v1262, 32
    %v4532 = vpop.permute.xlu0 %4531
    %4533 = vrot.lane.b32.xlu0 %v1263, 32
    %v4534 = vpop.permute.xlu0 %4533
    %4535 = vrot.lane.b32.xlu0 %v1264, 32
    %v4536 = vpop.permute.xlu0 %4535
    %4537 = vrot.lane.b32.xlu0 %v1265, 32
    %v4538 = vpop.permute.xlu0 %4537
    %4539 = vrot.lane.b32.xlu0 %v1266, 32
    %v4540 = vpop.permute.xlu0 %4539
    %4541 = vrot.lane.b32.xlu0 %v1267, 32
    %v4542 = vpop.permute.xlu0 %4541
    %4551 = vmatprep.subr.bf16.mxu0 0
    %4552 = vmatpush1.bf16.msra.mxu0 %v4528
    %4553 = vmatprep.subr.bf16.mxu0 0
    %4554 = vmatpush1.bf16.msra.mxu0 %v4530
    %4555 = vmatprep.subr.bf16.mxu0 0
    %4556 = vmatpush1.bf16.msra.mxu0 %v4532
    %4557 = vmatprep.subr.bf16.mxu0 0
    %4558 = vmatpush1.bf16.msra.mxu0 %v4534
    %4559 = vmatprep.subr.bf16.mxu0 0
    %4560 = vmatpush1.bf16.msra.mxu0 %v4536
    %4561 = vmatprep.subr.bf16.mxu0 0
    %4562 = vmatpush1.bf16.msra.mxu0 %v4538
    %4563 = vmatprep.subr.bf16.mxu0 0
    %4564 = vmatpush1.bf16.msra.mxu0 %v4540
    %4565 = vmatprep.subr.bf16.mxu0 0
    %4566 = vmatpush1.bf16.msra.mxu0 %v4542
    %4567 = vmatprep.subr.bf16.mxu0 0
    %4568 = vmatpush1.bf16.msra.mxu0 0
    %4569 = vmatprep.subr.bf16.mxu0 0
    %4570 = vmatpush1.bf16.msra.mxu0 0
    %4571 = vmatprep.subr.bf16.mxu0 0
    %4572 = vmatpush1.bf16.msra.mxu0 0
    %4573 = vmatprep.subr.bf16.mxu0 0
    %4574 = vmatpush1.bf16.msra.mxu0 0
    %4575 = vmatprep.subr.bf16.mxu0 0
    %4576 = vmatpush1.bf16.msra.mxu0 0
    %4577 = vmatprep.subr.bf16.mxu0 0
    %4578 = vmatpush1.bf16.msra.mxu0 0
    %4579 = vmatprep.subr.bf16.mxu0 0
    %4580 = vmatpush1.bf16.msra.mxu0 0
    %4581 = vmatprep.subr.bf16.mxu0 0
    %4582 = vmatpush1.bf16.msra.mxu0 0
    %4583 = vmatprep.mubr.bf16.mxu0 0
    %4584 = vmatmul.mubr.bf16.gmra.mrb[0].mxu0 %v4519
    %v4585 = vpop.f32.mrb[0].mxu0
    %v4586 = vadd.f32 0.0, %v4585
    %v4587 = vpop.f32.mrb[0].mxu0
    %v4588 = vpop.f32.mrb[0].mxu0
    %v4589 = vadd.f32 0.0, %v4588
    %v4590 = vpop.f32.mrb[0].mxu0
    %4591 = vmatprep.mubr.bf16.mxu0 0
    %4592 = vmatmul.mubr.bf16.gmra.mrb[0].mxu0 %v4520
    %v4593 = vpop.f32.mrb[0].mxu0
    %v4594 = vadd.f32 0.0, %v4593
    %v4595 = vpop.f32.mrb[0].mxu0
    %v4596 = vpop.f32.mrb[0].mxu0
    %v4597 = vadd.f32 0.0, %v4596
    %v4598 = vpop.f32.mrb[0].mxu0
    %4599 = vmatprep.mubr.bf16.mxu0 0
    %4600 = vmatmul.mubr.bf16.gmra.mrb[0].mxu0 %v4521
    %v4601 = vpop.f32.mrb[0].mxu0
    %v4602 = vadd.f32 0.0, %v4601
    %v4603 = vpop.f32.mrb[0].mxu0
    %v4604 = vpop.f32.mrb[0].mxu0
    %v4605 = vadd.f32 0.0, %v4604
    %v4606 = vpop.f32.mrb[0].mxu0
    %4607 = vmatprep.mubr.bf16.mxu0 0
    %4608 = vmatmul.mubr.bf16.gmra.mrb[0].mxu0 %v4522
    %v4609 = vpop.f32.mrb[0].mxu0
    %v4610 = vadd.f32 0.0, %v4609
    %v4611 = vpop.f32.mrb[0].mxu0
    %v4612 = vpop.f32.mrb[0].mxu0
    %v4613 = vadd.f32 0.0, %v4612
    %v4614 = vpop.f32.mrb[0].mxu0
    %4615 = vmatprep.mubr.bf16.mxu0 0
    %4616 = vmatmul.mubr.bf16.gmra.mrb[0].mxu0 %v4523
    %v4617 = vpop.f32.mrb[0].mxu0
    %v4618 = vadd.f32 0.0, %v4617
    %v4619 = vpop.f32.mrb[0].mxu0
    %v4620 = vpop.f32.mrb[0].mxu0
    %v4621 = vadd.f32 0.0, %v4620
    %v4622 = vpop.f32.mrb[0].mxu0
    %4623 = vmatprep.mubr.bf16.mxu0 0
    %4624 = vmatmul.mubr.bf16.gmra.mrb[0].mxu0 %v4524
    %v4625 = vpop.f32.mrb[0].mxu0
    %v4626 = vadd.f32 0.0, %v4625
    %v4627 = vpop.f32.mrb[0].mxu0
    %v4628 = vpop.f32.mrb[0].mxu0
    %v4629 = vadd.f32 0.0, %v4628
    %v4630 = vpop.f32.mrb[0].mxu0
    %4631 = vmatprep.mubr.bf16.mxu0 0
    %4632 = vmatmul.mubr.bf16.gmra.mrb[0].mxu0 %v4525
    %v4633 = vpop.f32.mrb[0].mxu0
    %v4634 = vadd.f32 0.0, %v4633
    %v4635 = vpop.f32.mrb[0].mxu0
    %v4636 = vpop.f32.mrb[0].mxu0
    %v4637 = vadd.f32 0.0, %v4636
    %v4638 = vpop.f32.mrb[0].mxu0
    %4639 = vmatprep.mubr.bf16.mxu0 0
    %4640 = vmatmul.mubr.bf16.gmra.mrb[0].mxu0 %v4526
    %v4641 = vpop.f32.mrb[0].mxu0
    %v4642 = vadd.f32 0.0, %v4641
    %v4643 = vpop.f32.mrb[0].mxu0
    %v4644 = vpop.f32.mrb[0].mxu0
    %v4645 = vadd.f32 0.0, %v4644
    %v4646 = vpop.f32.mrb[0].mxu0
    %4647 = vdwg.mxu0
    %4664 = vrot.lane.b32.xlu0 %v4586, 96
    %v4665 = vpop.permute.xlu0 %4664
    %4666 = vrot.lane.b32.xlu0 %v4589, 96
    %v4667 = vpop.permute.xlu0 %4666
    %4668 = vrot.lane.b32.xlu0 %v4594, 96
    %v4669 = vpop.permute.xlu0 %4668
    %4670 = vrot.lane.b32.xlu0 %v4597, 96
    %v4671 = vpop.permute.xlu0 %4670
    %4672 = vrot.lane.b32.xlu0 %v4602, 96
    %v4673 = vpop.permute.xlu0 %4672
    %4674 = vrot.lane.b32.xlu0 %v4605, 96
    %v4675 = vpop.permute.xlu0 %4674
    %4676 = vrot.lane.b32.xlu0 %v4610, 96
    %v4677 = vpop.permute.xlu0 %4676
    %4678 = vrot.lane.b32.xlu0 %v4613, 96
    %v4679 = vpop.permute.xlu0 %4678
    %4680 = vrot.lane.b32.xlu0 %v4618, 96
    %v4681 = vpop.permute.xlu0 %4680
    %4682 = vrot.lane.b32.xlu0 %v4621, 96
    %v4683 = vpop.permute.xlu0 %4682
    %4684 = vrot.lane.b32.xlu0 %v4626, 96
    %v4685 = vpop.permute.xlu0 %4684
    %4686 = vrot.lane.b32.xlu0 %v4629, 96
    %v4687 = vpop.permute.xlu0 %4686
    %4688 = vrot.lane.b32.xlu0 %v4634, 96
    %v4689 = vpop.permute.xlu0 %4688
    %4690 = vrot.lane.b32.xlu0 %v4637, 96
    %v4691 = vpop.permute.xlu0 %4690
    %4692 = vrot.lane.b32.xlu0 %v4642, 96
    %v4693 = vpop.permute.xlu0 %4692
    %4694 = vrot.lane.b32.xlu0 %v4645, 96
    %v4695 = vpop.permute.xlu0 %4694
    %vm4712 = vcmask 917248
    %4713 = vst.msk [vmem:[#allocation3] sm:$0xff] %vm4712, %v4665
    %4714 = vst.msk [vmem:[#allocation3 + $0x8] sm:$0xff] %vm4712, %v4667
    %4715 = vst.msk [vmem:[#allocation3 + $0x10] sm:$0xff] %vm4712, %v4669
    %4716 = vst.msk [vmem:[#allocation3 + $0x18] sm:$0xff] %vm4712, %v4671
    %4717 = vst.msk [vmem:[#allocation3 + $0x20] sm:$0xff] %vm4712, %v4673
    %4718 = vst.msk [vmem:[#allocation3 + $0x28] sm:$0xff] %vm4712, %v4675
    %4719 = vst.msk [vmem:[#allocation3 + $0x30] sm:$0xff] %vm4712, %v4677
    %4720 = vst.msk [vmem:[#allocation3 + $0x38] sm:$0xff] %vm4712, %v4679
    %4721 = vst.msk [vmem:[#allocation3 + $0x40] sm:$0xff] %vm4712, %v4681
    %4722 = vst.msk [vmem:[#allocation3 + $0x48] sm:$0xff] %vm4712, %v4683
    %4723 = vst.msk [vmem:[#allocation3 + $0x50] sm:$0xff] %vm4712, %v4685
    %4724 = vst.msk [vmem:[#allocation3 + $0x58] sm:$0xff] %vm4712, %v4687
    %4725 = vst.msk [vmem:[#allocation3 + $0x60] sm:$0xff] %vm4712, %v4689
    %4726 = vst.msk [vmem:[#allocation3 + $0x68] sm:$0xff] %vm4712, %v4691
    %4727 = vst.msk [vmem:[#allocation3 + $0x70] sm:$0xff] %vm4712, %v4693
    %4728 = vst.msk [vmem:[#allocation3 + $0x78] sm:$0xff] %vm4712, %v4695
    %v4729 = vld [vmem:[#allocation4] sm:$0xff]
    %v4730 = vld [vmem:[#allocation4 + $0x8] sm:$0xff]
    %v4731 = vld [vmem:[#allocation4 + $0x10] sm:$0xff]
    %v4732 = vld [vmem:[#allocation4 + $0x18] sm:$0xff]
    %v4733 = vld [vmem:[#allocation4 + $0x20] sm:$0xff]
    %v4734 = vld [vmem:[#allocation4 + $0x28] sm:$0xff]
    %v4735 = vld [vmem:[#allocation4 + $0x30] sm:$0xff]
    %v4736 = vld [vmem:[#allocation4 + $0x38] sm:$0xff]
    %v4737 = vld [vmem:[#allocation4 + $0x40] sm:$0xff]
    %v4738 = vld [vmem:[#allocation4 + $0x48] sm:$0xff]
    %v4739 = vld [vmem:[#allocation4 + $0x50] sm:$0xff]
    %v4740 = vld [vmem:[#allocation4 + $0x58] sm:$0xff]
    %v4741 = vld [vmem:[#allocation4 + $0x60] sm:$0xff]
    %v4742 = vld [vmem:[#allocation4 + $0x68] sm:$0xff]
    %v4743 = vld [vmem:[#allocation4 + $0x70] sm:$0xff]
    %v4744 = vld [vmem:[#allocation4 + $0x78] sm:$0xff]
    %4745 = vrot.lane.b32.xlu0 %v1212, 16
    %v4746 = vpop.permute.xlu0 %4745
    %4747 = vrot.lane.b32.xlu0 %v1213, 16
    %v4748 = vpop.permute.xlu0 %4747
    %4749 = vrot.lane.b32.xlu0 %v1214, 16
    %v4750 = vpop.permute.xlu0 %4749
    %4751 = vrot.lane.b32.xlu0 %v1215, 16
    %v4752 = vpop.permute.xlu0 %4751
    %4753 = vrot.lane.b32.xlu0 %v1216, 16
    %v4754 = vpop.permute.xlu0 %4753
    %4755 = vrot.lane.b32.xlu0 %v1217, 16
    %v4756 = vpop.permute.xlu0 %4755
    %4757 = vrot.lane.b32.xlu0 %v1218, 16
    %v4758 = vpop.permute.xlu0 %4757
    %4759 = vrot.lane.b32.xlu0 %v1219, 16
    %v4760 = vpop.permute.xlu0 %4759
    %v4762 = vsel %vm1284, %v4746, 0
    %v4765 = vsel %vm1284, %v4748, 0
    %v4768 = vsel %vm1284, %v4750, 0
    %v4771 = vsel %vm1284, %v4752, 0
    %v4774 = vsel %vm1284, %v4754, 0
    %v4777 = vsel %vm1284, %v4756, 0
    %v4780 = vsel %vm1284, %v4758, 0
    %v4783 = vsel %vm1284, %v4760, 0
    %4785 = vmatprep.subr.bf16.mxu0 0
    %4786 = vmatpush1.bf16.msra.mxu0 %v1259
    %4787 = vmatprep.subr.bf16.mxu0 0
    %4788 = vmatpush1.bf16.msra.mxu0 0
    %4789 = vmatprep.subr.bf16.mxu0 0
    %4790 = vmatpush1.bf16.msra.mxu0 0
    %4791 = vmatprep.subr.bf16.mxu0 0
    %4792 = vmatpush1.bf16.msra.mxu0 0
    %4793 = vmatprep.subr.bf16.mxu0 0
    %4794 = vmatpush1.bf16.msra.mxu0 0
    %4795 = vmatprep.subr.bf16.mxu0 0
    %4796 = vmatpush1.bf16.msra.mxu0 0
    %4797 = vmatprep.subr.bf16.mxu0 0
    %4798 = vmatpush1.bf16.msra.mxu0 0
    %4799 = vmatprep.subr.bf16.mxu0 0
    %4800 = vmatpush1.bf16.msra.mxu0 0
    %4801 = vmatprep.subr.bf16.mxu0 0
    %4802 = vmatpush1.bf16.msra.mxu0 0
    %4803 = vmatprep.subr.bf16.mxu0 0
    %4804 = vmatpush1.bf16.msra.mxu0 0
    %4805 = vmatprep.subr.bf16.mxu0 0
    %4806 = vmatpush1.bf16.msra.mxu0 0
    %4807 = vmatprep.subr.bf16.mxu0 0
    %4808 = vmatpush1.bf16.msra.mxu0 0
    %4809 = vmatprep.subr.bf16.mxu0 0
    %4810 = vmatpush1.bf16.msra.mxu0 0
    %4811 = vmatprep.subr.bf16.mxu0 0
    %4812 = vmatpush1.bf16.msra.mxu0 0
    %4813 = vmatprep.subr.bf16.mxu0 0
    %4814 = vmatpush1.bf16.msra.mxu0 0
    %4815 = vmatprep.subr.bf16.mxu0 0
    %4816 = vmatpush1.bf16.msra.mxu0 0
    %4817 = vmatprep.mubr.bf16.mxu0 0
    %4818 = vmatmul.mubr.bf16.gmra.mrb[0].mxu0 %v4762
    %v4819 = vpop.f32.mrb[0].mxu0
    %v4820 = vadd.f32 %v4729, %v4819
    %v4821 = vpop.f32.mrb[0].mxu0
    %v4822 = vpop.f32.mrb[0].mxu0
    %v4823 = vadd.f32 %v4730, %v4822
    %v4824 = vpop.f32.mrb[0].mxu0
    %4825 = vmatprep.mubr.bf16.mxu0 0
    %4826 = vmatmul.mubr.bf16.gmra.mrb[0].mxu0 %v4765
    %v4827 = vpop.f32.mrb[0].mxu0
    %v4828 = vadd.f32 %v4731, %v4827
    %v4829 = vpop.f32.mrb[0].mxu0
    %v4830 = vpop.f32.mrb[0].mxu0
    %v4831 = vadd.f32 %v4732, %v4830
    %v4832 = vpop.f32.mrb[0].mxu0
    %4833 = vmatprep.mubr.bf16.mxu0 0
    %4834 = vmatmul.mubr.bf16.gmra.mrb[0].mxu0 %v4768
    %v4835 = vpop.f32.mrb[0].mxu0
    %v4836 = vadd.f32 %v4733, %v4835
    %v4837 = vpop.f32.mrb[0].mxu0
    %v4838 = vpop.f32.mrb[0].mxu0
    %v4839 = vadd.f32 %v4734, %v4838
    %v4840 = vpop.f32.mrb[0].mxu0
    %4841 = vmatprep.mubr.bf16.mxu0 0
    %4842 = vmatmul.mubr.bf16.gmra.mrb[0].mxu0 %v4771
    %v4843 = vpop.f32.mrb[0].mxu0
    %v4844 = vadd.f32 %v4735, %v4843
    %v4845 = vpop.f32.mrb[0].mxu0
    %v4846 = vpop.f32.mrb[0].mxu0
    %v4847 = vadd.f32 %v4736, %v4846
    %v4848 = vpop.f32.mrb[0].mxu0
    %4849 = vmatprep.mubr.bf16.mxu0 0
    %4850 = vmatmul.mubr.bf16.gmra.mrb[0].mxu0 %v4774
    %v4851 = vpop.f32.mrb[0].mxu0
    %v4852 = vadd.f32 %v4737, %v4851
    %v4853 = vpop.f32.mrb[0].mxu0
    %v4854 = vpop.f32.mrb[0].mxu0
    %v4855 = vadd.f32 %v4738, %v4854
    %v4856 = vpop.f32.mrb[0].mxu0
    %4857 = vmatprep.mubr.bf16.mxu0 0
    %4858 = vmatmul.mubr.bf16.gmra.mrb[0].mxu0 %v4777
    %v4859 = vpop.f32.mrb[0].mxu0
    %v4860 = vadd.f32 %v4739, %v4859
    %v4861 = vpop.f32.mrb[0].mxu0
    %v4862 = vpop.f32.mrb[0].mxu0
    %v4863 = vadd.f32 %v4740, %v4862
    %v4864 = vpop.f32.mrb[0].mxu0
    %4865 = vmatprep.mubr.bf16.mxu0 0
    %4866 = vmatmul.mubr.bf16.gmra.mrb[0].mxu0 %v4780
    %v4867 = vpop.f32.mrb[0].mxu0
    %v4868 = vadd.f32 %v4741, %v4867
    %v4869 = vpop.f32.mrb[0].mxu0
    %v4870 = vpop.f32.mrb[0].mxu0
    %v4871 = vadd.f32 %v4742, %v4870
    %v4872 = vpop.f32.mrb[0].mxu0
    %4873 = vmatprep.mubr.bf16.mxu0 0
    %4874 = vmatmul.mubr.bf16.gmra.mrb[0].mxu0 %v4783
    %v4875 = vpop.f32.mrb[0].mxu0
    %v4876 = vadd.f32 %v4743, %v4875
    %v4877 = vpop.f32.mrb[0].mxu0
    %v4878 = vpop.f32.mrb[0].mxu0
    %v4879 = vadd.f32 %v4744, %v4878
    %v4880 = vpop.f32.mrb[0].mxu0
    %4881 = vdwg.mxu0
    %4882 = vmax.xlane.f32.xlu0 %v4820
    %v4883 = vpop.xlane.xlu0 %4882
    %4884 = vmax.xlane.f32.xlu0 %v4823
    %v4885 = vpop.xlane.xlu0 %4884
    %4886 = vmax.xlane.f32.xlu0 %v4828
    %v4887 = vpop.xlane.xlu0 %4886
    %4888 = vmax.xlane.f32.xlu0 %v4831
    %v4889 = vpop.xlane.xlu0 %4888
    %4890 = vmax.xlane.f32.xlu0 %v4836
    %v4891 = vpop.xlane.xlu0 %4890
    %4892 = vmax.xlane.f32.xlu0 %v4839
    %v4893 = vpop.xlane.xlu0 %4892
    %4894 = vmax.xlane.f32.xlu0 %v4844
    %v4895 = vpop.xlane.xlu0 %4894
    %4896 = vmax.xlane.f32.xlu0 %v4847
    %v4897 = vpop.xlane.xlu0 %4896
    %4898 = vmax.xlane.f32.xlu0 %v4852
    %v4899 = vpop.xlane.xlu0 %4898
    %4900 = vmax.xlane.f32.xlu0 %v4855
    %v4901 = vpop.xlane.xlu0 %4900
    %4902 = vmax.xlane.f32.xlu0 %v4860
    %v4903 = vpop.xlane.xlu0 %4902
    %4904 = vmax.xlane.f32.xlu0 %v4863
    %v4905 = vpop.xlane.xlu0 %4904
    %4906 = vmax.xlane.f32.xlu0 %v4868
    %v4907 = vpop.xlane.xlu0 %4906
    %4908 = vmax.xlane.f32.xlu0 %v4871
    %v4909 = vpop.xlane.xlu0 %4908
    %4910 = vmax.xlane.f32.xlu0 %v4876
    %v4911 = vpop.xlane.xlu0 %4910
    %4912 = vmax.xlane.f32.xlu0 %v4879
    %v4913 = vpop.xlane.xlu0 %4912
    %v4914 = vsub.f32 %v4820, %v4883
    %v4915 = vsub.f32 %v4823, %v4885
    %v4916 = vsub.f32 %v4828, %v4887
    %v4917 = vsub.f32 %v4831, %v4889
    %v4918 = vsub.f32 %v4836, %v4891
    %v4919 = vsub.f32 %v4839, %v4893
    %v4920 = vsub.f32 %v4844, %v4895
    %v4921 = vsub.f32 %v4847, %v4897
    %v4922 = vsub.f32 %v4852, %v4899
    %v4923 = vsub.f32 %v4855, %v4901
    %v4924 = vsub.f32 %v4860, %v4903
    %v4925 = vsub.f32 %v4863, %v4905
    %v4926 = vsub.f32 %v4868, %v4907
    %v4927 = vsub.f32 %v4871, %v4909
    %v4928 = vsub.f32 %v4876, %v4911
    %v4929 = vsub.f32 %v4879, %v4913
    %v4930 = vmul.f32 %v4914, 1.442695
    %v4931 = vpow.pop %v4930
    %v4932 = vmul.f32 %v4915, 1.442695
    %v4933 = vpow.pop %v4932
    %v4934 = vmul.f32 %v4916, 1.442695
    %v4935 = vpow.pop %v4934
    %v4936 = vmul.f32 %v4917, 1.442695
    %v4937 = vpow.pop %v4936
    %v4938 = vmul.f32 %v4918, 1.442695
    %v4939 = vpow.pop %v4938
    %v4940 = vmul.f32 %v4919, 1.442695
    %v4941 = vpow.pop %v4940
    %v4942 = vmul.f32 %v4920, 1.442695
    %v4943 = vpow.pop %v4942
    %v4944 = vmul.f32 %v4921, 1.442695
    %v4945 = vpow.pop %v4944
    %v4946 = vmul.f32 %v4922, 1.442695
    %v4947 = vpow.pop %v4946
    %v4948 = vmul.f32 %v4923, 1.442695
    %v4949 = vpow.pop %v4948
    %v4950 = vmul.f32 %v4924, 1.442695
    %v4951 = vpow.pop %v4950
    %v4952 = vmul.f32 %v4925, 1.442695
    %v4953 = vpow.pop %v4952
    %v4954 = vmul.f32 %v4926, 1.442695
    %v4955 = vpow.pop %v4954
    %v4956 = vmul.f32 %v4927, 1.442695
    %v4957 = vpow.pop %v4956
    %v4958 = vmul.f32 %v4928, 1.442695
    %v4959 = vpow.pop %v4958
    %v4960 = vmul.f32 %v4929, 1.442695
    %v4961 = vpow.pop %v4960
    %4962 = vadd.xlane.f32.xlu0 %v4931
    %v4963 = vpop.xlane.xlu0 %4962
    %4964 = vadd.xlane.f32.xlu0 %v4933
    %v4965 = vpop.xlane.xlu0 %4964
    %4966 = vadd.xlane.f32.xlu0 %v4935
    %v4967 = vpop.xlane.xlu0 %4966
    %4968 = vadd.xlane.f32.xlu0 %v4937
    %v4969 = vpop.xlane.xlu0 %4968
    %4970 = vadd.xlane.f32.xlu0 %v4939
    %v4971 = vpop.xlane.xlu0 %4970
    %4972 = vadd.xlane.f32.xlu0 %v4941
    %v4973 = vpop.xlane.xlu0 %4972
    %4974 = vadd.xlane.f32.xlu0 %v4943
    %v4975 = vpop.xlane.xlu0 %4974
    %4976 = vadd.xlane.f32.xlu0 %v4945
    %v4977 = vpop.xlane.xlu0 %4976
    %4978 = vadd.xlane.f32.xlu0 %v4947
    %v4979 = vpop.xlane.xlu0 %4978
    %4980 = vadd.xlane.f32.xlu0 %v4949
    %v4981 = vpop.xlane.xlu0 %4980
    %4982 = vadd.xlane.f32.xlu0 %v4951
    %v4983 = vpop.xlane.xlu0 %4982
    %4984 = vadd.xlane.f32.xlu0 %v4953
    %v4985 = vpop.xlane.xlu0 %4984
    %4986 = vadd.xlane.f32.xlu0 %v4955
    %v4987 = vpop.xlane.xlu0 %4986
    %4988 = vadd.xlane.f32.xlu0 %v4957
    %v4989 = vpop.xlane.xlu0 %4988
    %4990 = vadd.xlane.f32.xlu0 %v4959
    %v4991 = vpop.xlane.xlu0 %4990
    %4992 = vadd.xlane.f32.xlu0 %v4961
    %v4993 = vpop.xlane.xlu0 %4992
    %v4994 = vrcp.pop %v4963
    %v4995 = vrcp.pop %v4965
    %v4996 = vrcp.pop %v4967
    %v4997 = vrcp.pop %v4969
    %v4998 = vrcp.pop %v4971
    %v4999 = vrcp.pop %v4973
    %v5000 = vrcp.pop %v4975
    %v5001 = vrcp.pop %v4977
    %v5002 = vrcp.pop %v4979
    %v5003 = vrcp.pop %v4981
    %v5004 = vrcp.pop %v4983
    %v5005 = vrcp.pop %v4985
    %v5006 = vrcp.pop %v4987
    %v5007 = vrcp.pop %v4989
    %v5008 = vrcp.pop %v4991
    %v5009 = vrcp.pop %v4993
    %v5010 = vmul.f32 %v4931, %v4994
    %v5011 = vmul.f32 %v4933, %v4995
    %v5012 = vmul.f32 %v4935, %v4996
    %v5013 = vmul.f32 %v4937, %v4997
    %v5014 = vmul.f32 %v4939, %v4998
    %v5015 = vmul.f32 %v4941, %v4999
    %v5016 = vmul.f32 %v4943, %v5000
    %v5017 = vmul.f32 %v4945, %v5001
    %v5018 = vmul.f32 %v4947, %v5002
    %v5019 = vmul.f32 %v4949, %v5003
    %v5020 = vmul.f32 %v4951, %v5004
    %v5021 = vmul.f32 %v4953, %v5005
    %v5022 = vmul.f32 %v4955, %v5006
    %v5023 = vmul.f32 %v4957, %v5007
    %v5024 = vmul.f32 %v4959, %v5008
    %v5025 = vmul.f32 %v4961, %v5009
    %v5026 = vpack.c.bf16 %v5011, %v5010
    %v5027 = vpack.c.bf16 %v5013, %v5012
    %v5028 = vpack.c.bf16 %v5015, %v5014
    %v5029 = vpack.c.bf16 %v5017, %v5016
    %v5030 = vpack.c.bf16 %v5019, %v5018
    %v5031 = vpack.c.bf16 %v5021, %v5020
    %v5032 = vpack.c.bf16 %v5023, %v5022
    %v5033 = vpack.c.bf16 %v5025, %v5024
    %5034 = vrot.lane.b32.xlu0 %v1260, 16
    %v5035 = vpop.permute.xlu0 %5034
    %5036 = vrot.lane.b32.xlu0 %v1261, 16
    %v5037 = vpop.permute.xlu0 %5036
    %5038 = vrot.lane.b32.xlu0 %v1262, 16
    %v5039 = vpop.permute.xlu0 %5038
    %5040 = vrot.lane.b32.xlu0 %v1263, 16
    %v5041 = vpop.permute.xlu0 %5040
    %5042 = vrot.lane.b32.xlu0 %v1264, 16
    %v5043 = vpop.permute.xlu0 %5042
    %5044 = vrot.lane.b32.xlu0 %v1265, 16
    %v5045 = vpop.permute.xlu0 %5044
    %5046 = vrot.lane.b32.xlu0 %v1266, 16
    %v5047 = vpop.permute.xlu0 %5046
    %5048 = vrot.lane.b32.xlu0 %v1267, 16
    %v5049 = vpop.permute.xlu0 %5048
    %5058 = vmatprep.subr.bf16.mxu0 0
    %5059 = vmatpush1.bf16.msra.mxu0 %v5035
    %5060 = vmatprep.subr.bf16.mxu0 0
    %5061 = vmatpush1.bf16.msra.mxu0 %v5037
    %5062 = vmatprep.subr.bf16.mxu0 0
    %5063 = vmatpush1.bf16.msra.mxu0 %v5039
    %5064 = vmatprep.subr.bf16.mxu0 0
    %5065 = vmatpush1.bf16.msra.mxu0 %v5041
    %5066 = vmatprep.subr.bf16.mxu0 0
    %5067 = vmatpush1.bf16.msra.mxu0 %v5043
    %5068 = vmatprep.subr.bf16.mxu0 0
    %5069 = vmatpush1.bf16.msra.mxu0 %v5045
    %5070 = vmatprep.subr.bf16.mxu0 0
    %5071 = vmatpush1.bf16.msra.mxu0 %v5047
    %5072 = vmatprep.subr.bf16.mxu0 0
    %5073 = vmatpush1.bf16.msra.mxu0 %v5049
    %5074 = vmatprep.subr.bf16.mxu0 0
    %5075 = vmatpush1.bf16.msra.mxu0 0
    %5076 = vmatprep.subr.bf16.mxu0 0
    %5077 = vmatpush1.bf16.msra.mxu0 0
    %5078 = vmatprep.subr.bf16.mxu0 0
    %5079 = vmatpush1.bf16.msra.mxu0 0
    %5080 = vmatprep.subr.bf16.mxu0 0
    %5081 = vmatpush1.bf16.msra.mxu0 0
    %5082 = vmatprep.subr.bf16.mxu0 0
    %5083 = vmatpush1.bf16.msra.mxu0 0
    %5084 = vmatprep.subr.bf16.mxu0 0
    %5085 = vmatpush1.bf16.msra.mxu0 0
    %5086 = vmatprep.subr.bf16.mxu0 0
    %5087 = vmatpush1.bf16.msra.mxu0 0
    %5088 = vmatprep.subr.bf16.mxu0 0
    %5089 = vmatpush1.bf16.msra.mxu0 0
    %5090 = vmatprep.mubr.bf16.mxu0 0
    %5091 = vmatmul.mubr.bf16.gmra.mrb[0].mxu0 %v5026
    %v5092 = vpop.f32.mrb[0].mxu0
    %v5093 = vadd.f32 0.0, %v5092
    %v5094 = vpop.f32.mrb[0].mxu0
    %v5095 = vpop.f32.mrb[0].mxu0
    %v5096 = vadd.f32 0.0, %v5095
    %v5097 = vpop.f32.mrb[0].mxu0
    %5098 = vmatprep.mubr.bf16.mxu0 0
    %5099 = vmatmul.mubr.bf16.gmra.mrb[0].mxu0 %v5027
    %v5100 = vpop.f32.mrb[0].mxu0
    %v5101 = vadd.f32 0.0, %v5100
    %v5102 = vpop.f32.mrb[0].mxu0
    %v5103 = vpop.f32.mrb[0].mxu0
    %v5104 = vadd.f32 0.0, %v5103
    %v5105 = vpop.f32.mrb[0].mxu0
    %5106 = vmatprep.mubr.bf16.mxu0 0
    %5107 = vmatmul.mubr.bf16.gmra.mrb[0].mxu0 %v5028
    %v5108 = vpop.f32.mrb[0].mxu0
    %v5109 = vadd.f32 0.0, %v5108
    %v5110 = vpop.f32.mrb[0].mxu0
    %v5111 = vpop.f32.mrb[0].mxu0
    %v5112 = vadd.f32 0.0, %v5111
    %v5113 = vpop.f32.mrb[0].mxu0
    %5114 = vmatprep.mubr.bf16.mxu0 0
    %5115 = vmatmul.mubr.bf16.gmra.mrb[0].mxu0 %v5029
    %v5116 = vpop.f32.mrb[0].mxu0
    %v5117 = vadd.f32 0.0, %v5116
    %v5118 = vpop.f32.mrb[0].mxu0
    %v5119 = vpop.f32.mrb[0].mxu0
    %v5120 = vadd.f32 0.0, %v5119
    %v5121 = vpop.f32.mrb[0].mxu0
    %5122 = vmatprep.mubr.bf16.mxu0 0
    %5123 = vmatmul.mubr.bf16.gmra.mrb[0].mxu0 %v5030
    %v5124 = vpop.f32.mrb[0].mxu0
    %v5125 = vadd.f32 0.0, %v5124
    %v5126 = vpop.f32.mrb[0].mxu0
    %v5127 = vpop.f32.mrb[0].mxu0
    %v5128 = vadd.f32 0.0, %v5127
    %v5129 = vpop.f32.mrb[0].mxu0
    %5130 = vmatprep.mubr.bf16.mxu0 0
    %5131 = vmatmul.mubr.bf16.gmra.mrb[0].mxu0 %v5031
    %v5132 = vpop.f32.mrb[0].mxu0
    %v5133 = vadd.f32 0.0, %v5132
    %v5134 = vpop.f32.mrb[0].mxu0
    %v5135 = vpop.f32.mrb[0].mxu0
    %v5136 = vadd.f32 0.0, %v5135
    %v5137 = vpop.f32.mrb[0].mxu0
    %5138 = vmatprep.mubr.bf16.mxu0 0
    %5139 = vmatmul.mubr.bf16.gmra.mrb[0].mxu0 %v5032
    %v5140 = vpop.f32.mrb[0].mxu0
    %v5141 = vadd.f32 0.0, %v5140
    %v5142 = vpop.f32.mrb[0].mxu0
    %v5143 = vpop.f32.mrb[0].mxu0
    %v5144 = vadd.f32 0.0, %v5143
    %v5145 = vpop.f32.mrb[0].mxu0
    %5146 = vmatprep.mubr.bf16.mxu0 0
    %5147 = vmatmul.mubr.bf16.gmra.mrb[0].mxu0 %v5033
    %v5148 = vpop.f32.mrb[0].mxu0
    %v5149 = vadd.f32 0.0, %v5148
    %v5150 = vpop.f32.mrb[0].mxu0
    %v5151 = vpop.f32.mrb[0].mxu0
    %v5152 = vadd.f32 0.0, %v5151
    %v5153 = vpop.f32.mrb[0].mxu0
    %5154 = vdwg.mxu0
    %5171 = vrot.lane.b32.xlu0 %v5093, 112
    %v5172 = vpop.permute.xlu0 %5171
    %5173 = vrot.lane.b32.xlu0 %v5096, 112
    %v5174 = vpop.permute.xlu0 %5173
    %5175 = vrot.lane.b32.xlu0 %v5101, 112
    %v5176 = vpop.permute.xlu0 %5175
    %5177 = vrot.lane.b32.xlu0 %v5104, 112
    %v5178 = vpop.permute.xlu0 %5177
    %5179 = vrot.lane.b32.xlu0 %v5109, 112
    %v5180 = vpop.permute.xlu0 %5179
    %5181 = vrot.lane.b32.xlu0 %v5112, 112
    %v5182 = vpop.permute.xlu0 %5181
    %5183 = vrot.lane.b32.xlu0 %v5117, 112
    %v5184 = vpop.permute.xlu0 %5183
    %5185 = vrot.lane.b32.xlu0 %v5120, 112
    %v5186 = vpop.permute.xlu0 %5185
    %5187 = vrot.lane.b32.xlu0 %v5125, 112
    %v5188 = vpop.permute.xlu0 %5187
    %5189 = vrot.lane.b32.xlu0 %v5128, 112
    %v5190 = vpop.permute.xlu0 %5189
    %5191 = vrot.lane.b32.xlu0 %v5133, 112
    %v5192 = vpop.permute.xlu0 %5191
    %5193 = vrot.lane.b32.xlu0 %v5136, 112
    %v5194 = vpop.permute.xlu0 %5193
    %5195 = vrot.lane.b32.xlu0 %v5141, 112
    %v5196 = vpop.permute.xlu0 %5195
    %5197 = vrot.lane.b32.xlu0 %v5144, 112
    %v5198 = vpop.permute.xlu0 %5197
    %5199 = vrot.lane.b32.xlu0 %v5149, 112
    %v5200 = vpop.permute.xlu0 %5199
    %5201 = vrot.lane.b32.xlu0 %v5152, 112
    %v5202 = vpop.permute.xlu0 %5201
    %vm5219 = vcmask 1048448
    %5220 = vst.msk [vmem:[#allocation3] sm:$0xff] %vm5219, %v5172
    %5221 = vst.msk [vmem:[#allocation3 + $0x8] sm:$0xff] %vm5219, %v5174
    %5222 = vst.msk [vmem:[#allocation3 + $0x10] sm:$0xff] %vm5219, %v5176
    %5223 = vst.msk [vmem:[#allocation3 + $0x18] sm:$0xff] %vm5219, %v5178
    %5224 = vst.msk [vmem:[#allocation3 + $0x20] sm:$0xff] %vm5219, %v5180
    %5225 = vst.msk [vmem:[#allocation3 + $0x28] sm:$0xff] %vm5219, %v5182
    %5226 = vst.msk [vmem:[#allocation3 + $0x30] sm:$0xff] %vm5219, %v5184
    %5227 = vst.msk [vmem:[#allocation3 + $0x38] sm:$0xff] %vm5219, %v5186
    %5228 = vst.msk [vmem:[#allocation3 + $0x40] sm:$0xff] %vm5219, %v5188
    %5229 = vst.msk [vmem:[#allocation3 + $0x48] sm:$0xff] %vm5219, %v5190
    %5230 = vst.msk [vmem:[#allocation3 + $0x50] sm:$0xff] %vm5219, %v5192
    %5231 = vst.msk [vmem:[#allocation3 + $0x58] sm:$0xff] %vm5219, %v5194
    %5232 = vst.msk [vmem:[#allocation3 + $0x60] sm:$0xff] %vm5219, %v5196
    %5233 = vst.msk [vmem:[#allocation3 + $0x68] sm:$0xff] %vm5219, %v5198
    %5234 = vst.msk [vmem:[#allocation3 + $0x70] sm:$0xff] %vm5219, %v5200
    %5235 = vst.msk [vmem:[#allocation3 + $0x78] sm:$0xff] %vm5219, %v5202
    %v5236 = vld [vmem:[#allocation3] sm:$0xff]
    %v5237 = vld [vmem:[#allocation3 + $0x8] sm:$0xff]
    %v5238 = vld [vmem:[#allocation3 + $0x10] sm:$0xff]
    %v5239 = vld [vmem:[#allocation3 + $0x18] sm:$0xff]
    %v5240 = vld [vmem:[#allocation3 + $0x20] sm:$0xff]
    %v5241 = vld [vmem:[#allocation3 + $0x28] sm:$0xff]
    %v5242 = vld [vmem:[#allocation3 + $0x30] sm:$0xff]
    %v5243 = vld [vmem:[#allocation3 + $0x38] sm:$0xff]
    %v5244 = vld [vmem:[#allocation3 + $0x40] sm:$0xff]
    %v5245 = vld [vmem:[#allocation3 + $0x48] sm:$0xff]
    %v5246 = vld [vmem:[#allocation3 + $0x50] sm:$0xff]
    %v5247 = vld [vmem:[#allocation3 + $0x58] sm:$0xff]
    %v5248 = vld [vmem:[#allocation3 + $0x60] sm:$0xff]
    %v5249 = vld [vmem:[#allocation3 + $0x68] sm:$0xff]
    %v5250 = vld [vmem:[#allocation3 + $0x70] sm:$0xff]
    %v5251 = vld [vmem:[#allocation3 + $0x78] sm:$0xff]
    %v5252 = vpack.c.bf16 %v5237, %v5236
    %v5253 = vpack.c.bf16 %v5239, %v5238
    %v5254 = vpack.c.bf16 %v5241, %v5240
    %v5255 = vpack.c.bf16 %v5243, %v5242
    %v5256 = vpack.c.bf16 %v5245, %v5244
    %v5257 = vpack.c.bf16 %v5247, %v5246
    %v5258 = vpack.c.bf16 %v5249, %v5248
    %v5259 = vpack.c.bf16 %v5251, %v5250
    %v5260 = vld [vmem:[#allocation15] sm:$0xf]
    %v5261 = vld [vmem:[#allocation15 + $0x4] sm:$0xf]
    %v5262 = vld [vmem:[#allocation15 + $0x8] sm:$0xf]
    %v5263 = vld [vmem:[#allocation15 + $0xc] sm:$0xf]
    %v5264 = vld [vmem:[#allocation15 + $0x10] sm:$0xf]
    %v5265 = vld [vmem:[#allocation15 + $0x14] sm:$0xf]
    %v5266 = vld [vmem:[#allocation15 + $0x18] sm:$0xf]
    %v5267 = vld [vmem:[#allocation15 + $0x1c] sm:$0xf]
    %v5268 = vld [vmem:[#allocation15 + $0x20] sm:$0xf]
    %v5269 = vld [vmem:[#allocation15 + $0x24] sm:$0xf]
    %v5270 = vld [vmem:[#allocation15 + $0x28] sm:$0xf]
    %v5271 = vld [vmem:[#allocation15 + $0x2c] sm:$0xf]
    %v5272 = vld [vmem:[#allocation15 + $0x30] sm:$0xf]
    %v5273 = vld [vmem:[#allocation15 + $0x34] sm:$0xf]
    %v5274 = vld [vmem:[#allocation15 + $0x38] sm:$0xf]
    %v5275 = vld [vmem:[#allocation15 + $0x3c] sm:$0xf]
    %v5276 = vld [vmem:[%s14] sm:$0x1]
    %v5278 = vlaneseq
    %v5279 = vshrl.u32 %v5278, 7
    %v5280 = vsub.s32 0, %v5279
    %v5281 = vrot.slane %v5276, %v5280
    %v5299 = vunpack.c.l.b16 %v5260
    %v5300 = vunpack.c.l.b16 %v5261
    %v5301 = vunpack.c.l.b16 %v5262
    %v5302 = vunpack.c.l.b16 %v5263
    %v5303 = vunpack.c.l.b16 %v5264
    %v5304 = vunpack.c.l.b16 %v5265
    %v5305 = vunpack.c.l.b16 %v5266
    %v5306 = vunpack.c.l.b16 %v5267
    %v5307 = vunpack.c.l.b16 %v5268
    %v5308 = vunpack.c.l.b16 %v5269
    %v5309 = vunpack.c.l.b16 %v5270
    %v5310 = vunpack.c.l.b16 %v5271
    %v5311 = vunpack.c.l.b16 %v5272
    %v5312 = vunpack.c.l.b16 %v5273
    %v5313 = vunpack.c.l.b16 %v5274
    %v5314 = vunpack.c.l.b16 %v5275
    %v5315 = vpack.c.b16 %v5300, %v5299
    %v5316 = vpack.c.b16 %v5302, %v5301
    %v5317 = vpack.c.b16 %v5304, %v5303
    %v5318 = vpack.c.b16 %v5306, %v5305
    %v5319 = vpack.c.b16 %v5308, %v5307
    %v5320 = vpack.c.b16 %v5310, %v5309
    %v5321 = vpack.c.b16 %v5312, %v5311
    %v5322 = vpack.c.b16 %v5314, %v5313
    %5331 = vmatprep.subr.bf16.mxu0 0
    %5332 = vmatpush1.bf16.msra.mxu0 %v5315
    %5333 = vmatprep.subr.bf16.mxu0 0
    %5334 = vmatpush1.bf16.msra.mxu0 %v5316
    %5335 = vmatprep.subr.bf16.mxu0 0
    %5336 = vmatpush1.bf16.msra.mxu0 %v5317
    %5337 = vmatprep.subr.bf16.mxu0 0
    %5338 = vmatpush1.bf16.msra.mxu0 %v5318
    %5339 = vmatprep.subr.bf16.mxu0 0
    %5340 = vmatpush1.bf16.msra.mxu0 %v5319
    %5341 = vmatprep.subr.bf16.mxu0 0
    %5342 = vmatpush1.bf16.msra.mxu0 %v5320
    %5343 = vmatprep.subr.bf16.mxu0 0
    %5344 = vmatpush1.bf16.msra.mxu0 %v5321
    %5345 = vmatprep.subr.bf16.mxu0 0
    %5346 = vmatpush1.bf16.msra.mxu0 %v5322
    %5347 = vmatprep.subr.bf16.mxu0 0
    %5348 = vmatpush1.bf16.msra.mxu0 0
    %5349 = vmatprep.subr.bf16.mxu0 0
    %5350 = vmatpush1.bf16.msra.mxu0 0
    %5351 = vmatprep.subr.bf16.mxu0 0
    %5352 = vmatpush1.bf16.msra.mxu0 0
    %5353 = vmatprep.subr.bf16.mxu0 0
    %5354 = vmatpush1.bf16.msra.mxu0 0
    %5355 = vmatprep.subr.bf16.mxu0 0
    %5356 = vmatpush1.bf16.msra.mxu0 0
    %5357 = vmatprep.subr.bf16.mxu0 0
    %5358 = vmatpush1.bf16.msra.mxu0 0
    %5359 = vmatprep.subr.bf16.mxu0 0
    %5360 = vmatpush1.bf16.msra.mxu0 0
    %5361 = vmatprep.subr.bf16.mxu0 0
    %5362 = vmatpush1.bf16.msra.mxu0 0
    %5363 = vmatprep.mubr.bf16.mxu0 0
    %5364 = vmatmul.mubr.bf16.gmra.mrb[0].mxu0 %v5252
    %v5365 = vpop.f32.mrb[0].mxu0
    %v5366 = vadd.f32 %v5281, %v5365
    %v5367 = vpop.f32.mrb[0].mxu0
    %v5368 = vpop.f32.mrb[0].mxu0
    %v5369 = vadd.f32 %v5281, %v5368
    %v5370 = vpop.f32.mrb[0].mxu0
    %5371 = vmatprep.mubr.bf16.mxu0 0
    %5372 = vmatmul.mubr.bf16.gmra.mrb[0].mxu0 %v5253
    %v5373 = vpop.f32.mrb[0].mxu0
    %v5374 = vadd.f32 %v5281, %v5373
    %v5375 = vpop.f32.mrb[0].mxu0
    %v5376 = vpop.f32.mrb[0].mxu0
    %v5377 = vadd.f32 %v5281, %v5376
    %v5378 = vpop.f32.mrb[0].mxu0
    %5379 = vmatprep.mubr.bf16.mxu0 0
    %5380 = vmatmul.mubr.bf16.gmra.mrb[0].mxu0 %v5254
    %v5381 = vpop.f32.mrb[0].mxu0
    %v5382 = vadd.f32 %v5281, %v5381
    %v5383 = vpop.f32.mrb[0].mxu0
    %v5384 = vpop.f32.mrb[0].mxu0
    %v5385 = vadd.f32 %v5281, %v5384
    %v5386 = vpop.f32.mrb[0].mxu0
    %5387 = vmatprep.mubr.bf16.mxu0 0
    %5388 = vmatmul.mubr.bf16.gmra.mrb[0].mxu0 %v5255
    %v5389 = vpop.f32.mrb[0].mxu0
    %v5390 = vadd.f32 %v5281, %v5389
    %v5391 = vpop.f32.mrb[0].mxu0
    %v5392 = vpop.f32.mrb[0].mxu0
    %v5393 = vadd.f32 %v5281, %v5392
    %v5394 = vpop.f32.mrb[0].mxu0
    %5395 = vmatprep.mubr.bf16.mxu0 0
    %5396 = vmatmul.mubr.bf16.gmra.mrb[0].mxu0 %v5256
    %v5397 = vpop.f32.mrb[0].mxu0
    %v5398 = vadd.f32 %v5281, %v5397
    %v5399 = vpop.f32.mrb[0].mxu0
    %v5400 = vpop.f32.mrb[0].mxu0
    %v5401 = vadd.f32 %v5281, %v5400
    %v5402 = vpop.f32.mrb[0].mxu0
    %5403 = vmatprep.mubr.bf16.mxu0 0
    %5404 = vmatmul.mubr.bf16.gmra.mrb[0].mxu0 %v5257
    %v5405 = vpop.f32.mrb[0].mxu0
    %v5406 = vadd.f32 %v5281, %v5405
    %v5407 = vpop.f32.mrb[0].mxu0
    %v5408 = vpop.f32.mrb[0].mxu0
    %v5409 = vadd.f32 %v5281, %v5408
    %v5410 = vpop.f32.mrb[0].mxu0
    %5411 = vmatprep.mubr.bf16.mxu0 0
    %5412 = vmatmul.mubr.bf16.gmra.mrb[0].mxu0 %v5258
    %v5413 = vpop.f32.mrb[0].mxu0
    %v5414 = vadd.f32 %v5281, %v5413
    %v5415 = vpop.f32.mrb[0].mxu0
    %v5416 = vpop.f32.mrb[0].mxu0
    %v5417 = vadd.f32 %v5281, %v5416
    %v5418 = vpop.f32.mrb[0].mxu0
    %5419 = vmatprep.mubr.bf16.mxu0 0
    %5420 = vmatmul.mubr.bf16.gmra.mrb[0].mxu0 %v5259
    %v5421 = vpop.f32.mrb[0].mxu0
    %v5422 = vadd.f32 %v5281, %v5421
    %v5423 = vpop.f32.mrb[0].mxu0
    %v5424 = vpop.f32.mrb[0].mxu0
    %v5425 = vadd.f32 %v5281, %v5424
    %v5426 = vpop.f32.mrb[0].mxu0
    %5427 = vdwg.mxu0
    %v5428 = vmax.f32 %v5366, 0.0
    %v5429 = vmax.f32 %v5369, 0.0
    %v5430 = vmax.f32 %v5374, 0.0
    %v5431 = vmax.f32 %v5377, 0.0
    %v5432 = vmax.f32 %v5382, 0.0
    %v5433 = vmax.f32 %v5385, 0.0
    %v5434 = vmax.f32 %v5390, 0.0
    %v5435 = vmax.f32 %v5393, 0.0
    %v5436 = vmax.f32 %v5398, 0.0
    %v5437 = vmax.f32 %v5401, 0.0
    %v5438 = vmax.f32 %v5406, 0.0
    %v5439 = vmax.f32 %v5409, 0.0
    %v5440 = vmax.f32 %v5414, 0.0
    %v5441 = vmax.f32 %v5417, 0.0
    %v5442 = vmax.f32 %v5422, 0.0
    %v5443 = vmax.f32 %v5425, 0.0
    %v5444 = vld [vmem:[#allocation2] sm:$0xff]
    %v5445 = vld [vmem:[#allocation2 + $0x8] sm:$0xff]
    %v5446 = vld [vmem:[#allocation2 + $0x10] sm:$0xff]
    %v5447 = vld [vmem:[#allocation2 + $0x18] sm:$0xff]
    %v5448 = vld [vmem:[#allocation2 + $0x20] sm:$0xff]
    %v5449 = vld [vmem:[#allocation2 + $0x28] sm:$0xff]
    %v5450 = vld [vmem:[#allocation2 + $0x30] sm:$0xff]
    %v5451 = vld [vmem:[#allocation2 + $0x38] sm:$0xff]
    %v5452 = vld [vmem:[#allocation2 + $0x40] sm:$0xff]
    %v5453 = vld [vmem:[#allocation2 + $0x48] sm:$0xff]
    %v5454 = vld [vmem:[#allocation2 + $0x50] sm:$0xff]
    %v5455 = vld [vmem:[#allocation2 + $0x58] sm:$0xff]
    %v5456 = vld [vmem:[#allocation2 + $0x60] sm:$0xff]
    %v5457 = vld [vmem:[#allocation2 + $0x68] sm:$0xff]
    %v5458 = vld [vmem:[#allocation2 + $0x70] sm:$0xff]
    %v5459 = vld [vmem:[#allocation2 + $0x78] sm:$0xff]
    %v5460 = vadd.f32 %v5428, %v5444
    %v5461 = vadd.f32 %v5429, %v5445
    %v5462 = vadd.f32 %v5430, %v5446
    %v5463 = vadd.f32 %v5431, %v5447
    %v5464 = vadd.f32 %v5432, %v5448
    %v5465 = vadd.f32 %v5433, %v5449
    %v5466 = vadd.f32 %v5434, %v5450
    %v5467 = vadd.f32 %v5435, %v5451
    %v5468 = vadd.f32 %v5436, %v5452
    %v5469 = vadd.f32 %v5437, %v5453
    %v5470 = vadd.f32 %v5438, %v5454
    %v5471 = vadd.f32 %v5439, %v5455
    %v5472 = vadd.f32 %v5440, %v5456
    %v5473 = vadd.f32 %v5441, %v5457
    %v5474 = vadd.f32 %v5442, %v5458
    %v5475 = vadd.f32 %v5443, %v5459
    %v5476 = vpack.c.bf16 %v5461, %v5460
    %v5477 = vpack.c.bf16 %v5463, %v5462
    %v5478 = vpack.c.bf16 %v5465, %v5464
    %v5479 = vpack.c.bf16 %v5467, %v5466
    %v5480 = vpack.c.bf16 %v5469, %v5468
    %v5481 = vpack.c.bf16 %v5471, %v5470
    %v5482 = vpack.c.bf16 %v5473, %v5472
    %v5483 = vpack.c.bf16 %v5475, %v5474
    %v5484 = vld [vmem:[#allocation17] sm:$0xf]
    %v5485 = vld [vmem:[#allocation17 + $0x4] sm:$0xf]
    %v5486 = vld [vmem:[#allocation17 + $0x8] sm:$0xf]
    %v5487 = vld [vmem:[#allocation17 + $0xc] sm:$0xf]
    %v5488 = vld [vmem:[#allocation17 + $0x10] sm:$0xf]
    %v5489 = vld [vmem:[#allocation17 + $0x14] sm:$0xf]
    %v5490 = vld [vmem:[#allocation17 + $0x18] sm:$0xf]
    %v5491 = vld [vmem:[#allocation17 + $0x1c] sm:$0xf]
    %v5492 = vld [vmem:[#allocation17 + $0x20] sm:$0xf]
    %v5493 = vld [vmem:[#allocation17 + $0x24] sm:$0xf]
    %v5494 = vld [vmem:[#allocation17 + $0x28] sm:$0xf]
    %v5495 = vld [vmem:[#allocation17 + $0x2c] sm:$0xf]
    %v5496 = vld [vmem:[#allocation17 + $0x30] sm:$0xf]
    %v5497 = vld [vmem:[#allocation17 + $0x34] sm:$0xf]
    %v5498 = vld [vmem:[#allocation17 + $0x38] sm:$0xf]
    %v5499 = vld [vmem:[#allocation17 + $0x3c] sm:$0xf]
    %v5500 = vld [vmem:[%s16] sm:$0x1]
    %v5502 = vlaneseq
    %v5503 = vshrl.u32 %v5502, 7
    %v5504 = vsub.s32 0, %v5503
    %v5505 = vrot.slane %v5500, %v5504
    %v5523 = vunpack.c.l.b16 %v5484
    %v5524 = vunpack.c.l.b16 %v5485
    %v5525 = vunpack.c.l.b16 %v5486
    %v5526 = vunpack.c.l.b16 %v5487
    %v5527 = vunpack.c.l.b16 %v5488
    %v5528 = vunpack.c.l.b16 %v5489
    %v5529 = vunpack.c.l.b16 %v5490
    %v5530 = vunpack.c.l.b16 %v5491
    %v5531 = vunpack.c.l.b16 %v5492
    %v5532 = vunpack.c.l.b16 %v5493
    %v5533 = vunpack.c.l.b16 %v5494
    %v5534 = vunpack.c.l.b16 %v5495
    %v5535 = vunpack.c.l.b16 %v5496
    %v5536 = vunpack.c.l.b16 %v5497
    %v5537 = vunpack.c.l.b16 %v5498
    %v5538 = vunpack.c.l.b16 %v5499
    %v5539 = vpack.c.b16 %v5524, %v5523
    %v5540 = vpack.c.b16 %v5526, %v5525
    %v5541 = vpack.c.b16 %v5528, %v5527
    %v5542 = vpack.c.b16 %v5530, %v5529
    %v5543 = vpack.c.b16 %v5532, %v5531
    %v5544 = vpack.c.b16 %v5534, %v5533
    %v5545 = vpack.c.b16 %v5536, %v5535
    %v5546 = vpack.c.b16 %v5538, %v5537
    %5555 = vmatprep.subr.bf16.mxu0 0
    %5556 = vmatpush1.bf16.msra.mxu0 %v5539
    %5557 = vmatprep.subr.bf16.mxu0 0
    %5558 = vmatpush1.bf16.msra.mxu0 %v5540
    %5559 = vmatprep.subr.bf16.mxu0 0
    %5560 = vmatpush1.bf16.msra.mxu0 %v5541
    %5561 = vmatprep.subr.bf16.mxu0 0
    %5562 = vmatpush1.bf16.msra.mxu0 %v5542
    %5563 = vmatprep.subr.bf16.mxu0 0
    %5564 = vmatpush1.bf16.msra.mxu0 %v5543
    %5565 = vmatprep.subr.bf16.mxu0 0
    %5566 = vmatpush1.bf16.msra.mxu0 %v5544
    %5567 = vmatprep.subr.bf16.mxu0 0
    %5568 = vmatpush1.bf16.msra.mxu0 %v5545
    %5569 = vmatprep.subr.bf16.mxu0 0
    %5570 = vmatpush1.bf16.msra.mxu0 %v5546
    %5571 = vmatprep.subr.bf16.mxu0 0
    %5572 = vmatpush1.bf16.msra.mxu0 0
    %5573 = vmatprep.subr.bf16.mxu0 0
    %5574 = vmatpush1.bf16.msra.mxu0 0
    %5575 = vmatprep.subr.bf16.mxu0 0
    %5576 = vmatpush1.bf16.msra.mxu0 0
    %5577 = vmatprep.subr.bf16.mxu0 0
    %5578 = vmatpush1.bf16.msra.mxu0 0
    %5579 = vmatprep.subr.bf16.mxu0 0
    %5580 = vmatpush1.bf16.msra.mxu0 0
    %5581 = vmatprep.subr.bf16.mxu0 0
    %5582 = vmatpush1.bf16.msra.mxu0 0
    %5583 = vmatprep.subr.bf16.mxu0 0
    %5584 = vmatpush1.bf16.msra.mxu0 0
    %5585 = vmatprep.subr.bf16.mxu0 0
    %5586 = vmatpush1.bf16.msra.mxu0 0
    %5587 = vmatprep.mubr.bf16.mxu0 0
    %5588 = vmatmul.mubr.bf16.gmra.mrb[0].mxu0 %v5476
    %v5589 = vpop.f32.mrb[0].mxu0
    %v5590 = vadd.f32 %v5505, %v5589
    %v5591 = vpop.f32.mrb[0].mxu0
    %v5592 = vpop.f32.mrb[0].mxu0
    %v5593 = vadd.f32 %v5505, %v5592
    %v5594 = vpop.f32.mrb[0].mxu0
    %5595 = vmatprep.mubr.bf16.mxu0 0
    %5596 = vmatmul.mubr.bf16.gmra.mrb[0].mxu0 %v5477
    %v5597 = vpop.f32.mrb[0].mxu0
    %v5598 = vadd.f32 %v5505, %v5597
    %v5599 = vpop.f32.mrb[0].mxu0
    %v5600 = vpop.f32.mrb[0].mxu0
    %v5601 = vadd.f32 %v5505, %v5600
    %v5602 = vpop.f32.mrb[0].mxu0
    %5603 = vmatprep.mubr.bf16.mxu0 0
    %5604 = vmatmul.mubr.bf16.gmra.mrb[0].mxu0 %v5478
    %v5605 = vpop.f32.mrb[0].mxu0
    %v5606 = vadd.f32 %v5505, %v5605
    %v5607 = vpop.f32.mrb[0].mxu0
    %v5608 = vpop.f32.mrb[0].mxu0
    %v5609 = vadd.f32 %v5505, %v5608
    %v5610 = vpop.f32.mrb[0].mxu0
    %5611 = vmatprep.mubr.bf16.mxu0 0
    %5612 = vmatmul.mubr.bf16.gmra.mrb[0].mxu0 %v5479
    %v5613 = vpop.f32.mrb[0].mxu0
    %v5614 = vadd.f32 %v5505, %v5613
    %v5615 = vpop.f32.mrb[0].mxu0
    %v5616 = vpop.f32.mrb[0].mxu0
    %v5617 = vadd.f32 %v5505, %v5616
    %v5618 = vpop.f32.mrb[0].mxu0
    %5619 = vmatprep.mubr.bf16.mxu0 0
    %5620 = vmatmul.mubr.bf16.gmra.mrb[0].mxu0 %v5480
    %v5621 = vpop.f32.mrb[0].mxu0
    %v5622 = vadd.f32 %v5505, %v5621
    %v5623 = vpop.f32.mrb[0].mxu0
    %v5624 = vpop.f32.mrb[0].mxu0
    %v5625 = vadd.f32 %v5505, %v5624
    %v5626 = vpop.f32.mrb[0].mxu0
    %5627 = vmatprep.mubr.bf16.mxu0 0
    %5628 = vmatmul.mubr.bf16.gmra.mrb[0].mxu0 %v5481
    %v5629 = vpop.f32.mrb[0].mxu0
    %v5630 = vadd.f32 %v5505, %v5629
    %v5631 = vpop.f32.mrb[0].mxu0
    %v5632 = vpop.f32.mrb[0].mxu0
    %v5633 = vadd.f32 %v5505, %v5632
    %v5634 = vpop.f32.mrb[0].mxu0
    %5635 = vmatprep.mubr.bf16.mxu0 0
    %5636 = vmatmul.mubr.bf16.gmra.mrb[0].mxu0 %v5482
    %v5637 = vpop.f32.mrb[0].mxu0
    %v5638 = vadd.f32 %v5505, %v5637
    %v5639 = vpop.f32.mrb[0].mxu0
    %v5640 = vpop.f32.mrb[0].mxu0
    %v5641 = vadd.f32 %v5505, %v5640
    %v5642 = vpop.f32.mrb[0].mxu0
    %5643 = vmatprep.mubr.bf16.mxu0 0
    %5644 = vmatmul.mubr.bf16.gmra.mrb[0].mxu0 %v5483
    %v5645 = vpop.f32.mrb[0].mxu0
    %v5646 = vadd.f32 %v5505, %v5645
    %v5647 = vpop.f32.mrb[0].mxu0
    %v5648 = vpop.f32.mrb[0].mxu0
    %v5649 = vadd.f32 %v5505, %v5648
    %v5650 = vpop.f32.mrb[0].mxu0
    %5651 = vdwg.mxu0
    %v5652 = vxor.u32 %v5590, 2147483648
    %v5653 = vxor.u32 %v5593, 2147483648
    %v5654 = vxor.u32 %v5598, 2147483648
    %v5655 = vxor.u32 %v5601, 2147483648
    %v5656 = vxor.u32 %v5606, 2147483648
    %v5657 = vxor.u32 %v5609, 2147483648
    %v5658 = vxor.u32 %v5614, 2147483648
    %v5659 = vxor.u32 %v5617, 2147483648
    %v5660 = vxor.u32 %v5622, 2147483648
    %v5661 = vxor.u32 %v5625, 2147483648
    %v5662 = vxor.u32 %v5630, 2147483648
    %v5663 = vxor.u32 %v5633, 2147483648
    %v5664 = vxor.u32 %v5638, 2147483648
    %v5665 = vxor.u32 %v5641, 2147483648
    %v5666 = vxor.u32 %v5646, 2147483648
    %v5667 = vxor.u32 %v5649, 2147483648
    %v5668 = vmul.f32 %v5652, 1.442695
    %v5669 = vpow.pop %v5668
    %v5670 = vmul.f32 %v5653, 1.442695
    %v5671 = vpow.pop %v5670
    %v5672 = vmul.f32 %v5654, 1.442695
    %v5673 = vpow.pop %v5672
    %v5674 = vmul.f32 %v5655, 1.442695
    %v5675 = vpow.pop %v5674
    %v5676 = vmul.f32 %v5656, 1.442695
    %v5677 = vpow.pop %v5676
    %v5678 = vmul.f32 %v5657, 1.442695
    %v5679 = vpow.pop %v5678
    %v5680 = vmul.f32 %v5658, 1.442695
    %v5681 = vpow.pop %v5680
    %v5682 = vmul.f32 %v5659, 1.442695
    %v5683 = vpow.pop %v5682
    %v5684 = vmul.f32 %v5660, 1.442695
    %v5685 = vpow.pop %v5684
    %v5686 = vmul.f32 %v5661, 1.442695
    %v5687 = vpow.pop %v5686
    %v5688 = vmul.f32 %v5662, 1.442695
    %v5689 = vpow.pop %v5688
    %v5690 = vmul.f32 %v5663, 1.442695
    %v5691 = vpow.pop %v5690
    %v5692 = vmul.f32 %v5664, 1.442695
    %v5693 = vpow.pop %v5692
    %v5694 = vmul.f32 %v5665, 1.442695
    %v5695 = vpow.pop %v5694
    %v5696 = vmul.f32 %v5666, 1.442695
    %v5697 = vpow.pop %v5696
    %v5698 = vmul.f32 %v5667, 1.442695
    %v5699 = vpow.pop %v5698
    %v5700 = vadd.f32 %v5669, 1.0
    %v5701 = vadd.f32 %v5671, 1.0
    %v5702 = vadd.f32 %v5673, 1.0
    %v5703 = vadd.f32 %v5675, 1.0
    %v5704 = vadd.f32 %v5677, 1.0
    %v5705 = vadd.f32 %v5679, 1.0
    %v5706 = vadd.f32 %v5681, 1.0
    %v5707 = vadd.f32 %v5683, 1.0
    %v5708 = vadd.f32 %v5685, 1.0
    %v5709 = vadd.f32 %v5687, 1.0
    %v5710 = vadd.f32 %v5689, 1.0
    %v5711 = vadd.f32 %v5691, 1.0
    %v5712 = vadd.f32 %v5693, 1.0
    %v5713 = vadd.f32 %v5695, 1.0
    %v5714 = vadd.f32 %v5697, 1.0
    %v5715 = vadd.f32 %v5699, 1.0
    %v5716 = vrcp.pop %v5700
    %v5717 = vmul.f32 1.0, %v5716
    %v5718 = vrcp.pop %v5701
    %v5719 = vmul.f32 1.0, %v5718
    %v5720 = vrcp.pop %v5702
    %v5721 = vmul.f32 1.0, %v5720
    %v5722 = vrcp.pop %v5703
    %v5723 = vmul.f32 1.0, %v5722
    %v5724 = vrcp.pop %v5704
    %v5725 = vmul.f32 1.0, %v5724
    %v5726 = vrcp.pop %v5705
    %v5727 = vmul.f32 1.0, %v5726
    %v5728 = vrcp.pop %v5706
    %v5729 = vmul.f32 1.0, %v5728
    %v5730 = vrcp.pop %v5707
    %v5731 = vmul.f32 1.0, %v5730
    %v5732 = vrcp.pop %v5708
    %v5733 = vmul.f32 1.0, %v5732
    %v5734 = vrcp.pop %v5709
    %v5735 = vmul.f32 1.0, %v5734
    %v5736 = vrcp.pop %v5710
    %v5737 = vmul.f32 1.0, %v5736
    %v5738 = vrcp.pop %v5711
    %v5739 = vmul.f32 1.0, %v5738
    %v5740 = vrcp.pop %v5712
    %v5741 = vmul.f32 1.0, %v5740
    %v5742 = vrcp.pop %v5713
    %v5743 = vmul.f32 1.0, %v5742
    %v5744 = vrcp.pop %v5714
    %v5745 = vmul.f32 1.0, %v5744
    %v5746 = vrcp.pop %v5715
    %v5747 = vmul.f32 1.0, %v5746
    %v5748 = vmul.f32 %v5590, %v5717
    %v5749 = vmul.f32 %v5593, %v5719
    %v5750 = vmul.f32 %v5598, %v5721
    %v5751 = vmul.f32 %v5601, %v5723
    %v5752 = vmul.f32 %v5606, %v5725
    %v5753 = vmul.f32 %v5609, %v5727
    %v5754 = vmul.f32 %v5614, %v5729
    %v5755 = vmul.f32 %v5617, %v5731
    %v5756 = vmul.f32 %v5622, %v5733
    %v5757 = vmul.f32 %v5625, %v5735
    %v5758 = vmul.f32 %v5630, %v5737
    %v5759 = vmul.f32 %v5633, %v5739
    %v5760 = vmul.f32 %v5638, %v5741
    %v5761 = vmul.f32 %v5641, %v5743
    %v5762 = vmul.f32 %v5646, %v5745
    %v5763 = vmul.f32 %v5649, %v5747
    %v5764 = vpack.c.bf16 %v5749, %v5748
    %v5765 = vpack.c.bf16 %v5751, %v5750
    %v5766 = vpack.c.bf16 %v5753, %v5752
    %v5767 = vpack.c.bf16 %v5755, %v5754
    %v5768 = vpack.c.bf16 %v5757, %v5756
    %v5769 = vpack.c.bf16 %v5759, %v5758
    %v5770 = vpack.c.bf16 %v5761, %v5760
    %v5771 = vpack.c.bf16 %v5763, %v5762
    %v5772 = vld [vmem:[%s17] sm:$0xf]
    %v5773 = vld [vmem:[%s17 + $0x4] sm:$0xf]
    %v5774 = vld [vmem:[%s17 + $0x8] sm:$0xf]
    %v5775 = vld [vmem:[%s17 + $0xc] sm:$0xf]
    %v5776 = vld [vmem:[%s17 + $0x10] sm:$0xf]
    %v5777 = vld [vmem:[%s17 + $0x14] sm:$0xf]
    %v5778 = vld [vmem:[%s17 + $0x18] sm:$0xf]
    %v5779 = vld [vmem:[%s17 + $0x1c] sm:$0xf]
    %v5780 = vld [vmem:[%s17 + $0x20] sm:$0xf]
    %v5781 = vld [vmem:[%s17 + $0x24] sm:$0xf]
    %v5782 = vld [vmem:[%s17 + $0x28] sm:$0xf]
    %v5783 = vld [vmem:[%s17 + $0x2c] sm:$0xf]
    %v5784 = vld [vmem:[%s17 + $0x30] sm:$0xf]
    %v5785 = vld [vmem:[%s17 + $0x34] sm:$0xf]
    %v5786 = vld [vmem:[%s17 + $0x38] sm:$0xf]
    %v5787 = vld [vmem:[%s17 + $0x3c] sm:$0xf]
    %v5788 = vld [vmem:[%s18] sm:$0x1]
    %v5790 = vlaneseq
    %v5791 = vshrl.u32 %v5790, 7
    %v5792 = vsub.s32 0, %v5791
    %v5793 = vrot.slane %v5788, %v5792
    %v5811 = vunpack.c.l.b16 %v5772
    %v5812 = vunpack.c.l.b16 %v5773
    %v5813 = vunpack.c.l.b16 %v5774
    %v5814 = vunpack.c.l.b16 %v5775
    %v5815 = vunpack.c.l.b16 %v5776
    %v5816 = vunpack.c.l.b16 %v5777
    %v5817 = vunpack.c.l.b16 %v5778
    %v5818 = vunpack.c.l.b16 %v5779
    %v5819 = vunpack.c.l.b16 %v5780
    %v5820 = vunpack.c.l.b16 %v5781
    %v5821 = vunpack.c.l.b16 %v5782
    %v5822 = vunpack.c.l.b16 %v5783
    %v5823 = vunpack.c.l.b16 %v5784
    %v5824 = vunpack.c.l.b16 %v5785
    %v5825 = vunpack.c.l.b16 %v5786
    %v5826 = vunpack.c.l.b16 %v5787
    %v5827 = vpack.c.b16 %v5812, %v5811
    %v5828 = vpack.c.b16 %v5814, %v5813
    %v5829 = vpack.c.b16 %v5816, %v5815
    %v5830 = vpack.c.b16 %v5818, %v5817
    %v5831 = vpack.c.b16 %v5820, %v5819
    %v5832 = vpack.c.b16 %v5822, %v5821
    %v5833 = vpack.c.b16 %v5824, %v5823
    %v5834 = vpack.c.b16 %v5826, %v5825
    %5843 = vmatprep.subr.bf16.mxu0 0
    %5844 = vmatpush1.bf16.msra.mxu0 %v5827
    %5845 = vmatprep.subr.bf16.mxu0 0
    %5846 = vmatpush1.bf16.msra.mxu0 %v5828
    %5847 = vmatprep.subr.bf16.mxu0 0
    %5848 = vmatpush1.bf16.msra.mxu0 %v5829
    %5849 = vmatprep.subr.bf16.mxu0 0
    %5850 = vmatpush1.bf16.msra.mxu0 %v5830
    %5851 = vmatprep.subr.bf16.mxu0 0
    %5852 = vmatpush1.bf16.msra.mxu0 %v5831
    %5853 = vmatprep.subr.bf16.mxu0 0
    %5854 = vmatpush1.bf16.msra.mxu0 %v5832
    %5855 = vmatprep.subr.bf16.mxu0 0
    %5856 = vmatpush1.bf16.msra.mxu0 %v5833
    %5857 = vmatprep.subr.bf16.mxu0 0
    %5858 = vmatpush1.bf16.msra.mxu0 %v5834
    %5859 = vmatprep.subr.bf16.mxu0 0
    %5860 = vmatpush1.bf16.msra.mxu0 0
    %5861 = vmatprep.subr.bf16.mxu0 0
    %5862 = vmatpush1.bf16.msra.mxu0 0
    %5863 = vmatprep.subr.bf16.mxu0 0
    %5864 = vmatpush1.bf16.msra.mxu0 0
    %5865 = vmatprep.subr.bf16.mxu0 0
    %5866 = vmatpush1.bf16.msra.mxu0 0
    %5867 = vmatprep.subr.bf16.mxu0 0
    %5868 = vmatpush1.bf16.msra.mxu0 0
    %5869 = vmatprep.subr.bf16.mxu0 0
    %5870 = vmatpush1.bf16.msra.mxu0 0
    %5871 = vmatprep.subr.bf16.mxu0 0
    %5872 = vmatpush1.bf16.msra.mxu0 0
    %5873 = vmatprep.subr.bf16.mxu0 0
    %5874 = vmatpush1.bf16.msra.mxu0 0
    %5875 = vmatprep.mubr.bf16.mxu0 0
    %5876 = vmatmul.mubr.bf16.gmra.mrb[0].mxu0 %v5764
    %v5877 = vpop.f32.mrb[0].mxu0
    %v5878 = vadd.f32 %v5793, %v5877
    %v5879 = vpop.f32.mrb[0].mxu0
    %v5880 = vpop.f32.mrb[0].mxu0
    %v5881 = vadd.f32 %v5793, %v5880
    %v5882 = vpop.f32.mrb[0].mxu0
    %5883 = vmatprep.mubr.bf16.mxu0 0
    %5884 = vmatmul.mubr.bf16.gmra.mrb[0].mxu0 %v5765
    %v5885 = vpop.f32.mrb[0].mxu0
    %v5886 = vadd.f32 %v5793, %v5885
    %v5887 = vpop.f32.mrb[0].mxu0
    %v5888 = vpop.f32.mrb[0].mxu0
    %v5889 = vadd.f32 %v5793, %v5888
    %v5890 = vpop.f32.mrb[0].mxu0
    %5891 = vmatprep.mubr.bf16.mxu0 0
    %5892 = vmatmul.mubr.bf16.gmra.mrb[0].mxu0 %v5766
    %v5893 = vpop.f32.mrb[0].mxu0
    %v5894 = vadd.f32 %v5793, %v5893
    %v5895 = vpop.f32.mrb[0].mxu0
    %v5896 = vpop.f32.mrb[0].mxu0
    %v5897 = vadd.f32 %v5793, %v5896
    %v5898 = vpop.f32.mrb[0].mxu0
    %5899 = vmatprep.mubr.bf16.mxu0 0
    %5900 = vmatmul.mubr.bf16.gmra.mrb[0].mxu0 %v5767
    %v5901 = vpop.f32.mrb[0].mxu0
    %v5902 = vadd.f32 %v5793, %v5901
    %v5903 = vpop.f32.mrb[0].mxu0
    %v5904 = vpop.f32.mrb[0].mxu0
    %v5905 = vadd.f32 %v5793, %v5904
    %v5906 = vpop.f32.mrb[0].mxu0
    %5907 = vmatprep.mubr.bf16.mxu0 0
    %5908 = vmatmul.mubr.bf16.gmra.mrb[0].mxu0 %v5768
    %v5909 = vpop.f32.mrb[0].mxu0
    %v5910 = vadd.f32 %v5793, %v5909
    %v5911 = vpop.f32.mrb[0].mxu0
    %v5912 = vpop.f32.mrb[0].mxu0
    %v5913 = vadd.f32 %v5793, %v5912
    %v5914 = vpop.f32.mrb[0].mxu0
    %5915 = vmatprep.mubr.bf16.mxu0 0
    %5916 = vmatmul.mubr.bf16.gmra.mrb[0].mxu0 %v5769
    %v5917 = vpop.f32.mrb[0].mxu0
    %v5918 = vadd.f32 %v5793, %v5917
    %v5919 = vpop.f32.mrb[0].mxu0
    %v5920 = vpop.f32.mrb[0].mxu0
    %v5921 = vadd.f32 %v5793, %v5920
    %v5922 = vpop.f32.mrb[0].mxu0
    %5923 = vmatprep.mubr.bf16.mxu0 0
    %5924 = vmatmul.mubr.bf16.gmra.mrb[0].mxu0 %v5770
    %v5925 = vpop.f32.mrb[0].mxu0
    %v5926 = vadd.f32 %v5793, %v5925
    %v5927 = vpop.f32.mrb[0].mxu0
    %v5928 = vpop.f32.mrb[0].mxu0
    %v5929 = vadd.f32 %v5793, %v5928
    %v5930 = vpop.f32.mrb[0].mxu0
    %5931 = vmatprep.mubr.bf16.mxu0 0
    %5932 = vmatmul.mubr.bf16.gmra.mrb[0].mxu0 %v5771
    %v5933 = vpop.f32.mrb[0].mxu0
    %v5934 = vadd.f32 %v5793, %v5933
    %v5935 = vpop.f32.mrb[0].mxu0
    %v5936 = vpop.f32.mrb[0].mxu0
    %v5937 = vadd.f32 %v5793, %v5936
    %v5938 = vpop.f32.mrb[0].mxu0
    %5939 = vdwg.mxu0
    %v5940 = vld [vmem:[%s1] sm:$0xff]
    %v5941 = vld [vmem:[%s1 + $0x8] sm:$0xff]
    %v5942 = vld [vmem:[%s1 + $0x10] sm:$0xff]
    %v5943 = vld [vmem:[%s1 + $0x18] sm:$0xff]
    %v5944 = vld [vmem:[%s1 + $0x20] sm:$0xff]
    %v5945 = vld [vmem:[%s1 + $0x28] sm:$0xff]
    %v5946 = vld [vmem:[%s1 + $0x30] sm:$0xff]
    %v5947 = vld [vmem:[%s1 + $0x38] sm:$0xff]
    %v5948 = vld [vmem:[%s1 + $0x40] sm:$0xff]
    %v5949 = vld [vmem:[%s1 + $0x48] sm:$0xff]
    %v5950 = vld [vmem:[%s1 + $0x50] sm:$0xff]
    %v5951 = vld [vmem:[%s1 + $0x58] sm:$0xff]
    %v5952 = vld [vmem:[%s1 + $0x60] sm:$0xff]
    %v5953 = vld [vmem:[%s1 + $0x68] sm:$0xff]
    %v5954 = vld [vmem:[%s1 + $0x70] sm:$0xff]
    %v5955 = vld [vmem:[%s1 + $0x78] sm:$0xff]
    %vm5956 = vcmp.eq.f32.partialorder %v5940, 0.0
    %vm5957 = vcmp.eq.f32.partialorder %v5941, 0.0
    %vm5958 = vcmp.eq.f32.partialorder %v5942, 0.0
    %vm5959 = vcmp.eq.f32.partialorder %v5943, 0.0
    %vm5960 = vcmp.eq.f32.partialorder %v5944, 0.0
    %vm5961 = vcmp.eq.f32.partialorder %v5945, 0.0
    %vm5962 = vcmp.eq.f32.partialorder %v5946, 0.0
    %vm5963 = vcmp.eq.f32.partialorder %v5947, 0.0
    %vm5964 = vcmp.eq.f32.partialorder %v5948, 0.0
    %vm5965 = vcmp.eq.f32.partialorder %v5949, 0.0
    %vm5966 = vcmp.eq.f32.partialorder %v5950, 0.0
    %vm5967 = vcmp.eq.f32.partialorder %v5951, 0.0
    %vm5968 = vcmp.eq.f32.partialorder %v5952, 0.0
    %vm5969 = vcmp.eq.f32.partialorder %v5953, 0.0
    %vm5970 = vcmp.eq.f32.partialorder %v5954, 0.0
    %vm5971 = vcmp.eq.f32.partialorder %v5955, 0.0
    %v5972 = vsel %vm5956, -1e+09, %v5878
    %v5973 = vsel %vm5957, -1e+09, %v5881
    %v5974 = vsel %vm5958, -1e+09, %v5886
    %v5975 = vsel %vm5959, -1e+09, %v5889
    %v5976 = vsel %vm5960, -1e+09, %v5894
    %v5977 = vsel %vm5961, -1e+09, %v5897
    %v5978 = vsel %vm5962, -1e+09, %v5902
    %v5979 = vsel %vm5963, -1e+09, %v5905
    %v5980 = vsel %vm5964, -1e+09, %v5910
    %v5981 = vsel %vm5965, -1e+09, %v5913
    %v5982 = vsel %vm5966, -1e+09, %v5918
    %v5983 = vsel %vm5967, -1e+09, %v5921
    %v5984 = vsel %vm5968, -1e+09, %v5926
    %v5985 = vsel %vm5969, -1e+09, %v5929
    %v5986 = vsel %vm5970, -1e+09, %v5934
    %v5987 = vsel %vm5971, -1e+09, %v5937
    %vm5988 = vcmask 31744
    %v5989 = vsel %vm5988, %v5972, -inf
    %5990 = vmax.xlane.f32.xlu0 %v5989
    %v5991 = vpop.xlane.xlu0 %5990
    %v5992 = vsel %vm5988, %v5973, -inf
    %5993 = vmax.xlane.f32.xlu0 %v5992
    %v5994 = vpop.xlane.xlu0 %5993
    %v5995 = vsel %vm5988, %v5974, -inf
    %5996 = vmax.xlane.f32.xlu0 %v5995
    %v5997 = vpop.xlane.xlu0 %5996
    %v5998 = vsel %vm5988, %v5975, -inf
    %5999 = vmax.xlane.f32.xlu0 %v5998
    %v6000 = vpop.xlane.xlu0 %5999
    %v6001 = vsel %vm5988, %v5976, -inf
    %6002 = vmax.xlane.f32.xlu0 %v6001
    %v6003 = vpop.xlane.xlu0 %6002
    %v6004 = vsel %vm5988, %v5977, -inf
    %6005 = vmax.xlane.f32.xlu0 %v6004
    %v6006 = vpop.xlane.xlu0 %6005
    %v6007 = vsel %vm5988, %v5978, -inf
    %6008 = vmax.xlane.f32.xlu0 %v6007
    %v6009 = vpop.xlane.xlu0 %6008
    %v6010 = vsel %vm5988, %v5979, -inf
    %6011 = vmax.xlane.f32.xlu0 %v6010
    %v6012 = vpop.xlane.xlu0 %6011
    %v6013 = vsel %vm5988, %v5980, -inf
    %6014 = vmax.xlane.f32.xlu0 %v6013
    %v6015 = vpop.xlane.xlu0 %6014
    %v6016 = vsel %vm5988, %v5981, -inf
    %6017 = vmax.xlane.f32.xlu0 %v6016
    %v6018 = vpop.xlane.xlu0 %6017
    %v6019 = vsel %vm5988, %v5982, -inf
    %6020 = vmax.xlane.f32.xlu0 %v6019
    %v6021 = vpop.xlane.xlu0 %6020
    %v6022 = vsel %vm5988, %v5983, -inf
    %6023 = vmax.xlane.f32.xlu0 %v6022
    %v6024 = vpop.xlane.xlu0 %6023
    %v6025 = vsel %vm5988, %v5984, -inf
    %6026 = vmax.xlane.f32.xlu0 %v6025
    %v6027 = vpop.xlane.xlu0 %6026
    %v6028 = vsel %vm5988, %v5985, -inf
    %6029 = vmax.xlane.f32.xlu0 %v6028
    %v6030 = vpop.xlane.xlu0 %6029
    %v6031 = vsel %vm5988, %v5986, -inf
    %6032 = vmax.xlane.f32.xlu0 %v6031
    %v6033 = vpop.xlane.xlu0 %6032
    %v6034 = vsel %vm5988, %v5987, -inf
    %6035 = vmax.xlane.f32.xlu0 %v6034
    %v6036 = vpop.xlane.xlu0 %6035
    %v6037 = vsub.f32 %v5972, %v5991
    %v6038 = vsub.f32 %v5973, %v5994
    %v6039 = vsub.f32 %v5974, %v5997
    %v6040 = vsub.f32 %v5975, %v6000
    %v6041 = vsub.f32 %v5976, %v6003
    %v6042 = vsub.f32 %v5977, %v6006
    %v6043 = vsub.f32 %v5978, %v6009
    %v6044 = vsub.f32 %v5979, %v6012
    %v6045 = vsub.f32 %v5980, %v6015
    %v6046 = vsub.f32 %v5981, %v6018
    %v6047 = vsub.f32 %v5982, %v6021
    %v6048 = vsub.f32 %v5983, %v6024
    %v6049 = vsub.f32 %v5984, %v6027
    %v6050 = vsub.f32 %v5985, %v6030
    %v6051 = vsub.f32 %v5986, %v6033
    %v6052 = vsub.f32 %v5987, %v6036
    %v6053 = vmul.f32 %v6037, 1.442695
    %v6054 = vpow.pop %v6053
    %v6055 = vmul.f32 %v6038, 1.442695
    %v6056 = vpow.pop %v6055
    %v6057 = vmul.f32 %v6039, 1.442695
    %v6058 = vpow.pop %v6057
    %v6059 = vmul.f32 %v6040, 1.442695
    %v6060 = vpow.pop %v6059
    %v6061 = vmul.f32 %v6041, 1.442695
    %v6062 = vpow.pop %v6061
    %v6063 = vmul.f32 %v6042, 1.442695
    %v6064 = vpow.pop %v6063
    %v6065 = vmul.f32 %v6043, 1.442695
    %v6066 = vpow.pop %v6065
    %v6067 = vmul.f32 %v6044, 1.442695
    %v6068 = vpow.pop %v6067
    %v6069 = vmul.f32 %v6045, 1.442695
    %v6070 = vpow.pop %v6069
    %v6071 = vmul.f32 %v6046, 1.442695
    %v6072 = vpow.pop %v6071
    %v6073 = vmul.f32 %v6047, 1.442695
    %v6074 = vpow.pop %v6073
    %v6075 = vmul.f32 %v6048, 1.442695
    %v6076 = vpow.pop %v6075
    %v6077 = vmul.f32 %v6049, 1.442695
    %v6078 = vpow.pop %v6077
    %v6079 = vmul.f32 %v6050, 1.442695
    %v6080 = vpow.pop %v6079
    %v6081 = vmul.f32 %v6051, 1.442695
    %v6082 = vpow.pop %v6081
    %v6083 = vmul.f32 %v6052, 1.442695
    %v6084 = vpow.pop %v6083
    %v6085 = vsel %vm5988, %v6054, 0.0
    %6086 = vadd.xlane.f32.xlu0 %v6085
    %v6087 = vpop.xlane.xlu0 %6086
    %v6088 = vsel %vm5988, %v6056, 0.0
    %6089 = vadd.xlane.f32.xlu0 %v6088
    %v6090 = vpop.xlane.xlu0 %6089
    %v6091 = vsel %vm5988, %v6058, 0.0
    %6092 = vadd.xlane.f32.xlu0 %v6091
    %v6093 = vpop.xlane.xlu0 %6092
    %v6094 = vsel %vm5988, %v6060, 0.0
    %6095 = vadd.xlane.f32.xlu0 %v6094
    %v6096 = vpop.xlane.xlu0 %6095
    %v6097 = vsel %vm5988, %v6062, 0.0
    %6098 = vadd.xlane.f32.xlu0 %v6097
    %v6099 = vpop.xlane.xlu0 %6098
    %v6100 = vsel %vm5988, %v6064, 0.0
    %6101 = vadd.xlane.f32.xlu0 %v6100
    %v6102 = vpop.xlane.xlu0 %6101
    %v6103 = vsel %vm5988, %v6066, 0.0
    %6104 = vadd.xlane.f32.xlu0 %v6103
    %v6105 = vpop.xlane.xlu0 %6104
    %v6106 = vsel %vm5988, %v6068, 0.0
    %6107 = vadd.xlane.f32.xlu0 %v6106
    %v6108 = vpop.xlane.xlu0 %6107
    %v6109 = vsel %vm5988, %v6070, 0.0
    %6110 = vadd.xlane.f32.xlu0 %v6109
    %v6111 = vpop.xlane.xlu0 %6110
    %v6112 = vsel %vm5988, %v6072, 0.0
    %6113 = vadd.xlane.f32.xlu0 %v6112
    %v6114 = vpop.xlane.xlu0 %6113
    %v6115 = vsel %vm5988, %v6074, 0.0
    %6116 = vadd.xlane.f32.xlu0 %v6115
    %v6117 = vpop.xlane.xlu0 %6116
    %v6118 = vsel %vm5988, %v6076, 0.0
    %6119 = vadd.xlane.f32.xlu0 %v6118
    %v6120 = vpop.xlane.xlu0 %6119
    %v6121 = vsel %vm5988, %v6078, 0.0
    %6122 = vadd.xlane.f32.xlu0 %v6121
    %v6123 = vpop.xlane.xlu0 %6122
    %v6124 = vsel %vm5988, %v6080, 0.0
    %6125 = vadd.xlane.f32.xlu0 %v6124
    %v6126 = vpop.xlane.xlu0 %6125
    %v6127 = vsel %vm5988, %v6082, 0.0
    %6128 = vadd.xlane.f32.xlu0 %v6127
    %v6129 = vpop.xlane.xlu0 %6128
    %v6130 = vsel %vm5988, %v6084, 0.0
    %6131 = vadd.xlane.f32.xlu0 %v6130
    %v6132 = vpop.xlane.xlu0 %6131
    %v6133 = vrcp.pop %v6087
    %v6134 = vmul.f32 %v6054, %v6133
    %v6135 = vrcp.pop %v6090
    %v6136 = vmul.f32 %v6056, %v6135
    %v6137 = vrcp.pop %v6093
    %v6138 = vmul.f32 %v6058, %v6137
    %v6139 = vrcp.pop %v6096
    %v6140 = vmul.f32 %v6060, %v6139
    %v6141 = vrcp.pop %v6099
    %v6142 = vmul.f32 %v6062, %v6141
    %v6143 = vrcp.pop %v6102
    %v6144 = vmul.f32 %v6064, %v6143
    %v6145 = vrcp.pop %v6105
    %v6146 = vmul.f32 %v6066, %v6145
    %v6147 = vrcp.pop %v6108
    %v6148 = vmul.f32 %v6068, %v6147
    %v6149 = vrcp.pop %v6111
    %v6150 = vmul.f32 %v6070, %v6149
    %v6151 = vrcp.pop %v6114
    %v6152 = vmul.f32 %v6072, %v6151
    %v6153 = vrcp.pop %v6117
    %v6154 = vmul.f32 %v6074, %v6153
    %v6155 = vrcp.pop %v6120
    %v6156 = vmul.f32 %v6076, %v6155
    %v6157 = vrcp.pop %v6123
    %v6158 = vmul.f32 %v6078, %v6157
    %v6159 = vrcp.pop %v6126
    %v6160 = vmul.f32 %v6080, %v6159
    %v6161 = vrcp.pop %v6129
    %v6162 = vmul.f32 %v6082, %v6161
    %v6163 = vrcp.pop %v6132
    %v6164 = vmul.f32 %v6084, %v6163
    %6165 = vst.msk [vmem:[%s19] sm:$0xff] %vm5988, %v6134
    %6166 = vst.msk [vmem:[%s19 + $0x8] sm:$0xff] %vm5988, %v6136
    %6167 = vst.msk [vmem:[%s19 + $0x10] sm:$0xff] %vm5988, %v6138
    %6168 = vst.msk [vmem:[%s19 + $0x18] sm:$0xff] %vm5988, %v6140
    %6169 = vst.msk [vmem:[%s19 + $0x20] sm:$0xff] %vm5988, %v6142
    %6170 = vst.msk [vmem:[%s19 + $0x28] sm:$0xff] %vm5988, %v6144
    %6171 = vst.msk [vmem:[%s19 + $0x30] sm:$0xff] %vm5988, %v6146
    %6172 = vst.msk [vmem:[%s19 + $0x38] sm:$0xff] %vm5988, %v6148
    %6173 = vst.msk [vmem:[%s19 + $0x40] sm:$0xff] %vm5988, %v6150
    %6174 = vst.msk [vmem:[%s19 + $0x48] sm:$0xff] %vm5988, %v6152
    %6175 = vst.msk [vmem:[%s19 + $0x50] sm:$0xff] %vm5988, %v6154
    %6176 = vst.msk [vmem:[%s19 + $0x58] sm:$0xff] %vm5988, %v6156
    %6177 = vst.msk [vmem:[%s19 + $0x60] sm:$0xff] %vm5988, %v6158
    %6178 = vst.msk [vmem:[%s19 + $0x68] sm:$0xff] %vm5988, %v6160
    %6179 = vst.msk [vmem:[%s19 + $0x70] sm:$0xff] %vm5988, %v6162
    %6180 = vst.msk [vmem:[%s19 + $0x78] sm:$0xff] %vm5988, %v6164
    // Predicated region
    $region114: #{tpu_custom_call.1} parent=1 // pred_check
      _
    $region115: #{tpu_custom_call.1} parent=1 // pred_check_branch
      %6182 = sbr.rel (0) target = $region117
    $region116: #{tpu_custom_call.1} parent=1 // pred_region
      _
    $region117: #{tpu_custom_call.1} parent=1 // pred_fallthru
      _
    // Predicated region
    $region118: #{tpu_custom_call.1} parent=1 // pred_check
      _
    $region119: #{tpu_custom_call.1} parent=1 // pred_check_branch
      %6184 = sbr.rel (0) target = $region121
    $region120: #{tpu_custom_call.1} parent=1 // pred_region
      _
    $region121: #{tpu_custom_call.1} parent=1 // pred_fallthru
      _
    %6185 = vsyncpa [#allocation5], 1
    %6186 = vsyncpa [#allocation7], 1
    %6187 = vsyncpa [#allocation10], 1
    %6188 = vsyncpa [#allocation13], 1
    %6189 = vsyncpa [#allocation16], 1

</llo_original>
